<compile_context>
chip_gen: v7x
topology: tpu7x:2x2x1
jax: 0.10.0
libtpu: 0.0.40
codegen_flags: <defaults>
</compile_context>

<pallas_src>
import numpy as np
import jax
import jax.numpy as jnp
from jax.experimental import pallas as pl
from jax.experimental.pallas import tpu as pltpu

# ---- small, deterministic hyperparameters (stand-ins for `hps`) ----
B = 2                    # batch
T = 8                    # decoder steps = frame_length // r
S = 8                    # encoder sequence length
N_MELS = 16              # hps.n_mels
R = 2                    # reduction factor
INPUT_SIZE = N_MELS * R  # decoder frame input size
HIDDEN = 32              # hidden_size
PRENET = 32              # hps.prenet_size[0]
H2 = HIDDEN // 2         # prenet output size
EMB = 32                 # text_embed_size
D = HIDDEN + EMB         # decoder RNN width
NR = N_MELS * R          # per-step decoder output width
TB = T * B

# Packed slab layout for the narrow outputs (alignments + final GRU states).
OFF_A = 0
OFF_HA = T * S                 # 64
OFF_H1 = OFF_HA + HIDDEN       # 96
OFF_H2 = OFF_H1 + D            # 160
SLAB_W = OFF_H2 + D            # 224


# ------------------------------------------------------------------ main decoder kernel
def _decoder_mel_kernel(
    frames_ref, memory_ref, tlen_ref,
    pw1, pb1, pw2, pb2,
    awih, awhh, abih, abhh,
    qw, qb, vw, wm, bm,
    d1w, d1bih, d1bhh,
    d2w, d2bih, d2bhh,
    fcw, fcb,
    mel_ref, slab_ref,
    gi_scr, mp_scr, x3_scr,
):
    f32 = jnp.float32
    bf16 = jnp.bfloat16

    def dot_bf(x, w_ref):
        # bf16 operands on the MXU, f32 accumulation; elementwise math stays f32.
        return jnp.dot(x.astype(bf16), w_ref[...], preferred_element_type=f32)

    # ---------------- pre-loop batched block (time-invariant work) ----------------
    # Prenet over all T*B rows at once, then attention-GRU input gates (r,z,n from W_ih).
    # TODO(synk): prenet dropout omitted (deterministic eval-mode forward).
    frames = frames_ref[...]                                    # (T*B, INPUT_SIZE)
    p1 = jnp.maximum(dot_bf(frames, pw1) + pb1[...], 0.0)       # (T*B, PRENET)
    p2 = jnp.maximum(dot_bf(p1, pw2) + pb2[...], 0.0)           # (T*B, H2)
    gi_scr[...] = dot_bf(p2, awih) + abih[...]                  # (T*B, 3*HIDDEN)

    # Attention memory projection (sequence-constant), per batch row, into VMEM scratch.
    bm_v = bm[...]
    for b in range(B):
        mp_scr[b] = dot_bf(memory_ref[b], wm) + bm_v            # (S, HIDDEN)

    # ---------------- hoisted loop-invariant values ----------------
    mem = memory_ref[...]                                       # (B, S, EMB)
    mproj = mp_scr[...]                                         # (B, S, HIDDEN)
    col = jax.lax.broadcasted_iota(jnp.int32, (B, S), 1)
    maskadd = jnp.where(col < tlen_ref[...], 0.0, -1e9)         # (B, S)
    v_v = vw[...]
    abhh_v = abhh[...]
    qb_v = qb[...]
    d1bih_v = d1bih[...]
    d1bhh_v = d1bhh[...]
    d2bih_v = d2bih[...]
    d2bhh_v = d2bhh[...]

    def gru_gates(gi, gh, h, hdim):
        # PyTorch nn.GRU gate ordering: r, z, n (biases already added to gi/gh separately).
        r = jax.nn.sigmoid(gi[:, 0:hdim] + gh[:, 0:hdim])
        z = jax.nn.sigmoid(gi[:, hdim:2 * hdim] + gh[:, hdim:2 * hdim])
        n = jnp.tanh(gi[:, 2 * hdim:3 * hdim] + r * gh[:, 2 * hdim:3 * hdim])
        return (1.0 - z) * n + z * h

    # Initial GRU states (None -> zeros), carried as plain vreg-resident values.
    h_attn = jnp.zeros((B, HIDDEN), f32)
    h_d1 = jnp.zeros((B, D), f32)
    h_d2 = jnp.zeros((B, D), f32)

    for t in range(T):  # static unroll; T is tiny, no per-step grid/pipeline overhead
        # ---- Attention RNN GRU cell (input gates precomputed above) ----
        gi_a = gi_scr[t * B:(t + 1) * B, :]                     # (B, 3*HIDDEN)
        gh_a = dot_bf(h_attn, awhh) + abhh_v
        h_attn = gru_gates(gi_a, gh_a, h_attn, HIDDEN)

        # ---- Bahdanau attention over encoder memory (length-masked softmax) ----
        q = dot_bf(h_attn, qw) + qb_v                           # (B, HIDDEN)
        e = jnp.tanh(q[:, None, :] + mproj)                     # (B, S, HIDDEN)
        scores = jnp.sum(e * v_v, axis=-1) + maskadd            # (B, S)
        scores = scores - jnp.max(scores, axis=-1, keepdims=True)
        w = jnp.exp(scores)
        inv = pl.reciprocal(jnp.sum(w, axis=-1, keepdims=True), approx=True)
        a = w * inv                                             # alignments (B, S)
        ctx = jnp.sum(a[:, :, None] * mem, axis=1)              # (B, EMB)
        hcat = jnp.concatenate([h_attn, ctx], axis=-1)          # (B, HIDDEN+EMB)

        # ---- Decoder GRU 1: fused gi/gh matmul (block-diag RHS), biases separate ----
        res1 = dot_bf(jnp.concatenate([hcat, h_d1], axis=-1), d1w)   # (B, 6*D)
        h_d1 = gru_gates(res1[:, :3 * D] + d1bih_v,
                         res1[:, 3 * D:] + d1bhh_v, h_d1, D)
        x2 = hcat + h_d1

        # ---- Decoder GRU 2 ----
        res2 = dot_bf(jnp.concatenate([x2, h_d2], axis=-1), d2w)     # (B, 6*D)
        h_d2 = gru_gates(res2[:, :3 * D] + d2bih_v,
                         res2[:, 3 * D:] + d2bhh_v, h_d2, D)
        x3 = x2 + h_d2

        # Stash x3 for the deferred output FC; write alignments straight into the slab.
        x3_scr[t * B:(t + 1) * B, :] = x3
        slab_ref[:, OFF_A + t * S: OFF_A + (t + 1) * S] = a

    # Deferred output projection: one batched matmul over all T*B rows, single store.
    mel_ref[...] = dot_bf(x3_scr[...], fcw) + fcb[...]          # (T*B, NR)

    # Final GRU states into the packed slab (lane-offset stores, slab fully covered).
    slab_ref[:, OFF_HA:OFF_HA + HIDDEN] = h_attn
    slab_ref[:, OFF_H1:OFF_H1 + D] = h_d1
    slab_ref[:, OFF_H2:OFF_H2 + D] = h_d2


# ------------------------------------------------------------------ wrapper (glue)
def _block_diag(a, b):
    za = jnp.zeros((a.shape[0], b.shape[1]), a.dtype)
    zb = jnp.zeros((b.shape[0], a.shape[1]), b.dtype)
    return jnp.concatenate(
        [jnp.concatenate([a, za], axis=1), jnp.concatenate([zb, b], axis=1)], axis=0)


def decoder_mel_forward(frames, memory, text_length, p):
    """frames: (B, T, INPUT_SIZE); memory: (B, S, EMB); text_length: (B,) int32."""
    bf16 = jnp.bfloat16
    f32 = jnp.float32

    # Time-major flatten so row t*B + b == frames[b, t] (matches the in-kernel slicing).
    frames_flat = jnp.transpose(frames, (1, 0, 2)).reshape(TB, INPUT_SIZE)
    tlen = text_length.reshape(B, 1).astype(jnp.int32)

    # Fused block-diagonal GRU weights: [x | h] @ [[W_ih, 0], [0, W_hh]] = [gi | gh].
    # Biases are NOT folded in here (the n-gate needs gi_n + r*gh_n with separate biases).
    d1w = _block_diag(p["d1wih"], p["d1whh"]).astype(bf16)      # (2D, 6D)
    d2w = _block_diag(p["d2wih"], p["d2whh"]).astype(bf16)

    args = [
        frames_flat, memory, tlen,
        p["pw1"].astype(bf16), p["pb1"], p["pw2"].astype(bf16), p["pb2"],
        p["awih"].astype(bf16), p["awhh"].astype(bf16), p["abih"], p["abhh"],
        p["att_wq"].astype(bf16), p["att_bq"], p["att_v"],
        p["att_wm"].astype(bf16), p["att_bm"],
        d1w, p["d1bih"], p["d1bhh"],
        d2w, p["d2bih"], p["d2bhh"],
        p["fcw"].astype(bf16), p["fcb"],
    ]

    out_shape = (
        jax.ShapeDtypeStruct((TB, NR), f32),       # per-step mel frames (t-major rows)
        jax.ShapeDtypeStruct((B, SLAB_W), f32),    # packed: alignments | h_attn | h_d1 | h_d2
    )
    scratch_shapes = [
        pltpu.VMEM((TB, 3 * HIDDEN), f32),         # precomputed attention-GRU input gates
        pltpu.VMEM((B, S, HIDDEN), f32),           # attention memory projection
        pltpu.VMEM((TB, D), f32),                  # per-step x3 for the deferred output FC
    ]

    # Single kernel invocation: no grid, all operands resident in VMEM (<1 MiB on every
    # TPU generation). Per review: no megacore batch split at B=2, no vmem_limit tuning.
    mel_flat, slab = pl.pallas_call(
        _decoder_mel_kernel,
        out_shape=out_shape,
        scratch_shapes=scratch_shapes,
    )(*args)

    out = mel_flat.reshape(T, B, R, N_MELS).transpose(1, 0, 2, 3).reshape(B, T * R, N_MELS)
    a = slab[:, OFF_A:OFF_A + T * S].reshape(B, T, S)
    s_attn = slab[:, OFF_HA:OFF_HA + HIDDEN]
    s_d1 = slab[:, OFF_H1:OFF_H1 + D]
    s_d2 = slab[:, OFF_H2:OFF_H2 + D]
    # TODO(synk): binaryMask(out, frame_length) path (mask=True) not implemented; default mask=False branch reproduced.
    return out, a, s_attn[None], s_d1[None], s_d2[None]


# ------------------------------------------------------------------ deterministic parameter init
def init_params(key):
    shapes = {
        "pw1": (INPUT_SIZE, PRENET), "pb1": (1, PRENET),
        "pw2": (PRENET, H2), "pb2": (1, H2),
        "awih": (H2, 3 * HIDDEN), "awhh": (HIDDEN, 3 * HIDDEN),
        "abih": (1, 3 * HIDDEN), "abhh": (1, 3 * HIDDEN),
        "att_wq": (HIDDEN, HIDDEN), "att_bq": (1, HIDDEN),
        "att_wm": (EMB, HIDDEN), "att_bm": (1, HIDDEN),
        "att_v": (1, HIDDEN),
        "d1wih": (D, 3 * D), "d1whh": (D, 3 * D), "d1bih": (1, 3 * D), "d1bhh": (1, 3 * D),
        "d2wih": (D, 3 * D), "d2whh": (D, 3 * D), "d2bih": (1, 3 * D), "d2bhh": (1, 3 * D),
        "fcw": (D, NR), "fcb": (1, NR),
    }
    matmul_weight_keys = {"pw1", "pw2", "awih", "awhh", "att_wq", "att_wm",
                          "d1wih", "d1whh", "d2wih", "d2whh", "fcw"}
    keys = jax.random.split(key, len(shapes))
    params = {}
    for (name, shp), k in zip(shapes.items(), keys):
        w = 0.1 * jax.random.normal(k, shp, dtype=jnp.float32)
        if name in matmul_weight_keys:
            # Weights used as MXU operands are stored bf16-representable, so the bf16
            # kernel and the f32 reference see identical weight values.
            w = w.astype(jnp.bfloat16).astype(jnp.float32)
        params[name] = w
    return params


# ------------------------------------------------------------------ pure-JAX reference
def ref_forward(frames, memory, text_length, p):
    def gru(x, h, wih, whh, bih, bhh, hdim):
        gi = x @ wih + bih
        gh = h @ whh + bhh
        r = jax.nn.sigmoid(gi[:, :hdim] + gh[:, :hdim])
        z = jax.nn.sigmoid(gi[:, hdim:2 * hdim] + gh[:, hdim:2 * hdim])
        n = jnp.tanh(gi[:, 2 * hdim:] + r * gh[:, 2 * hdim:])
        return (1.0 - z) * n + z * h

    h = jnp.maximum(frames @ p["pw1"] + p["pb1"], 0.0)
    h = jnp.maximum(h @ p["pw2"] + p["pb2"], 0.0)
    mproj = memory @ p["att_wm"] + p["att_bm"]
    maskadd = jnp.where(jnp.arange(S)[None, :] < text_length[:, None], 0.0, -1e9)
    ha = jnp.zeros((B, HIDDEN)); hd1 = jnp.zeros((B, D)); hd2 = jnp.zeros((B, D))
    outs, als = [], []
    for t in range(T):
        ha = gru(h[:, t], ha, p["awih"], p["awhh"], p["abih"], p["abhh"], HIDDEN)
        q = ha @ p["att_wq"] + p["att_bq"]
        e = jnp.tanh(q[:, None, :] + mproj)
        sc = jnp.sum(e * p["att_v"], axis=-1) + maskadd
        a = jax.nn.softmax(sc, axis=-1)
        ctx = jnp.sum(a[:, :, None] * memory, axis=1)
        hc = jnp.concatenate([ha, ctx], axis=-1)
        d1 = gru(hc, hd1, p["d1wih"], p["d1whh"], p["d1bih"], p["d1bhh"], D); hd1 = d1
        x2 = hc + d1
        d2 = gru(x2, hd2, p["d2wih"], p["d2whh"], p["d2bih"], p["d2bhh"], D); hd2 = d2
        x3 = x2 + d2
        outs.append(x3 @ p["fcw"] + p["fcb"])
        als.append(a)
    out = jnp.stack(outs, axis=1).reshape(B, T * R, N_MELS)
    return out, jnp.stack(als, axis=1), ha[None], hd1[None], hd2[None]


if __name__ == "__main__":
    key = jax.random.PRNGKey(0)
    kf, km, kp = jax.random.split(key, 3)
    frames = jax.random.normal(kf, (B, T, INPUT_SIZE), dtype=jnp.float32)
    memory = jax.random.normal(km, (B, S, EMB), dtype=jnp.float32)
    text_length = jnp.array([S, S - 2], dtype=jnp.int32)
    params = init_params(kp)

    out, a, s_attn, s_d1, s_d2 = decoder_mel_forward(frames, memory, text_length, params)
    jax.block_until_ready((out, a, s_attn, s_d1, s_d2))

    assert out.shape == (B, T * R, N_MELS)
    assert a.shape == (B, T, S)
    assert s_attn.shape == (1, B, HIDDEN) and s_d1.shape == (1, B, D) and s_d2.shape == (1, B, D)

    r_out, r_a, r_sa, r_d1, r_d2 = ref_forward(frames, memory, text_length, params)
    for got, exp in ((out, r_out), (a, r_a), (s_attn, r_sa), (s_d1, r_d1), (s_d2, r_d2)):
        np.testing.assert_allclose(np.asarray(got), np.asarray(exp), rtol=5e-2, atol=5e-2)

    print("KERNEL_OK")
</pallas_src>

<mosaic_0001>
module attributes {stable_mosaic.version = 11 : i64} {
  func.func @_decoder_mel_kernel(%arg0: memref<16x32xf32, #tpu.memory_space<vmem>>, %arg1: memref<2x8x32xf32, #tpu.memory_space<vmem>>, %arg2: memref<2x1xi32, #tpu.memory_space<vmem>>, %arg3: memref<32x32xbf16, #tpu.memory_space<vmem>>, %arg4: memref<1x32xf32, #tpu.memory_space<vmem>>, %arg5: memref<32x16xbf16, #tpu.memory_space<vmem>>, %arg6: memref<1x16xf32, #tpu.memory_space<vmem>>, %arg7: memref<16x96xbf16, #tpu.memory_space<vmem>>, %arg8: memref<32x96xbf16, #tpu.memory_space<vmem>>, %arg9: memref<1x96xf32, #tpu.memory_space<vmem>>, %arg10: memref<1x96xf32, #tpu.memory_space<vmem>>, %arg11: memref<32x32xbf16, #tpu.memory_space<vmem>>, %arg12: memref<1x32xf32, #tpu.memory_space<vmem>>, %arg13: memref<1x32xf32, #tpu.memory_space<vmem>>, %arg14: memref<32x32xbf16, #tpu.memory_space<vmem>>, %arg15: memref<1x32xf32, #tpu.memory_space<vmem>>, %arg16: memref<128x384xbf16, #tpu.memory_space<vmem>>, %arg17: memref<1x192xf32, #tpu.memory_space<vmem>>, %arg18: memref<1x192xf32, #tpu.memory_space<vmem>>, %arg19: memref<128x384xbf16, #tpu.memory_space<vmem>>, %arg20: memref<1x192xf32, #tpu.memory_space<vmem>>, %arg21: memref<1x192xf32, #tpu.memory_space<vmem>>, %arg22: memref<64x32xbf16, #tpu.memory_space<vmem>>, %arg23: memref<1x32xf32, #tpu.memory_space<vmem>>, %arg24: memref<16x32xf32, #tpu.memory_space<vmem>>, %arg25: memref<2x224xf32, #tpu.memory_space<vmem>>, %arg26: memref<16x96xf32, #tpu.memory_space<vmem>>, %arg27: memref<2x8x32xf32, #tpu.memory_space<vmem>>, %arg28: memref<16x64xf32, #tpu.memory_space<vmem>>) attributes {dimension_semantics = [], scalar_prefetch = 0 : i64, scratch_operands = 3 : i64, tpu.core_type = #tpu.core_type<tc>} {
    %c0 = arith.constant 0 : index
    %c0_0 = arith.constant 0 : index
    %0 = vector.load %arg0[%c0, %c0_0] : memref<16x32xf32, #tpu.memory_space<vmem>>, vector<16x32xf32>
    %1 = arith.truncf %0 : vector<16x32xf32> to vector<16x32xbf16>
    %c0_1 = arith.constant 0 : index
    %c0_2 = arith.constant 0 : index
    %2 = vector.load %arg3[%c0_1, %c0_2] : memref<32x32xbf16, #tpu.memory_space<vmem>>, vector<32x32xbf16>
    %cst = arith.constant dense<0.000000e+00> : vector<16x32xf32>
    %3 = tpu.matmul %1, %2, %cst {dimension_numbers = #tpu.dot_dimension_numbers<[1], [0], [0], [1], [0, 0, 1, 1], [], []>} : vector<16x32xbf16>, vector<32x32xbf16>, vector<16x32xf32> -> vector<16x32xf32>
    %c0_3 = arith.constant 0 : index
    %c0_4 = arith.constant 0 : index
    %4 = vector.load %arg4[%c0_3, %c0_4] : memref<1x32xf32, #tpu.memory_space<vmem>>, vector<1x32xf32>
    %5 = vector.broadcast %4 : vector<1x32xf32> to vector<16x32xf32>
    %6 = arith.addf %3, %5 : vector<16x32xf32>
    %cst_5 = arith.constant 0.000000e+00 : f32
    %7 = vector.broadcast %cst_5 : f32 to vector<16x32xf32>
    %8 = arith.maximumf %6, %7 : vector<16x32xf32>
    %9 = arith.truncf %8 : vector<16x32xf32> to vector<16x32xbf16>
    %c0_6 = arith.constant 0 : index
    %c0_7 = arith.constant 0 : index
    %10 = vector.load %arg5[%c0_6, %c0_7] : memref<32x16xbf16, #tpu.memory_space<vmem>>, vector<32x16xbf16>
    %cst_8 = arith.constant dense<0.000000e+00> : vector<16x16xf32>
    %11 = tpu.matmul %9, %10, %cst_8 {dimension_numbers = #tpu.dot_dimension_numbers<[1], [0], [0], [1], [0, 0, 1, 1], [], []>} : vector<16x32xbf16>, vector<32x16xbf16>, vector<16x16xf32> -> vector<16x16xf32>
    %c0_9 = arith.constant 0 : index
    %c0_10 = arith.constant 0 : index
    %12 = vector.load %arg6[%c0_9, %c0_10] : memref<1x16xf32, #tpu.memory_space<vmem>>, vector<1x16xf32>
    %13 = vector.broadcast %12 : vector<1x16xf32> to vector<16x16xf32>
    %14 = arith.addf %11, %13 : vector<16x16xf32>
    %cst_11 = arith.constant 0.000000e+00 : f32
    %15 = vector.broadcast %cst_11 : f32 to vector<16x16xf32>
    %16 = arith.maximumf %14, %15 : vector<16x16xf32>
    %17 = arith.truncf %16 : vector<16x16xf32> to vector<16x16xbf16>
    %c0_12 = arith.constant 0 : index
    %c0_13 = arith.constant 0 : index
    %18 = vector.load %arg7[%c0_12, %c0_13] : memref<16x96xbf16, #tpu.memory_space<vmem>>, vector<16x96xbf16>
    %cst_14 = arith.constant dense<0.000000e+00> : vector<16x96xf32>
    %19 = tpu.matmul %17, %18, %cst_14 {dimension_numbers = #tpu.dot_dimension_numbers<[1], [0], [0], [1], [0, 0, 1, 1], [], []>} : vector<16x16xbf16>, vector<16x96xbf16>, vector<16x96xf32> -> vector<16x96xf32>
    %c0_15 = arith.constant 0 : index
    %c0_16 = arith.constant 0 : index
    %20 = vector.load %arg9[%c0_15, %c0_16] : memref<1x96xf32, #tpu.memory_space<vmem>>, vector<1x96xf32>
    %21 = vector.broadcast %20 : vector<1x96xf32> to vector<16x96xf32>
    %22 = arith.addf %19, %21 : vector<16x96xf32>
    %c0_17 = arith.constant 0 : index
    %c0_18 = arith.constant 0 : index
    %23 = vector.load %arg26[%c0_17, %c0_18] : memref<16x96xf32, #tpu.memory_space<vmem>>, vector<16x96xf32>
    tpu.vector_store %arg26[%c0_17, %c0_18], %22 {strides = array<i32>} : memref<16x96xf32, #tpu.memory_space<vmem>>, vector<16x96xf32>,
    %c0_19 = arith.constant 0 : index
    %c0_20 = arith.constant 0 : index
    %24 = vector.load %arg15[%c0_19, %c0_20] : memref<1x32xf32, #tpu.memory_space<vmem>>, vector<1x32xf32>
    %c0_21 = arith.constant 0 : index
    %c0_22 = arith.constant 0 : index
    %c0_23 = arith.constant 0 : index
    %25 = vector.load %arg1[%c0_21, %c0_22, %c0_23] : memref<2x8x32xf32, #tpu.memory_space<vmem>>, vector<1x8x32xf32>
    %26 = vector.shape_cast %25 : vector<1x8x32xf32> to vector<8x32xf32>
    %27 = arith.truncf %26 : vector<8x32xf32> to vector<8x32xbf16>
    %c0_24 = arith.constant 0 : index
    %c0_25 = arith.constant 0 : index
    %28 = vector.load %arg14[%c0_24, %c0_25] : memref<32x32xbf16, #tpu.memory_space<vmem>>, vector<32x32xbf16>
    %cst_26 = arith.constant dense<0.000000e+00> : vector<8x32xf32>
    %29 = tpu.matmul %27, %28, %cst_26 {dimension_numbers = #tpu.dot_dimension_numbers<[1], [0], [0], [1], [0, 0, 1, 1], [], []>} : vector<8x32xbf16>, vector<32x32xbf16>, vector<8x32xf32> -> vector<8x32xf32>
    %30 = vector.broadcast %24 : vector<1x32xf32> to vector<8x32xf32>
    %31 = arith.addf %29, %30 : vector<8x32xf32>
    %c0_27 = arith.constant 0 : index
    %c0_28 = arith.constant 0 : index
    %c0_29 = arith.constant 0 : index
    %32 = vector.load %arg27[%c0_27, %c0_28, %c0_29] : memref<2x8x32xf32, #tpu.memory_space<vmem>>, vector<1x8x32xf32>
    %33 = vector.shape_cast %32 : vector<1x8x32xf32> to vector<8x32xf32>
    %34 = vector.shape_cast %31 : vector<8x32xf32> to vector<1x8x32xf32>
    tpu.vector_store %arg27[%c0_27, %c0_28, %c0_29], %34 {strides = array<i32>} : memref<2x8x32xf32, #tpu.memory_space<vmem>>, vector<1x8x32xf32>,
    %c1 = arith.constant 1 : index
    %c0_30 = arith.constant 0 : index
    %c0_31 = arith.constant 0 : index
    %35 = vector.load %arg1[%c1, %c0_30, %c0_31] : memref<2x8x32xf32, #tpu.memory_space<vmem>>, vector<1x8x32xf32>
    %36 = vector.shape_cast %35 : vector<1x8x32xf32> to vector<8x32xf32>
    %37 = arith.truncf %36 : vector<8x32xf32> to vector<8x32xbf16>
    %c0_32 = arith.constant 0 : index
    %c0_33 = arith.constant 0 : index
    %38 = vector.load %arg14[%c0_32, %c0_33] : memref<32x32xbf16, #tpu.memory_space<vmem>>, vector<32x32xbf16>
    %cst_34 = arith.constant dense<0.000000e+00> : vector<8x32xf32>
    %39 = tpu.matmul %37, %38, %cst_34 {dimension_numbers = #tpu.dot_dimension_numbers<[1], [0], [0], [1], [0, 0, 1, 1], [], []>} : vector<8x32xbf16>, vector<32x32xbf16>, vector<8x32xf32> -> vector<8x32xf32>
    %40 = vector.broadcast %24 : vector<1x32xf32> to vector<8x32xf32>
    %41 = arith.addf %39, %40 : vector<8x32xf32>
    %c1_35 = arith.constant 1 : index
    %c0_36 = arith.constant 0 : index
    %c0_37 = arith.constant 0 : index
    %42 = vector.load %arg27[%c1_35, %c0_36, %c0_37] : memref<2x8x32xf32, #tpu.memory_space<vmem>>, vector<1x8x32xf32>
    %43 = vector.shape_cast %42 : vector<1x8x32xf32> to vector<8x32xf32>
    %44 = vector.shape_cast %41 : vector<8x32xf32> to vector<1x8x32xf32>
    tpu.vector_store %arg27[%c1_35, %c0_36, %c0_37], %44 {strides = array<i32>} : memref<2x8x32xf32, #tpu.memory_space<vmem>>, vector<1x8x32xf32>,
    %c0_38 = arith.constant 0 : index
    %c0_39 = arith.constant 0 : index
    %c0_40 = arith.constant 0 : index
    %45 = vector.load %arg1[%c0_38, %c0_39, %c0_40] : memref<2x8x32xf32, #tpu.memory_space<vmem>>, vector<2x8x32xf32>
    %c0_41 = arith.constant 0 : index
    %c0_42 = arith.constant 0 : index
    %c0_43 = arith.constant 0 : index
    %46 = vector.load %arg27[%c0_41, %c0_42, %c0_43] : memref<2x8x32xf32, #tpu.memory_space<vmem>>, vector<2x8x32xf32>
    %47 = tpu.iota {dimensions = array<i32: 1>} : vector<2x8xi32>
    %c0_44 = arith.constant 0 : index
    %c0_45 = arith.constant 0 : index
    %48 = vector.load %arg2[%c0_44, %c0_45] : memref<2x1xi32, #tpu.memory_space<vmem>>, vector<2x1xi32>
    %49 = vector.broadcast %48 : vector<2x1xi32> to vector<2x8xi32>
    %50 = arith.cmpi slt, %47, %49 : vector<2x8xi32>
    %cst_46 = arith.constant 0.000000e+00 : f32
    %cst_47 = arith.constant -1.000000e+09 : f32
    %51 = vector.broadcast %cst_46 : f32 to vector<2x8xf32>
    %52 = vector.broadcast %cst_47 : f32 to vector<2x8xf32>
    %53 = arith.select %50, %51, %52 : vector<2x8xi1>, vector<2x8xf32>
    %c0_48 = arith.constant 0 : index
    %c0_49 = arith.constant 0 : index
    %54 = vector.load %arg13[%c0_48, %c0_49] : memref<1x32xf32, #tpu.memory_space<vmem>>, vector<1x32xf32>
    %c0_50 = arith.constant 0 : index
    %c0_51 = arith.constant 0 : index
    %55 = vector.load %arg10[%c0_50, %c0_51] : memref<1x96xf32, #tpu.memory_space<vmem>>, vector<1x96xf32>
    %c0_52 = arith.constant 0 : index
    %c0_53 = arith.constant 0 : index
    %56 = vector.load %arg12[%c0_52, %c0_53] : memref<1x32xf32, #tpu.memory_space<vmem>>, vector<1x32xf32>
    %c0_54 = arith.constant 0 : index
    %c0_55 = arith.constant 0 : index
    %57 = vector.load %arg17[%c0_54, %c0_55] : memref<1x192xf32, #tpu.memory_space<vmem>>, vector<1x192xf32>
    %c0_56 = arith.constant 0 : index
    %c0_57 = arith.constant 0 : index
    %58 = vector.load %arg18[%c0_56, %c0_57] : memref<1x192xf32, #tpu.memory_space<vmem>>, vector<1x192xf32>
    %c0_58 = arith.constant 0 : index
    %c0_59 = arith.constant 0 : index
    %59 = vector.load %arg20[%c0_58, %c0_59] : memref<1x192xf32, #tpu.memory_space<vmem>>, vector<1x192xf32>
    %c0_60 = arith.constant 0 : index
    %c0_61 = arith.constant 0 : index
    %60 = vector.load %arg21[%c0_60, %c0_61] : memref<1x192xf32, #tpu.memory_space<vmem>>, vector<1x192xf32>
    %cst_62 = arith.constant 0.000000e+00 : f32
    %61 = vector.broadcast %cst_62 : f32 to vector<2x32xf32>
    %cst_63 = arith.constant 0.000000e+00 : f32
    %62 = vector.broadcast %cst_63 : f32 to vector<2x64xf32>
    %cst_64 = arith.constant 0.000000e+00 : f32
    %63 = vector.broadcast %cst_64 : f32 to vector<2x64xf32>
    %c0_65 = arith.constant 0 : index
    %c0_66 = arith.constant 0 : index
    %64 = vector.load %arg26[%c0_65, %c0_66] : memref<16x96xf32, #tpu.memory_space<vmem>>, vector<2x96xf32>
    %65 = arith.truncf %61 : vector<2x32xf32> to vector<2x32xbf16>
    %c0_67 = arith.constant 0 : index
    %c0_68 = arith.constant 0 : index
    %66 = vector.load %arg8[%c0_67, %c0_68] : memref<32x96xbf16, #tpu.memory_space<vmem>>, vector<32x96xbf16>
    %cst_69 = arith.constant dense<0.000000e+00> : vector<2x96xf32>
    %67 = tpu.matmul %65, %66, %cst_69 {dimension_numbers = #tpu.dot_dimension_numbers<[1], [0], [0], [1], [0, 0, 1, 1], [], []>} : vector<2x32xbf16>, vector<32x96xbf16>, vector<2x96xf32> -> vector<2x96xf32>
    %68 = vector.broadcast %55 : vector<1x96xf32> to vector<2x96xf32>
    %69 = arith.addf %67, %68 : vector<2x96xf32>
    %70 = vector.extract_strided_slice %64 {offsets = [0, 0], sizes = [2, 32], strides = [1, 1]} : vector<2x96xf32> to vector<2x32xf32>
    %71 = vector.extract_strided_slice %69 {offsets = [0, 0], sizes = [2, 32], strides = [1, 1]} : vector<2x96xf32> to vector<2x32xf32>
    %72 = arith.addf %70, %71 : vector<2x32xf32>
    %73 = arith.negf %72 : vector<2x32xf32>
    %74 = math.exp %73 : vector<2x32xf32>
    %cst_70 = arith.constant 1.000000e+00 : f32
    %75 = vector.broadcast %cst_70 : f32 to vector<2x32xf32>
    %76 = arith.addf %75, %74 : vector<2x32xf32>
    %77 = arith.divf %75, %76 : vector<2x32xf32>
    %78 = vector.extract_strided_slice %64 {offsets = [0, 32], sizes = [2, 32], strides = [1, 1]} : vector<2x96xf32> to vector<2x32xf32>
    %79 = vector.extract_strided_slice %69 {offsets = [0, 32], sizes = [2, 32], strides = [1, 1]} : vector<2x96xf32> to vector<2x32xf32>
    %80 = arith.addf %78, %79 : vector<2x32xf32>
    %81 = arith.negf %80 : vector<2x32xf32>
    %82 = math.exp %81 : vector<2x32xf32>
    %cst_71 = arith.constant 1.000000e+00 : f32
    %83 = vector.broadcast %cst_71 : f32 to vector<2x32xf32>
    %84 = arith.addf %83, %82 : vector<2x32xf32>
    %85 = arith.divf %83, %84 : vector<2x32xf32>
    %86 = vector.extract_strided_slice %64 {offsets = [0, 64], sizes = [2, 32], strides = [1, 1]} : vector<2x96xf32> to vector<2x32xf32>
    %87 = vector.extract_strided_slice %69 {offsets = [0, 64], sizes = [2, 32], strides = [1, 1]} : vector<2x96xf32> to vector<2x32xf32>
    %88 = arith.mulf %77, %87 : vector<2x32xf32>
    %89 = arith.addf %86, %88 : vector<2x32xf32>
    %90 = math.tanh %89 : vector<2x32xf32>
    %cst_72 = arith.constant 1.000000e+00 : f32
    %91 = vector.broadcast %cst_72 : f32 to vector<2x32xf32>
    %92 = arith.subf %91, %85 : vector<2x32xf32>
    %93 = arith.mulf %92, %90 : vector<2x32xf32>
    %94 = arith.mulf %85, %61 : vector<2x32xf32>
    %95 = arith.addf %93, %94 : vector<2x32xf32>
    %96 = arith.truncf %95 : vector<2x32xf32> to vector<2x32xbf16>
    %c0_73 = arith.constant 0 : index
    %c0_74 = arith.constant 0 : index
    %97 = vector.load %arg11[%c0_73, %c0_74] : memref<32x32xbf16, #tpu.memory_space<vmem>>, vector<32x32xbf16>
    %cst_75 = arith.constant dense<0.000000e+00> : vector<2x32xf32>
    %98 = tpu.matmul %96, %97, %cst_75 {dimension_numbers = #tpu.dot_dimension_numbers<[1], [0], [0], [1], [0, 0, 1, 1], [], []>} : vector<2x32xbf16>, vector<32x32xbf16>, vector<2x32xf32> -> vector<2x32xf32>
    %99 = vector.broadcast %56 : vector<1x32xf32> to vector<2x32xf32>
    %100 = arith.addf %98, %99 : vector<2x32xf32>
    %101 = vector.shape_cast %100 : vector<2x32xf32> to vector<2x1x32xf32>
    %102 = vector.broadcast %101 : vector<2x1x32xf32> to vector<2x8x32xf32>
    %103 = arith.addf %102, %46 : vector<2x8x32xf32>
    %104 = math.tanh %103 : vector<2x8x32xf32>
    %105 = vector.shape_cast %54 : vector<1x32xf32> to vector<1x1x32xf32>
    %106 = vector.broadcast %105 : vector<1x1x32xf32> to vector<2x8x32xf32>
    %107 = arith.mulf %104, %106 : vector<2x8x32xf32>
    %cst_76 = arith.constant dense<0.000000e+00> : vector<2x8xf32>
    %108 = vector.multi_reduction <add>, %107, %cst_76 [2] : vector<2x8x32xf32> to vector<2x8xf32>
    %109 = arith.addf %108, %53 : vector<2x8xf32>
    %cst_77 = arith.constant dense<0xFF800000> : vector<2xf32>
    %110 = vector.multi_reduction <maximumf>, %109, %cst_77 [1] : vector<2x8xf32> to vector<2xf32>
    %111 = vector.shape_cast %110 : vector<2xf32> to vector<2x1xf32>
    %112 = vector.broadcast %111 : vector<2x1xf32> to vector<2x8xf32>
    %113 = arith.subf %109, %112 : vector<2x8xf32>
    %114 = math.exp %113 : vector<2x8xf32>
    %cst_78 = arith.constant dense<0.000000e+00> : vector<2xf32>
    %115 = vector.multi_reduction <add>, %114, %cst_78 [1] : vector<2x8xf32> to vector<2xf32>
    %116 = vector.shape_cast %115 : vector<2xf32> to vector<2x1xf32>
    %117 = tpu.reciprocal %116 {approx = true} : vector<2x1xf32> -> vector<2x1xf32>
    %118 = vector.broadcast %117 : vector<2x1xf32> to vector<2x8xf32>
    %119 = arith.mulf %114, %118 : vector<2x8xf32>
    %120 = vector.shape_cast %119 : vector<2x8xf32> to vector<2x8x1xf32>
    %121 = vector.broadcast %120 : vector<2x8x1xf32> to vector<2x8x32xf32>
    %122 = arith.mulf %121, %45 : vector<2x8x32xf32>
    %cst_79 = arith.constant dense<0.000000e+00> : vector<2x32xf32>
    %123 = vector.multi_reduction <add>, %122, %cst_79 [1] : vector<2x8x32xf32> to vector<2x32xf32>
    %124 = tpu.concatenate %95, %123 in 1 : vector<2x32xf32>, vector<2x32xf32> -> vector<2x64xf32>
    %125 = tpu.concatenate %124, %62 in 1 : vector<2x64xf32>, vector<2x64xf32> -> vector<2x128xf32>
    %126 = arith.truncf %125 : vector<2x128xf32> to vector<2x128xbf16>
    %c0_80 = arith.constant 0 : index
    %c0_81 = arith.constant 0 : index
    %127 = vector.load %arg16[%c0_80, %c0_81] : memref<128x384xbf16, #tpu.memory_space<vmem>>, vector<128x384xbf16>
    %cst_82 = arith.constant dense<0.000000e+00> : vector<2x384xf32>
    %128 = tpu.matmul %126, %127, %cst_82 {dimension_numbers = #tpu.dot_dimension_numbers<[1], [0], [0], [1], [0, 0, 1, 1], [], []>} : vector<2x128xbf16>, vector<128x384xbf16>, vector<2x384xf32> -> vector<2x384xf32>
    %129 = vector.extract_strided_slice %128 {offsets = [0, 0], sizes = [2, 192], strides = [1, 1]} : vector<2x384xf32> to vector<2x192xf32>
    %130 = vector.broadcast %57 : vector<1x192xf32> to vector<2x192xf32>
    %131 = arith.addf %129, %130 : vector<2x192xf32>
    %132 = vector.extract_strided_slice %128 {offsets = [0, 192], sizes = [2, 192], strides = [1, 1]} : vector<2x384xf32> to vector<2x192xf32>
    %133 = vector.broadcast %58 : vector<1x192xf32> to vector<2x192xf32>
    %134 = arith.addf %132, %133 : vector<2x192xf32>
    %135 = vector.extract_strided_slice %131 {offsets = [0, 0], sizes = [2, 64], strides = [1, 1]} : vector<2x192xf32> to vector<2x64xf32>
    %136 = vector.extract_strided_slice %134 {offsets = [0, 0], sizes = [2, 64], strides = [1, 1]} : vector<2x192xf32> to vector<2x64xf32>
    %137 = arith.addf %135, %136 : vector<2x64xf32>
    %138 = arith.negf %137 : vector<2x64xf32>
    %139 = math.exp %138 : vector<2x64xf32>
    %cst_83 = arith.constant 1.000000e+00 : f32
    %140 = vector.broadcast %cst_83 : f32 to vector<2x64xf32>
    %141 = arith.addf %140, %139 : vector<2x64xf32>
    %142 = arith.divf %140, %141 : vector<2x64xf32>
    %143 = vector.extract_strided_slice %131 {offsets = [0, 64], sizes = [2, 64], strides = [1, 1]} : vector<2x192xf32> to vector<2x64xf32>
    %144 = vector.extract_strided_slice %134 {offsets = [0, 64], sizes = [2, 64], strides = [1, 1]} : vector<2x192xf32> to vector<2x64xf32>
    %145 = arith.addf %143, %144 : vector<2x64xf32>
    %146 = arith.negf %145 : vector<2x64xf32>
    %147 = math.exp %146 : vector<2x64xf32>
    %cst_84 = arith.constant 1.000000e+00 : f32
    %148 = vector.broadcast %cst_84 : f32 to vector<2x64xf32>
    %149 = arith.addf %148, %147 : vector<2x64xf32>
    %150 = arith.divf %148, %149 : vector<2x64xf32>
    %151 = vector.extract_strided_slice %131 {offsets = [0, 128], sizes = [2, 64], strides = [1, 1]} : vector<2x192xf32> to vector<2x64xf32>
    %152 = vector.extract_strided_slice %134 {offsets = [0, 128], sizes = [2, 64], strides = [1, 1]} : vector<2x192xf32> to vector<2x64xf32>
    %153 = arith.mulf %142, %152 : vector<2x64xf32>
    %154 = arith.addf %151, %153 : vector<2x64xf32>
    %155 = math.tanh %154 : vector<2x64xf32>
    %cst_85 = arith.constant 1.000000e+00 : f32
    %156 = vector.broadcast %cst_85 : f32 to vector<2x64xf32>
    %157 = arith.subf %156, %150 : vector<2x64xf32>
    %158 = arith.mulf %157, %155 : vector<2x64xf32>
    %159 = arith.mulf %150, %62 : vector<2x64xf32>
    %160 = arith.addf %158, %159 : vector<2x64xf32>
    %161 = arith.addf %124, %160 : vector<2x64xf32>
    %162 = tpu.concatenate %161, %63 in 1 : vector<2x64xf32>, vector<2x64xf32> -> vector<2x128xf32>
    %163 = arith.truncf %162 : vector<2x128xf32> to vector<2x128xbf16>
    %c0_86 = arith.constant 0 : index
    %c0_87 = arith.constant 0 : index
    %164 = vector.load %arg19[%c0_86, %c0_87] : memref<128x384xbf16, #tpu.memory_space<vmem>>, vector<128x384xbf16>
    %cst_88 = arith.constant dense<0.000000e+00> : vector<2x384xf32>
    %165 = tpu.matmul %163, %164, %cst_88 {dimension_numbers = #tpu.dot_dimension_numbers<[1], [0], [0], [1], [0, 0, 1, 1], [], []>} : vector<2x128xbf16>, vector<128x384xbf16>, vector<2x384xf32> -> vector<2x384xf32>
    %166 = vector.extract_strided_slice %165 {offsets = [0, 0], sizes = [2, 192], strides = [1, 1]} : vector<2x384xf32> to vector<2x192xf32>
    %167 = vector.broadcast %59 : vector<1x192xf32> to vector<2x192xf32>
    %168 = arith.addf %166, %167 : vector<2x192xf32>
    %169 = vector.extract_strided_slice %165 {offsets = [0, 192], sizes = [2, 192], strides = [1, 1]} : vector<2x384xf32> to vector<2x192xf32>
    %170 = vector.broadcast %60 : vector<1x192xf32> to vector<2x192xf32>
    %171 = arith.addf %169, %170 : vector<2x192xf32>
    %172 = vector.extract_strided_slice %168 {offsets = [0, 0], sizes = [2, 64], strides = [1, 1]} : vector<2x192xf32> to vector<2x64xf32>
    %173 = vector.extract_strided_slice %171 {offsets = [0, 0], sizes = [2, 64], strides = [1, 1]} : vector<2x192xf32> to vector<2x64xf32>
    %174 = arith.addf %172, %173 : vector<2x64xf32>
    %175 = arith.negf %174 : vector<2x64xf32>
    %176 = math.exp %175 : vector<2x64xf32>
    %cst_89 = arith.constant 1.000000e+00 : f32
    %177 = vector.broadcast %cst_89 : f32 to vector<2x64xf32>
    %178 = arith.addf %177, %176 : vector<2x64xf32>
    %179 = arith.divf %177, %178 : vector<2x64xf32>
    %180 = vector.extract_strided_slice %168 {offsets = [0, 64], sizes = [2, 64], strides = [1, 1]} : vector<2x192xf32> to vector<2x64xf32>
    %181 = vector.extract_strided_slice %171 {offsets = [0, 64], sizes = [2, 64], strides = [1, 1]} : vector<2x192xf32> to vector<2x64xf32>
    %182 = arith.addf %180, %181 : vector<2x64xf32>
    %183 = arith.negf %182 : vector<2x64xf32>
    %184 = math.exp %183 : vector<2x64xf32>
    %cst_90 = arith.constant 1.000000e+00 : f32
    %185 = vector.broadcast %cst_90 : f32 to vector<2x64xf32>
    %186 = arith.addf %185, %184 : vector<2x64xf32>
    %187 = arith.divf %185, %186 : vector<2x64xf32>
    %188 = vector.extract_strided_slice %168 {offsets = [0, 128], sizes = [2, 64], strides = [1, 1]} : vector<2x192xf32> to vector<2x64xf32>
    %189 = vector.extract_strided_slice %171 {offsets = [0, 128], sizes = [2, 64], strides = [1, 1]} : vector<2x192xf32> to vector<2x64xf32>
    %190 = arith.mulf %179, %189 : vector<2x64xf32>
    %191 = arith.addf %188, %190 : vector<2x64xf32>
    %192 = math.tanh %191 : vector<2x64xf32>
    %cst_91 = arith.constant 1.000000e+00 : f32
    %193 = vector.broadcast %cst_91 : f32 to vector<2x64xf32>
    %194 = arith.subf %193, %187 : vector<2x64xf32>
    %195 = arith.mulf %194, %192 : vector<2x64xf32>
    %196 = arith.mulf %187, %63 : vector<2x64xf32>
    %197 = arith.addf %195, %196 : vector<2x64xf32>
    %198 = arith.addf %161, %197 : vector<2x64xf32>
    %c0_92 = arith.constant 0 : index
    %c0_93 = arith.constant 0 : index
    %199 = vector.load %arg28[%c0_92, %c0_93] : memref<16x64xf32, #tpu.memory_space<vmem>>, vector<2x64xf32>
    tpu.vector_store %arg28[%c0_92, %c0_93], %198 {strides = array<i32>} : memref<16x64xf32, #tpu.memory_space<vmem>>, vector<2x64xf32>,
    %c0_94 = arith.constant 0 : index
    %c0_95 = arith.constant 0 : index
    %200 = vector.load %arg25[%c0_94, %c0_95] : memref<2x224xf32, #tpu.memory_space<vmem>>, vector<2x8xf32>
    tpu.vector_store %arg25[%c0_94, %c0_95], %119 {strides = array<i32>} : memref<2x224xf32, #tpu.memory_space<vmem>>, vector<2x8xf32>,
    %c2 = arith.constant 2 : index
    %c0_96 = arith.constant 0 : index
    %201 = vector.load %arg26[%c2, %c0_96] : memref<16x96xf32, #tpu.memory_space<vmem>>, vector<2x96xf32>
    %202 = arith.truncf %95 : vector<2x32xf32> to vector<2x32xbf16>
    %c0_97 = arith.constant 0 : index
    %c0_98 = arith.constant 0 : index
    %203 = vector.load %arg8[%c0_97, %c0_98] : memref<32x96xbf16, #tpu.memory_space<vmem>>, vector<32x96xbf16>
    %cst_99 = arith.constant dense<0.000000e+00> : vector<2x96xf32>
    %204 = tpu.matmul %202, %203, %cst_99 {dimension_numbers = #tpu.dot_dimension_numbers<[1], [0], [0], [1], [0, 0, 1, 1], [], []>} : vector<2x32xbf16>, vector<32x96xbf16>, vector<2x96xf32> -> vector<2x96xf32>
    %205 = vector.broadcast %55 : vector<1x96xf32> to vector<2x96xf32>
    %206 = arith.addf %204, %205 : vector<2x96xf32>
    %207 = vector.extract_strided_slice %201 {offsets = [0, 0], sizes = [2, 32], strides = [1, 1]} : vector<2x96xf32> to vector<2x32xf32>
    %208 = vector.extract_strided_slice %206 {offsets = [0, 0], sizes = [2, 32], strides = [1, 1]} : vector<2x96xf32> to vector<2x32xf32>
    %209 = arith.addf %207, %208 : vector<2x32xf32>
    %210 = arith.negf %209 : vector<2x32xf32>
    %211 = math.exp %210 : vector<2x32xf32>
    %cst_100 = arith.constant 1.000000e+00 : f32
    %212 = vector.broadcast %cst_100 : f32 to vector<2x32xf32>
    %213 = arith.addf %212, %211 : vector<2x32xf32>
    %214 = arith.divf %212, %213 : vector<2x32xf32>
    %215 = vector.extract_strided_slice %201 {offsets = [0, 32], sizes = [2, 32], strides = [1, 1]} : vector<2x96xf32> to vector<2x32xf32>
    %216 = vector.extract_strided_slice %206 {offsets = [0, 32], sizes = [2, 32], strides = [1, 1]} : vector<2x96xf32> to vector<2x32xf32>
    %217 = arith.addf %215, %216 : vector<2x32xf32>
    %218 = arith.negf %217 : vector<2x32xf32>
    %219 = math.exp %218 : vector<2x32xf32>
    %cst_101 = arith.constant 1.000000e+00 : f32
    %220 = vector.broadcast %cst_101 : f32 to vector<2x32xf32>
    %221 = arith.addf %220, %219 : vector<2x32xf32>
    %222 = arith.divf %220, %221 : vector<2x32xf32>
    %223 = vector.extract_strided_slice %201 {offsets = [0, 64], sizes = [2, 32], strides = [1, 1]} : vector<2x96xf32> to vector<2x32xf32>
    %224 = vector.extract_strided_slice %206 {offsets = [0, 64], sizes = [2, 32], strides = [1, 1]} : vector<2x96xf32> to vector<2x32xf32>
    %225 = arith.mulf %214, %224 : vector<2x32xf32>
    %226 = arith.addf %223, %225 : vector<2x32xf32>
    %227 = math.tanh %226 : vector<2x32xf32>
    %cst_102 = arith.constant 1.000000e+00 : f32
    %228 = vector.broadcast %cst_102 : f32 to vector<2x32xf32>
    %229 = arith.subf %228, %222 : vector<2x32xf32>
    %230 = arith.mulf %229, %227 : vector<2x32xf32>
    %231 = arith.mulf %222, %95 : vector<2x32xf32>
    %232 = arith.addf %230, %231 : vector<2x32xf32>
    %233 = arith.truncf %232 : vector<2x32xf32> to vector<2x32xbf16>
    %c0_103 = arith.constant 0 : index
    %c0_104 = arith.constant 0 : index
    %234 = vector.load %arg11[%c0_103, %c0_104] : memref<32x32xbf16, #tpu.memory_space<vmem>>, vector<32x32xbf16>
    %cst_105 = arith.constant dense<0.000000e+00> : vector<2x32xf32>
    %235 = tpu.matmul %233, %234, %cst_105 {dimension_numbers = #tpu.dot_dimension_numbers<[1], [0], [0], [1], [0, 0, 1, 1], [], []>} : vector<2x32xbf16>, vector<32x32xbf16>, vector<2x32xf32> -> vector<2x32xf32>
    %236 = vector.broadcast %56 : vector<1x32xf32> to vector<2x32xf32>
    %237 = arith.addf %235, %236 : vector<2x32xf32>
    %238 = vector.shape_cast %237 : vector<2x32xf32> to vector<2x1x32xf32>
    %239 = vector.broadcast %238 : vector<2x1x32xf32> to vector<2x8x32xf32>
    %240 = arith.addf %239, %46 : vector<2x8x32xf32>
    %241 = math.tanh %240 : vector<2x8x32xf32>
    %242 = vector.shape_cast %54 : vector<1x32xf32> to vector<1x1x32xf32>
    %243 = vector.broadcast %242 : vector<1x1x32xf32> to vector<2x8x32xf32>
    %244 = arith.mulf %241, %243 : vector<2x8x32xf32>
    %cst_106 = arith.constant dense<0.000000e+00> : vector<2x8xf32>
    %245 = vector.multi_reduction <add>, %244, %cst_106 [2] : vector<2x8x32xf32> to vector<2x8xf32>
    %246 = arith.addf %245, %53 : vector<2x8xf32>
    %cst_107 = arith.constant dense<0xFF800000> : vector<2xf32>
    %247 = vector.multi_reduction <maximumf>, %246, %cst_107 [1] : vector<2x8xf32> to vector<2xf32>
    %248 = vector.shape_cast %247 : vector<2xf32> to vector<2x1xf32>
    %249 = vector.broadcast %248 : vector<2x1xf32> to vector<2x8xf32>
    %250 = arith.subf %246, %249 : vector<2x8xf32>
    %251 = math.exp %250 : vector<2x8xf32>
    %cst_108 = arith.constant dense<0.000000e+00> : vector<2xf32>
    %252 = vector.multi_reduction <add>, %251, %cst_108 [1] : vector<2x8xf32> to vector<2xf32>
    %253 = vector.shape_cast %252 : vector<2xf32> to vector<2x1xf32>
    %254 = tpu.reciprocal %253 {approx = true} : vector<2x1xf32> -> vector<2x1xf32>
    %255 = vector.broadcast %254 : vector<2x1xf32> to vector<2x8xf32>
    %256 = arith.mulf %251, %255 : vector<2x8xf32>
    %257 = vector.shape_cast %256 : vector<2x8xf32> to vector<2x8x1xf32>
    %258 = vector.broadcast %257 : vector<2x8x1xf32> to vector<2x8x32xf32>
    %259 = arith.mulf %258, %45 : vector<2x8x32xf32>
    %cst_109 = arith.constant dense<0.000000e+00> : vector<2x32xf32>
    %260 = vector.multi_reduction <add>, %259, %cst_109 [1] : vector<2x8x32xf32> to vector<2x32xf32>
    %261 = tpu.concatenate %232, %260 in 1 : vector<2x32xf32>, vector<2x32xf32> -> vector<2x64xf32>
    %262 = tpu.concatenate %261, %160 in 1 : vector<2x64xf32>, vector<2x64xf32> -> vector<2x128xf32>
    %263 = arith.truncf %262 : vector<2x128xf32> to vector<2x128xbf16>
    %c0_110 = arith.constant 0 : index
    %c0_111 = arith.constant 0 : index
    %264 = vector.load %arg16[%c0_110, %c0_111] : memref<128x384xbf16, #tpu.memory_space<vmem>>, vector<128x384xbf16>
    %cst_112 = arith.constant dense<0.000000e+00> : vector<2x384xf32>
    %265 = tpu.matmul %263, %264, %cst_112 {dimension_numbers = #tpu.dot_dimension_numbers<[1], [0], [0], [1], [0, 0, 1, 1], [], []>} : vector<2x128xbf16>, vector<128x384xbf16>, vector<2x384xf32> -> vector<2x384xf32>
    %266 = vector.extract_strided_slice %265 {offsets = [0, 0], sizes = [2, 192], strides = [1, 1]} : vector<2x384xf32> to vector<2x192xf32>
    %267 = vector.broadcast %57 : vector<1x192xf32> to vector<2x192xf32>
    %268 = arith.addf %266, %267 : vector<2x192xf32>
    %269 = vector.extract_strided_slice %265 {offsets = [0, 192], sizes = [2, 192], strides = [1, 1]} : vector<2x384xf32> to vector<2x192xf32>
    %270 = vector.broadcast %58 : vector<1x192xf32> to vector<2x192xf32>
    %271 = arith.addf %269, %270 : vector<2x192xf32>
    %272 = vector.extract_strided_slice %268 {offsets = [0, 0], sizes = [2, 64], strides = [1, 1]} : vector<2x192xf32> to vector<2x64xf32>
    %273 = vector.extract_strided_slice %271 {offsets = [0, 0], sizes = [2, 64], strides = [1, 1]} : vector<2x192xf32> to vector<2x64xf32>
    %274 = arith.addf %272, %273 : vector<2x64xf32>
    %275 = arith.negf %274 : vector<2x64xf32>
    %276 = math.exp %275 : vector<2x64xf32>
    %cst_113 = arith.constant 1.000000e+00 : f32
    %277 = vector.broadcast %cst_113 : f32 to vector<2x64xf32>
    %278 = arith.addf %277, %276 : vector<2x64xf32>
    %279 = arith.divf %277, %278 : vector<2x64xf32>
    %280 = vector.extract_strided_slice %268 {offsets = [0, 64], sizes = [2, 64], strides = [1, 1]} : vector<2x192xf32> to vector<2x64xf32>
    %281 = vector.extract_strided_slice %271 {offsets = [0, 64], sizes = [2, 64], strides = [1, 1]} : vector<2x192xf32> to vector<2x64xf32>
    %282 = arith.addf %280, %281 : vector<2x64xf32>
    %283 = arith.negf %282 : vector<2x64xf32>
    %284 = math.exp %283 : vector<2x64xf32>
    %cst_114 = arith.constant 1.000000e+00 : f32
    %285 = vector.broadcast %cst_114 : f32 to vector<2x64xf32>
    %286 = arith.addf %285, %284 : vector<2x64xf32>
    %287 = arith.divf %285, %286 : vector<2x64xf32>
    %288 = vector.extract_strided_slice %268 {offsets = [0, 128], sizes = [2, 64], strides = [1, 1]} : vector<2x192xf32> to vector<2x64xf32>
    %289 = vector.extract_strided_slice %271 {offsets = [0, 128], sizes = [2, 64], strides = [1, 1]} : vector<2x192xf32> to vector<2x64xf32>
    %290 = arith.mulf %279, %289 : vector<2x64xf32>
    %291 = arith.addf %288, %290 : vector<2x64xf32>
    %292 = math.tanh %291 : vector<2x64xf32>
    %cst_115 = arith.constant 1.000000e+00 : f32
    %293 = vector.broadcast %cst_115 : f32 to vector<2x64xf32>
    %294 = arith.subf %293, %287 : vector<2x64xf32>
    %295 = arith.mulf %294, %292 : vector<2x64xf32>
    %296 = arith.mulf %287, %160 : vector<2x64xf32>
    %297 = arith.addf %295, %296 : vector<2x64xf32>
    %298 = arith.addf %261, %297 : vector<2x64xf32>
    %299 = tpu.concatenate %298, %197 in 1 : vector<2x64xf32>, vector<2x64xf32> -> vector<2x128xf32>
    %300 = arith.truncf %299 : vector<2x128xf32> to vector<2x128xbf16>
    %c0_116 = arith.constant 0 : index
    %c0_117 = arith.constant 0 : index
    %301 = vector.load %arg19[%c0_116, %c0_117] : memref<128x384xbf16, #tpu.memory_space<vmem>>, vector<128x384xbf16>
    %cst_118 = arith.constant dense<0.000000e+00> : vector<2x384xf32>
    %302 = tpu.matmul %300, %301, %cst_118 {dimension_numbers = #tpu.dot_dimension_numbers<[1], [0], [0], [1], [0, 0, 1, 1], [], []>} : vector<2x128xbf16>, vector<128x384xbf16>, vector<2x384xf32> -> vector<2x384xf32>
    %303 = vector.extract_strided_slice %302 {offsets = [0, 0], sizes = [2, 192], strides = [1, 1]} : vector<2x384xf32> to vector<2x192xf32>
    %304 = vector.broadcast %59 : vector<1x192xf32> to vector<2x192xf32>
    %305 = arith.addf %303, %304 : vector<2x192xf32>
    %306 = vector.extract_strided_slice %302 {offsets = [0, 192], sizes = [2, 192], strides = [1, 1]} : vector<2x384xf32> to vector<2x192xf32>
    %307 = vector.broadcast %60 : vector<1x192xf32> to vector<2x192xf32>
    %308 = arith.addf %306, %307 : vector<2x192xf32>
    %309 = vector.extract_strided_slice %305 {offsets = [0, 0], sizes = [2, 64], strides = [1, 1]} : vector<2x192xf32> to vector<2x64xf32>
    %310 = vector.extract_strided_slice %308 {offsets = [0, 0], sizes = [2, 64], strides = [1, 1]} : vector<2x192xf32> to vector<2x64xf32>
    %311 = arith.addf %309, %310 : vector<2x64xf32>
    %312 = arith.negf %311 : vector<2x64xf32>
    %313 = math.exp %312 : vector<2x64xf32>
    %cst_119 = arith.constant 1.000000e+00 : f32
    %314 = vector.broadcast %cst_119 : f32 to vector<2x64xf32>
    %315 = arith.addf %314, %313 : vector<2x64xf32>
    %316 = arith.divf %314, %315 : vector<2x64xf32>
    %317 = vector.extract_strided_slice %305 {offsets = [0, 64], sizes = [2, 64], strides = [1, 1]} : vector<2x192xf32> to vector<2x64xf32>
    %318 = vector.extract_strided_slice %308 {offsets = [0, 64], sizes = [2, 64], strides = [1, 1]} : vector<2x192xf32> to vector<2x64xf32>
    %319 = arith.addf %317, %318 : vector<2x64xf32>
    %320 = arith.negf %319 : vector<2x64xf32>
    %321 = math.exp %320 : vector<2x64xf32>
    %cst_120 = arith.constant 1.000000e+00 : f32
    %322 = vector.broadcast %cst_120 : f32 to vector<2x64xf32>
    %323 = arith.addf %322, %321 : vector<2x64xf32>
    %324 = arith.divf %322, %323 : vector<2x64xf32>
    %325 = vector.extract_strided_slice %305 {offsets = [0, 128], sizes = [2, 64], strides = [1, 1]} : vector<2x192xf32> to vector<2x64xf32>
    %326 = vector.extract_strided_slice %308 {offsets = [0, 128], sizes = [2, 64], strides = [1, 1]} : vector<2x192xf32> to vector<2x64xf32>
    %327 = arith.mulf %316, %326 : vector<2x64xf32>
    %328 = arith.addf %325, %327 : vector<2x64xf32>
    %329 = math.tanh %328 : vector<2x64xf32>
    %cst_121 = arith.constant 1.000000e+00 : f32
    %330 = vector.broadcast %cst_121 : f32 to vector<2x64xf32>
    %331 = arith.subf %330, %324 : vector<2x64xf32>
    %332 = arith.mulf %331, %329 : vector<2x64xf32>
    %333 = arith.mulf %324, %197 : vector<2x64xf32>
    %334 = arith.addf %332, %333 : vector<2x64xf32>
    %335 = arith.addf %298, %334 : vector<2x64xf32>
    %c2_122 = arith.constant 2 : index
    %c0_123 = arith.constant 0 : index
    %336 = vector.load %arg28[%c2_122, %c0_123] : memref<16x64xf32, #tpu.memory_space<vmem>>, vector<2x64xf32>
    tpu.vector_store %arg28[%c2_122, %c0_123], %335 {strides = array<i32>} : memref<16x64xf32, #tpu.memory_space<vmem>>, vector<2x64xf32>,
    %c0_124 = arith.constant 0 : index
    %c8 = arith.constant 8 : index
    %337 = vector.load %arg25[%c0_124, %c8] : memref<2x224xf32, #tpu.memory_space<vmem>>, vector<2x8xf32>
    tpu.vector_store %arg25[%c0_124, %c8], %256 {strides = array<i32>} : memref<2x224xf32, #tpu.memory_space<vmem>>, vector<2x8xf32>,
    %c4 = arith.constant 4 : index
    %c0_125 = arith.constant 0 : index
    %338 = vector.load %arg26[%c4, %c0_125] : memref<16x96xf32, #tpu.memory_space<vmem>>, vector<2x96xf32>
    %339 = arith.truncf %232 : vector<2x32xf32> to vector<2x32xbf16>
    %c0_126 = arith.constant 0 : index
    %c0_127 = arith.constant 0 : index
    %340 = vector.load %arg8[%c0_126, %c0_127] : memref<32x96xbf16, #tpu.memory_space<vmem>>, vector<32x96xbf16>
    %cst_128 = arith.constant dense<0.000000e+00> : vector<2x96xf32>
    %341 = tpu.matmul %339, %340, %cst_128 {dimension_numbers = #tpu.dot_dimension_numbers<[1], [0], [0], [1], [0, 0, 1, 1], [], []>} : vector<2x32xbf16>, vector<32x96xbf16>, vector<2x96xf32> -> vector<2x96xf32>
    %342 = vector.broadcast %55 : vector<1x96xf32> to vector<2x96xf32>
    %343 = arith.addf %341, %342 : vector<2x96xf32>
    %344 = vector.extract_strided_slice %338 {offsets = [0, 0], sizes = [2, 32], strides = [1, 1]} : vector<2x96xf32> to vector<2x32xf32>
    %345 = vector.extract_strided_slice %343 {offsets = [0, 0], sizes = [2, 32], strides = [1, 1]} : vector<2x96xf32> to vector<2x32xf32>
    %346 = arith.addf %344, %345 : vector<2x32xf32>
    %347 = arith.negf %346 : vector<2x32xf32>
    %348 = math.exp %347 : vector<2x32xf32>
    %cst_129 = arith.constant 1.000000e+00 : f32
    %349 = vector.broadcast %cst_129 : f32 to vector<2x32xf32>
    %350 = arith.addf %349, %348 : vector<2x32xf32>
    %351 = arith.divf %349, %350 : vector<2x32xf32>
    %352 = vector.extract_strided_slice %338 {offsets = [0, 32], sizes = [2, 32], strides = [1, 1]} : vector<2x96xf32> to vector<2x32xf32>
    %353 = vector.extract_strided_slice %343 {offsets = [0, 32], sizes = [2, 32], strides = [1, 1]} : vector<2x96xf32> to vector<2x32xf32>
    %354 = arith.addf %352, %353 : vector<2x32xf32>
    %355 = arith.negf %354 : vector<2x32xf32>
    %356 = math.exp %355 : vector<2x32xf32>
    %cst_130 = arith.constant 1.000000e+00 : f32
    %357 = vector.broadcast %cst_130 : f32 to vector<2x32xf32>
    %358 = arith.addf %357, %356 : vector<2x32xf32>
    %359 = arith.divf %357, %358 : vector<2x32xf32>
    %360 = vector.extract_strided_slice %338 {offsets = [0, 64], sizes = [2, 32], strides = [1, 1]} : vector<2x96xf32> to vector<2x32xf32>
    %361 = vector.extract_strided_slice %343 {offsets = [0, 64], sizes = [2, 32], strides = [1, 1]} : vector<2x96xf32> to vector<2x32xf32>
    %362 = arith.mulf %351, %361 : vector<2x32xf32>
    %363 = arith.addf %360, %362 : vector<2x32xf32>
    %364 = math.tanh %363 : vector<2x32xf32>
    %cst_131 = arith.constant 1.000000e+00 : f32
    %365 = vector.broadcast %cst_131 : f32 to vector<2x32xf32>
    %366 = arith.subf %365, %359 : vector<2x32xf32>
    %367 = arith.mulf %366, %364 : vector<2x32xf32>
    %368 = arith.mulf %359, %232 : vector<2x32xf32>
    %369 = arith.addf %367, %368 : vector<2x32xf32>
    %370 = arith.truncf %369 : vector<2x32xf32> to vector<2x32xbf16>
    %c0_132 = arith.constant 0 : index
    %c0_133 = arith.constant 0 : index
    %371 = vector.load %arg11[%c0_132, %c0_133] : memref<32x32xbf16, #tpu.memory_space<vmem>>, vector<32x32xbf16>
    %cst_134 = arith.constant dense<0.000000e+00> : vector<2x32xf32>
    %372 = tpu.matmul %370, %371, %cst_134 {dimension_numbers = #tpu.dot_dimension_numbers<[1], [0], [0], [1], [0, 0, 1, 1], [], []>} : vector<2x32xbf16>, vector<32x32xbf16>, vector<2x32xf32> -> vector<2x32xf32>
    %373 = vector.broadcast %56 : vector<1x32xf32> to vector<2x32xf32>
    %374 = arith.addf %372, %373 : vector<2x32xf32>
    %375 = vector.shape_cast %374 : vector<2x32xf32> to vector<2x1x32xf32>
    %376 = vector.broadcast %375 : vector<2x1x32xf32> to vector<2x8x32xf32>
    %377 = arith.addf %376, %46 : vector<2x8x32xf32>
    %378 = math.tanh %377 : vector<2x8x32xf32>
    %379 = vector.shape_cast %54 : vector<1x32xf32> to vector<1x1x32xf32>
    %380 = vector.broadcast %379 : vector<1x1x32xf32> to vector<2x8x32xf32>
    %381 = arith.mulf %378, %380 : vector<2x8x32xf32>
    %cst_135 = arith.constant dense<0.000000e+00> : vector<2x8xf32>
    %382 = vector.multi_reduction <add>, %381, %cst_135 [2] : vector<2x8x32xf32> to vector<2x8xf32>
    %383 = arith.addf %382, %53 : vector<2x8xf32>
    %cst_136 = arith.constant dense<0xFF800000> : vector<2xf32>
    %384 = vector.multi_reduction <maximumf>, %383, %cst_136 [1] : vector<2x8xf32> to vector<2xf32>
    %385 = vector.shape_cast %384 : vector<2xf32> to vector<2x1xf32>
    %386 = vector.broadcast %385 : vector<2x1xf32> to vector<2x8xf32>
    %387 = arith.subf %383, %386 : vector<2x8xf32>
    %388 = math.exp %387 : vector<2x8xf32>
    %cst_137 = arith.constant dense<0.000000e+00> : vector<2xf32>
    %389 = vector.multi_reduction <add>, %388, %cst_137 [1] : vector<2x8xf32> to vector<2xf32>
    %390 = vector.shape_cast %389 : vector<2xf32> to vector<2x1xf32>
    %391 = tpu.reciprocal %390 {approx = true} : vector<2x1xf32> -> vector<2x1xf32>
    %392 = vector.broadcast %391 : vector<2x1xf32> to vector<2x8xf32>
    %393 = arith.mulf %388, %392 : vector<2x8xf32>
    %394 = vector.shape_cast %393 : vector<2x8xf32> to vector<2x8x1xf32>
    %395 = vector.broadcast %394 : vector<2x8x1xf32> to vector<2x8x32xf32>
    %396 = arith.mulf %395, %45 : vector<2x8x32xf32>
    %cst_138 = arith.constant dense<0.000000e+00> : vector<2x32xf32>
    %397 = vector.multi_reduction <add>, %396, %cst_138 [1] : vector<2x8x32xf32> to vector<2x32xf32>
    %398 = tpu.concatenate %369, %397 in 1 : vector<2x32xf32>, vector<2x32xf32> -> vector<2x64xf32>
    %399 = tpu.concatenate %398, %297 in 1 : vector<2x64xf32>, vector<2x64xf32> -> vector<2x128xf32>
    %400 = arith.truncf %399 : vector<2x128xf32> to vector<2x128xbf16>
    %c0_139 = arith.constant 0 : index
    %c0_140 = arith.constant 0 : index
    %401 = vector.load %arg16[%c0_139, %c0_140] : memref<128x384xbf16, #tpu.memory_space<vmem>>, vector<128x384xbf16>
    %cst_141 = arith.constant dense<0.000000e+00> : vector<2x384xf32>
    %402 = tpu.matmul %400, %401, %cst_141 {dimension_numbers = #tpu.dot_dimension_numbers<[1], [0], [0], [1], [0, 0, 1, 1], [], []>} : vector<2x128xbf16>, vector<128x384xbf16>, vector<2x384xf32> -> vector<2x384xf32>
    %403 = vector.extract_strided_slice %402 {offsets = [0, 0], sizes = [2, 192], strides = [1, 1]} : vector<2x384xf32> to vector<2x192xf32>
    %404 = vector.broadcast %57 : vector<1x192xf32> to vector<2x192xf32>
    %405 = arith.addf %403, %404 : vector<2x192xf32>
    %406 = vector.extract_strided_slice %402 {offsets = [0, 192], sizes = [2, 192], strides = [1, 1]} : vector<2x384xf32> to vector<2x192xf32>
    %407 = vector.broadcast %58 : vector<1x192xf32> to vector<2x192xf32>
    %408 = arith.addf %406, %407 : vector<2x192xf32>
    %409 = vector.extract_strided_slice %405 {offsets = [0, 0], sizes = [2, 64], strides = [1, 1]} : vector<2x192xf32> to vector<2x64xf32>
    %410 = vector.extract_strided_slice %408 {offsets = [0, 0], sizes = [2, 64], strides = [1, 1]} : vector<2x192xf32> to vector<2x64xf32>
    %411 = arith.addf %409, %410 : vector<2x64xf32>
    %412 = arith.negf %411 : vector<2x64xf32>
    %413 = math.exp %412 : vector<2x64xf32>
    %cst_142 = arith.constant 1.000000e+00 : f32
    %414 = vector.broadcast %cst_142 : f32 to vector<2x64xf32>
    %415 = arith.addf %414, %413 : vector<2x64xf32>
    %416 = arith.divf %414, %415 : vector<2x64xf32>
    %417 = vector.extract_strided_slice %405 {offsets = [0, 64], sizes = [2, 64], strides = [1, 1]} : vector<2x192xf32> to vector<2x64xf32>
    %418 = vector.extract_strided_slice %408 {offsets = [0, 64], sizes = [2, 64], strides = [1, 1]} : vector<2x192xf32> to vector<2x64xf32>
    %419 = arith.addf %417, %418 : vector<2x64xf32>
    %420 = arith.negf %419 : vector<2x64xf32>
    %421 = math.exp %420 : vector<2x64xf32>
    %cst_143 = arith.constant 1.000000e+00 : f32
    %422 = vector.broadcast %cst_143 : f32 to vector<2x64xf32>
    %423 = arith.addf %422, %421 : vector<2x64xf32>
    %424 = arith.divf %422, %423 : vector<2x64xf32>
    %425 = vector.extract_strided_slice %405 {offsets = [0, 128], sizes = [2, 64], strides = [1, 1]} : vector<2x192xf32> to vector<2x64xf32>
    %426 = vector.extract_strided_slice %408 {offsets = [0, 128], sizes = [2, 64], strides = [1, 1]} : vector<2x192xf32> to vector<2x64xf32>
    %427 = arith.mulf %416, %426 : vector<2x64xf32>
    %428 = arith.addf %425, %427 : vector<2x64xf32>
    %429 = math.tanh %428 : vector<2x64xf32>
    %cst_144 = arith.constant 1.000000e+00 : f32
    %430 = vector.broadcast %cst_144 : f32 to vector<2x64xf32>
    %431 = arith.subf %430, %424 : vector<2x64xf32>
    %432 = arith.mulf %431, %429 : vector<2x64xf32>
    %433 = arith.mulf %424, %297 : vector<2x64xf32>
    %434 = arith.addf %432, %433 : vector<2x64xf32>
    %435 = arith.addf %398, %434 : vector<2x64xf32>
    %436 = tpu.concatenate %435, %334 in 1 : vector<2x64xf32>, vector<2x64xf32> -> vector<2x128xf32>
    %437 = arith.truncf %436 : vector<2x128xf32> to vector<2x128xbf16>
    %c0_145 = arith.constant 0 : index
    %c0_146 = arith.constant 0 : index
    %438 = vector.load %arg19[%c0_145, %c0_146] : memref<128x384xbf16, #tpu.memory_space<vmem>>, vector<128x384xbf16>
    %cst_147 = arith.constant dense<0.000000e+00> : vector<2x384xf32>
    %439 = tpu.matmul %437, %438, %cst_147 {dimension_numbers = #tpu.dot_dimension_numbers<[1], [0], [0], [1], [0, 0, 1, 1], [], []>} : vector<2x128xbf16>, vector<128x384xbf16>, vector<2x384xf32> -> vector<2x384xf32>
    %440 = vector.extract_strided_slice %439 {offsets = [0, 0], sizes = [2, 192], strides = [1, 1]} : vector<2x384xf32> to vector<2x192xf32>
    %441 = vector.broadcast %59 : vector<1x192xf32> to vector<2x192xf32>
    %442 = arith.addf %440, %441 : vector<2x192xf32>
    %443 = vector.extract_strided_slice %439 {offsets = [0, 192], sizes = [2, 192], strides = [1, 1]} : vector<2x384xf32> to vector<2x192xf32>
    %444 = vector.broadcast %60 : vector<1x192xf32> to vector<2x192xf32>
    %445 = arith.addf %443, %444 : vector<2x192xf32>
    %446 = vector.extract_strided_slice %442 {offsets = [0, 0], sizes = [2, 64], strides = [1, 1]} : vector<2x192xf32> to vector<2x64xf32>
    %447 = vector.extract_strided_slice %445 {offsets = [0, 0], sizes = [2, 64], strides = [1, 1]} : vector<2x192xf32> to vector<2x64xf32>
    %448 = arith.addf %446, %447 : vector<2x64xf32>
    %449 = arith.negf %448 : vector<2x64xf32>
    %450 = math.exp %449 : vector<2x64xf32>
    %cst_148 = arith.constant 1.000000e+00 : f32
    %451 = vector.broadcast %cst_148 : f32 to vector<2x64xf32>
    %452 = arith.addf %451, %450 : vector<2x64xf32>
    %453 = arith.divf %451, %452 : vector<2x64xf32>
    %454 = vector.extract_strided_slice %442 {offsets = [0, 64], sizes = [2, 64], strides = [1, 1]} : vector<2x192xf32> to vector<2x64xf32>
    %455 = vector.extract_strided_slice %445 {offsets = [0, 64], sizes = [2, 64], strides = [1, 1]} : vector<2x192xf32> to vector<2x64xf32>
    %456 = arith.addf %454, %455 : vector<2x64xf32>
    %457 = arith.negf %456 : vector<2x64xf32>
    %458 = math.exp %457 : vector<2x64xf32>
    %cst_149 = arith.constant 1.000000e+00 : f32
    %459 = vector.broadcast %cst_149 : f32 to vector<2x64xf32>
    %460 = arith.addf %459, %458 : vector<2x64xf32>
    %461 = arith.divf %459, %460 : vector<2x64xf32>
    %462 = vector.extract_strided_slice %442 {offsets = [0, 128], sizes = [2, 64], strides = [1, 1]} : vector<2x192xf32> to vector<2x64xf32>
    %463 = vector.extract_strided_slice %445 {offsets = [0, 128], sizes = [2, 64], strides = [1, 1]} : vector<2x192xf32> to vector<2x64xf32>
    %464 = arith.mulf %453, %463 : vector<2x64xf32>
    %465 = arith.addf %462, %464 : vector<2x64xf32>
    %466 = math.tanh %465 : vector<2x64xf32>
    %cst_150 = arith.constant 1.000000e+00 : f32
    %467 = vector.broadcast %cst_150 : f32 to vector<2x64xf32>
    %468 = arith.subf %467, %461 : vector<2x64xf32>
    %469 = arith.mulf %468, %466 : vector<2x64xf32>
    %470 = arith.mulf %461, %334 : vector<2x64xf32>
    %471 = arith.addf %469, %470 : vector<2x64xf32>
    %472 = arith.addf %435, %471 : vector<2x64xf32>
    %c4_151 = arith.constant 4 : index
    %c0_152 = arith.constant 0 : index
    %473 = vector.load %arg28[%c4_151, %c0_152] : memref<16x64xf32, #tpu.memory_space<vmem>>, vector<2x64xf32>
    tpu.vector_store %arg28[%c4_151, %c0_152], %472 {strides = array<i32>} : memref<16x64xf32, #tpu.memory_space<vmem>>, vector<2x64xf32>,
    %c0_153 = arith.constant 0 : index
    %c16 = arith.constant 16 : index
    %474 = vector.load %arg25[%c0_153, %c16] : memref<2x224xf32, #tpu.memory_space<vmem>>, vector<2x8xf32>
    tpu.vector_store %arg25[%c0_153, %c16], %393 {strides = array<i32>} : memref<2x224xf32, #tpu.memory_space<vmem>>, vector<2x8xf32>,
    %c6 = arith.constant 6 : index
    %c0_154 = arith.constant 0 : index
    %475 = vector.load %arg26[%c6, %c0_154] : memref<16x96xf32, #tpu.memory_space<vmem>>, vector<2x96xf32>
    %476 = arith.truncf %369 : vector<2x32xf32> to vector<2x32xbf16>
    %c0_155 = arith.constant 0 : index
    %c0_156 = arith.constant 0 : index
    %477 = vector.load %arg8[%c0_155, %c0_156] : memref<32x96xbf16, #tpu.memory_space<vmem>>, vector<32x96xbf16>
    %cst_157 = arith.constant dense<0.000000e+00> : vector<2x96xf32>
    %478 = tpu.matmul %476, %477, %cst_157 {dimension_numbers = #tpu.dot_dimension_numbers<[1], [0], [0], [1], [0, 0, 1, 1], [], []>} : vector<2x32xbf16>, vector<32x96xbf16>, vector<2x96xf32> -> vector<2x96xf32>
    %479 = vector.broadcast %55 : vector<1x96xf32> to vector<2x96xf32>
    %480 = arith.addf %478, %479 : vector<2x96xf32>
    %481 = vector.extract_strided_slice %475 {offsets = [0, 0], sizes = [2, 32], strides = [1, 1]} : vector<2x96xf32> to vector<2x32xf32>
    %482 = vector.extract_strided_slice %480 {offsets = [0, 0], sizes = [2, 32], strides = [1, 1]} : vector<2x96xf32> to vector<2x32xf32>
    %483 = arith.addf %481, %482 : vector<2x32xf32>
    %484 = arith.negf %483 : vector<2x32xf32>
    %485 = math.exp %484 : vector<2x32xf32>
    %cst_158 = arith.constant 1.000000e+00 : f32
    %486 = vector.broadcast %cst_158 : f32 to vector<2x32xf32>
    %487 = arith.addf %486, %485 : vector<2x32xf32>
    %488 = arith.divf %486, %487 : vector<2x32xf32>
    %489 = vector.extract_strided_slice %475 {offsets = [0, 32], sizes = [2, 32], strides = [1, 1]} : vector<2x96xf32> to vector<2x32xf32>
    %490 = vector.extract_strided_slice %480 {offsets = [0, 32], sizes = [2, 32], strides = [1, 1]} : vector<2x96xf32> to vector<2x32xf32>
    %491 = arith.addf %489, %490 : vector<2x32xf32>
    %492 = arith.negf %491 : vector<2x32xf32>
    %493 = math.exp %492 : vector<2x32xf32>
    %cst_159 = arith.constant 1.000000e+00 : f32
    %494 = vector.broadcast %cst_159 : f32 to vector<2x32xf32>
    %495 = arith.addf %494, %493 : vector<2x32xf32>
    %496 = arith.divf %494, %495 : vector<2x32xf32>
    %497 = vector.extract_strided_slice %475 {offsets = [0, 64], sizes = [2, 32], strides = [1, 1]} : vector<2x96xf32> to vector<2x32xf32>
    %498 = vector.extract_strided_slice %480 {offsets = [0, 64], sizes = [2, 32], strides = [1, 1]} : vector<2x96xf32> to vector<2x32xf32>
    %499 = arith.mulf %488, %498 : vector<2x32xf32>
    %500 = arith.addf %497, %499 : vector<2x32xf32>
    %501 = math.tanh %500 : vector<2x32xf32>
    %cst_160 = arith.constant 1.000000e+00 : f32
    %502 = vector.broadcast %cst_160 : f32 to vector<2x32xf32>
    %503 = arith.subf %502, %496 : vector<2x32xf32>
    %504 = arith.mulf %503, %501 : vector<2x32xf32>
    %505 = arith.mulf %496, %369 : vector<2x32xf32>
    %506 = arith.addf %504, %505 : vector<2x32xf32>
    %507 = arith.truncf %506 : vector<2x32xf32> to vector<2x32xbf16>
    %c0_161 = arith.constant 0 : index
    %c0_162 = arith.constant 0 : index
    %508 = vector.load %arg11[%c0_161, %c0_162] : memref<32x32xbf16, #tpu.memory_space<vmem>>, vector<32x32xbf16>
    %cst_163 = arith.constant dense<0.000000e+00> : vector<2x32xf32>
    %509 = tpu.matmul %507, %508, %cst_163 {dimension_numbers = #tpu.dot_dimension_numbers<[1], [0], [0], [1], [0, 0, 1, 1], [], []>} : vector<2x32xbf16>, vector<32x32xbf16>, vector<2x32xf32> -> vector<2x32xf32>
    %510 = vector.broadcast %56 : vector<1x32xf32> to vector<2x32xf32>
    %511 = arith.addf %509, %510 : vector<2x32xf32>
    %512 = vector.shape_cast %511 : vector<2x32xf32> to vector<2x1x32xf32>
    %513 = vector.broadcast %512 : vector<2x1x32xf32> to vector<2x8x32xf32>
    %514 = arith.addf %513, %46 : vector<2x8x32xf32>
    %515 = math.tanh %514 : vector<2x8x32xf32>
    %516 = vector.shape_cast %54 : vector<1x32xf32> to vector<1x1x32xf32>
    %517 = vector.broadcast %516 : vector<1x1x32xf32> to vector<2x8x32xf32>
    %518 = arith.mulf %515, %517 : vector<2x8x32xf32>
    %cst_164 = arith.constant dense<0.000000e+00> : vector<2x8xf32>
    %519 = vector.multi_reduction <add>, %518, %cst_164 [2] : vector<2x8x32xf32> to vector<2x8xf32>
    %520 = arith.addf %519, %53 : vector<2x8xf32>
    %cst_165 = arith.constant dense<0xFF800000> : vector<2xf32>
    %521 = vector.multi_reduction <maximumf>, %520, %cst_165 [1] : vector<2x8xf32> to vector<2xf32>
    %522 = vector.shape_cast %521 : vector<2xf32> to vector<2x1xf32>
    %523 = vector.broadcast %522 : vector<2x1xf32> to vector<2x8xf32>
    %524 = arith.subf %520, %523 : vector<2x8xf32>
    %525 = math.exp %524 : vector<2x8xf32>
    %cst_166 = arith.constant dense<0.000000e+00> : vector<2xf32>
    %526 = vector.multi_reduction <add>, %525, %cst_166 [1] : vector<2x8xf32> to vector<2xf32>
    %527 = vector.shape_cast %526 : vector<2xf32> to vector<2x1xf32>
    %528 = tpu.reciprocal %527 {approx = true} : vector<2x1xf32> -> vector<2x1xf32>
    %529 = vector.broadcast %528 : vector<2x1xf32> to vector<2x8xf32>
    %530 = arith.mulf %525, %529 : vector<2x8xf32>
    %531 = vector.shape_cast %530 : vector<2x8xf32> to vector<2x8x1xf32>
    %532 = vector.broadcast %531 : vector<2x8x1xf32> to vector<2x8x32xf32>
    %533 = arith.mulf %532, %45 : vector<2x8x32xf32>
    %cst_167 = arith.constant dense<0.000000e+00> : vector<2x32xf32>
    %534 = vector.multi_reduction <add>, %533, %cst_167 [1] : vector<2x8x32xf32> to vector<2x32xf32>
    %535 = tpu.concatenate %506, %534 in 1 : vector<2x32xf32>, vector<2x32xf32> -> vector<2x64xf32>
    %536 = tpu.concatenate %535, %434 in 1 : vector<2x64xf32>, vector<2x64xf32> -> vector<2x128xf32>
    %537 = arith.truncf %536 : vector<2x128xf32> to vector<2x128xbf16>
    %c0_168 = arith.constant 0 : index
    %c0_169 = arith.constant 0 : index
    %538 = vector.load %arg16[%c0_168, %c0_169] : memref<128x384xbf16, #tpu.memory_space<vmem>>, vector<128x384xbf16>
    %cst_170 = arith.constant dense<0.000000e+00> : vector<2x384xf32>
    %539 = tpu.matmul %537, %538, %cst_170 {dimension_numbers = #tpu.dot_dimension_numbers<[1], [0], [0], [1], [0, 0, 1, 1], [], []>} : vector<2x128xbf16>, vector<128x384xbf16>, vector<2x384xf32> -> vector<2x384xf32>
    %540 = vector.extract_strided_slice %539 {offsets = [0, 0], sizes = [2, 192], strides = [1, 1]} : vector<2x384xf32> to vector<2x192xf32>
    %541 = vector.broadcast %57 : vector<1x192xf32> to vector<2x192xf32>
    %542 = arith.addf %540, %541 : vector<2x192xf32>
    %543 = vector.extract_strided_slice %539 {offsets = [0, 192], sizes = [2, 192], strides = [1, 1]} : vector<2x384xf32> to vector<2x192xf32>
    %544 = vector.broadcast %58 : vector<1x192xf32> to vector<2x192xf32>
    %545 = arith.addf %543, %544 : vector<2x192xf32>
    %546 = vector.extract_strided_slice %542 {offsets = [0, 0], sizes = [2, 64], strides = [1, 1]} : vector<2x192xf32> to vector<2x64xf32>
    %547 = vector.extract_strided_slice %545 {offsets = [0, 0], sizes = [2, 64], strides = [1, 1]} : vector<2x192xf32> to vector<2x64xf32>
    %548 = arith.addf %546, %547 : vector<2x64xf32>
    %549 = arith.negf %548 : vector<2x64xf32>
    %550 = math.exp %549 : vector<2x64xf32>
    %cst_171 = arith.constant 1.000000e+00 : f32
    %551 = vector.broadcast %cst_171 : f32 to vector<2x64xf32>
    %552 = arith.addf %551, %550 : vector<2x64xf32>
    %553 = arith.divf %551, %552 : vector<2x64xf32>
    %554 = vector.extract_strided_slice %542 {offsets = [0, 64], sizes = [2, 64], strides = [1, 1]} : vector<2x192xf32> to vector<2x64xf32>
    %555 = vector.extract_strided_slice %545 {offsets = [0, 64], sizes = [2, 64], strides = [1, 1]} : vector<2x192xf32> to vector<2x64xf32>
    %556 = arith.addf %554, %555 : vector<2x64xf32>
    %557 = arith.negf %556 : vector<2x64xf32>
    %558 = math.exp %557 : vector<2x64xf32>
    %cst_172 = arith.constant 1.000000e+00 : f32
    %559 = vector.broadcast %cst_172 : f32 to vector<2x64xf32>
    %560 = arith.addf %559, %558 : vector<2x64xf32>
    %561 = arith.divf %559, %560 : vector<2x64xf32>
    %562 = vector.extract_strided_slice %542 {offsets = [0, 128], sizes = [2, 64], strides = [1, 1]} : vector<2x192xf32> to vector<2x64xf32>
    %563 = vector.extract_strided_slice %545 {offsets = [0, 128], sizes = [2, 64], strides = [1, 1]} : vector<2x192xf32> to vector<2x64xf32>
    %564 = arith.mulf %553, %563 : vector<2x64xf32>
    %565 = arith.addf %562, %564 : vector<2x64xf32>
    %566 = math.tanh %565 : vector<2x64xf32>
    %cst_173 = arith.constant 1.000000e+00 : f32
    %567 = vector.broadcast %cst_173 : f32 to vector<2x64xf32>
    %568 = arith.subf %567, %561 : vector<2x64xf32>
    %569 = arith.mulf %568, %566 : vector<2x64xf32>
    %570 = arith.mulf %561, %434 : vector<2x64xf32>
    %571 = arith.addf %569, %570 : vector<2x64xf32>
    %572 = arith.addf %535, %571 : vector<2x64xf32>
    %573 = tpu.concatenate %572, %471 in 1 : vector<2x64xf32>, vector<2x64xf32> -> vector<2x128xf32>
    %574 = arith.truncf %573 : vector<2x128xf32> to vector<2x128xbf16>
    %c0_174 = arith.constant 0 : index
    %c0_175 = arith.constant 0 : index
    %575 = vector.load %arg19[%c0_174, %c0_175] : memref<128x384xbf16, #tpu.memory_space<vmem>>, vector<128x384xbf16>
    %cst_176 = arith.constant dense<0.000000e+00> : vector<2x384xf32>
    %576 = tpu.matmul %574, %575, %cst_176 {dimension_numbers = #tpu.dot_dimension_numbers<[1], [0], [0], [1], [0, 0, 1, 1], [], []>} : vector<2x128xbf16>, vector<128x384xbf16>, vector<2x384xf32> -> vector<2x384xf32>
    %577 = vector.extract_strided_slice %576 {offsets = [0, 0], sizes = [2, 192], strides = [1, 1]} : vector<2x384xf32> to vector<2x192xf32>
    %578 = vector.broadcast %59 : vector<1x192xf32> to vector<2x192xf32>
    %579 = arith.addf %577, %578 : vector<2x192xf32>
    %580 = vector.extract_strided_slice %576 {offsets = [0, 192], sizes = [2, 192], strides = [1, 1]} : vector<2x384xf32> to vector<2x192xf32>
    %581 = vector.broadcast %60 : vector<1x192xf32> to vector<2x192xf32>
    %582 = arith.addf %580, %581 : vector<2x192xf32>
    %583 = vector.extract_strided_slice %579 {offsets = [0, 0], sizes = [2, 64], strides = [1, 1]} : vector<2x192xf32> to vector<2x64xf32>
    %584 = vector.extract_strided_slice %582 {offsets = [0, 0], sizes = [2, 64], strides = [1, 1]} : vector<2x192xf32> to vector<2x64xf32>
    %585 = arith.addf %583, %584 : vector<2x64xf32>
    %586 = arith.negf %585 : vector<2x64xf32>
    %587 = math.exp %586 : vector<2x64xf32>
    %cst_177 = arith.constant 1.000000e+00 : f32
    %588 = vector.broadcast %cst_177 : f32 to vector<2x64xf32>
    %589 = arith.addf %588, %587 : vector<2x64xf32>
    %590 = arith.divf %588, %589 : vector<2x64xf32>
    %591 = vector.extract_strided_slice %579 {offsets = [0, 64], sizes = [2, 64], strides = [1, 1]} : vector<2x192xf32> to vector<2x64xf32>
    %592 = vector.extract_strided_slice %582 {offsets = [0, 64], sizes = [2, 64], strides = [1, 1]} : vector<2x192xf32> to vector<2x64xf32>
    %593 = arith.addf %591, %592 : vector<2x64xf32>
    %594 = arith.negf %593 : vector<2x64xf32>
    %595 = math.exp %594 : vector<2x64xf32>
    %cst_178 = arith.constant 1.000000e+00 : f32
    %596 = vector.broadcast %cst_178 : f32 to vector<2x64xf32>
    %597 = arith.addf %596, %595 : vector<2x64xf32>
    %598 = arith.divf %596, %597 : vector<2x64xf32>
    %599 = vector.extract_strided_slice %579 {offsets = [0, 128], sizes = [2, 64], strides = [1, 1]} : vector<2x192xf32> to vector<2x64xf32>
    %600 = vector.extract_strided_slice %582 {offsets = [0, 128], sizes = [2, 64], strides = [1, 1]} : vector<2x192xf32> to vector<2x64xf32>
    %601 = arith.mulf %590, %600 : vector<2x64xf32>
    %602 = arith.addf %599, %601 : vector<2x64xf32>
    %603 = math.tanh %602 : vector<2x64xf32>
    %cst_179 = arith.constant 1.000000e+00 : f32
    %604 = vector.broadcast %cst_179 : f32 to vector<2x64xf32>
    %605 = arith.subf %604, %598 : vector<2x64xf32>
    %606 = arith.mulf %605, %603 : vector<2x64xf32>
    %607 = arith.mulf %598, %471 : vector<2x64xf32>
    %608 = arith.addf %606, %607 : vector<2x64xf32>
    %609 = arith.addf %572, %608 : vector<2x64xf32>
    %c6_180 = arith.constant 6 : index
    %c0_181 = arith.constant 0 : index
    %610 = vector.load %arg28[%c6_180, %c0_181] : memref<16x64xf32, #tpu.memory_space<vmem>>, vector<2x64xf32>
    tpu.vector_store %arg28[%c6_180, %c0_181], %609 {strides = array<i32>} : memref<16x64xf32, #tpu.memory_space<vmem>>, vector<2x64xf32>,
    %c0_182 = arith.constant 0 : index
    %c24 = arith.constant 24 : index
    %611 = vector.load %arg25[%c0_182, %c24] : memref<2x224xf32, #tpu.memory_space<vmem>>, vector<2x8xf32>
    tpu.vector_store %arg25[%c0_182, %c24], %530 {strides = array<i32>} : memref<2x224xf32, #tpu.memory_space<vmem>>, vector<2x8xf32>,
    %c8_183 = arith.constant 8 : index
    %c0_184 = arith.constant 0 : index
    %612 = vector.load %arg26[%c8_183, %c0_184] : memref<16x96xf32, #tpu.memory_space<vmem>>, vector<2x96xf32>
    %613 = arith.truncf %506 : vector<2x32xf32> to vector<2x32xbf16>
    %c0_185 = arith.constant 0 : index
    %c0_186 = arith.constant 0 : index
    %614 = vector.load %arg8[%c0_185, %c0_186] : memref<32x96xbf16, #tpu.memory_space<vmem>>, vector<32x96xbf16>
    %cst_187 = arith.constant dense<0.000000e+00> : vector<2x96xf32>
    %615 = tpu.matmul %613, %614, %cst_187 {dimension_numbers = #tpu.dot_dimension_numbers<[1], [0], [0], [1], [0, 0, 1, 1], [], []>} : vector<2x32xbf16>, vector<32x96xbf16>, vector<2x96xf32> -> vector<2x96xf32>
    %616 = vector.broadcast %55 : vector<1x96xf32> to vector<2x96xf32>
    %617 = arith.addf %615, %616 : vector<2x96xf32>
    %618 = vector.extract_strided_slice %612 {offsets = [0, 0], sizes = [2, 32], strides = [1, 1]} : vector<2x96xf32> to vector<2x32xf32>
    %619 = vector.extract_strided_slice %617 {offsets = [0, 0], sizes = [2, 32], strides = [1, 1]} : vector<2x96xf32> to vector<2x32xf32>
    %620 = arith.addf %618, %619 : vector<2x32xf32>
    %621 = arith.negf %620 : vector<2x32xf32>
    %622 = math.exp %621 : vector<2x32xf32>
    %cst_188 = arith.constant 1.000000e+00 : f32
    %623 = vector.broadcast %cst_188 : f32 to vector<2x32xf32>
    %624 = arith.addf %623, %622 : vector<2x32xf32>
    %625 = arith.divf %623, %624 : vector<2x32xf32>
    %626 = vector.extract_strided_slice %612 {offsets = [0, 32], sizes = [2, 32], strides = [1, 1]} : vector<2x96xf32> to vector<2x32xf32>
    %627 = vector.extract_strided_slice %617 {offsets = [0, 32], sizes = [2, 32], strides = [1, 1]} : vector<2x96xf32> to vector<2x32xf32>
    %628 = arith.addf %626, %627 : vector<2x32xf32>
    %629 = arith.negf %628 : vector<2x32xf32>
    %630 = math.exp %629 : vector<2x32xf32>
    %cst_189 = arith.constant 1.000000e+00 : f32
    %631 = vector.broadcast %cst_189 : f32 to vector<2x32xf32>
    %632 = arith.addf %631, %630 : vector<2x32xf32>
    %633 = arith.divf %631, %632 : vector<2x32xf32>
    %634 = vector.extract_strided_slice %612 {offsets = [0, 64], sizes = [2, 32], strides = [1, 1]} : vector<2x96xf32> to vector<2x32xf32>
    %635 = vector.extract_strided_slice %617 {offsets = [0, 64], sizes = [2, 32], strides = [1, 1]} : vector<2x96xf32> to vector<2x32xf32>
    %636 = arith.mulf %625, %635 : vector<2x32xf32>
    %637 = arith.addf %634, %636 : vector<2x32xf32>
    %638 = math.tanh %637 : vector<2x32xf32>
    %cst_190 = arith.constant 1.000000e+00 : f32
    %639 = vector.broadcast %cst_190 : f32 to vector<2x32xf32>
    %640 = arith.subf %639, %633 : vector<2x32xf32>
    %641 = arith.mulf %640, %638 : vector<2x32xf32>
    %642 = arith.mulf %633, %506 : vector<2x32xf32>
    %643 = arith.addf %641, %642 : vector<2x32xf32>
    %644 = arith.truncf %643 : vector<2x32xf32> to vector<2x32xbf16>
    %c0_191 = arith.constant 0 : index
    %c0_192 = arith.constant 0 : index
    %645 = vector.load %arg11[%c0_191, %c0_192] : memref<32x32xbf16, #tpu.memory_space<vmem>>, vector<32x32xbf16>
    %cst_193 = arith.constant dense<0.000000e+00> : vector<2x32xf32>
    %646 = tpu.matmul %644, %645, %cst_193 {dimension_numbers = #tpu.dot_dimension_numbers<[1], [0], [0], [1], [0, 0, 1, 1], [], []>} : vector<2x32xbf16>, vector<32x32xbf16>, vector<2x32xf32> -> vector<2x32xf32>
    %647 = vector.broadcast %56 : vector<1x32xf32> to vector<2x32xf32>
    %648 = arith.addf %646, %647 : vector<2x32xf32>
    %649 = vector.shape_cast %648 : vector<2x32xf32> to vector<2x1x32xf32>
    %650 = vector.broadcast %649 : vector<2x1x32xf32> to vector<2x8x32xf32>
    %651 = arith.addf %650, %46 : vector<2x8x32xf32>
    %652 = math.tanh %651 : vector<2x8x32xf32>
    %653 = vector.shape_cast %54 : vector<1x32xf32> to vector<1x1x32xf32>
    %654 = vector.broadcast %653 : vector<1x1x32xf32> to vector<2x8x32xf32>
    %655 = arith.mulf %652, %654 : vector<2x8x32xf32>
    %cst_194 = arith.constant dense<0.000000e+00> : vector<2x8xf32>
    %656 = vector.multi_reduction <add>, %655, %cst_194 [2] : vector<2x8x32xf32> to vector<2x8xf32>
    %657 = arith.addf %656, %53 : vector<2x8xf32>
    %cst_195 = arith.constant dense<0xFF800000> : vector<2xf32>
    %658 = vector.multi_reduction <maximumf>, %657, %cst_195 [1] : vector<2x8xf32> to vector<2xf32>
    %659 = vector.shape_cast %658 : vector<2xf32> to vector<2x1xf32>
    %660 = vector.broadcast %659 : vector<2x1xf32> to vector<2x8xf32>
    %661 = arith.subf %657, %660 : vector<2x8xf32>
    %662 = math.exp %661 : vector<2x8xf32>
    %cst_196 = arith.constant dense<0.000000e+00> : vector<2xf32>
    %663 = vector.multi_reduction <add>, %662, %cst_196 [1] : vector<2x8xf32> to vector<2xf32>
    %664 = vector.shape_cast %663 : vector<2xf32> to vector<2x1xf32>
    %665 = tpu.reciprocal %664 {approx = true} : vector<2x1xf32> -> vector<2x1xf32>
    %666 = vector.broadcast %665 : vector<2x1xf32> to vector<2x8xf32>
    %667 = arith.mulf %662, %666 : vector<2x8xf32>
    %668 = vector.shape_cast %667 : vector<2x8xf32> to vector<2x8x1xf32>
    %669 = vector.broadcast %668 : vector<2x8x1xf32> to vector<2x8x32xf32>
    %670 = arith.mulf %669, %45 : vector<2x8x32xf32>
    %cst_197 = arith.constant dense<0.000000e+00> : vector<2x32xf32>
    %671 = vector.multi_reduction <add>, %670, %cst_197 [1] : vector<2x8x32xf32> to vector<2x32xf32>
    %672 = tpu.concatenate %643, %671 in 1 : vector<2x32xf32>, vector<2x32xf32> -> vector<2x64xf32>
    %673 = tpu.concatenate %672, %571 in 1 : vector<2x64xf32>, vector<2x64xf32> -> vector<2x128xf32>
    %674 = arith.truncf %673 : vector<2x128xf32> to vector<2x128xbf16>
    %c0_198 = arith.constant 0 : index
    %c0_199 = arith.constant 0 : index
    %675 = vector.load %arg16[%c0_198, %c0_199] : memref<128x384xbf16, #tpu.memory_space<vmem>>, vector<128x384xbf16>
    %cst_200 = arith.constant dense<0.000000e+00> : vector<2x384xf32>
    %676 = tpu.matmul %674, %675, %cst_200 {dimension_numbers = #tpu.dot_dimension_numbers<[1], [0], [0], [1], [0, 0, 1, 1], [], []>} : vector<2x128xbf16>, vector<128x384xbf16>, vector<2x384xf32> -> vector<2x384xf32>
    %677 = vector.extract_strided_slice %676 {offsets = [0, 0], sizes = [2, 192], strides = [1, 1]} : vector<2x384xf32> to vector<2x192xf32>
    %678 = vector.broadcast %57 : vector<1x192xf32> to vector<2x192xf32>
    %679 = arith.addf %677, %678 : vector<2x192xf32>
    %680 = vector.extract_strided_slice %676 {offsets = [0, 192], sizes = [2, 192], strides = [1, 1]} : vector<2x384xf32> to vector<2x192xf32>
    %681 = vector.broadcast %58 : vector<1x192xf32> to vector<2x192xf32>
    %682 = arith.addf %680, %681 : vector<2x192xf32>
    %683 = vector.extract_strided_slice %679 {offsets = [0, 0], sizes = [2, 64], strides = [1, 1]} : vector<2x192xf32> to vector<2x64xf32>
    %684 = vector.extract_strided_slice %682 {offsets = [0, 0], sizes = [2, 64], strides = [1, 1]} : vector<2x192xf32> to vector<2x64xf32>
    %685 = arith.addf %683, %684 : vector<2x64xf32>
    %686 = arith.negf %685 : vector<2x64xf32>
    %687 = math.exp %686 : vector<2x64xf32>
    %cst_201 = arith.constant 1.000000e+00 : f32
    %688 = vector.broadcast %cst_201 : f32 to vector<2x64xf32>
    %689 = arith.addf %688, %687 : vector<2x64xf32>
    %690 = arith.divf %688, %689 : vector<2x64xf32>
    %691 = vector.extract_strided_slice %679 {offsets = [0, 64], sizes = [2, 64], strides = [1, 1]} : vector<2x192xf32> to vector<2x64xf32>
    %692 = vector.extract_strided_slice %682 {offsets = [0, 64], sizes = [2, 64], strides = [1, 1]} : vector<2x192xf32> to vector<2x64xf32>
    %693 = arith.addf %691, %692 : vector<2x64xf32>
    %694 = arith.negf %693 : vector<2x64xf32>
    %695 = math.exp %694 : vector<2x64xf32>
    %cst_202 = arith.constant 1.000000e+00 : f32
    %696 = vector.broadcast %cst_202 : f32 to vector<2x64xf32>
    %697 = arith.addf %696, %695 : vector<2x64xf32>
    %698 = arith.divf %696, %697 : vector<2x64xf32>
    %699 = vector.extract_strided_slice %679 {offsets = [0, 128], sizes = [2, 64], strides = [1, 1]} : vector<2x192xf32> to vector<2x64xf32>
    %700 = vector.extract_strided_slice %682 {offsets = [0, 128], sizes = [2, 64], strides = [1, 1]} : vector<2x192xf32> to vector<2x64xf32>
    %701 = arith.mulf %690, %700 : vector<2x64xf32>
    %702 = arith.addf %699, %701 : vector<2x64xf32>
    %703 = math.tanh %702 : vector<2x64xf32>
    %cst_203 = arith.constant 1.000000e+00 : f32
    %704 = vector.broadcast %cst_203 : f32 to vector<2x64xf32>
    %705 = arith.subf %704, %698 : vector<2x64xf32>
    %706 = arith.mulf %705, %703 : vector<2x64xf32>
    %707 = arith.mulf %698, %571 : vector<2x64xf32>
    %708 = arith.addf %706, %707 : vector<2x64xf32>
    %709 = arith.addf %672, %708 : vector<2x64xf32>
    %710 = tpu.concatenate %709, %608 in 1 : vector<2x64xf32>, vector<2x64xf32> -> vector<2x128xf32>
    %711 = arith.truncf %710 : vector<2x128xf32> to vector<2x128xbf16>
    %c0_204 = arith.constant 0 : index
    %c0_205 = arith.constant 0 : index
    %712 = vector.load %arg19[%c0_204, %c0_205] : memref<128x384xbf16, #tpu.memory_space<vmem>>, vector<128x384xbf16>
    %cst_206 = arith.constant dense<0.000000e+00> : vector<2x384xf32>
    %713 = tpu.matmul %711, %712, %cst_206 {dimension_numbers = #tpu.dot_dimension_numbers<[1], [0], [0], [1], [0, 0, 1, 1], [], []>} : vector<2x128xbf16>, vector<128x384xbf16>, vector<2x384xf32> -> vector<2x384xf32>
    %714 = vector.extract_strided_slice %713 {offsets = [0, 0], sizes = [2, 192], strides = [1, 1]} : vector<2x384xf32> to vector<2x192xf32>
    %715 = vector.broadcast %59 : vector<1x192xf32> to vector<2x192xf32>
    %716 = arith.addf %714, %715 : vector<2x192xf32>
    %717 = vector.extract_strided_slice %713 {offsets = [0, 192], sizes = [2, 192], strides = [1, 1]} : vector<2x384xf32> to vector<2x192xf32>
    %718 = vector.broadcast %60 : vector<1x192xf32> to vector<2x192xf32>
    %719 = arith.addf %717, %718 : vector<2x192xf32>
    %720 = vector.extract_strided_slice %716 {offsets = [0, 0], sizes = [2, 64], strides = [1, 1]} : vector<2x192xf32> to vector<2x64xf32>
    %721 = vector.extract_strided_slice %719 {offsets = [0, 0], sizes = [2, 64], strides = [1, 1]} : vector<2x192xf32> to vector<2x64xf32>
    %722 = arith.addf %720, %721 : vector<2x64xf32>
    %723 = arith.negf %722 : vector<2x64xf32>
    %724 = math.exp %723 : vector<2x64xf32>
    %cst_207 = arith.constant 1.000000e+00 : f32
    %725 = vector.broadcast %cst_207 : f32 to vector<2x64xf32>
    %726 = arith.addf %725, %724 : vector<2x64xf32>
    %727 = arith.divf %725, %726 : vector<2x64xf32>
    %728 = vector.extract_strided_slice %716 {offsets = [0, 64], sizes = [2, 64], strides = [1, 1]} : vector<2x192xf32> to vector<2x64xf32>
    %729 = vector.extract_strided_slice %719 {offsets = [0, 64], sizes = [2, 64], strides = [1, 1]} : vector<2x192xf32> to vector<2x64xf32>
    %730 = arith.addf %728, %729 : vector<2x64xf32>
    %731 = arith.negf %730 : vector<2x64xf32>
    %732 = math.exp %731 : vector<2x64xf32>
    %cst_208 = arith.constant 1.000000e+00 : f32
    %733 = vector.broadcast %cst_208 : f32 to vector<2x64xf32>
    %734 = arith.addf %733, %732 : vector<2x64xf32>
    %735 = arith.divf %733, %734 : vector<2x64xf32>
    %736 = vector.extract_strided_slice %716 {offsets = [0, 128], sizes = [2, 64], strides = [1, 1]} : vector<2x192xf32> to vector<2x64xf32>
    %737 = vector.extract_strided_slice %719 {offsets = [0, 128], sizes = [2, 64], strides = [1, 1]} : vector<2x192xf32> to vector<2x64xf32>
    %738 = arith.mulf %727, %737 : vector<2x64xf32>
    %739 = arith.addf %736, %738 : vector<2x64xf32>
    %740 = math.tanh %739 : vector<2x64xf32>
    %cst_209 = arith.constant 1.000000e+00 : f32
    %741 = vector.broadcast %cst_209 : f32 to vector<2x64xf32>
    %742 = arith.subf %741, %735 : vector<2x64xf32>
    %743 = arith.mulf %742, %740 : vector<2x64xf32>
    %744 = arith.mulf %735, %608 : vector<2x64xf32>
    %745 = arith.addf %743, %744 : vector<2x64xf32>
    %746 = arith.addf %709, %745 : vector<2x64xf32>
    %c8_210 = arith.constant 8 : index
    %c0_211 = arith.constant 0 : index
    %747 = vector.load %arg28[%c8_210, %c0_211] : memref<16x64xf32, #tpu.memory_space<vmem>>, vector<2x64xf32>
    tpu.vector_store %arg28[%c8_210, %c0_211], %746 {strides = array<i32>} : memref<16x64xf32, #tpu.memory_space<vmem>>, vector<2x64xf32>,
    %c0_212 = arith.constant 0 : index
    %c32 = arith.constant 32 : index
    %748 = vector.load %arg25[%c0_212, %c32] : memref<2x224xf32, #tpu.memory_space<vmem>>, vector<2x8xf32>
    tpu.vector_store %arg25[%c0_212, %c32], %667 {strides = array<i32>} : memref<2x224xf32, #tpu.memory_space<vmem>>, vector<2x8xf32>,
    %c10 = arith.constant 10 : index
    %c0_213 = arith.constant 0 : index
    %749 = vector.load %arg26[%c10, %c0_213] : memref<16x96xf32, #tpu.memory_space<vmem>>, vector<2x96xf32>
    %750 = arith.truncf %643 : vector<2x32xf32> to vector<2x32xbf16>
    %c0_214 = arith.constant 0 : index
    %c0_215 = arith.constant 0 : index
    %751 = vector.load %arg8[%c0_214, %c0_215] : memref<32x96xbf16, #tpu.memory_space<vmem>>, vector<32x96xbf16>
    %cst_216 = arith.constant dense<0.000000e+00> : vector<2x96xf32>
    %752 = tpu.matmul %750, %751, %cst_216 {dimension_numbers = #tpu.dot_dimension_numbers<[1], [0], [0], [1], [0, 0, 1, 1], [], []>} : vector<2x32xbf16>, vector<32x96xbf16>, vector<2x96xf32> -> vector<2x96xf32>
    %753 = vector.broadcast %55 : vector<1x96xf32> to vector<2x96xf32>
    %754 = arith.addf %752, %753 : vector<2x96xf32>
    %755 = vector.extract_strided_slice %749 {offsets = [0, 0], sizes = [2, 32], strides = [1, 1]} : vector<2x96xf32> to vector<2x32xf32>
    %756 = vector.extract_strided_slice %754 {offsets = [0, 0], sizes = [2, 32], strides = [1, 1]} : vector<2x96xf32> to vector<2x32xf32>
    %757 = arith.addf %755, %756 : vector<2x32xf32>
    %758 = arith.negf %757 : vector<2x32xf32>
    %759 = math.exp %758 : vector<2x32xf32>
    %cst_217 = arith.constant 1.000000e+00 : f32
    %760 = vector.broadcast %cst_217 : f32 to vector<2x32xf32>
    %761 = arith.addf %760, %759 : vector<2x32xf32>
    %762 = arith.divf %760, %761 : vector<2x32xf32>
    %763 = vector.extract_strided_slice %749 {offsets = [0, 32], sizes = [2, 32], strides = [1, 1]} : vector<2x96xf32> to vector<2x32xf32>
    %764 = vector.extract_strided_slice %754 {offsets = [0, 32], sizes = [2, 32], strides = [1, 1]} : vector<2x96xf32> to vector<2x32xf32>
    %765 = arith.addf %763, %764 : vector<2x32xf32>
    %766 = arith.negf %765 : vector<2x32xf32>
    %767 = math.exp %766 : vector<2x32xf32>
    %cst_218 = arith.constant 1.000000e+00 : f32
    %768 = vector.broadcast %cst_218 : f32 to vector<2x32xf32>
    %769 = arith.addf %768, %767 : vector<2x32xf32>
    %770 = arith.divf %768, %769 : vector<2x32xf32>
    %771 = vector.extract_strided_slice %749 {offsets = [0, 64], sizes = [2, 32], strides = [1, 1]} : vector<2x96xf32> to vector<2x32xf32>
    %772 = vector.extract_strided_slice %754 {offsets = [0, 64], sizes = [2, 32], strides = [1, 1]} : vector<2x96xf32> to vector<2x32xf32>
    %773 = arith.mulf %762, %772 : vector<2x32xf32>
    %774 = arith.addf %771, %773 : vector<2x32xf32>
    %775 = math.tanh %774 : vector<2x32xf32>
    %cst_219 = arith.constant 1.000000e+00 : f32
    %776 = vector.broadcast %cst_219 : f32 to vector<2x32xf32>
    %777 = arith.subf %776, %770 : vector<2x32xf32>
    %778 = arith.mulf %777, %775 : vector<2x32xf32>
    %779 = arith.mulf %770, %643 : vector<2x32xf32>
    %780 = arith.addf %778, %779 : vector<2x32xf32>
    %781 = arith.truncf %780 : vector<2x32xf32> to vector<2x32xbf16>
    %c0_220 = arith.constant 0 : index
    %c0_221 = arith.constant 0 : index
    %782 = vector.load %arg11[%c0_220, %c0_221] : memref<32x32xbf16, #tpu.memory_space<vmem>>, vector<32x32xbf16>
    %cst_222 = arith.constant dense<0.000000e+00> : vector<2x32xf32>
    %783 = tpu.matmul %781, %782, %cst_222 {dimension_numbers = #tpu.dot_dimension_numbers<[1], [0], [0], [1], [0, 0, 1, 1], [], []>} : vector<2x32xbf16>, vector<32x32xbf16>, vector<2x32xf32> -> vector<2x32xf32>
    %784 = vector.broadcast %56 : vector<1x32xf32> to vector<2x32xf32>
    %785 = arith.addf %783, %784 : vector<2x32xf32>
    %786 = vector.shape_cast %785 : vector<2x32xf32> to vector<2x1x32xf32>
    %787 = vector.broadcast %786 : vector<2x1x32xf32> to vector<2x8x32xf32>
    %788 = arith.addf %787, %46 : vector<2x8x32xf32>
    %789 = math.tanh %788 : vector<2x8x32xf32>
    %790 = vector.shape_cast %54 : vector<1x32xf32> to vector<1x1x32xf32>
    %791 = vector.broadcast %790 : vector<1x1x32xf32> to vector<2x8x32xf32>
    %792 = arith.mulf %789, %791 : vector<2x8x32xf32>
    %cst_223 = arith.constant dense<0.000000e+00> : vector<2x8xf32>
    %793 = vector.multi_reduction <add>, %792, %cst_223 [2] : vector<2x8x32xf32> to vector<2x8xf32>
    %794 = arith.addf %793, %53 : vector<2x8xf32>
    %cst_224 = arith.constant dense<0xFF800000> : vector<2xf32>
    %795 = vector.multi_reduction <maximumf>, %794, %cst_224 [1] : vector<2x8xf32> to vector<2xf32>
    %796 = vector.shape_cast %795 : vector<2xf32> to vector<2x1xf32>
    %797 = vector.broadcast %796 : vector<2x1xf32> to vector<2x8xf32>
    %798 = arith.subf %794, %797 : vector<2x8xf32>
    %799 = math.exp %798 : vector<2x8xf32>
    %cst_225 = arith.constant dense<0.000000e+00> : vector<2xf32>
    %800 = vector.multi_reduction <add>, %799, %cst_225 [1] : vector<2x8xf32> to vector<2xf32>
    %801 = vector.shape_cast %800 : vector<2xf32> to vector<2x1xf32>
    %802 = tpu.reciprocal %801 {approx = true} : vector<2x1xf32> -> vector<2x1xf32>
    %803 = vector.broadcast %802 : vector<2x1xf32> to vector<2x8xf32>
    %804 = arith.mulf %799, %803 : vector<2x8xf32>
    %805 = vector.shape_cast %804 : vector<2x8xf32> to vector<2x8x1xf32>
    %806 = vector.broadcast %805 : vector<2x8x1xf32> to vector<2x8x32xf32>
    %807 = arith.mulf %806, %45 : vector<2x8x32xf32>
    %cst_226 = arith.constant dense<0.000000e+00> : vector<2x32xf32>
    %808 = vector.multi_reduction <add>, %807, %cst_226 [1] : vector<2x8x32xf32> to vector<2x32xf32>
    %809 = tpu.concatenate %780, %808 in 1 : vector<2x32xf32>, vector<2x32xf32> -> vector<2x64xf32>
    %810 = tpu.concatenate %809, %708 in 1 : vector<2x64xf32>, vector<2x64xf32> -> vector<2x128xf32>
    %811 = arith.truncf %810 : vector<2x128xf32> to vector<2x128xbf16>
    %c0_227 = arith.constant 0 : index
    %c0_228 = arith.constant 0 : index
    %812 = vector.load %arg16[%c0_227, %c0_228] : memref<128x384xbf16, #tpu.memory_space<vmem>>, vector<128x384xbf16>
    %cst_229 = arith.constant dense<0.000000e+00> : vector<2x384xf32>
    %813 = tpu.matmul %811, %812, %cst_229 {dimension_numbers = #tpu.dot_dimension_numbers<[1], [0], [0], [1], [0, 0, 1, 1], [], []>} : vector<2x128xbf16>, vector<128x384xbf16>, vector<2x384xf32> -> vector<2x384xf32>
    %814 = vector.extract_strided_slice %813 {offsets = [0, 0], sizes = [2, 192], strides = [1, 1]} : vector<2x384xf32> to vector<2x192xf32>
    %815 = vector.broadcast %57 : vector<1x192xf32> to vector<2x192xf32>
    %816 = arith.addf %814, %815 : vector<2x192xf32>
    %817 = vector.extract_strided_slice %813 {offsets = [0, 192], sizes = [2, 192], strides = [1, 1]} : vector<2x384xf32> to vector<2x192xf32>
    %818 = vector.broadcast %58 : vector<1x192xf32> to vector<2x192xf32>
    %819 = arith.addf %817, %818 : vector<2x192xf32>
    %820 = vector.extract_strided_slice %816 {offsets = [0, 0], sizes = [2, 64], strides = [1, 1]} : vector<2x192xf32> to vector<2x64xf32>
    %821 = vector.extract_strided_slice %819 {offsets = [0, 0], sizes = [2, 64], strides = [1, 1]} : vector<2x192xf32> to vector<2x64xf32>
    %822 = arith.addf %820, %821 : vector<2x64xf32>
    %823 = arith.negf %822 : vector<2x64xf32>
    %824 = math.exp %823 : vector<2x64xf32>
    %cst_230 = arith.constant 1.000000e+00 : f32
    %825 = vector.broadcast %cst_230 : f32 to vector<2x64xf32>
    %826 = arith.addf %825, %824 : vector<2x64xf32>
    %827 = arith.divf %825, %826 : vector<2x64xf32>
    %828 = vector.extract_strided_slice %816 {offsets = [0, 64], sizes = [2, 64], strides = [1, 1]} : vector<2x192xf32> to vector<2x64xf32>
    %829 = vector.extract_strided_slice %819 {offsets = [0, 64], sizes = [2, 64], strides = [1, 1]} : vector<2x192xf32> to vector<2x64xf32>
    %830 = arith.addf %828, %829 : vector<2x64xf32>
    %831 = arith.negf %830 : vector<2x64xf32>
    %832 = math.exp %831 : vector<2x64xf32>
    %cst_231 = arith.constant 1.000000e+00 : f32
    %833 = vector.broadcast %cst_231 : f32 to vector<2x64xf32>
    %834 = arith.addf %833, %832 : vector<2x64xf32>
    %835 = arith.divf %833, %834 : vector<2x64xf32>
    %836 = vector.extract_strided_slice %816 {offsets = [0, 128], sizes = [2, 64], strides = [1, 1]} : vector<2x192xf32> to vector<2x64xf32>
    %837 = vector.extract_strided_slice %819 {offsets = [0, 128], sizes = [2, 64], strides = [1, 1]} : vector<2x192xf32> to vector<2x64xf32>
    %838 = arith.mulf %827, %837 : vector<2x64xf32>
    %839 = arith.addf %836, %838 : vector<2x64xf32>
    %840 = math.tanh %839 : vector<2x64xf32>
    %cst_232 = arith.constant 1.000000e+00 : f32
    %841 = vector.broadcast %cst_232 : f32 to vector<2x64xf32>
    %842 = arith.subf %841, %835 : vector<2x64xf32>
    %843 = arith.mulf %842, %840 : vector<2x64xf32>
    %844 = arith.mulf %835, %708 : vector<2x64xf32>
    %845 = arith.addf %843, %844 : vector<2x64xf32>
    %846 = arith.addf %809, %845 : vector<2x64xf32>
    %847 = tpu.concatenate %846, %745 in 1 : vector<2x64xf32>, vector<2x64xf32> -> vector<2x128xf32>
    %848 = arith.truncf %847 : vector<2x128xf32> to vector<2x128xbf16>
    %c0_233 = arith.constant 0 : index
    %c0_234 = arith.constant 0 : index
    %849 = vector.load %arg19[%c0_233, %c0_234] : memref<128x384xbf16, #tpu.memory_space<vmem>>, vector<128x384xbf16>
    %cst_235 = arith.constant dense<0.000000e+00> : vector<2x384xf32>
    %850 = tpu.matmul %848, %849, %cst_235 {dimension_numbers = #tpu.dot_dimension_numbers<[1], [0], [0], [1], [0, 0, 1, 1], [], []>} : vector<2x128xbf16>, vector<128x384xbf16>, vector<2x384xf32> -> vector<2x384xf32>
    %851 = vector.extract_strided_slice %850 {offsets = [0, 0], sizes = [2, 192], strides = [1, 1]} : vector<2x384xf32> to vector<2x192xf32>
    %852 = vector.broadcast %59 : vector<1x192xf32> to vector<2x192xf32>
    %853 = arith.addf %851, %852 : vector<2x192xf32>
    %854 = vector.extract_strided_slice %850 {offsets = [0, 192], sizes = [2, 192], strides = [1, 1]} : vector<2x384xf32> to vector<2x192xf32>
    %855 = vector.broadcast %60 : vector<1x192xf32> to vector<2x192xf32>
    %856 = arith.addf %854, %855 : vector<2x192xf32>
    %857 = vector.extract_strided_slice %853 {offsets = [0, 0], sizes = [2, 64], strides = [1, 1]} : vector<2x192xf32> to vector<2x64xf32>
    %858 = vector.extract_strided_slice %856 {offsets = [0, 0], sizes = [2, 64], strides = [1, 1]} : vector<2x192xf32> to vector<2x64xf32>
    %859 = arith.addf %857, %858 : vector<2x64xf32>
    %860 = arith.negf %859 : vector<2x64xf32>
    %861 = math.exp %860 : vector<2x64xf32>
    %cst_236 = arith.constant 1.000000e+00 : f32
    %862 = vector.broadcast %cst_236 : f32 to vector<2x64xf32>
    %863 = arith.addf %862, %861 : vector<2x64xf32>
    %864 = arith.divf %862, %863 : vector<2x64xf32>
    %865 = vector.extract_strided_slice %853 {offsets = [0, 64], sizes = [2, 64], strides = [1, 1]} : vector<2x192xf32> to vector<2x64xf32>
    %866 = vector.extract_strided_slice %856 {offsets = [0, 64], sizes = [2, 64], strides = [1, 1]} : vector<2x192xf32> to vector<2x64xf32>
    %867 = arith.addf %865, %866 : vector<2x64xf32>
    %868 = arith.negf %867 : vector<2x64xf32>
    %869 = math.exp %868 : vector<2x64xf32>
    %cst_237 = arith.constant 1.000000e+00 : f32
    %870 = vector.broadcast %cst_237 : f32 to vector<2x64xf32>
    %871 = arith.addf %870, %869 : vector<2x64xf32>
    %872 = arith.divf %870, %871 : vector<2x64xf32>
    %873 = vector.extract_strided_slice %853 {offsets = [0, 128], sizes = [2, 64], strides = [1, 1]} : vector<2x192xf32> to vector<2x64xf32>
    %874 = vector.extract_strided_slice %856 {offsets = [0, 128], sizes = [2, 64], strides = [1, 1]} : vector<2x192xf32> to vector<2x64xf32>
    %875 = arith.mulf %864, %874 : vector<2x64xf32>
    %876 = arith.addf %873, %875 : vector<2x64xf32>
    %877 = math.tanh %876 : vector<2x64xf32>
    %cst_238 = arith.constant 1.000000e+00 : f32
    %878 = vector.broadcast %cst_238 : f32 to vector<2x64xf32>
    %879 = arith.subf %878, %872 : vector<2x64xf32>
    %880 = arith.mulf %879, %877 : vector<2x64xf32>
    %881 = arith.mulf %872, %745 : vector<2x64xf32>
    %882 = arith.addf %880, %881 : vector<2x64xf32>
    %883 = arith.addf %846, %882 : vector<2x64xf32>
    %c10_239 = arith.constant 10 : index
    %c0_240 = arith.constant 0 : index
    %884 = vector.load %arg28[%c10_239, %c0_240] : memref<16x64xf32, #tpu.memory_space<vmem>>, vector<2x64xf32>
    tpu.vector_store %arg28[%c10_239, %c0_240], %883 {strides = array<i32>} : memref<16x64xf32, #tpu.memory_space<vmem>>, vector<2x64xf32>,
    %c0_241 = arith.constant 0 : index
    %c40 = arith.constant 40 : index
    %885 = vector.load %arg25[%c0_241, %c40] : memref<2x224xf32, #tpu.memory_space<vmem>>, vector<2x8xf32>
    tpu.vector_store %arg25[%c0_241, %c40], %804 {strides = array<i32>} : memref<2x224xf32, #tpu.memory_space<vmem>>, vector<2x8xf32>,
    %c12 = arith.constant 12 : index
    %c0_242 = arith.constant 0 : index
    %886 = vector.load %arg26[%c12, %c0_242] : memref<16x96xf32, #tpu.memory_space<vmem>>, vector<2x96xf32>
    %887 = arith.truncf %780 : vector<2x32xf32> to vector<2x32xbf16>
    %c0_243 = arith.constant 0 : index
    %c0_244 = arith.constant 0 : index
    %888 = vector.load %arg8[%c0_243, %c0_244] : memref<32x96xbf16, #tpu.memory_space<vmem>>, vector<32x96xbf16>
    %cst_245 = arith.constant dense<0.000000e+00> : vector<2x96xf32>
    %889 = tpu.matmul %887, %888, %cst_245 {dimension_numbers = #tpu.dot_dimension_numbers<[1], [0], [0], [1], [0, 0, 1, 1], [], []>} : vector<2x32xbf16>, vector<32x96xbf16>, vector<2x96xf32> -> vector<2x96xf32>
    %890 = vector.broadcast %55 : vector<1x96xf32> to vector<2x96xf32>
    %891 = arith.addf %889, %890 : vector<2x96xf32>
    %892 = vector.extract_strided_slice %886 {offsets = [0, 0], sizes = [2, 32], strides = [1, 1]} : vector<2x96xf32> to vector<2x32xf32>
    %893 = vector.extract_strided_slice %891 {offsets = [0, 0], sizes = [2, 32], strides = [1, 1]} : vector<2x96xf32> to vector<2x32xf32>
    %894 = arith.addf %892, %893 : vector<2x32xf32>
    %895 = arith.negf %894 : vector<2x32xf32>
    %896 = math.exp %895 : vector<2x32xf32>
    %cst_246 = arith.constant 1.000000e+00 : f32
    %897 = vector.broadcast %cst_246 : f32 to vector<2x32xf32>
    %898 = arith.addf %897, %896 : vector<2x32xf32>
    %899 = arith.divf %897, %898 : vector<2x32xf32>
    %900 = vector.extract_strided_slice %886 {offsets = [0, 32], sizes = [2, 32], strides = [1, 1]} : vector<2x96xf32> to vector<2x32xf32>
    %901 = vector.extract_strided_slice %891 {offsets = [0, 32], sizes = [2, 32], strides = [1, 1]} : vector<2x96xf32> to vector<2x32xf32>
    %902 = arith.addf %900, %901 : vector<2x32xf32>
    %903 = arith.negf %902 : vector<2x32xf32>
    %904 = math.exp %903 : vector<2x32xf32>
    %cst_247 = arith.constant 1.000000e+00 : f32
    %905 = vector.broadcast %cst_247 : f32 to vector<2x32xf32>
    %906 = arith.addf %905, %904 : vector<2x32xf32>
    %907 = arith.divf %905, %906 : vector<2x32xf32>
    %908 = vector.extract_strided_slice %886 {offsets = [0, 64], sizes = [2, 32], strides = [1, 1]} : vector<2x96xf32> to vector<2x32xf32>
    %909 = vector.extract_strided_slice %891 {offsets = [0, 64], sizes = [2, 32], strides = [1, 1]} : vector<2x96xf32> to vector<2x32xf32>
    %910 = arith.mulf %899, %909 : vector<2x32xf32>
    %911 = arith.addf %908, %910 : vector<2x32xf32>
    %912 = math.tanh %911 : vector<2x32xf32>
    %cst_248 = arith.constant 1.000000e+00 : f32
    %913 = vector.broadcast %cst_248 : f32 to vector<2x32xf32>
    %914 = arith.subf %913, %907 : vector<2x32xf32>
    %915 = arith.mulf %914, %912 : vector<2x32xf32>
    %916 = arith.mulf %907, %780 : vector<2x32xf32>
    %917 = arith.addf %915, %916 : vector<2x32xf32>
    %918 = arith.truncf %917 : vector<2x32xf32> to vector<2x32xbf16>
    %c0_249 = arith.constant 0 : index
    %c0_250 = arith.constant 0 : index
    %919 = vector.load %arg11[%c0_249, %c0_250] : memref<32x32xbf16, #tpu.memory_space<vmem>>, vector<32x32xbf16>
    %cst_251 = arith.constant dense<0.000000e+00> : vector<2x32xf32>
    %920 = tpu.matmul %918, %919, %cst_251 {dimension_numbers = #tpu.dot_dimension_numbers<[1], [0], [0], [1], [0, 0, 1, 1], [], []>} : vector<2x32xbf16>, vector<32x32xbf16>, vector<2x32xf32> -> vector<2x32xf32>
    %921 = vector.broadcast %56 : vector<1x32xf32> to vector<2x32xf32>
    %922 = arith.addf %920, %921 : vector<2x32xf32>
    %923 = vector.shape_cast %922 : vector<2x32xf32> to vector<2x1x32xf32>
    %924 = vector.broadcast %923 : vector<2x1x32xf32> to vector<2x8x32xf32>
    %925 = arith.addf %924, %46 : vector<2x8x32xf32>
    %926 = math.tanh %925 : vector<2x8x32xf32>
    %927 = vector.shape_cast %54 : vector<1x32xf32> to vector<1x1x32xf32>
    %928 = vector.broadcast %927 : vector<1x1x32xf32> to vector<2x8x32xf32>
    %929 = arith.mulf %926, %928 : vector<2x8x32xf32>
    %cst_252 = arith.constant dense<0.000000e+00> : vector<2x8xf32>
    %930 = vector.multi_reduction <add>, %929, %cst_252 [2] : vector<2x8x32xf32> to vector<2x8xf32>
    %931 = arith.addf %930, %53 : vector<2x8xf32>
    %cst_253 = arith.constant dense<0xFF800000> : vector<2xf32>
    %932 = vector.multi_reduction <maximumf>, %931, %cst_253 [1] : vector<2x8xf32> to vector<2xf32>
    %933 = vector.shape_cast %932 : vector<2xf32> to vector<2x1xf32>
    %934 = vector.broadcast %933 : vector<2x1xf32> to vector<2x8xf32>
    %935 = arith.subf %931, %934 : vector<2x8xf32>
    %936 = math.exp %935 : vector<2x8xf32>
    %cst_254 = arith.constant dense<0.000000e+00> : vector<2xf32>
    %937 = vector.multi_reduction <add>, %936, %cst_254 [1] : vector<2x8xf32> to vector<2xf32>
    %938 = vector.shape_cast %937 : vector<2xf32> to vector<2x1xf32>
    %939 = tpu.reciprocal %938 {approx = true} : vector<2x1xf32> -> vector<2x1xf32>
    %940 = vector.broadcast %939 : vector<2x1xf32> to vector<2x8xf32>
    %941 = arith.mulf %936, %940 : vector<2x8xf32>
    %942 = vector.shape_cast %941 : vector<2x8xf32> to vector<2x8x1xf32>
    %943 = vector.broadcast %942 : vector<2x8x1xf32> to vector<2x8x32xf32>
    %944 = arith.mulf %943, %45 : vector<2x8x32xf32>
    %cst_255 = arith.constant dense<0.000000e+00> : vector<2x32xf32>
    %945 = vector.multi_reduction <add>, %944, %cst_255 [1] : vector<2x8x32xf32> to vector<2x32xf32>
    %946 = tpu.concatenate %917, %945 in 1 : vector<2x32xf32>, vector<2x32xf32> -> vector<2x64xf32>
    %947 = tpu.concatenate %946, %845 in 1 : vector<2x64xf32>, vector<2x64xf32> -> vector<2x128xf32>
    %948 = arith.truncf %947 : vector<2x128xf32> to vector<2x128xbf16>
    %c0_256 = arith.constant 0 : index
    %c0_257 = arith.constant 0 : index
    %949 = vector.load %arg16[%c0_256, %c0_257] : memref<128x384xbf16, #tpu.memory_space<vmem>>, vector<128x384xbf16>
    %cst_258 = arith.constant dense<0.000000e+00> : vector<2x384xf32>
    %950 = tpu.matmul %948, %949, %cst_258 {dimension_numbers = #tpu.dot_dimension_numbers<[1], [0], [0], [1], [0, 0, 1, 1], [], []>} : vector<2x128xbf16>, vector<128x384xbf16>, vector<2x384xf32> -> vector<2x384xf32>
    %951 = vector.extract_strided_slice %950 {offsets = [0, 0], sizes = [2, 192], strides = [1, 1]} : vector<2x384xf32> to vector<2x192xf32>
    %952 = vector.broadcast %57 : vector<1x192xf32> to vector<2x192xf32>
    %953 = arith.addf %951, %952 : vector<2x192xf32>
    %954 = vector.extract_strided_slice %950 {offsets = [0, 192], sizes = [2, 192], strides = [1, 1]} : vector<2x384xf32> to vector<2x192xf32>
    %955 = vector.broadcast %58 : vector<1x192xf32> to vector<2x192xf32>
    %956 = arith.addf %954, %955 : vector<2x192xf32>
    %957 = vector.extract_strided_slice %953 {offsets = [0, 0], sizes = [2, 64], strides = [1, 1]} : vector<2x192xf32> to vector<2x64xf32>
    %958 = vector.extract_strided_slice %956 {offsets = [0, 0], sizes = [2, 64], strides = [1, 1]} : vector<2x192xf32> to vector<2x64xf32>
    %959 = arith.addf %957, %958 : vector<2x64xf32>
    %960 = arith.negf %959 : vector<2x64xf32>
    %961 = math.exp %960 : vector<2x64xf32>
    %cst_259 = arith.constant 1.000000e+00 : f32
    %962 = vector.broadcast %cst_259 : f32 to vector<2x64xf32>
    %963 = arith.addf %962, %961 : vector<2x64xf32>
    %964 = arith.divf %962, %963 : vector<2x64xf32>
    %965 = vector.extract_strided_slice %953 {offsets = [0, 64], sizes = [2, 64], strides = [1, 1]} : vector<2x192xf32> to vector<2x64xf32>
    %966 = vector.extract_strided_slice %956 {offsets = [0, 64], sizes = [2, 64], strides = [1, 1]} : vector<2x192xf32> to vector<2x64xf32>
    %967 = arith.addf %965, %966 : vector<2x64xf32>
    %968 = arith.negf %967 : vector<2x64xf32>
    %969 = math.exp %968 : vector<2x64xf32>
    %cst_260 = arith.constant 1.000000e+00 : f32
    %970 = vector.broadcast %cst_260 : f32 to vector<2x64xf32>
    %971 = arith.addf %970, %969 : vector<2x64xf32>
    %972 = arith.divf %970, %971 : vector<2x64xf32>
    %973 = vector.extract_strided_slice %953 {offsets = [0, 128], sizes = [2, 64], strides = [1, 1]} : vector<2x192xf32> to vector<2x64xf32>
    %974 = vector.extract_strided_slice %956 {offsets = [0, 128], sizes = [2, 64], strides = [1, 1]} : vector<2x192xf32> to vector<2x64xf32>
    %975 = arith.mulf %964, %974 : vector<2x64xf32>
    %976 = arith.addf %973, %975 : vector<2x64xf32>
    %977 = math.tanh %976 : vector<2x64xf32>
    %cst_261 = arith.constant 1.000000e+00 : f32
    %978 = vector.broadcast %cst_261 : f32 to vector<2x64xf32>
    %979 = arith.subf %978, %972 : vector<2x64xf32>
    %980 = arith.mulf %979, %977 : vector<2x64xf32>
    %981 = arith.mulf %972, %845 : vector<2x64xf32>
    %982 = arith.addf %980, %981 : vector<2x64xf32>
    %983 = arith.addf %946, %982 : vector<2x64xf32>
    %984 = tpu.concatenate %983, %882 in 1 : vector<2x64xf32>, vector<2x64xf32> -> vector<2x128xf32>
    %985 = arith.truncf %984 : vector<2x128xf32> to vector<2x128xbf16>
    %c0_262 = arith.constant 0 : index
    %c0_263 = arith.constant 0 : index
    %986 = vector.load %arg19[%c0_262, %c0_263] : memref<128x384xbf16, #tpu.memory_space<vmem>>, vector<128x384xbf16>
    %cst_264 = arith.constant dense<0.000000e+00> : vector<2x384xf32>
    %987 = tpu.matmul %985, %986, %cst_264 {dimension_numbers = #tpu.dot_dimension_numbers<[1], [0], [0], [1], [0, 0, 1, 1], [], []>} : vector<2x128xbf16>, vector<128x384xbf16>, vector<2x384xf32> -> vector<2x384xf32>
    %988 = vector.extract_strided_slice %987 {offsets = [0, 0], sizes = [2, 192], strides = [1, 1]} : vector<2x384xf32> to vector<2x192xf32>
    %989 = vector.broadcast %59 : vector<1x192xf32> to vector<2x192xf32>
    %990 = arith.addf %988, %989 : vector<2x192xf32>
    %991 = vector.extract_strided_slice %987 {offsets = [0, 192], sizes = [2, 192], strides = [1, 1]} : vector<2x384xf32> to vector<2x192xf32>
    %992 = vector.broadcast %60 : vector<1x192xf32> to vector<2x192xf32>
    %993 = arith.addf %991, %992 : vector<2x192xf32>
    %994 = vector.extract_strided_slice %990 {offsets = [0, 0], sizes = [2, 64], strides = [1, 1]} : vector<2x192xf32> to vector<2x64xf32>
    %995 = vector.extract_strided_slice %993 {offsets = [0, 0], sizes = [2, 64], strides = [1, 1]} : vector<2x192xf32> to vector<2x64xf32>
    %996 = arith.addf %994, %995 : vector<2x64xf32>
    %997 = arith.negf %996 : vector<2x64xf32>
    %998 = math.exp %997 : vector<2x64xf32>
    %cst_265 = arith.constant 1.000000e+00 : f32
    %999 = vector.broadcast %cst_265 : f32 to vector<2x64xf32>
    %1000 = arith.addf %999, %998 : vector<2x64xf32>
    %1001 = arith.divf %999, %1000 : vector<2x64xf32>
    %1002 = vector.extract_strided_slice %990 {offsets = [0, 64], sizes = [2, 64], strides = [1, 1]} : vector<2x192xf32> to vector<2x64xf32>
    %1003 = vector.extract_strided_slice %993 {offsets = [0, 64], sizes = [2, 64], strides = [1, 1]} : vector<2x192xf32> to vector<2x64xf32>
    %1004 = arith.addf %1002, %1003 : vector<2x64xf32>
    %1005 = arith.negf %1004 : vector<2x64xf32>
    %1006 = math.exp %1005 : vector<2x64xf32>
    %cst_266 = arith.constant 1.000000e+00 : f32
    %1007 = vector.broadcast %cst_266 : f32 to vector<2x64xf32>
    %1008 = arith.addf %1007, %1006 : vector<2x64xf32>
    %1009 = arith.divf %1007, %1008 : vector<2x64xf32>
    %1010 = vector.extract_strided_slice %990 {offsets = [0, 128], sizes = [2, 64], strides = [1, 1]} : vector<2x192xf32> to vector<2x64xf32>
    %1011 = vector.extract_strided_slice %993 {offsets = [0, 128], sizes = [2, 64], strides = [1, 1]} : vector<2x192xf32> to vector<2x64xf32>
    %1012 = arith.mulf %1001, %1011 : vector<2x64xf32>
    %1013 = arith.addf %1010, %1012 : vector<2x64xf32>
    %1014 = math.tanh %1013 : vector<2x64xf32>
    %cst_267 = arith.constant 1.000000e+00 : f32
    %1015 = vector.broadcast %cst_267 : f32 to vector<2x64xf32>
    %1016 = arith.subf %1015, %1009 : vector<2x64xf32>
    %1017 = arith.mulf %1016, %1014 : vector<2x64xf32>
    %1018 = arith.mulf %1009, %882 : vector<2x64xf32>
    %1019 = arith.addf %1017, %1018 : vector<2x64xf32>
    %1020 = arith.addf %983, %1019 : vector<2x64xf32>
    %c12_268 = arith.constant 12 : index
    %c0_269 = arith.constant 0 : index
    %1021 = vector.load %arg28[%c12_268, %c0_269] : memref<16x64xf32, #tpu.memory_space<vmem>>, vector<2x64xf32>
    tpu.vector_store %arg28[%c12_268, %c0_269], %1020 {strides = array<i32>} : memref<16x64xf32, #tpu.memory_space<vmem>>, vector<2x64xf32>,
    %c0_270 = arith.constant 0 : index
    %c48 = arith.constant 48 : index
    %1022 = vector.load %arg25[%c0_270, %c48] : memref<2x224xf32, #tpu.memory_space<vmem>>, vector<2x8xf32>
    tpu.vector_store %arg25[%c0_270, %c48], %941 {strides = array<i32>} : memref<2x224xf32, #tpu.memory_space<vmem>>, vector<2x8xf32>,
    %c14 = arith.constant 14 : index
    %c0_271 = arith.constant 0 : index
    %1023 = vector.load %arg26[%c14, %c0_271] : memref<16x96xf32, #tpu.memory_space<vmem>>, vector<2x96xf32>
    %1024 = arith.truncf %917 : vector<2x32xf32> to vector<2x32xbf16>
    %c0_272 = arith.constant 0 : index
    %c0_273 = arith.constant 0 : index
    %1025 = vector.load %arg8[%c0_272, %c0_273] : memref<32x96xbf16, #tpu.memory_space<vmem>>, vector<32x96xbf16>
    %cst_274 = arith.constant dense<0.000000e+00> : vector<2x96xf32>
    %1026 = tpu.matmul %1024, %1025, %cst_274 {dimension_numbers = #tpu.dot_dimension_numbers<[1], [0], [0], [1], [0, 0, 1, 1], [], []>} : vector<2x32xbf16>, vector<32x96xbf16>, vector<2x96xf32> -> vector<2x96xf32>
    %1027 = vector.broadcast %55 : vector<1x96xf32> to vector<2x96xf32>
    %1028 = arith.addf %1026, %1027 : vector<2x96xf32>
    %1029 = vector.extract_strided_slice %1023 {offsets = [0, 0], sizes = [2, 32], strides = [1, 1]} : vector<2x96xf32> to vector<2x32xf32>
    %1030 = vector.extract_strided_slice %1028 {offsets = [0, 0], sizes = [2, 32], strides = [1, 1]} : vector<2x96xf32> to vector<2x32xf32>
    %1031 = arith.addf %1029, %1030 : vector<2x32xf32>
    %1032 = arith.negf %1031 : vector<2x32xf32>
    %1033 = math.exp %1032 : vector<2x32xf32>
    %cst_275 = arith.constant 1.000000e+00 : f32
    %1034 = vector.broadcast %cst_275 : f32 to vector<2x32xf32>
    %1035 = arith.addf %1034, %1033 : vector<2x32xf32>
    %1036 = arith.divf %1034, %1035 : vector<2x32xf32>
    %1037 = vector.extract_strided_slice %1023 {offsets = [0, 32], sizes = [2, 32], strides = [1, 1]} : vector<2x96xf32> to vector<2x32xf32>
    %1038 = vector.extract_strided_slice %1028 {offsets = [0, 32], sizes = [2, 32], strides = [1, 1]} : vector<2x96xf32> to vector<2x32xf32>
    %1039 = arith.addf %1037, %1038 : vector<2x32xf32>
    %1040 = arith.negf %1039 : vector<2x32xf32>
    %1041 = math.exp %1040 : vector<2x32xf32>
    %cst_276 = arith.constant 1.000000e+00 : f32
    %1042 = vector.broadcast %cst_276 : f32 to vector<2x32xf32>
    %1043 = arith.addf %1042, %1041 : vector<2x32xf32>
    %1044 = arith.divf %1042, %1043 : vector<2x32xf32>
    %1045 = vector.extract_strided_slice %1023 {offsets = [0, 64], sizes = [2, 32], strides = [1, 1]} : vector<2x96xf32> to vector<2x32xf32>
    %1046 = vector.extract_strided_slice %1028 {offsets = [0, 64], sizes = [2, 32], strides = [1, 1]} : vector<2x96xf32> to vector<2x32xf32>
    %1047 = arith.mulf %1036, %1046 : vector<2x32xf32>
    %1048 = arith.addf %1045, %1047 : vector<2x32xf32>
    %1049 = math.tanh %1048 : vector<2x32xf32>
    %cst_277 = arith.constant 1.000000e+00 : f32
    %1050 = vector.broadcast %cst_277 : f32 to vector<2x32xf32>
    %1051 = arith.subf %1050, %1044 : vector<2x32xf32>
    %1052 = arith.mulf %1051, %1049 : vector<2x32xf32>
    %1053 = arith.mulf %1044, %917 : vector<2x32xf32>
    %1054 = arith.addf %1052, %1053 : vector<2x32xf32>
    %1055 = arith.truncf %1054 : vector<2x32xf32> to vector<2x32xbf16>
    %c0_278 = arith.constant 0 : index
    %c0_279 = arith.constant 0 : index
    %1056 = vector.load %arg11[%c0_278, %c0_279] : memref<32x32xbf16, #tpu.memory_space<vmem>>, vector<32x32xbf16>
    %cst_280 = arith.constant dense<0.000000e+00> : vector<2x32xf32>
    %1057 = tpu.matmul %1055, %1056, %cst_280 {dimension_numbers = #tpu.dot_dimension_numbers<[1], [0], [0], [1], [0, 0, 1, 1], [], []>} : vector<2x32xbf16>, vector<32x32xbf16>, vector<2x32xf32> -> vector<2x32xf32>
    %1058 = vector.broadcast %56 : vector<1x32xf32> to vector<2x32xf32>
    %1059 = arith.addf %1057, %1058 : vector<2x32xf32>
    %1060 = vector.shape_cast %1059 : vector<2x32xf32> to vector<2x1x32xf32>
    %1061 = vector.broadcast %1060 : vector<2x1x32xf32> to vector<2x8x32xf32>
    %1062 = arith.addf %1061, %46 : vector<2x8x32xf32>
    %1063 = math.tanh %1062 : vector<2x8x32xf32>
    %1064 = vector.shape_cast %54 : vector<1x32xf32> to vector<1x1x32xf32>
    %1065 = vector.broadcast %1064 : vector<1x1x32xf32> to vector<2x8x32xf32>
    %1066 = arith.mulf %1063, %1065 : vector<2x8x32xf32>
    %cst_281 = arith.constant dense<0.000000e+00> : vector<2x8xf32>
    %1067 = vector.multi_reduction <add>, %1066, %cst_281 [2] : vector<2x8x32xf32> to vector<2x8xf32>
    %1068 = arith.addf %1067, %53 : vector<2x8xf32>
    %cst_282 = arith.constant dense<0xFF800000> : vector<2xf32>
    %1069 = vector.multi_reduction <maximumf>, %1068, %cst_282 [1] : vector<2x8xf32> to vector<2xf32>
    %1070 = vector.shape_cast %1069 : vector<2xf32> to vector<2x1xf32>
    %1071 = vector.broadcast %1070 : vector<2x1xf32> to vector<2x8xf32>
    %1072 = arith.subf %1068, %1071 : vector<2x8xf32>
    %1073 = math.exp %1072 : vector<2x8xf32>
    %cst_283 = arith.constant dense<0.000000e+00> : vector<2xf32>
    %1074 = vector.multi_reduction <add>, %1073, %cst_283 [1] : vector<2x8xf32> to vector<2xf32>
    %1075 = vector.shape_cast %1074 : vector<2xf32> to vector<2x1xf32>
    %1076 = tpu.reciprocal %1075 {approx = true} : vector<2x1xf32> -> vector<2x1xf32>
    %1077 = vector.broadcast %1076 : vector<2x1xf32> to vector<2x8xf32>
    %1078 = arith.mulf %1073, %1077 : vector<2x8xf32>
    %1079 = vector.shape_cast %1078 : vector<2x8xf32> to vector<2x8x1xf32>
    %1080 = vector.broadcast %1079 : vector<2x8x1xf32> to vector<2x8x32xf32>
    %1081 = arith.mulf %1080, %45 : vector<2x8x32xf32>
    %cst_284 = arith.constant dense<0.000000e+00> : vector<2x32xf32>
    %1082 = vector.multi_reduction <add>, %1081, %cst_284 [1] : vector<2x8x32xf32> to vector<2x32xf32>
    %1083 = tpu.concatenate %1054, %1082 in 1 : vector<2x32xf32>, vector<2x32xf32> -> vector<2x64xf32>
    %1084 = tpu.concatenate %1083, %982 in 1 : vector<2x64xf32>, vector<2x64xf32> -> vector<2x128xf32>
    %1085 = arith.truncf %1084 : vector<2x128xf32> to vector<2x128xbf16>
    %c0_285 = arith.constant 0 : index
    %c0_286 = arith.constant 0 : index
    %1086 = vector.load %arg16[%c0_285, %c0_286] : memref<128x384xbf16, #tpu.memory_space<vmem>>, vector<128x384xbf16>
    %cst_287 = arith.constant dense<0.000000e+00> : vector<2x384xf32>
    %1087 = tpu.matmul %1085, %1086, %cst_287 {dimension_numbers = #tpu.dot_dimension_numbers<[1], [0], [0], [1], [0, 0, 1, 1], [], []>} : vector<2x128xbf16>, vector<128x384xbf16>, vector<2x384xf32> -> vector<2x384xf32>
    %1088 = vector.extract_strided_slice %1087 {offsets = [0, 0], sizes = [2, 192], strides = [1, 1]} : vector<2x384xf32> to vector<2x192xf32>
    %1089 = vector.broadcast %57 : vector<1x192xf32> to vector<2x192xf32>
    %1090 = arith.addf %1088, %1089 : vector<2x192xf32>
    %1091 = vector.extract_strided_slice %1087 {offsets = [0, 192], sizes = [2, 192], strides = [1, 1]} : vector<2x384xf32> to vector<2x192xf32>
    %1092 = vector.broadcast %58 : vector<1x192xf32> to vector<2x192xf32>
    %1093 = arith.addf %1091, %1092 : vector<2x192xf32>
    %1094 = vector.extract_strided_slice %1090 {offsets = [0, 0], sizes = [2, 64], strides = [1, 1]} : vector<2x192xf32> to vector<2x64xf32>
    %1095 = vector.extract_strided_slice %1093 {offsets = [0, 0], sizes = [2, 64], strides = [1, 1]} : vector<2x192xf32> to vector<2x64xf32>
    %1096 = arith.addf %1094, %1095 : vector<2x64xf32>
    %1097 = arith.negf %1096 : vector<2x64xf32>
    %1098 = math.exp %1097 : vector<2x64xf32>
    %cst_288 = arith.constant 1.000000e+00 : f32
    %1099 = vector.broadcast %cst_288 : f32 to vector<2x64xf32>
    %1100 = arith.addf %1099, %1098 : vector<2x64xf32>
    %1101 = arith.divf %1099, %1100 : vector<2x64xf32>
    %1102 = vector.extract_strided_slice %1090 {offsets = [0, 64], sizes = [2, 64], strides = [1, 1]} : vector<2x192xf32> to vector<2x64xf32>
    %1103 = vector.extract_strided_slice %1093 {offsets = [0, 64], sizes = [2, 64], strides = [1, 1]} : vector<2x192xf32> to vector<2x64xf32>
    %1104 = arith.addf %1102, %1103 : vector<2x64xf32>
    %1105 = arith.negf %1104 : vector<2x64xf32>
    %1106 = math.exp %1105 : vector<2x64xf32>
    %cst_289 = arith.constant 1.000000e+00 : f32
    %1107 = vector.broadcast %cst_289 : f32 to vector<2x64xf32>
    %1108 = arith.addf %1107, %1106 : vector<2x64xf32>
    %1109 = arith.divf %1107, %1108 : vector<2x64xf32>
    %1110 = vector.extract_strided_slice %1090 {offsets = [0, 128], sizes = [2, 64], strides = [1, 1]} : vector<2x192xf32> to vector<2x64xf32>
    %1111 = vector.extract_strided_slice %1093 {offsets = [0, 128], sizes = [2, 64], strides = [1, 1]} : vector<2x192xf32> to vector<2x64xf32>
    %1112 = arith.mulf %1101, %1111 : vector<2x64xf32>
    %1113 = arith.addf %1110, %1112 : vector<2x64xf32>
    %1114 = math.tanh %1113 : vector<2x64xf32>
    %cst_290 = arith.constant 1.000000e+00 : f32
    %1115 = vector.broadcast %cst_290 : f32 to vector<2x64xf32>
    %1116 = arith.subf %1115, %1109 : vector<2x64xf32>
    %1117 = arith.mulf %1116, %1114 : vector<2x64xf32>
    %1118 = arith.mulf %1109, %982 : vector<2x64xf32>
    %1119 = arith.addf %1117, %1118 : vector<2x64xf32>
    %1120 = arith.addf %1083, %1119 : vector<2x64xf32>
    %1121 = tpu.concatenate %1120, %1019 in 1 : vector<2x64xf32>, vector<2x64xf32> -> vector<2x128xf32>
    %1122 = arith.truncf %1121 : vector<2x128xf32> to vector<2x128xbf16>
    %c0_291 = arith.constant 0 : index
    %c0_292 = arith.constant 0 : index
    %1123 = vector.load %arg19[%c0_291, %c0_292] : memref<128x384xbf16, #tpu.memory_space<vmem>>, vector<128x384xbf16>
    %cst_293 = arith.constant dense<0.000000e+00> : vector<2x384xf32>
    %1124 = tpu.matmul %1122, %1123, %cst_293 {dimension_numbers = #tpu.dot_dimension_numbers<[1], [0], [0], [1], [0, 0, 1, 1], [], []>} : vector<2x128xbf16>, vector<128x384xbf16>, vector<2x384xf32> -> vector<2x384xf32>
    %1125 = vector.extract_strided_slice %1124 {offsets = [0, 0], sizes = [2, 192], strides = [1, 1]} : vector<2x384xf32> to vector<2x192xf32>
    %1126 = vector.broadcast %59 : vector<1x192xf32> to vector<2x192xf32>
    %1127 = arith.addf %1125, %1126 : vector<2x192xf32>
    %1128 = vector.extract_strided_slice %1124 {offsets = [0, 192], sizes = [2, 192], strides = [1, 1]} : vector<2x384xf32> to vector<2x192xf32>
    %1129 = vector.broadcast %60 : vector<1x192xf32> to vector<2x192xf32>
    %1130 = arith.addf %1128, %1129 : vector<2x192xf32>
    %1131 = vector.extract_strided_slice %1127 {offsets = [0, 0], sizes = [2, 64], strides = [1, 1]} : vector<2x192xf32> to vector<2x64xf32>
    %1132 = vector.extract_strided_slice %1130 {offsets = [0, 0], sizes = [2, 64], strides = [1, 1]} : vector<2x192xf32> to vector<2x64xf32>
    %1133 = arith.addf %1131, %1132 : vector<2x64xf32>
    %1134 = arith.negf %1133 : vector<2x64xf32>
    %1135 = math.exp %1134 : vector<2x64xf32>
    %cst_294 = arith.constant 1.000000e+00 : f32
    %1136 = vector.broadcast %cst_294 : f32 to vector<2x64xf32>
    %1137 = arith.addf %1136, %1135 : vector<2x64xf32>
    %1138 = arith.divf %1136, %1137 : vector<2x64xf32>
    %1139 = vector.extract_strided_slice %1127 {offsets = [0, 64], sizes = [2, 64], strides = [1, 1]} : vector<2x192xf32> to vector<2x64xf32>
    %1140 = vector.extract_strided_slice %1130 {offsets = [0, 64], sizes = [2, 64], strides = [1, 1]} : vector<2x192xf32> to vector<2x64xf32>
    %1141 = arith.addf %1139, %1140 : vector<2x64xf32>
    %1142 = arith.negf %1141 : vector<2x64xf32>
    %1143 = math.exp %1142 : vector<2x64xf32>
    %cst_295 = arith.constant 1.000000e+00 : f32
    %1144 = vector.broadcast %cst_295 : f32 to vector<2x64xf32>
    %1145 = arith.addf %1144, %1143 : vector<2x64xf32>
    %1146 = arith.divf %1144, %1145 : vector<2x64xf32>
    %1147 = vector.extract_strided_slice %1127 {offsets = [0, 128], sizes = [2, 64], strides = [1, 1]} : vector<2x192xf32> to vector<2x64xf32>
    %1148 = vector.extract_strided_slice %1130 {offsets = [0, 128], sizes = [2, 64], strides = [1, 1]} : vector<2x192xf32> to vector<2x64xf32>
    %1149 = arith.mulf %1138, %1148 : vector<2x64xf32>
    %1150 = arith.addf %1147, %1149 : vector<2x64xf32>
    %1151 = math.tanh %1150 : vector<2x64xf32>
    %cst_296 = arith.constant 1.000000e+00 : f32
    %1152 = vector.broadcast %cst_296 : f32 to vector<2x64xf32>
    %1153 = arith.subf %1152, %1146 : vector<2x64xf32>
    %1154 = arith.mulf %1153, %1151 : vector<2x64xf32>
    %1155 = arith.mulf %1146, %1019 : vector<2x64xf32>
    %1156 = arith.addf %1154, %1155 : vector<2x64xf32>
    %1157 = arith.addf %1120, %1156 : vector<2x64xf32>
    %c14_297 = arith.constant 14 : index
    %c0_298 = arith.constant 0 : index
    %1158 = vector.load %arg28[%c14_297, %c0_298] : memref<16x64xf32, #tpu.memory_space<vmem>>, vector<2x64xf32>
    tpu.vector_store %arg28[%c14_297, %c0_298], %1157 {strides = array<i32>} : memref<16x64xf32, #tpu.memory_space<vmem>>, vector<2x64xf32>,
    %c0_299 = arith.constant 0 : index
    %c56 = arith.constant 56 : index
    %1159 = vector.load %arg25[%c0_299, %c56] : memref<2x224xf32, #tpu.memory_space<vmem>>, vector<2x8xf32>
    tpu.vector_store %arg25[%c0_299, %c56], %1078 {strides = array<i32>} : memref<2x224xf32, #tpu.memory_space<vmem>>, vector<2x8xf32>,
    %c0_300 = arith.constant 0 : index
    %c0_301 = arith.constant 0 : index
    %1160 = vector.load %arg28[%c0_300, %c0_301] : memref<16x64xf32, #tpu.memory_space<vmem>>, vector<16x64xf32>
    %1161 = arith.truncf %1160 : vector<16x64xf32> to vector<16x64xbf16>
    %c0_302 = arith.constant 0 : index
    %c0_303 = arith.constant 0 : index
    %1162 = vector.load %arg22[%c0_302, %c0_303] : memref<64x32xbf16, #tpu.memory_space<vmem>>, vector<64x32xbf16>
    %cst_304 = arith.constant dense<0.000000e+00> : vector<16x32xf32>
    %1163 = tpu.matmul %1161, %1162, %cst_304 {dimension_numbers = #tpu.dot_dimension_numbers<[1], [0], [0], [1], [0, 0, 1, 1], [], []>} : vector<16x64xbf16>, vector<64x32xbf16>, vector<16x32xf32> -> vector<16x32xf32>
    %c0_305 = arith.constant 0 : index
    %c0_306 = arith.constant 0 : index
    %1164 = vector.load %arg23[%c0_305, %c0_306] : memref<1x32xf32, #tpu.memory_space<vmem>>, vector<1x32xf32>
    %1165 = vector.broadcast %1164 : vector<1x32xf32> to vector<16x32xf32>
    %1166 = arith.addf %1163, %1165 : vector<16x32xf32>
    %c0_307 = arith.constant 0 : index
    %c0_308 = arith.constant 0 : index
    %1167 = vector.load %arg24[%c0_307, %c0_308] : memref<16x32xf32, #tpu.memory_space<vmem>>, vector<16x32xf32>
    tpu.vector_store %arg24[%c0_307, %c0_308], %1166 {strides = array<i32>} : memref<16x32xf32, #tpu.memory_space<vmem>>, vector<16x32xf32>,
    %c0_309 = arith.constant 0 : index
    %c64 = arith.constant 64 : index
    %1168 = vector.load %arg25[%c0_309, %c64] : memref<2x224xf32, #tpu.memory_space<vmem>>, vector<2x32xf32>
    tpu.vector_store %arg25[%c0_309, %c64], %1054 {strides = array<i32>} : memref<2x224xf32, #tpu.memory_space<vmem>>, vector<2x32xf32>,
    %c0_310 = arith.constant 0 : index
    %c96 = arith.constant 96 : index
    %1169 = vector.load %arg25[%c0_310, %c96] : memref<2x224xf32, #tpu.memory_space<vmem>>, vector<2x64xf32>
    tpu.vector_store %arg25[%c0_310, %c96], %1119 {strides = array<i32>} : memref<2x224xf32, #tpu.memory_space<vmem>>, vector<2x64xf32>,
    %c0_311 = arith.constant 0 : index
    %c160 = arith.constant 160 : index
    %1170 = vector.load %arg25[%c0_311, %c160] : memref<2x224xf32, #tpu.memory_space<vmem>>, vector<2x64xf32>
    tpu.vector_store %arg25[%c0_311, %c160], %1156 {strides = array<i32>} : memref<2x224xf32, #tpu.memory_space<vmem>>, vector<2x64xf32>,
    return
  }
}

</mosaic_0001>

<llo_original>
// kernel: tpu_custom_call.1
$region0: #{tpu_custom_call.1}
  #allocation0 [shape = 'u32[]', space=smem, size = 0x4, offset = 0x4, fixed_abs, tag = 'smem constant byte address 0x4 - core index']
  #allocation1 [shape = 'u32[144,128]{1,0:T(1,128)}', space=vmem, size = 0x12000, scoped, tag = 'internal scratch']
  #allocation2 [shape = 'f32[16,96]{1,0:T(8,128)}', space=vmem, size = 0x2000, scoped, tag = 'scratch operand']
  #allocation3 [shape = 'f32[2,8,32]{2,1,0:T(8,128)}', space=vmem, size = 0x2000, scoped, tag = 'scratch operand']
  #allocation4 [shape = 'f32[16,64]{1,0:T(8,128)}', space=vmem, size = 0x2000, scoped, tag = 'scratch operand']
  %s0 = inlined_call_operand.vmem [shape: f32[16,32], index: 0, kind: input, shape index: {}]
  %s1 = inlined_call_operand.vmem [shape: f32[2,8,32], index: 1, kind: input, shape index: {}]
  %s2 = inlined_call_operand.vmem [shape: s32[2,1], index: 2, kind: input, shape index: {}]
  %s3 = inlined_call_operand.vmem [shape: bf16[32,32], index: 3, kind: input, shape index: {}]
  %s4 = inlined_call_operand.vmem [shape: f32[1,32], index: 4, kind: input, shape index: {}]
  %s5 = inlined_call_operand.vmem [shape: bf16[32,16], index: 5, kind: input, shape index: {}]
  %s6 = inlined_call_operand.hbm [shape: f32[1,16], index: 6, kind: input, shape index: {}]
  %s7 = inlined_call_operand.hbm [shape: bf16[16,96], index: 7, kind: input, shape index: {}]
  %s8 = inlined_call_operand.vmem [shape: bf16[32,96], index: 8, kind: input, shape index: {}]
  %s9 = inlined_call_operand.hbm [shape: f32[1,96], index: 9, kind: input, shape index: {}]
  %s10 = inlined_call_operand.hbm [shape: f32[1,96], index: 10, kind: input, shape index: {}]
  %s11 = inlined_call_operand.vmem [shape: bf16[32,32], index: 11, kind: input, shape index: {}]
  %s12 = inlined_call_operand.hbm [shape: f32[1,32], index: 12, kind: input, shape index: {}]
  %s13 = inlined_call_operand.vmem [shape: f32[1,32], index: 13, kind: input, shape index: {}]
  %s14 = inlined_call_operand.vmem [shape: bf16[32,32], index: 14, kind: input, shape index: {}]
  %s15 = inlined_call_operand.vmem [shape: f32[1,32], index: 15, kind: input, shape index: {}]
  %s16 = inlined_call_operand.hbm [shape: bf16[128,384], index: 16, kind: input, shape index: {}]
  %s17 = inlined_call_operand.vmem [shape: f32[1,192], index: 17, kind: input, shape index: {}]
  %s18 = inlined_call_operand.vmem [shape: f32[1,192], index: 18, kind: input, shape index: {}]
  %s19 = inlined_call_operand.hbm [shape: bf16[128,384], index: 19, kind: input, shape index: {}]
  %s20 = inlined_call_operand.vmem [shape: f32[1,192], index: 20, kind: input, shape index: {}]
  %s21 = inlined_call_operand.vmem [shape: f32[1,192], index: 21, kind: input, shape index: {}]
  %s22 = inlined_call_operand.vmem [shape: bf16[64,32], index: 22, kind: input, shape index: {}]
  %s23 = inlined_call_operand.vmem [shape: f32[1,32], index: 23, kind: input, shape index: {}]
  %s24 = inlined_call_operand.hbm [shape: f32[16,32], index: 24, kind: output, shape index: {0}]
  %s25 = inlined_call_operand.hbm [shape: f32[2,224], index: 25, kind: output, shape index: {1}]
  %26 = xla_tuple %s24, %s25
  %s27 = sld [smem:[#allocation0]]
  $region142: #{tpu_custom_call.1} parent=0
    _
  %s29 = ssub.s32 1, %s27
  %s30 = scalar_select 0, %s29, %s27
  $region1: #{tpu_custom_call.1} parent=0
    #allocation5 [shape = 'u8[512]{0}', space=vmem, size = 0x400, scoped, tag = 'input window, operand 6, single buffered']
    #allocation6 [shape = 's32[1]{0}', space=sflag, size = 0x4, scoped, tag = 'scoped memory for tpu_custom_call.1']
    #allocation7 [shape = 's32[1]{0}', space=sflag, size = 0x4, scoped, tag = 'scoped memory for tpu_custom_call.1']
    #allocation8 [shape = 'u8[4096]{0}', space=vmem, size = 0x1000, scoped, tag = 'input window, operand 7, single buffered']
    #allocation9 [shape = 's32[1]{0}', space=sflag, size = 0x4, scoped, tag = 'scoped memory for tpu_custom_call.1']
    #allocation10 [shape = 'u8[512]{0}', space=vmem, size = 0x400, scoped, tag = 'input window, operand 9, single buffered']
    #allocation11 [shape = 'u8[512]{0}', space=vmem, size = 0x400, scoped, tag = 'input window, operand 10, single buffered']
    #allocation12 [shape = 's32[1]{0}', space=sflag, size = 0x4, scoped, tag = 'scoped memory for tpu_custom_call.1']
    #allocation13 [shape = 'u8[512]{0}', space=vmem, size = 0x400, scoped, tag = 'input window, operand 12, single buffered']
    #allocation14 [shape = 'u8[98304]{0}', space=vmem, size = 0x18000, scoped, tag = 'input window, operand 16, single buffered']
    #allocation15 [shape = 's32[1]{0}', space=sflag, size = 0x4, scoped, tag = 'scoped memory for tpu_custom_call.1']
    #allocation16 [shape = 'u8[98304]{0}', space=vmem, size = 0x18000, scoped, tag = 'input window, operand 19, single buffered']
    #allocation17 [shape = 'u8[8192]{0}', space=vmem, size = 0x2000, scoped, tag = 'output window, operand 0, single buffered']
    #allocation18 [shape = 'u8[2048]{0}', space=vmem, size = 0x800, scoped, tag = 'output window, operand 1, single buffered']
    #allocation19 [shape = 's32[1]{0}', space=sflag, size = 0x4, scoped, tag = 'scoped memory for tpu_custom_call.1']
    %31 = vsyncpa [#allocation6], 0
    %32 = vsyncpa [#allocation9], 0
    %33 = vsyncpa [#allocation12], 0
    %34 = vsyncpa [#allocation15], 0
    %35 = vsyncpa [#allocation7], 0
    %36 = vsyncpa [#allocation19], 0
    // Predicated region
    $region2: #{tpu_custom_call.1} parent=1 // pred_check
      _
    $region3: #{tpu_custom_call.1} parent=1 // pred_check_branch
      %38 = sbr.rel (0) target = $region5
    $region4: #{tpu_custom_call.1} parent=1 // pred_region
      _
    $region5: #{tpu_custom_call.1} parent=1 // pred_fallthru
      _
    // Predicated region
    $region6: #{tpu_custom_call.1} parent=1 // pred_check
      _
    $region7: #{tpu_custom_call.1} parent=1 // pred_check_branch
      %40 = sbr.rel (0) target = $region9
    $region8: #{tpu_custom_call.1} parent=1 // pred_region
      _
    $region9: #{tpu_custom_call.1} parent=1 // pred_fallthru
      _
    // Predicated region
    $region10: #{tpu_custom_call.1} parent=1 // pred_check
      _
    $region11: #{tpu_custom_call.1} parent=1 // pred_check_branch
      %42 = sbr.rel (0) target = $region13
    $region12: #{tpu_custom_call.1} parent=1 // pred_region
      _
    $region13: #{tpu_custom_call.1} parent=1 // pred_fallthru
      _
    // Predicated region
    $region14: #{tpu_custom_call.1} parent=1 // pred_check
      _
    $region15: #{tpu_custom_call.1} parent=1 // pred_check_branch
      %44 = sbr.rel (0) target = $region17
    $region16: #{tpu_custom_call.1} parent=1 // pred_region
      _
    $region17: #{tpu_custom_call.1} parent=1 // pred_fallthru
      _
    // Predicated region
    $region18: #{tpu_custom_call.1} parent=1 // pred_check
      _
    $region19: #{tpu_custom_call.1} parent=1 // pred_check_branch
      %46 = sbr.rel (0) target = $region21
    $region20: #{tpu_custom_call.1} parent=1 // pred_region
      _
    $region21: #{tpu_custom_call.1} parent=1 // pred_fallthru
      _
    // Predicated region
    $region22: #{tpu_custom_call.1} parent=1 // pred_check
      _
    $region23: #{tpu_custom_call.1} parent=1 // pred_check_branch
      %48 = sbr.rel (0) target = $region25
    $region24: #{tpu_custom_call.1} parent=1 // pred_region
      _
    $region25: #{tpu_custom_call.1} parent=1 // pred_fallthru
      _
    // Predicated region
    $region26: #{tpu_custom_call.1} parent=1 // pred_check
      _
    $region27: #{tpu_custom_call.1} parent=1 // pred_check_branch
      %50 = sbr.rel (0) target = $region29
    $region28: #{tpu_custom_call.1} parent=1 // pred_region
      %s52 = ssub.s32 16, 16
      %53 = vsyncadd [#allocation6], %s52
      %s55 = sshll.u32 [#allocation5], 4
      %s56 = int_to_ptr.vmem [resolvable:$true] %s55
      %58 = dma.hbm_to_vmem [thread:$0]  %s6, 16, %s56, [#allocation6]
    $region29: #{tpu_custom_call.1} parent=1 // pred_fallthru
      _
    // Predicated region
    $region30: #{tpu_custom_call.1} parent=1 // pred_check
      _
    $region31: #{tpu_custom_call.1} parent=1 // pred_check_branch
      %60 = sbr.rel (0) target = $region33
    $region32: #{tpu_custom_call.1} parent=1 // pred_region
      %s62 = ssub.s32 128, 128
      %63 = vsyncadd [#allocation9], %s62
      %s64 = sshll.u32 [#allocation8], 4
      %s65 = int_to_ptr.vmem [resolvable:$true] %s64
      %70 = dma.hbm_to_vmem [thread:$0]  %s7, 128, %s65, [#allocation9], 64, 64, 4
    $region33: #{tpu_custom_call.1} parent=1 // pred_fallthru
      _
    // Predicated region
    $region34: #{tpu_custom_call.1} parent=1 // pred_check
      _
    $region35: #{tpu_custom_call.1} parent=1 // pred_check_branch
      %72 = sbr.rel (0) target = $region37
    $region36: #{tpu_custom_call.1} parent=1 // pred_region
      _
    $region37: #{tpu_custom_call.1} parent=1 // pred_fallthru
      _
    // Predicated region
    $region38: #{tpu_custom_call.1} parent=1 // pred_check
      _
    $region39: #{tpu_custom_call.1} parent=1 // pred_check_branch
      %74 = sbr.rel (0) target = $region41
    $region40: #{tpu_custom_call.1} parent=1 // pred_region
      %s76 = ssub.s32 16, 16
      %77 = vsyncadd [#allocation9], %s76
      %s79 = sshll.u32 [#allocation10], 4
      %s80 = int_to_ptr.vmem [resolvable:$true] %s79
      %82 = dma.hbm_to_vmem [thread:$0]  %s9, 16, %s80, [#allocation9]
    $region41: #{tpu_custom_call.1} parent=1 // pred_fallthru
      _
    // Predicated region
    $region42: #{tpu_custom_call.1} parent=1 // pred_check
      _
    $region43: #{tpu_custom_call.1} parent=1 // pred_check_branch
      %84 = sbr.rel (0) target = $region45
    $region44: #{tpu_custom_call.1} parent=1 // pred_region
      %s86 = ssub.s32 16, 16
      %87 = vsyncadd [#allocation12], %s86
      %s89 = sshll.u32 [#allocation11], 4
      %s90 = int_to_ptr.vmem [resolvable:$true] %s89
      %92 = dma.hbm_to_vmem [thread:$0]  %s10, 16, %s90, [#allocation12]
    $region45: #{tpu_custom_call.1} parent=1 // pred_fallthru
      _
    // Predicated region
    $region46: #{tpu_custom_call.1} parent=1 // pred_check
      _
    $region47: #{tpu_custom_call.1} parent=1 // pred_check_branch
      %94 = sbr.rel (0) target = $region49
    $region48: #{tpu_custom_call.1} parent=1 // pred_region
      _
    $region49: #{tpu_custom_call.1} parent=1 // pred_fallthru
      _
    // Predicated region
    $region50: #{tpu_custom_call.1} parent=1 // pred_check
      _
    $region51: #{tpu_custom_call.1} parent=1 // pred_check_branch
      %96 = sbr.rel (0) target = $region53
    $region52: #{tpu_custom_call.1} parent=1 // pred_region
      %s98 = ssub.s32 16, 16
      %99 = vsyncadd [#allocation12], %s98
      %s101 = sshll.u32 [#allocation13], 4
      %s102 = int_to_ptr.vmem [resolvable:$true] %s101
      %104 = dma.hbm_to_vmem [thread:$0]  %s12, 16, %s102, [#allocation12]
    $region53: #{tpu_custom_call.1} parent=1 // pred_fallthru
      _
    // Predicated region
    $region54: #{tpu_custom_call.1} parent=1 // pred_check
      _
    $region55: #{tpu_custom_call.1} parent=1 // pred_check_branch
      %106 = sbr.rel (0) target = $region57
    $region56: #{tpu_custom_call.1} parent=1 // pred_region
      _
    $region57: #{tpu_custom_call.1} parent=1 // pred_fallthru
      _
    // Predicated region
    $region58: #{tpu_custom_call.1} parent=1 // pred_check
      _
    $region59: #{tpu_custom_call.1} parent=1 // pred_check_branch
      %108 = sbr.rel (0) target = $region61
    $region60: #{tpu_custom_call.1} parent=1 // pred_region
      _
    $region61: #{tpu_custom_call.1} parent=1 // pred_fallthru
      _
    // Predicated region
    $region62: #{tpu_custom_call.1} parent=1 // pred_check
      _
    $region63: #{tpu_custom_call.1} parent=1 // pred_check_branch
      %110 = sbr.rel (0) target = $region65
    $region64: #{tpu_custom_call.1} parent=1 // pred_region
      _
    $region65: #{tpu_custom_call.1} parent=1 // pred_fallthru
      _
    // Predicated region
    $region66: #{tpu_custom_call.1} parent=1 // pred_check
      _
    $region67: #{tpu_custom_call.1} parent=1 // pred_check_branch
      %112 = sbr.rel (0) target = $region69
    $region68: #{tpu_custom_call.1} parent=1 // pred_region
      %s114 = ssub.s32 3072, 3072
      %115 = vsyncadd [#allocation15], %s114
      %s116 = sshll.u32 [#allocation14], 4
      %s117 = int_to_ptr.vmem [resolvable:$true] %s116
      %122 = dma.hbm_to_vmem [thread:$0]  %s16, 3072, %s117, [#allocation15], 192, 192, 12
    $region69: #{tpu_custom_call.1} parent=1 // pred_fallthru
      _
    // Predicated region
    $region70: #{tpu_custom_call.1} parent=1 // pred_check
      _
    $region71: #{tpu_custom_call.1} parent=1 // pred_check_branch
      %124 = sbr.rel (0) target = $region73
    $region72: #{tpu_custom_call.1} parent=1 // pred_region
      _
    $region73: #{tpu_custom_call.1} parent=1 // pred_fallthru
      _
    // Predicated region
    $region74: #{tpu_custom_call.1} parent=1 // pred_check
      _
    $region75: #{tpu_custom_call.1} parent=1 // pred_check_branch
      %126 = sbr.rel (0) target = $region77
    $region76: #{tpu_custom_call.1} parent=1 // pred_region
      _
    $region77: #{tpu_custom_call.1} parent=1 // pred_fallthru
      _
    // Predicated region
    $region78: #{tpu_custom_call.1} parent=1 // pred_check
      _
    $region79: #{tpu_custom_call.1} parent=1 // pred_check_branch
      %128 = sbr.rel (0) target = $region81
    $region80: #{tpu_custom_call.1} parent=1 // pred_region
      %s130 = ssub.s32 3072, 3072
      %131 = vsyncadd [#allocation15], %s130
      %s132 = sshll.u32 [#allocation16], 4
      %s133 = int_to_ptr.vmem [resolvable:$true] %s132
      %138 = dma.hbm_to_vmem [thread:$0]  %s19, 3072, %s133, [#allocation15], 192, 192, 12
    $region81: #{tpu_custom_call.1} parent=1 // pred_fallthru
      _
    // Predicated region
    $region82: #{tpu_custom_call.1} parent=1 // pred_check
      _
    $region83: #{tpu_custom_call.1} parent=1 // pred_check_branch
      %140 = sbr.rel (0) target = $region85
    $region84: #{tpu_custom_call.1} parent=1 // pred_region
      _
    $region85: #{tpu_custom_call.1} parent=1 // pred_fallthru
      _
    // Predicated region
    $region86: #{tpu_custom_call.1} parent=1 // pred_check
      _
    $region87: #{tpu_custom_call.1} parent=1 // pred_check_branch
      %142 = sbr.rel (0) target = $region89
    $region88: #{tpu_custom_call.1} parent=1 // pred_region
      _
    $region89: #{tpu_custom_call.1} parent=1 // pred_fallthru
      _
    // Predicated region
    $region90: #{tpu_custom_call.1} parent=1 // pred_check
      _
    $region91: #{tpu_custom_call.1} parent=1 // pred_check_branch
      %144 = sbr.rel (0) target = $region93
    $region92: #{tpu_custom_call.1} parent=1 // pred_region
      _
    $region93: #{tpu_custom_call.1} parent=1 // pred_fallthru
      _
    // Predicated region
    $region94: #{tpu_custom_call.1} parent=1 // pred_check
      _
    $region95: #{tpu_custom_call.1} parent=1 // pred_check_branch
      %146 = sbr.rel (0) target = $region97
    $region96: #{tpu_custom_call.1} parent=1 // pred_region
      _
    $region97: #{tpu_custom_call.1} parent=1 // pred_fallthru
      _
    // Predicated region
    $region98: #{tpu_custom_call.1} parent=1 // pred_check
      _
    $region99: #{tpu_custom_call.1} parent=1 // pred_check_branch
      %148 = sbr.rel (0) target = $region101
    $region100: #{tpu_custom_call.1} parent=1 // pred_region
      %149 = dma.done [#allocation6], 16
    $region101: #{tpu_custom_call.1} parent=1 // pred_fallthru
      _
    // Predicated region
    $region102: #{tpu_custom_call.1} parent=1 // pred_check
      _
    $region103: #{tpu_custom_call.1} parent=1 // pred_check_branch
      %151 = sbr.rel (0) target = $region105
    $region104: #{tpu_custom_call.1} parent=1 // pred_region
      %152 = dma.done [#allocation9], 128
    $region105: #{tpu_custom_call.1} parent=1 // pred_fallthru
      _
    // Predicated region
    $region106: #{tpu_custom_call.1} parent=1 // pred_check
      _
    $region107: #{tpu_custom_call.1} parent=1 // pred_check_branch
      %154 = sbr.rel (0) target = $region109
    $region108: #{tpu_custom_call.1} parent=1 // pred_region
      %155 = dma.done [#allocation9], 16
    $region109: #{tpu_custom_call.1} parent=1 // pred_fallthru
      _
    // Predicated region
    $region110: #{tpu_custom_call.1} parent=1 // pred_check
      _
    $region111: #{tpu_custom_call.1} parent=1 // pred_check_branch
      %157 = sbr.rel (0) target = $region113
    $region112: #{tpu_custom_call.1} parent=1 // pred_region
      %158 = dma.done [#allocation12], 16
    $region113: #{tpu_custom_call.1} parent=1 // pred_fallthru
      _
    // Predicated region
    $region114: #{tpu_custom_call.1} parent=1 // pred_check
      _
    $region115: #{tpu_custom_call.1} parent=1 // pred_check_branch
      %160 = sbr.rel (0) target = $region117
    $region116: #{tpu_custom_call.1} parent=1 // pred_region
      %161 = dma.done [#allocation12], 16
    $region117: #{tpu_custom_call.1} parent=1 // pred_fallthru
      _
    // Predicated region
    $region118: #{tpu_custom_call.1} parent=1 // pred_check
      _
    $region119: #{tpu_custom_call.1} parent=1 // pred_check_branch
      %163 = sbr.rel (0) target = $region121
    $region120: #{tpu_custom_call.1} parent=1 // pred_region
      %164 = dma.done [#allocation15], 3072
    $region121: #{tpu_custom_call.1} parent=1 // pred_fallthru
      _
    // Predicated region
    $region122: #{tpu_custom_call.1} parent=1 // pred_check
      _
    $region123: #{tpu_custom_call.1} parent=1 // pred_check_branch
      %166 = sbr.rel (0) target = $region125
    $region124: #{tpu_custom_call.1} parent=1 // pred_region
      %167 = dma.done [#allocation15], 3072
    $region125: #{tpu_custom_call.1} parent=1 // pred_fallthru
      _
    %v169 = vld [vmem:[%s0] sm:$0xff]
    %v170 = vld [vmem:[%s0 + $0x8] sm:$0xff]
    %v171 = vpack.c.bf16 %v170, %v169
    %v172 = vld [vmem:[%s3] sm:$0xf]
    %v173 = vld [vmem:[%s3 + $0x4] sm:$0xf]
    %v174 = vld [vmem:[%s3 + $0x8] sm:$0xf]
    %v175 = vld [vmem:[%s3 + $0xc] sm:$0xf]
    %v176 = vld [vmem:[%s4] sm:$0x1]
    %v178 = vlaneseq
    %v179 = vshrl.u32 %v178, 7
    %v180 = vsub.s32 0, %v179
    %v181 = vrot.slane %v176, %v180
    %v187 = vunpack.c.l.b16 %v172
    %v188 = vunpack.c.l.b16 %v173
    %v189 = vunpack.c.l.b16 %v174
    %v190 = vunpack.c.l.b16 %v175
    %v191 = vpack.c.b16 %v188, %v187
    %v192 = vpack.c.b16 %v190, %v189
    %vm195 = vcmask 261120
    %v197 = vsel %vm195, %v171, 0
    %199 = vmatprep.subr.bf16.mxu0 0
    %200 = vmatpush1.bf16.msra.mxu0 %v191
    %201 = vmatprep.subr.bf16.mxu0 0
    %202 = vmatpush1.bf16.msra.mxu0 %v192
    %203 = vmatprep.subr.bf16.mxu0 0
    %204 = vmatpush1.bf16.msra.mxu0 0
    %205 = vmatprep.subr.bf16.mxu0 0
    %206 = vmatpush1.bf16.msra.mxu0 0
    %207 = vmatprep.subr.bf16.mxu0 0
    %208 = vmatpush1.bf16.msra.mxu0 0
    %209 = vmatprep.subr.bf16.mxu0 0
    %210 = vmatpush1.bf16.msra.mxu0 0
    %211 = vmatprep.subr.bf16.mxu0 0
    %212 = vmatpush1.bf16.msra.mxu0 0
    %213 = vmatprep.subr.bf16.mxu0 0
    %214 = vmatpush1.bf16.msra.mxu0 0
    %215 = vmatprep.subr.bf16.mxu0 0
    %216 = vmatpush1.bf16.msra.mxu0 0
    %217 = vmatprep.subr.bf16.mxu0 0
    %218 = vmatpush1.bf16.msra.mxu0 0
    %219 = vmatprep.subr.bf16.mxu0 0
    %220 = vmatpush1.bf16.msra.mxu0 0
    %221 = vmatprep.subr.bf16.mxu0 0
    %222 = vmatpush1.bf16.msra.mxu0 0
    %223 = vmatprep.subr.bf16.mxu0 0
    %224 = vmatpush1.bf16.msra.mxu0 0
    %225 = vmatprep.subr.bf16.mxu0 0
    %226 = vmatpush1.bf16.msra.mxu0 0
    %227 = vmatprep.subr.bf16.mxu0 0
    %228 = vmatpush1.bf16.msra.mxu0 0
    %229 = vmatprep.subr.bf16.mxu0 0
    %230 = vmatpush1.bf16.msra.mxu0 0
    %231 = vmatprep.mubr.bf16.mxu0 0
    %232 = vmatmul.mubr.bf16.gmra.mrb[0].mxu0 %v197
    %v233 = vpop.f32.mrb[0].mxu0
    %v234 = vadd.f32 %v181, %v233
    %v235 = vpop.f32.mrb[0].mxu0
    %v236 = vpop.f32.mrb[0].mxu0
    %v237 = vadd.f32 %v181, %v236
    %v238 = vpop.f32.mrb[0].mxu0
    %239 = vdwg.mxu0
    %v240 = vmax.f32 %v234, 0.0
    %v241 = vmax.f32 %v237, 0.0
    %v242 = vpack.c.bf16 %v241, %v240
    %v243 = vld [vmem:[%s5] sm:$0xf]
    %v244 = vld [vmem:[%s5 + $0x4] sm:$0xf]
    %v245 = vld [vmem:[%s5 + $0x8] sm:$0xf]
    %v246 = vld [vmem:[%s5 + $0xc] sm:$0xf]
    %v247 = vld [vmem:[#allocation5] sm:$0x1]
    %v249 = vlaneseq
    %v250 = vshrl.u32 %v249, 7
    %v251 = vsub.s32 0, %v250
    %v252 = vrot.slane %v247, %v251
    %v258 = vunpack.c.l.b16 %v243
    %v259 = vunpack.c.l.b16 %v244
    %v260 = vunpack.c.l.b16 %v245
    %v261 = vunpack.c.l.b16 %v246
    %v262 = vpack.c.b16 %v259, %v258
    %v263 = vpack.c.b16 %v261, %v260
    %v267 = vsel %vm195, %v242, 0
    %269 = vmatprep.subr.bf16.mxu0 0
    %270 = vmatpush1.bf16.msra.mxu0 %v262
    %271 = vmatprep.subr.bf16.mxu0 0
    %272 = vmatpush1.bf16.msra.mxu0 %v263
    %273 = vmatprep.subr.bf16.mxu0 0
    %274 = vmatpush1.bf16.msra.mxu0 0
    %275 = vmatprep.subr.bf16.mxu0 0
    %276 = vmatpush1.bf16.msra.mxu0 0
    %277 = vmatprep.subr.bf16.mxu0 0
    %278 = vmatpush1.bf16.msra.mxu0 0
    %279 = vmatprep.subr.bf16.mxu0 0
    %280 = vmatpush1.bf16.msra.mxu0 0
    %281 = vmatprep.subr.bf16.mxu0 0
    %282 = vmatpush1.bf16.msra.mxu0 0
    %283 = vmatprep.subr.bf16.mxu0 0
    %284 = vmatpush1.bf16.msra.mxu0 0
    %285 = vmatprep.subr.bf16.mxu0 0
    %286 = vmatpush1.bf16.msra.mxu0 0
    %287 = vmatprep.subr.bf16.mxu0 0
    %288 = vmatpush1.bf16.msra.mxu0 0
    %289 = vmatprep.subr.bf16.mxu0 0
    %290 = vmatpush1.bf16.msra.mxu0 0
    %291 = vmatprep.subr.bf16.mxu0 0
    %292 = vmatpush1.bf16.msra.mxu0 0
    %293 = vmatprep.subr.bf16.mxu0 0
    %294 = vmatpush1.bf16.msra.mxu0 0
    %295 = vmatprep.subr.bf16.mxu0 0
    %296 = vmatpush1.bf16.msra.mxu0 0
    %297 = vmatprep.subr.bf16.mxu0 0
    %298 = vmatpush1.bf16.msra.mxu0 0
    %299 = vmatprep.subr.bf16.mxu0 0
    %300 = vmatpush1.bf16.msra.mxu0 0
    %301 = vmatprep.mubr.bf16.mxu0 0
    %302 = vmatmul.mubr.bf16.gmra.mrb[0].mxu0 %v267
    %v303 = vpop.f32.mrb[0].mxu0
    %v304 = vadd.f32 %v252, %v303
    %v305 = vpop.f32.mrb[0].mxu0
    %v306 = vpop.f32.mrb[0].mxu0
    %v307 = vadd.f32 %v252, %v306
    %v308 = vpop.f32.mrb[0].mxu0
    %309 = vdwg.mxu0
    %v310 = vmax.f32 %v304, 0.0
    %v311 = vmax.f32 %v307, 0.0
    %v312 = vpack.c.bf16 %v311, %v310
    %v313 = vld [vmem:[#allocation8] sm:$0xf]
    %v314 = vld [vmem:[#allocation8 + $0x4] sm:$0xf]
    %v315 = vld [vmem:[#allocation10] sm:$0x1]
    %v317 = vlaneseq
    %v318 = vshrl.u32 %v317, 7
    %v319 = vsub.s32 0, %v318
    %v320 = vrot.slane %v315, %v319
    %v324 = vunpack.c.l.b16 %v313
    %v325 = vunpack.c.l.b16 %v314
    %v326 = vpack.c.b16 %v325, %v324
    %vm328 = vcmask 130048
    %v330 = vsel %vm328, %v312, 0
    %332 = vmatprep.subr.bf16.mxu0 0
    %333 = vmatpush1.bf16.msra.mxu0 %v326
    %334 = vmatprep.subr.bf16.mxu0 0
    %335 = vmatpush1.bf16.msra.mxu0 0
    %336 = vmatprep.subr.bf16.mxu0 0
    %337 = vmatpush1.bf16.msra.mxu0 0
    %338 = vmatprep.subr.bf16.mxu0 0
    %339 = vmatpush1.bf16.msra.mxu0 0
    %340 = vmatprep.subr.bf16.mxu0 0
    %341 = vmatpush1.bf16.msra.mxu0 0
    %342 = vmatprep.subr.bf16.mxu0 0
    %343 = vmatpush1.bf16.msra.mxu0 0
    %344 = vmatprep.subr.bf16.mxu0 0
    %345 = vmatpush1.bf16.msra.mxu0 0
    %346 = vmatprep.subr.bf16.mxu0 0
    %347 = vmatpush1.bf16.msra.mxu0 0
    %348 = vmatprep.subr.bf16.mxu0 0
    %349 = vmatpush1.bf16.msra.mxu0 0
    %350 = vmatprep.subr.bf16.mxu0 0
    %351 = vmatpush1.bf16.msra.mxu0 0
    %352 = vmatprep.subr.bf16.mxu0 0
    %353 = vmatpush1.bf16.msra.mxu0 0
    %354 = vmatprep.subr.bf16.mxu0 0
    %355 = vmatpush1.bf16.msra.mxu0 0
    %356 = vmatprep.subr.bf16.mxu0 0
    %357 = vmatpush1.bf16.msra.mxu0 0
    %358 = vmatprep.subr.bf16.mxu0 0
    %359 = vmatpush1.bf16.msra.mxu0 0
    %360 = vmatprep.subr.bf16.mxu0 0
    %361 = vmatpush1.bf16.msra.mxu0 0
    %362 = vmatprep.subr.bf16.mxu0 0
    %363 = vmatpush1.bf16.msra.mxu0 0
    %364 = vmatprep.mubr.bf16.mxu0 0
    %365 = vmatmul.mubr.bf16.gmra.mrb[0].mxu0 %v330
    %v366 = vpop.f32.mrb[0].mxu0
    %v367 = vadd.f32 %v320, %v366
    %v368 = vpop.f32.mrb[0].mxu0
    %v369 = vpop.f32.mrb[0].mxu0
    %v370 = vadd.f32 %v320, %v369
    %v371 = vpop.f32.mrb[0].mxu0
    %372 = vdwg.mxu0
    %vm373 = vcmask 785408
    %374 = vst.msk [vmem:[#allocation2] sm:$0xff] %vm373, %v367
    %375 = vst.msk [vmem:[#allocation2 + $0x8] sm:$0xff] %vm373, %v370
    %v376 = vld [vmem:[%s15] sm:$0x1]
    %v377 = vld [vmem:[%s1] sm:$0xff]
    %v378 = vpack.c.bf16 %v377, %v377
    %v379 = vld [vmem:[%s14] sm:$0xf]
    %v380 = vld [vmem:[%s14 + $0x4] sm:$0xf]
    %v381 = vld [vmem:[%s14 + $0x8] sm:$0xf]
    %v382 = vld [vmem:[%s14 + $0xc] sm:$0xf]
    %v384 = vlaneseq
    %v385 = vshrl.u32 %v384, 7
    %v386 = vsub.s32 0, %v385
    %v387 = vrot.slane %v376, %v386
    %v393 = vunpack.c.l.b16 %v379
    %v394 = vunpack.c.l.b16 %v380
    %v395 = vunpack.c.l.b16 %v381
    %v396 = vunpack.c.l.b16 %v382
    %v397 = vpack.c.b16 %v394, %v393
    %v398 = vpack.c.b16 %v396, %v395
    %v402 = vsel %vm195, %v378, 0
    %404 = vmatprep.subr.bf16.mxu0 0
    %405 = vmatpush1.bf16.msra.mxu0 %v397
    %406 = vmatprep.subr.bf16.mxu0 0
    %407 = vmatpush1.bf16.msra.mxu0 %v398
    %408 = vmatprep.subr.bf16.mxu0 0
    %409 = vmatpush1.bf16.msra.mxu0 0
    %410 = vmatprep.subr.bf16.mxu0 0
    %411 = vmatpush1.bf16.msra.mxu0 0
    %412 = vmatprep.subr.bf16.mxu0 0
    %413 = vmatpush1.bf16.msra.mxu0 0
    %414 = vmatprep.subr.bf16.mxu0 0
    %415 = vmatpush1.bf16.msra.mxu0 0
    %416 = vmatprep.subr.bf16.mxu0 0
    %417 = vmatpush1.bf16.msra.mxu0 0
    %418 = vmatprep.subr.bf16.mxu0 0
    %419 = vmatpush1.bf16.msra.mxu0 0
    %420 = vmatprep.subr.bf16.mxu0 0
    %421 = vmatpush1.bf16.msra.mxu0 0
    %422 = vmatprep.subr.bf16.mxu0 0
    %423 = vmatpush1.bf16.msra.mxu0 0
    %424 = vmatprep.subr.bf16.mxu0 0
    %425 = vmatpush1.bf16.msra.mxu0 0
    %426 = vmatprep.subr.bf16.mxu0 0
    %427 = vmatpush1.bf16.msra.mxu0 0
    %428 = vmatprep.subr.bf16.mxu0 0
    %429 = vmatpush1.bf16.msra.mxu0 0
    %430 = vmatprep.subr.bf16.mxu0 0
    %431 = vmatpush1.bf16.msra.mxu0 0
    %432 = vmatprep.subr.bf16.mxu0 0
    %433 = vmatpush1.bf16.msra.mxu0 0
    %434 = vmatprep.subr.bf16.mxu0 0
    %435 = vmatpush1.bf16.msra.mxu0 0
    %436 = vmatprep.mubr.bf16.mxu0 0
    %437 = vmatmul.mubr.bf16.gmra.mrb[0].mxu0 %v402
    %v438 = vpop.f32.mrb[0].mxu0
    %v439 = vadd.f32 %v387, %v438
    %v440 = vpop.f32.mrb[0].mxu0
    %v441 = vpop.f32.mrb[0].mxu0
    %v442 = vpop.f32.mrb[0].mxu0
    %443 = vdwg.mxu0
    %444 = vst.msk [vmem:[#allocation3] sm:$0xff] %vm195, %v439
    %s445 = scalar_lea.vmem %s1, 8
    %v446 = vld [vmem:[%s445] sm:$0xff]
    %v447 = vpack.c.bf16 %v446, %v446
    %v448 = vld [vmem:[%s14] sm:$0xf]
    %v449 = vld [vmem:[%s14 + $0x4] sm:$0xf]
    %v450 = vld [vmem:[%s14 + $0x8] sm:$0xf]
    %v451 = vld [vmem:[%s14 + $0xc] sm:$0xf]
    %v456 = vunpack.c.l.b16 %v448
    %v457 = vunpack.c.l.b16 %v449
    %v458 = vunpack.c.l.b16 %v450
    %v459 = vunpack.c.l.b16 %v451
    %v460 = vpack.c.b16 %v457, %v456
    %v461 = vpack.c.b16 %v459, %v458
    %v465 = vsel %vm195, %v447, 0
    %467 = vmatprep.subr.bf16.mxu0 0
    %468 = vmatpush1.bf16.msra.mxu0 %v460
    %469 = vmatprep.subr.bf16.mxu0 0
    %470 = vmatpush1.bf16.msra.mxu0 %v461
    %471 = vmatprep.subr.bf16.mxu0 0
    %472 = vmatpush1.bf16.msra.mxu0 0
    %473 = vmatprep.subr.bf16.mxu0 0
    %474 = vmatpush1.bf16.msra.mxu0 0
    %475 = vmatprep.subr.bf16.mxu0 0
    %476 = vmatpush1.bf16.msra.mxu0 0
    %477 = vmatprep.subr.bf16.mxu0 0
    %478 = vmatpush1.bf16.msra.mxu0 0
    %479 = vmatprep.subr.bf16.mxu0 0
    %480 = vmatpush1.bf16.msra.mxu0 0
    %481 = vmatprep.subr.bf16.mxu0 0
    %482 = vmatpush1.bf16.msra.mxu0 0
    %483 = vmatprep.subr.bf16.mxu0 0
    %484 = vmatpush1.bf16.msra.mxu0 0
    %485 = vmatprep.subr.bf16.mxu0 0
    %486 = vmatpush1.bf16.msra.mxu0 0
    %487 = vmatprep.subr.bf16.mxu0 0
    %488 = vmatpush1.bf16.msra.mxu0 0
    %489 = vmatprep.subr.bf16.mxu0 0
    %490 = vmatpush1.bf16.msra.mxu0 0
    %491 = vmatprep.subr.bf16.mxu0 0
    %492 = vmatpush1.bf16.msra.mxu0 0
    %493 = vmatprep.subr.bf16.mxu0 0
    %494 = vmatpush1.bf16.msra.mxu0 0
    %495 = vmatprep.subr.bf16.mxu0 0
    %496 = vmatpush1.bf16.msra.mxu0 0
    %497 = vmatprep.subr.bf16.mxu0 0
    %498 = vmatpush1.bf16.msra.mxu0 0
    %499 = vmatprep.mubr.bf16.mxu0 0
    %500 = vmatmul.mubr.bf16.gmra.mrb[0].mxu0 %v465
    %v501 = vpop.f32.mrb[0].mxu0
    %v502 = vadd.f32 %v387, %v501
    %v503 = vpop.f32.mrb[0].mxu0
    %v504 = vpop.f32.mrb[0].mxu0
    %v505 = vpop.f32.mrb[0].mxu0
    %506 = vdwg.mxu0
    %s507 = scalar_lea.vmem [#allocation3], 8
    %508 = vst.msk [vmem:[%s507] sm:$0xff] %vm195, %v502
    %v509 = vld [vmem:[%s1] sm:$0xff]
    %v510 = vld [vmem:[%s1 + $0x8] sm:$0xff]
    %v511 = vld [vmem:[#allocation3] sm:$0xff]
    %v512 = vld [vmem:[#allocation3 + $0x8] sm:$0xff]
    %v513 = vlaneseq
    %v514 = vand.u32 %v513, 127
    %v515 = vld [vmem:[%s2] sm:$0x3]
    %516 = vset.pattern.permute.xlu0 0
    %517 = vperm.xlu0 %516, %v515
    %v518 = vpop.permute.xlu0 %517
    %vm519 = vcmp.lt.s32.totalorder %v514, %v518
    %v520 = vsel %vm519, 0.0, -1e+09
    %v521 = vld [vmem:[%s13] sm:$0x1]
    %v522 = vld [vmem:[#allocation11] sm:$0x1]
    %v523 = vld [vmem:[#allocation13] sm:$0x1]
    %v524 = vld [vmem:[%s17] sm:$0x3]
    %v525 = vld [vmem:[%s18] sm:$0x3]
    %v526 = vld [vmem:[%s20] sm:$0x3]
    %v527 = vld [vmem:[%s21] sm:$0x3]
    %v528 = vld [vmem:[#allocation2] sm:$0x3]
    %v529 = vld [vmem:[%s8] sm:$0xf]
    %v530 = vld [vmem:[%s8 + $0x4] sm:$0xf]
    %v531 = vld [vmem:[%s8 + $0x8] sm:$0xf]
    %v532 = vld [vmem:[%s8 + $0xc] sm:$0xf]
    %v534 = vlaneseq
    %v535 = vshrl.u32 %v534, 7
    %v536 = vsub.s32 0, %v535
    %v537 = vrot.slane %v522, %v536
    %v543 = vunpack.c.l.b16 %v529
    %v544 = vunpack.c.l.b16 %v530
    %v545 = vunpack.c.l.b16 %v531
    %v546 = vunpack.c.l.b16 %v532
    %v547 = vpack.c.b16 %v544, %v543
    %v548 = vpack.c.b16 %v546, %v545
    %v552 = vsel %vm195, 0, 0
    %554 = vmatprep.subr.bf16.mxu0 0
    %555 = vmatpush1.bf16.msra.mxu0 %v547
    %556 = vmatprep.subr.bf16.mxu0 0
    %557 = vmatpush1.bf16.msra.mxu0 %v548
    %558 = vmatprep.subr.bf16.mxu0 0
    %559 = vmatpush1.bf16.msra.mxu0 0
    %560 = vmatprep.subr.bf16.mxu0 0
    %561 = vmatpush1.bf16.msra.mxu0 0
    %562 = vmatprep.subr.bf16.mxu0 0
    %563 = vmatpush1.bf16.msra.mxu0 0
    %564 = vmatprep.subr.bf16.mxu0 0
    %565 = vmatpush1.bf16.msra.mxu0 0
    %566 = vmatprep.subr.bf16.mxu0 0
    %567 = vmatpush1.bf16.msra.mxu0 0
    %568 = vmatprep.subr.bf16.mxu0 0
    %569 = vmatpush1.bf16.msra.mxu0 0
    %570 = vmatprep.subr.bf16.mxu0 0
    %571 = vmatpush1.bf16.msra.mxu0 0
    %572 = vmatprep.subr.bf16.mxu0 0
    %573 = vmatpush1.bf16.msra.mxu0 0
    %574 = vmatprep.subr.bf16.mxu0 0
    %575 = vmatpush1.bf16.msra.mxu0 0
    %576 = vmatprep.subr.bf16.mxu0 0
    %577 = vmatpush1.bf16.msra.mxu0 0
    %578 = vmatprep.subr.bf16.mxu0 0
    %579 = vmatpush1.bf16.msra.mxu0 0
    %580 = vmatprep.subr.bf16.mxu0 0
    %581 = vmatpush1.bf16.msra.mxu0 0
    %582 = vmatprep.subr.bf16.mxu0 0
    %583 = vmatpush1.bf16.msra.mxu0 0
    %584 = vmatprep.subr.bf16.mxu0 0
    %585 = vmatpush1.bf16.msra.mxu0 0
    %586 = vmatprep.mubr.bf16.mxu0 0
    %587 = vmatmul.mubr.bf16.gmra.mrb[0].mxu0 %v552
    %v588 = vpop.f32.mrb[0].mxu0
    %v589 = vadd.f32 %v537, %v588
    %v590 = vpop.f32.mrb[0].mxu0
    %v591 = vpop.f32.mrb[0].mxu0
    %v592 = vpop.f32.mrb[0].mxu0
    %593 = vdwg.mxu0
    %v594 = vadd.f32 %v528, %v589
    %v595 = vxor.u32 %v594, 2147483648
    %v596 = vmul.f32 %v595, 1.442695
    %v597 = vpow.pop %v596
    %v598 = vadd.f32 %v597, 1.0
    %v599 = vrcp.pop %v598
    %v600 = vmul.f32 1.0, %v599
    %602 = vrot.lane.b32.xlu0 %v589, 64
    %v603 = vpop.permute.xlu0 %602
    %v605 = vmul.f32 %v600, %v603
    %607 = vrot.lane.b32.xlu0 %v605, 64
    %v608 = vpop.permute.xlu0 %607
    %v610 = vadd.f32 %v528, %v608
    %v611 = vtanh.pop %v610
    %v612 = vsub.f32 1.0, %v600
    %614 = vrot.lane.b32.xlu0 %v611, 96
    %v615 = vpop.permute.xlu0 %614
    %v617 = vmul.f32 %v612, %v615
    %v618 = vmul.f32 %v600, 0.0
    %v619 = vadd.f32 %v617, %v618
    %v620 = vpack.c.bf16 %v619, %v619
    %v621 = vld [vmem:[%s11] sm:$0xf]
    %v622 = vld [vmem:[%s11 + $0x4] sm:$0xf]
    %v623 = vld [vmem:[%s11 + $0x8] sm:$0xf]
    %v624 = vld [vmem:[%s11 + $0xc] sm:$0xf]
    %v626 = vlaneseq
    %v627 = vshrl.u32 %v626, 7
    %v628 = vsub.s32 0, %v627
    %v629 = vrot.slane %v523, %v628
    %632 = vrot.lane.b32.xlu0 %v620, 96
    %v633 = vpop.permute.xlu0 %632
    %v638 = vunpack.c.l.b16 %v621
    %v639 = vunpack.c.l.b16 %v622
    %v640 = vunpack.c.l.b16 %v623
    %v641 = vunpack.c.l.b16 %v624
    %v642 = vpack.c.b16 %v639, %v638
    %v643 = vpack.c.b16 %v641, %v640
    %v647 = vsel %vm195, %v633, 0
    %649 = vmatprep.subr.bf16.mxu0 0
    %650 = vmatpush1.bf16.msra.mxu0 %v642
    %651 = vmatprep.subr.bf16.mxu0 0
    %652 = vmatpush1.bf16.msra.mxu0 %v643
    %653 = vmatprep.subr.bf16.mxu0 0
    %654 = vmatpush1.bf16.msra.mxu0 0
    %655 = vmatprep.subr.bf16.mxu0 0
    %656 = vmatpush1.bf16.msra.mxu0 0
    %657 = vmatprep.subr.bf16.mxu0 0
    %658 = vmatpush1.bf16.msra.mxu0 0
    %659 = vmatprep.subr.bf16.mxu0 0
    %660 = vmatpush1.bf16.msra.mxu0 0
    %661 = vmatprep.subr.bf16.mxu0 0
    %662 = vmatpush1.bf16.msra.mxu0 0
    %663 = vmatprep.subr.bf16.mxu0 0
    %664 = vmatpush1.bf16.msra.mxu0 0
    %665 = vmatprep.subr.bf16.mxu0 0
    %666 = vmatpush1.bf16.msra.mxu0 0
    %667 = vmatprep.subr.bf16.mxu0 0
    %668 = vmatpush1.bf16.msra.mxu0 0
    %669 = vmatprep.subr.bf16.mxu0 0
    %670 = vmatpush1.bf16.msra.mxu0 0
    %671 = vmatprep.subr.bf16.mxu0 0
    %672 = vmatpush1.bf16.msra.mxu0 0
    %673 = vmatprep.subr.bf16.mxu0 0
    %674 = vmatpush1.bf16.msra.mxu0 0
    %675 = vmatprep.subr.bf16.mxu0 0
    %676 = vmatpush1.bf16.msra.mxu0 0
    %677 = vmatprep.subr.bf16.mxu0 0
    %678 = vmatpush1.bf16.msra.mxu0 0
    %679 = vmatprep.subr.bf16.mxu0 0
    %680 = vmatpush1.bf16.msra.mxu0 0
    %681 = vmatprep.mubr.bf16.mxu0 0
    %682 = vmatmul.mubr.bf16.gmra.mrb[0].mxu0 %v647
    %v683 = vpop.f32.mrb[0].mxu0
    %v684 = vadd.f32 %v629, %v683
    %v685 = vpop.f32.mrb[0].mxu0
    %v686 = vpop.f32.mrb[0].mxu0
    %v687 = vpop.f32.mrb[0].mxu0
    %688 = vdwg.mxu0
    %v691 = vunpack.c.l.s4 1966171168
    %v692 = vunpack.c.0.s8 %v691
    %v693 = vlaneseq
    %v694 = vshrl.u32 %v693, 7
    %v695 = vsub.s32 %v692, %v694
    %v696 = vrot.slane %v684, %v695
    %v697 = vcombine.high %v696, %v696
    %v699 = vunpack.c.l.s4 1966171168
    %v700 = vunpack.c.0.s8 %v699
    %v701 = vlaneseq
    %v702 = vshrl.u32 %v701, 7
    %v703 = vsub.s32 %v700, %v702
    %v704 = vrot.slane %v696, %v703
    %v706 = vunpack.c.l.s4 1966171168
    %v707 = vunpack.c.0.s8 %v706
    %v708 = vlaneseq
    %v709 = vshrl.u32 %v708, 7
    %v710 = vsub.s32 %v707, %v709
    %v711 = vrot.slane %v697, %v710
    %v712 = vlaneseq
    %v713 = vshrl.u32 %v712, 7
    %v714 = vsub.s32 0, %v713
    %v715 = vrot.slane %v704, %v714
    %v716 = vlaneseq
    %v717 = vshrl.u32 %v716, 7
    %v718 = vsub.s32 0, %v717
    %v719 = vrot.slane %v711, %v718
    %v722 = vadd.f32 %v715, %v511
    %v723 = vadd.f32 %v719, %v512
    %v724 = vtanh.pop %v722
    %v725 = vtanh.pop %v723
    %v727 = vlaneseq
    %v728 = vshrl.u32 %v727, 7
    %v729 = vsub.s32 0, %v728
    %v730 = vrot.slane %v521, %v729
    %v732 = vmul.f32 %v724, %v730
    %v733 = vmul.f32 %v725, %v730
    %v734 = vsel %vm195, %v732, 0.0
    %735 = vadd.xlane.f32.xlu0 %v734
    %v736 = vpop.xlane.xlu0 %735
    %v737 = vsel %vm195, %v733, 0.0
    %738 = vadd.xlane.f32.xlu0 %v737
    %v739 = vpop.xlane.xlu0 %738
    %v741 = vlaneseq
    %v742 = vshrl.u32 %v741, 7
    %v743 = vsub.s32 0, %v742
    %v744 = vrot.slane %v520, %v743
    %746 = vbcast.lane.b32.xlu0 %v744, 256
    %v747 = vpop.permute.xlu0 %746
    %v748 = vlaneseq
    %v749 = vshrl.u32 %v748, 7
    %v750 = vsub.s32 1, %v749
    %v751 = vrot.slane %v520, %v750
    %753 = vbcast.lane.b32.xlu0 %v751, 256
    %v754 = vpop.permute.xlu0 %753
    %v757 = vadd.f32 %v736, %v747
    %v758 = vadd.f32 %v739, %v754
    %761 = vset.pattern.permute.xlu0 0
    %762 = vperm.xlu0 %761, %v757
    %v763 = vpop.permute.xlu0 %762
    %764 = vset.pattern.permute.xlu0 0
    %765 = vperm.xlu0 %764, %v758
    %v766 = vpop.permute.xlu0 %765
    %v767 = vlaneseq
    %v768 = vshrl.u32 %v767, 7
    %v769 = vsub.s32 %v514, %v768
    %v770 = vrot.slane %v763, %v769
    %v771 = vlaneseq
    %v772 = vshrl.u32 %v771, 7
    %v773 = vsub.s32 %v514, %v772
    %v774 = vrot.slane %v766, %v773
    %vm775 = vcmask 1041409
    %v776 = vsel %vm775, %v774, %v770
    %vm778 = vcmask 58368
    %v779 = vsel %vm778, %v776, -inf
    %780 = vmax.xlane.f32.xlu0 %v779
    %v781 = vpop.xlane.xlu0 %780
    %v783 = vlaneseq
    %v784 = vshrl.u32 %v783, 7
    %v785 = vsub.s32 0, %v784
    %v786 = vrot.slane %v781, %v785
    %v787 = vlaneseq
    %v788 = vshrl.u32 %v787, 7
    %v789 = vsub.s32 1, %v788
    %v790 = vrot.slane %v781, %v789
    %v793 = vsub.f32 %v757, %v786
    %v794 = vsub.f32 %v758, %v790
    %v795 = vmul.f32 %v793, 1.442695
    %v796 = vpow.pop %v795
    %v797 = vmul.f32 %v794, 1.442695
    %v798 = vpow.pop %v797
    %801 = vset.pattern.permute.xlu0 0
    %802 = vperm.xlu0 %801, %v796
    %v803 = vpop.permute.xlu0 %802
    %804 = vset.pattern.permute.xlu0 0
    %805 = vperm.xlu0 %804, %v798
    %v806 = vpop.permute.xlu0 %805
    %v807 = vlaneseq
    %v808 = vshrl.u32 %v807, 7
    %v809 = vsub.s32 %v514, %v808
    %v810 = vrot.slane %v803, %v809
    %v811 = vlaneseq
    %v812 = vshrl.u32 %v811, 7
    %v813 = vsub.s32 %v514, %v812
    %v814 = vrot.slane %v806, %v813
    %v815 = vsel %vm775, %v814, %v810
    %v817 = vsel %vm778, %v815, 0.0
    %818 = vadd.xlane.f32.xlu0 %v817
    %v819 = vpop.xlane.xlu0 %818
    %v820 = vrcp.pop %v819
    %v822 = vlaneseq
    %v823 = vshrl.u32 %v822, 7
    %v824 = vsub.s32 0, %v823
    %v825 = vrot.slane %v820, %v824
    %v826 = vlaneseq
    %v827 = vshrl.u32 %v826, 7
    %v828 = vsub.s32 1, %v827
    %v829 = vrot.slane %v820, %v828
    %v832 = vmul.f32 %v796, %v825
    %v833 = vmul.f32 %v798, %v829
    %835 = vset.pattern.permute.xlu0 0
    %836 = vperm.xlu0 %835, %v832
    %v837 = vpop.permute.xlu0 %836
    %840 = vset.pattern.permute.xlu0 0
    %841 = vperm.xlu0 %840, %v833
    %v842 = vpop.permute.xlu0 %841
    %v844 = vmul.f32 %v837, %v509
    %v845 = vmul.f32 %v842, %v510
    %v846 = vsel %vm195, %v844, 0.0
    %v847 = vrot.slane %v846, 4
    %v848 = vadd.f32 %v846, %v847
    %v849 = vrot.slane %v848, 2
    %v850 = vadd.f32 %v848, %v849
    %v851 = vrot.slane %v850, 1
    %v852 = vadd.f32 %v850, %v851
    %v853 = vsel %vm195, %v845, 0.0
    %v854 = vrot.slane %v853, 4
    %v855 = vadd.f32 %v853, %v854
    %v856 = vrot.slane %v855, 2
    %v857 = vadd.f32 %v855, %v856
    %v858 = vrot.slane %v857, 1
    %v859 = vadd.f32 %v857, %v858
    %861 = vrot.lane.b32.xlu0 %v619, 96
    %v862 = vpop.permute.xlu0 %861
    %v866 = vsel %vm775, %v859, %v852
    %867 = vrot.lane.b32.xlu0 %v866, 32
    %v868 = vpop.permute.xlu0 %867
    %v870 = vsel %vm195, %v862, %v868
    %vm871 = vcmask 523264
    %v872 = vsel %vm871, %v870, 0.0
    %v873 = vpack.c.bf16 %v872, %v872
    %v874 = vld [vmem:[#allocation14] sm:$0xff]
    %v875 = vld [vmem:[#allocation14 + $0x8] sm:$0xf]
    %v876 = vld [vmem:[#allocation14 + $0xc] sm:$0xff]
    %v877 = vld [vmem:[#allocation14 + $0x14] sm:$0xf]
    %v878 = vld [vmem:[#allocation14 + $0x18] sm:$0xff]
    %v879 = vld [vmem:[#allocation14 + $0x20] sm:$0xf]
    %v880 = vld [vmem:[#allocation14 + $0x24] sm:$0xff]
    %v881 = vld [vmem:[#allocation14 + $0x2c] sm:$0xf]
    %v882 = vld [vmem:[#allocation14 + $0x30] sm:$0xff]
    %v883 = vld [vmem:[#allocation14 + $0x38] sm:$0xf]
    %v884 = vld [vmem:[#allocation14 + $0x3c] sm:$0xff]
    %v885 = vld [vmem:[#allocation14 + $0x44] sm:$0xf]
    %v886 = vld [vmem:[#allocation14 + $0x48] sm:$0xff]
    %v887 = vld [vmem:[#allocation14 + $0x50] sm:$0xf]
    %v888 = vld [vmem:[#allocation14 + $0x54] sm:$0xff]
    %v889 = vld [vmem:[#allocation14 + $0x5c] sm:$0xf]
    %v890 = vld [vmem:[#allocation14 + $0x60] sm:$0xff]
    %v891 = vld [vmem:[#allocation14 + $0x68] sm:$0xf]
    %v892 = vld [vmem:[#allocation14 + $0x6c] sm:$0xff]
    %v893 = vld [vmem:[#allocation14 + $0x74] sm:$0xf]
    %v894 = vld [vmem:[#allocation14 + $0x78] sm:$0xff]
    %v895 = vld [vmem:[#allocation14 + $0x80] sm:$0xf]
    %v896 = vld [vmem:[#allocation14 + $0x84] sm:$0xff]
    %v897 = vld [vmem:[#allocation14 + $0x8c] sm:$0xf]
    %v898 = vld [vmem:[#allocation14 + $0x90] sm:$0xff]
    %v899 = vld [vmem:[#allocation14 + $0x98] sm:$0xf]
    %v900 = vld [vmem:[#allocation14 + $0x9c] sm:$0xff]
    %v901 = vld [vmem:[#allocation14 + $0xa4] sm:$0xf]
    %v902 = vld [vmem:[#allocation14 + $0xa8] sm:$0xff]
    %v903 = vld [vmem:[#allocation14 + $0xb0] sm:$0xf]
    %v904 = vld [vmem:[#allocation14 + $0xb4] sm:$0xff]
    %v905 = vld [vmem:[#allocation14 + $0xbc] sm:$0xf]
    %v938 = vunpack.c.l.b16 %v874
    %v939 = vunpack.c.h.b16 %v874
    %v940 = vunpack.c.l.b16 %v875
    %v941 = vunpack.c.l.b16 %v876
    %v942 = vunpack.c.h.b16 %v876
    %v943 = vunpack.c.l.b16 %v877
    %v944 = vunpack.c.l.b16 %v878
    %v945 = vunpack.c.h.b16 %v878
    %v946 = vunpack.c.l.b16 %v879
    %v947 = vunpack.c.l.b16 %v880
    %v948 = vunpack.c.h.b16 %v880
    %v949 = vunpack.c.l.b16 %v881
    %v950 = vunpack.c.l.b16 %v882
    %v951 = vunpack.c.h.b16 %v882
    %v952 = vunpack.c.l.b16 %v883
    %v953 = vunpack.c.l.b16 %v884
    %v954 = vunpack.c.h.b16 %v884
    %v955 = vunpack.c.l.b16 %v885
    %v956 = vunpack.c.l.b16 %v886
    %v957 = vunpack.c.h.b16 %v886
    %v958 = vunpack.c.l.b16 %v887
    %v959 = vunpack.c.l.b16 %v888
    %v960 = vunpack.c.h.b16 %v888
    %v961 = vunpack.c.l.b16 %v889
    %v962 = vunpack.c.l.b16 %v890
    %v963 = vunpack.c.h.b16 %v890
    %v964 = vunpack.c.l.b16 %v891
    %v965 = vunpack.c.l.b16 %v892
    %v966 = vunpack.c.h.b16 %v892
    %v967 = vunpack.c.l.b16 %v893
    %v968 = vunpack.c.l.b16 %v894
    %v969 = vunpack.c.h.b16 %v894
    %v970 = vunpack.c.l.b16 %v895
    %v971 = vunpack.c.l.b16 %v896
    %v972 = vunpack.c.h.b16 %v896
    %v973 = vunpack.c.l.b16 %v897
    %v974 = vunpack.c.l.b16 %v898
    %v975 = vunpack.c.h.b16 %v898
    %v976 = vunpack.c.l.b16 %v899
    %v977 = vunpack.c.l.b16 %v900
    %v978 = vunpack.c.h.b16 %v900
    %v979 = vunpack.c.l.b16 %v901
    %v980 = vunpack.c.l.b16 %v902
    %v981 = vunpack.c.h.b16 %v902
    %v982 = vunpack.c.l.b16 %v903
    %v983 = vunpack.c.l.b16 %v904
    %v984 = vunpack.c.h.b16 %v904
    %v985 = vunpack.c.l.b16 %v905
    %v986 = vpack.c.b16 %v941, %v938
    %v987 = vpack.c.b16 %v942, %v939
    %v988 = vpack.c.b16 %v943, %v940
    %v989 = vpack.c.b16 %v947, %v944
    %v990 = vpack.c.b16 %v948, %v945
    %v991 = vpack.c.b16 %v949, %v946
    %v992 = vpack.c.b16 %v953, %v950
    %v993 = vpack.c.b16 %v954, %v951
    %v994 = vpack.c.b16 %v955, %v952
    %v995 = vpack.c.b16 %v959, %v956
    %v996 = vpack.c.b16 %v960, %v957
    %v997 = vpack.c.b16 %v961, %v958
    %v998 = vpack.c.b16 %v965, %v962
    %v999 = vpack.c.b16 %v966, %v963
    %v1000 = vpack.c.b16 %v967, %v964
    %v1001 = vpack.c.b16 %v971, %v968
    %v1002 = vpack.c.b16 %v972, %v969
    %v1003 = vpack.c.b16 %v973, %v970
    %v1004 = vpack.c.b16 %v977, %v974
    %v1005 = vpack.c.b16 %v978, %v975
    %v1006 = vpack.c.b16 %v979, %v976
    %v1007 = vpack.c.b16 %v983, %v980
    %v1008 = vpack.c.b16 %v984, %v981
    %v1009 = vpack.c.b16 %v985, %v982
    %1034 = vmatprep.subr.bf16.mxu0 %v987
    %1035 = vmatpush1.bf16.msra.mxu0 %v986
    %1036 = vmatprep.subr.bf16.mxu0 %v990
    %1037 = vmatpush1.bf16.msra.mxu0 %v989
    %1038 = vmatprep.subr.bf16.mxu0 %v993
    %1039 = vmatpush1.bf16.msra.mxu0 %v992
    %1040 = vmatprep.subr.bf16.mxu0 %v996
    %1041 = vmatpush1.bf16.msra.mxu0 %v995
    %1042 = vmatprep.subr.bf16.mxu0 %v999
    %1043 = vmatpush1.bf16.msra.mxu0 %v998
    %1044 = vmatprep.subr.bf16.mxu0 %v1002
    %1045 = vmatpush1.bf16.msra.mxu0 %v1001
    %1046 = vmatprep.subr.bf16.mxu0 %v1005
    %1047 = vmatpush1.bf16.msra.mxu0 %v1004
    %1048 = vmatprep.subr.bf16.mxu0 %v1008
    %1049 = vmatpush1.bf16.msra.mxu0 %v1007
    %1050 = vmatprep.subr.bf16.mxu0 0
    %1051 = vmatpush1.bf16.msra.mxu0 0
    %1052 = vmatprep.subr.bf16.mxu0 0
    %1053 = vmatpush1.bf16.msra.mxu0 0
    %1054 = vmatprep.subr.bf16.mxu0 0
    %1055 = vmatpush1.bf16.msra.mxu0 0
    %1056 = vmatprep.subr.bf16.mxu0 0
    %1057 = vmatpush1.bf16.msra.mxu0 0
    %1058 = vmatprep.subr.bf16.mxu0 0
    %1059 = vmatpush1.bf16.msra.mxu0 0
    %1060 = vmatprep.subr.bf16.mxu0 0
    %1061 = vmatpush1.bf16.msra.mxu0 0
    %1062 = vmatprep.subr.bf16.mxu0 0
    %1063 = vmatpush1.bf16.msra.mxu0 0
    %1064 = vmatprep.subr.bf16.mxu0 0
    %1065 = vmatpush1.bf16.msra.mxu0 0
    %1066 = vmatprep.mubr.bf16.mxu0 0
    %1067 = vmatmul.mubr.bf16.gmra.mrb[0].mxu0 %v873
    %v1068 = vpop.f32.mrb[0].mxu0
    %v1069 = vadd.f32 0.0, %v1068
    %v1070 = vpop.f32.mrb[0].mxu0
    %v1071 = vadd.f32 0.0, %v1070
    %v1072 = vpop.f32.mrb[0].mxu0
    %v1073 = vpop.f32.mrb[0].mxu0
    %1074 = vdwg.mxu0
    %1075 = vmatprep.subr.bf16.mxu0 0
    %1076 = vmatpush1.bf16.msra.mxu0 %v988
    %1077 = vmatprep.subr.bf16.mxu0 0
    %1078 = vmatpush1.bf16.msra.mxu0 %v991
    %1079 = vmatprep.subr.bf16.mxu0 0
    %1080 = vmatpush1.bf16.msra.mxu0 %v994
    %1081 = vmatprep.subr.bf16.mxu0 0
    %1082 = vmatpush1.bf16.msra.mxu0 %v997
    %1083 = vmatprep.subr.bf16.mxu0 0
    %1084 = vmatpush1.bf16.msra.mxu0 %v1000
    %1085 = vmatprep.subr.bf16.mxu0 0
    %1086 = vmatpush1.bf16.msra.mxu0 %v1003
    %1087 = vmatprep.subr.bf16.mxu0 0
    %1088 = vmatpush1.bf16.msra.mxu0 %v1006
    %1089 = vmatprep.subr.bf16.mxu0 0
    %1090 = vmatpush1.bf16.msra.mxu0 %v1009
    %1091 = vmatprep.subr.bf16.mxu0 0
    %1092 = vmatpush1.bf16.msra.mxu0 0
    %1093 = vmatprep.subr.bf16.mxu0 0
    %1094 = vmatpush1.bf16.msra.mxu0 0
    %1095 = vmatprep.subr.bf16.mxu0 0
    %1096 = vmatpush1.bf16.msra.mxu0 0
    %1097 = vmatprep.subr.bf16.mxu0 0
    %1098 = vmatpush1.bf16.msra.mxu0 0
    %1099 = vmatprep.subr.bf16.mxu0 0
    %1100 = vmatpush1.bf16.msra.mxu0 0
    %1101 = vmatprep.subr.bf16.mxu0 0
    %1102 = vmatpush1.bf16.msra.mxu0 0
    %1103 = vmatprep.subr.bf16.mxu0 0
    %1104 = vmatpush1.bf16.msra.mxu0 0
    %1105 = vmatprep.subr.bf16.mxu0 0
    %1106 = vmatpush1.bf16.msra.mxu0 0
    %1107 = vmatprep.mubr.bf16.mxu0 0
    %1108 = vmatmul.mubr.bf16.gmra.mrb[0].mxu0 %v873
    %v1109 = vpop.f32.mrb[0].mxu0
    %v1110 = vadd.f32 0.0, %v1109
    %v1111 = vpop.f32.mrb[0].mxu0
    %v1112 = vpop.f32.mrb[0].mxu0
    %v1113 = vpop.f32.mrb[0].mxu0
    %1114 = vdwg.mxu0
    %v1116 = vlaneseq
    %v1117 = vshrl.u32 %v1116, 7
    %v1118 = vsub.s32 0, %v1117
    %v1119 = vrot.slane %v524, %v1118
    %v1120 = vlaneseq
    %v1121 = vshrl.u32 %v1120, 7
    %v1122 = vsub.s32 1, %v1121
    %v1123 = vrot.slane %v524, %v1122
    %v1126 = vadd.f32 %v1069, %v1119
    %v1127 = vadd.f32 %v1071, %v1123
    %v1129 = vlaneseq
    %v1130 = vshrl.u32 %v1129, 7
    %v1131 = vsub.s32 0, %v1130
    %v1132 = vrot.slane %v525, %v1131
    %v1133 = vlaneseq
    %v1134 = vshrl.u32 %v1133, 7
    %v1135 = vsub.s32 1, %v1134
    %v1136 = vrot.slane %v525, %v1135
    %1137 = vrot.lane.b32.xlu0 %v1132, 64
    %v1138 = vpop.permute.xlu0 %1137
    %1139 = vrot.lane.b32.xlu0 %v1136, 64
    %v1140 = vpop.permute.xlu0 %1139
    %v1141 = vsel %vm871, %v1138, %v1140
    %v1144 = vadd.f32 %v1071, %v1138
    %v1145 = vadd.f32 %v1110, %v1141
    %1147 = vrot.lane.b32.xlu0 %v1144, 64
    %v1148 = vpop.permute.xlu0 %1147
    %v1150 = vadd.f32 %v1126, %v1148
    %v1151 = vxor.u32 %v1150, 2147483648
    %v1152 = vmul.f32 %v1151, 1.442695
    %v1153 = vpow.pop %v1152
    %v1154 = vadd.f32 %v1153, 1.0
    %v1155 = vrcp.pop %v1154
    %v1156 = vmul.f32 1.0, %v1155
    %1158 = vrot.lane.b32.xlu0 %v1145, 64
    %v1159 = vpop.permute.xlu0 %1158
    %v1161 = vadd.f32 %v1126, %v1159
    %v1162 = vxor.u32 %v1161, 2147483648
    %v1163 = vmul.f32 %v1162, 1.442695
    %v1164 = vpow.pop %v1163
    %v1165 = vadd.f32 %v1164, 1.0
    %v1166 = vrcp.pop %v1165
    %v1167 = vmul.f32 1.0, %v1166
    %v1168 = vmul.f32 %v1156, %v1159
    %v1169 = vadd.f32 %v1127, %v1168
    %v1170 = vtanh.pop %v1169
    %v1171 = vsub.f32 1.0, %v1167
    %1173 = vrot.lane.b32.xlu0 %v1170, 64
    %v1174 = vpop.permute.xlu0 %1173
    %v1176 = vmul.f32 %v1171, %v1174
    %v1177 = vmul.f32 %v1167, 0.0
    %v1178 = vadd.f32 %v1176, %v1177
    %1180 = vrot.lane.b32.xlu0 %v1178, 64
    %v1181 = vpop.permute.xlu0 %1180
    %v1183 = vadd.f32 %v870, %v1181
    %v1184 = vsel %vm871, %v1183, 0.0
    %v1185 = vpack.c.bf16 %v1184, %v1184
    %v1186 = vld [vmem:[#allocation16] sm:$0xff]
    %v1187 = vld [vmem:[#allocation16 + $0x8] sm:$0xf]
    %v1188 = vld [vmem:[#allocation16 + $0xc] sm:$0xff]
    %v1189 = vld [vmem:[#allocation16 + $0x14] sm:$0xf]
    %v1190 = vld [vmem:[#allocation16 + $0x18] sm:$0xff]
    %v1191 = vld [vmem:[#allocation16 + $0x20] sm:$0xf]
    %v1192 = vld [vmem:[#allocation16 + $0x24] sm:$0xff]
    %v1193 = vld [vmem:[#allocation16 + $0x2c] sm:$0xf]
    %v1194 = vld [vmem:[#allocation16 + $0x30] sm:$0xff]
    %v1195 = vld [vmem:[#allocation16 + $0x38] sm:$0xf]
    %v1196 = vld [vmem:[#allocation16 + $0x3c] sm:$0xff]
    %v1197 = vld [vmem:[#allocation16 + $0x44] sm:$0xf]
    %v1198 = vld [vmem:[#allocation16 + $0x48] sm:$0xff]
    %v1199 = vld [vmem:[#allocation16 + $0x50] sm:$0xf]
    %v1200 = vld [vmem:[#allocation16 + $0x54] sm:$0xff]
    %v1201 = vld [vmem:[#allocation16 + $0x5c] sm:$0xf]
    %v1202 = vld [vmem:[#allocation16 + $0x60] sm:$0xff]
    %v1203 = vld [vmem:[#allocation16 + $0x68] sm:$0xf]
    %v1204 = vld [vmem:[#allocation16 + $0x6c] sm:$0xff]
    %v1205 = vld [vmem:[#allocation16 + $0x74] sm:$0xf]
    %v1206 = vld [vmem:[#allocation16 + $0x78] sm:$0xff]
    %v1207 = vld [vmem:[#allocation16 + $0x80] sm:$0xf]
    %v1208 = vld [vmem:[#allocation16 + $0x84] sm:$0xff]
    %v1209 = vld [vmem:[#allocation16 + $0x8c] sm:$0xf]
    %v1210 = vld [vmem:[#allocation16 + $0x90] sm:$0xff]
    %v1211 = vld [vmem:[#allocation16 + $0x98] sm:$0xf]
    %v1212 = vld [vmem:[#allocation16 + $0x9c] sm:$0xff]
    %v1213 = vld [vmem:[#allocation16 + $0xa4] sm:$0xf]
    %v1214 = vld [vmem:[#allocation16 + $0xa8] sm:$0xff]
    %v1215 = vld [vmem:[#allocation16 + $0xb0] sm:$0xf]
    %v1216 = vld [vmem:[#allocation16 + $0xb4] sm:$0xff]
    %v1217 = vld [vmem:[#allocation16 + $0xbc] sm:$0xf]
    %v1250 = vunpack.c.l.b16 %v1186
    %v1251 = vunpack.c.h.b16 %v1186
    %v1252 = vunpack.c.l.b16 %v1187
    %v1253 = vunpack.c.l.b16 %v1188
    %v1254 = vunpack.c.h.b16 %v1188
    %v1255 = vunpack.c.l.b16 %v1189
    %v1256 = vunpack.c.l.b16 %v1190
    %v1257 = vunpack.c.h.b16 %v1190
    %v1258 = vunpack.c.l.b16 %v1191
    %v1259 = vunpack.c.l.b16 %v1192
    %v1260 = vunpack.c.h.b16 %v1192
    %v1261 = vunpack.c.l.b16 %v1193
    %v1262 = vunpack.c.l.b16 %v1194
    %v1263 = vunpack.c.h.b16 %v1194
    %v1264 = vunpack.c.l.b16 %v1195
    %v1265 = vunpack.c.l.b16 %v1196
    %v1266 = vunpack.c.h.b16 %v1196
    %v1267 = vunpack.c.l.b16 %v1197
    %v1268 = vunpack.c.l.b16 %v1198
    %v1269 = vunpack.c.h.b16 %v1198
    %v1270 = vunpack.c.l.b16 %v1199
    %v1271 = vunpack.c.l.b16 %v1200
    %v1272 = vunpack.c.h.b16 %v1200
    %v1273 = vunpack.c.l.b16 %v1201
    %v1274 = vunpack.c.l.b16 %v1202
    %v1275 = vunpack.c.h.b16 %v1202
    %v1276 = vunpack.c.l.b16 %v1203
    %v1277 = vunpack.c.l.b16 %v1204
    %v1278 = vunpack.c.h.b16 %v1204
    %v1279 = vunpack.c.l.b16 %v1205
    %v1280 = vunpack.c.l.b16 %v1206
    %v1281 = vunpack.c.h.b16 %v1206
    %v1282 = vunpack.c.l.b16 %v1207
    %v1283 = vunpack.c.l.b16 %v1208
    %v1284 = vunpack.c.h.b16 %v1208
    %v1285 = vunpack.c.l.b16 %v1209
    %v1286 = vunpack.c.l.b16 %v1210
    %v1287 = vunpack.c.h.b16 %v1210
    %v1288 = vunpack.c.l.b16 %v1211
    %v1289 = vunpack.c.l.b16 %v1212
    %v1290 = vunpack.c.h.b16 %v1212
    %v1291 = vunpack.c.l.b16 %v1213
    %v1292 = vunpack.c.l.b16 %v1214
    %v1293 = vunpack.c.h.b16 %v1214
    %v1294 = vunpack.c.l.b16 %v1215
    %v1295 = vunpack.c.l.b16 %v1216
    %v1296 = vunpack.c.h.b16 %v1216
    %v1297 = vunpack.c.l.b16 %v1217
    %v1298 = vpack.c.b16 %v1253, %v1250
    %v1299 = vpack.c.b16 %v1254, %v1251
    %v1300 = vpack.c.b16 %v1255, %v1252
    %v1301 = vpack.c.b16 %v1259, %v1256
    %v1302 = vpack.c.b16 %v1260, %v1257
    %v1303 = vpack.c.b16 %v1261, %v1258
    %v1304 = vpack.c.b16 %v1265, %v1262
    %v1305 = vpack.c.b16 %v1266, %v1263
    %v1306 = vpack.c.b16 %v1267, %v1264
    %v1307 = vpack.c.b16 %v1271, %v1268
    %v1308 = vpack.c.b16 %v1272, %v1269
    %v1309 = vpack.c.b16 %v1273, %v1270
    %v1310 = vpack.c.b16 %v1277, %v1274
    %v1311 = vpack.c.b16 %v1278, %v1275
    %v1312 = vpack.c.b16 %v1279, %v1276
    %v1313 = vpack.c.b16 %v1283, %v1280
    %v1314 = vpack.c.b16 %v1284, %v1281
    %v1315 = vpack.c.b16 %v1285, %v1282
    %v1316 = vpack.c.b16 %v1289, %v1286
    %v1317 = vpack.c.b16 %v1290, %v1287
    %v1318 = vpack.c.b16 %v1291, %v1288
    %v1319 = vpack.c.b16 %v1295, %v1292
    %v1320 = vpack.c.b16 %v1296, %v1293
    %v1321 = vpack.c.b16 %v1297, %v1294
    %1346 = vmatprep.subr.bf16.mxu0 %v1299
    %1347 = vmatpush1.bf16.msra.mxu0 %v1298
    %1348 = vmatprep.subr.bf16.mxu0 %v1302
    %1349 = vmatpush1.bf16.msra.mxu0 %v1301
    %1350 = vmatprep.subr.bf16.mxu0 %v1305
    %1351 = vmatpush1.bf16.msra.mxu0 %v1304
    %1352 = vmatprep.subr.bf16.mxu0 %v1308
    %1353 = vmatpush1.bf16.msra.mxu0 %v1307
    %1354 = vmatprep.subr.bf16.mxu0 %v1311
    %1355 = vmatpush1.bf16.msra.mxu0 %v1310
    %1356 = vmatprep.subr.bf16.mxu0 %v1314
    %1357 = vmatpush1.bf16.msra.mxu0 %v1313
    %1358 = vmatprep.subr.bf16.mxu0 %v1317
    %1359 = vmatpush1.bf16.msra.mxu0 %v1316
    %1360 = vmatprep.subr.bf16.mxu0 %v1320
    %1361 = vmatpush1.bf16.msra.mxu0 %v1319
    %1362 = vmatprep.subr.bf16.mxu0 0
    %1363 = vmatpush1.bf16.msra.mxu0 0
    %1364 = vmatprep.subr.bf16.mxu0 0
    %1365 = vmatpush1.bf16.msra.mxu0 0
    %1366 = vmatprep.subr.bf16.mxu0 0
    %1367 = vmatpush1.bf16.msra.mxu0 0
    %1368 = vmatprep.subr.bf16.mxu0 0
    %1369 = vmatpush1.bf16.msra.mxu0 0
    %1370 = vmatprep.subr.bf16.mxu0 0
    %1371 = vmatpush1.bf16.msra.mxu0 0
    %1372 = vmatprep.subr.bf16.mxu0 0
    %1373 = vmatpush1.bf16.msra.mxu0 0
    %1374 = vmatprep.subr.bf16.mxu0 0
    %1375 = vmatpush1.bf16.msra.mxu0 0
    %1376 = vmatprep.subr.bf16.mxu0 0
    %1377 = vmatpush1.bf16.msra.mxu0 0
    %1378 = vmatprep.mubr.bf16.mxu0 0
    %1379 = vmatmul.mubr.bf16.gmra.mrb[0].mxu0 %v1185
    %v1380 = vpop.f32.mrb[0].mxu0
    %v1381 = vadd.f32 0.0, %v1380
    %v1382 = vpop.f32.mrb[0].mxu0
    %v1383 = vadd.f32 0.0, %v1382
    %v1384 = vpop.f32.mrb[0].mxu0
    %v1385 = vpop.f32.mrb[0].mxu0
    %1386 = vdwg.mxu0
    %1387 = vmatprep.subr.bf16.mxu0 0
    %1388 = vmatpush1.bf16.msra.mxu0 %v1300
    %1389 = vmatprep.subr.bf16.mxu0 0
    %1390 = vmatpush1.bf16.msra.mxu0 %v1303
    %1391 = vmatprep.subr.bf16.mxu0 0
    %1392 = vmatpush1.bf16.msra.mxu0 %v1306
    %1393 = vmatprep.subr.bf16.mxu0 0
    %1394 = vmatpush1.bf16.msra.mxu0 %v1309
    %1395 = vmatprep.subr.bf16.mxu0 0
    %1396 = vmatpush1.bf16.msra.mxu0 %v1312
    %1397 = vmatprep.subr.bf16.mxu0 0
    %1398 = vmatpush1.bf16.msra.mxu0 %v1315
    %1399 = vmatprep.subr.bf16.mxu0 0
    %1400 = vmatpush1.bf16.msra.mxu0 %v1318
    %1401 = vmatprep.subr.bf16.mxu0 0
    %1402 = vmatpush1.bf16.msra.mxu0 %v1321
    %1403 = vmatprep.subr.bf16.mxu0 0
    %1404 = vmatpush1.bf16.msra.mxu0 0
    %1405 = vmatprep.subr.bf16.mxu0 0
    %1406 = vmatpush1.bf16.msra.mxu0 0
    %1407 = vmatprep.subr.bf16.mxu0 0
    %1408 = vmatpush1.bf16.msra.mxu0 0
    %1409 = vmatprep.subr.bf16.mxu0 0
    %1410 = vmatpush1.bf16.msra.mxu0 0
    %1411 = vmatprep.subr.bf16.mxu0 0
    %1412 = vmatpush1.bf16.msra.mxu0 0
    %1413 = vmatprep.subr.bf16.mxu0 0
    %1414 = vmatpush1.bf16.msra.mxu0 0
    %1415 = vmatprep.subr.bf16.mxu0 0
    %1416 = vmatpush1.bf16.msra.mxu0 0
    %1417 = vmatprep.subr.bf16.mxu0 0
    %1418 = vmatpush1.bf16.msra.mxu0 0
    %1419 = vmatprep.mubr.bf16.mxu0 0
    %1420 = vmatmul.mubr.bf16.gmra.mrb[0].mxu0 %v1185
    %v1421 = vpop.f32.mrb[0].mxu0
    %v1422 = vadd.f32 0.0, %v1421
    %v1423 = vpop.f32.mrb[0].mxu0
    %v1424 = vpop.f32.mrb[0].mxu0
    %v1425 = vpop.f32.mrb[0].mxu0
    %1426 = vdwg.mxu0
    %v1428 = vlaneseq
    %v1429 = vshrl.u32 %v1428, 7
    %v1430 = vsub.s32 0, %v1429
    %v1431 = vrot.slane %v526, %v1430
    %v1432 = vlaneseq
    %v1433 = vshrl.u32 %v1432, 7
    %v1434 = vsub.s32 1, %v1433
    %v1435 = vrot.slane %v526, %v1434
    %v1438 = vadd.f32 %v1381, %v1431
    %v1439 = vadd.f32 %v1383, %v1435
    %v1441 = vlaneseq
    %v1442 = vshrl.u32 %v1441, 7
    %v1443 = vsub.s32 0, %v1442
    %v1444 = vrot.slane %v527, %v1443
    %v1445 = vlaneseq
    %v1446 = vshrl.u32 %v1445, 7
    %v1447 = vsub.s32 1, %v1446
    %v1448 = vrot.slane %v527, %v1447
    %1449 = vrot.lane.b32.xlu0 %v1444, 64
    %v1450 = vpop.permute.xlu0 %1449
    %1451 = vrot.lane.b32.xlu0 %v1448, 64
    %v1452 = vpop.permute.xlu0 %1451
    %v1453 = vsel %vm871, %v1450, %v1452
    %v1456 = vadd.f32 %v1383, %v1450
    %v1457 = vadd.f32 %v1422, %v1453
    %1459 = vrot.lane.b32.xlu0 %v1456, 64
    %v1460 = vpop.permute.xlu0 %1459
    %v1462 = vadd.f32 %v1438, %v1460
    %v1463 = vxor.u32 %v1462, 2147483648
    %v1464 = vmul.f32 %v1463, 1.442695
    %v1465 = vpow.pop %v1464
    %v1466 = vadd.f32 %v1465, 1.0
    %v1467 = vrcp.pop %v1466
    %v1468 = vmul.f32 1.0, %v1467
    %1470 = vrot.lane.b32.xlu0 %v1457, 64
    %v1471 = vpop.permute.xlu0 %1470
    %v1473 = vadd.f32 %v1438, %v1471
    %v1474 = vxor.u32 %v1473, 2147483648
    %v1475 = vmul.f32 %v1474, 1.442695
    %v1476 = vpow.pop %v1475
    %v1477 = vadd.f32 %v1476, 1.0
    %v1478 = vrcp.pop %v1477
    %v1479 = vmul.f32 1.0, %v1478
    %v1480 = vmul.f32 %v1468, %v1471
    %v1481 = vadd.f32 %v1439, %v1480
    %v1482 = vtanh.pop %v1481
    %v1483 = vsub.f32 1.0, %v1479
    %1485 = vrot.lane.b32.xlu0 %v1482, 64
    %v1486 = vpop.permute.xlu0 %1485
    %v1488 = vmul.f32 %v1483, %v1486
    %v1489 = vmul.f32 %v1479, 0.0
    %v1490 = vadd.f32 %v1488, %v1489
    %1492 = vrot.lane.b32.xlu0 %v1490, 64
    %v1493 = vpop.permute.xlu0 %1492
    %v1495 = vadd.f32 %v1183, %v1493
    %vm1496 = vcmask 517120
    %1497 = vst.msk [vmem:[#allocation4] sm:$0x3] %vm1496, %v1495
    %v1498 = vcombine.high %v832, %v832
    %v1500 = vunpack.c.l.s4 1983009808
    %v1501 = vunpack.c.0.s8 %v1500
    %v1502 = vlaneseq
    %v1503 = vshrl.u32 %v1502, 7
    %v1504 = vsub.s32 %v1501, %v1503
    %v1505 = vrot.slane %v832, %v1504
    %v1507 = vunpack.c.l.s4 1983009808
    %v1508 = vunpack.c.0.s8 %v1507
    %v1509 = vlaneseq
    %v1510 = vshrl.u32 %v1509, 7
    %v1511 = vsub.s32 %v1508, %v1510
    %v1512 = vrot.slane %v1498, %v1511
    %v1513 = vcombine.high %v1505, %v1505
    %v1514 = vcombine.high %v1512, %v1512
    %v1515 = vcombine.high %v833, %v833
    %v1517 = vunpack.c.l.s4 1983009808
    %v1518 = vunpack.c.0.s8 %v1517
    %v1519 = vlaneseq
    %v1520 = vshrl.u32 %v1519, 7
    %v1521 = vsub.s32 %v1518, %v1520
    %v1522 = vrot.slane %v833, %v1521
    %v1524 = vunpack.c.l.s4 1983009808
    %v1525 = vunpack.c.0.s8 %v1524
    %v1526 = vlaneseq
    %v1527 = vshrl.u32 %v1526, 7
    %v1528 = vsub.s32 %v1525, %v1527
    %v1529 = vrot.slane %v1515, %v1528
    %v1530 = vcombine.high %v1522, %v1522
    %v1531 = vcombine.high %v1529, %v1529
    %v1532 = vcombine.low %v1505, %v1513
    %v1533 = vcombine.low %v1512, %v1514
    %v1535 = vunpack.c.l.s4 1983009808
    %v1536 = vunpack.c.0.s8 %v1535
    %v1537 = vlaneseq
    %v1538 = vshrl.u32 %v1537, 7
    %v1539 = vsub.s32 %v1536, %v1538
    %v1540 = vrot.slane %v1532, %v1539
    %v1542 = vunpack.c.l.s4 1983009808
    %v1543 = vunpack.c.0.s8 %v1542
    %v1544 = vlaneseq
    %v1545 = vshrl.u32 %v1544, 7
    %v1546 = vsub.s32 %v1543, %v1545
    %v1547 = vrot.slane %v1533, %v1546
    %v1548 = vcombine.low %v1540, %v1547
    %v1549 = vcombine.low %v1522, %v1530
    %v1550 = vcombine.low %v1529, %v1531
    %v1552 = vunpack.c.l.s4 1983009808
    %v1553 = vunpack.c.0.s8 %v1552
    %v1554 = vlaneseq
    %v1555 = vshrl.u32 %v1554, 7
    %v1556 = vsub.s32 %v1553, %v1555
    %v1557 = vrot.slane %v1549, %v1556
    %v1559 = vunpack.c.l.s4 1983009808
    %v1560 = vunpack.c.0.s8 %v1559
    %v1561 = vlaneseq
    %v1562 = vshrl.u32 %v1561, 7
    %v1563 = vsub.s32 %v1560, %v1562
    %v1564 = vrot.slane %v1550, %v1563
    %v1565 = vcombine.low %v1557, %v1564
    %1566 = vset.pattern.permute.xlu0 0
    %1567 = vperm.xlu0 %1566, %v1548
    %v1568 = vpop.permute.xlu0 %1567
    %1569 = vset.pattern.permute.xlu0 0
    %1570 = vperm.xlu0 %1569, %v1565
    %v1571 = vpop.permute.xlu0 %1570
    %v1572 = vlaneseq
    %v1573 = vshrl.u32 %v1572, 7
    %v1574 = vsub.s32 %v514, %v1573
    %v1575 = vrot.slane %v1568, %v1574
    %v1576 = vlaneseq
    %v1577 = vshrl.u32 %v1576, 7
    %v1578 = vsub.s32 %v514, %v1577
    %v1579 = vrot.slane %v1571, %v1578
    %v1580 = vsel %vm775, %v1579, %v1575
    %v1582 = vunpack.c.l.s4 1983009808
    %v1583 = vunpack.c.0.s8 %v1582
    %v1584 = vlaneseq
    %v1585 = vshrl.u32 %v1584, 7
    %v1586 = vsub.s32 %v1583, %v1585
    %v1587 = vrot.slane %v1580, %v1586
    %1589 = vst.msk [vmem:[#allocation18] sm:$0x3] %vm778, %v1587
    %v1590 = vld [vmem:[#allocation2 + $0x2] sm:$0x3]
    %v1591 = vld [vmem:[%s8] sm:$0xf]
    %v1592 = vld [vmem:[%s8 + $0x4] sm:$0xf]
    %v1593 = vld [vmem:[%s8 + $0x8] sm:$0xf]
    %v1594 = vld [vmem:[%s8 + $0xc] sm:$0xf]
    %v1599 = vunpack.c.l.b16 %v1591
    %v1600 = vunpack.c.l.b16 %v1592
    %v1601 = vunpack.c.l.b16 %v1593
    %v1602 = vunpack.c.l.b16 %v1594
    %v1603 = vpack.c.b16 %v1600, %v1599
    %v1604 = vpack.c.b16 %v1602, %v1601
    %1607 = vmatprep.subr.bf16.mxu0 0
    %1608 = vmatpush1.bf16.msra.mxu0 %v1603
    %1609 = vmatprep.subr.bf16.mxu0 0
    %1610 = vmatpush1.bf16.msra.mxu0 %v1604
    %1611 = vmatprep.subr.bf16.mxu0 0
    %1612 = vmatpush1.bf16.msra.mxu0 0
    %1613 = vmatprep.subr.bf16.mxu0 0
    %1614 = vmatpush1.bf16.msra.mxu0 0
    %1615 = vmatprep.subr.bf16.mxu0 0
    %1616 = vmatpush1.bf16.msra.mxu0 0
    %1617 = vmatprep.subr.bf16.mxu0 0
    %1618 = vmatpush1.bf16.msra.mxu0 0
    %1619 = vmatprep.subr.bf16.mxu0 0
    %1620 = vmatpush1.bf16.msra.mxu0 0
    %1621 = vmatprep.subr.bf16.mxu0 0
    %1622 = vmatpush1.bf16.msra.mxu0 0
    %1623 = vmatprep.subr.bf16.mxu0 0
    %1624 = vmatpush1.bf16.msra.mxu0 0
    %1625 = vmatprep.subr.bf16.mxu0 0
    %1626 = vmatpush1.bf16.msra.mxu0 0
    %1627 = vmatprep.subr.bf16.mxu0 0
    %1628 = vmatpush1.bf16.msra.mxu0 0
    %1629 = vmatprep.subr.bf16.mxu0 0
    %1630 = vmatpush1.bf16.msra.mxu0 0
    %1631 = vmatprep.subr.bf16.mxu0 0
    %1632 = vmatpush1.bf16.msra.mxu0 0
    %1633 = vmatprep.subr.bf16.mxu0 0
    %1634 = vmatpush1.bf16.msra.mxu0 0
    %1635 = vmatprep.subr.bf16.mxu0 0
    %1636 = vmatpush1.bf16.msra.mxu0 0
    %1637 = vmatprep.subr.bf16.mxu0 0
    %1638 = vmatpush1.bf16.msra.mxu0 0
    %1639 = vmatprep.mubr.bf16.mxu0 0
    %1640 = vmatmul.mubr.bf16.gmra.mrb[0].mxu0 %v647
    %v1641 = vpop.f32.mrb[0].mxu0
    %v1642 = vadd.f32 %v537, %v1641
    %v1643 = vpop.f32.mrb[0].mxu0
    %v1644 = vpop.f32.mrb[0].mxu0
    %v1645 = vpop.f32.mrb[0].mxu0
    %1646 = vdwg.mxu0
    %v1647 = vadd.f32 %v1590, %v1642
    %v1648 = vxor.u32 %v1647, 2147483648
    %v1649 = vmul.f32 %v1648, 1.442695
    %v1650 = vpow.pop %v1649
    %v1651 = vadd.f32 %v1650, 1.0
    %v1652 = vrcp.pop %v1651
    %v1653 = vmul.f32 1.0, %v1652
    %1655 = vrot.lane.b32.xlu0 %v1642, 64
    %v1656 = vpop.permute.xlu0 %1655
    %v1658 = vmul.f32 %v1653, %v1656
    %1660 = vrot.lane.b32.xlu0 %v1658, 64
    %v1661 = vpop.permute.xlu0 %1660
    %v1663 = vadd.f32 %v1590, %v1661
    %v1664 = vtanh.pop %v1663
    %v1665 = vsub.f32 1.0, %v1653
    %1667 = vrot.lane.b32.xlu0 %v1664, 96
    %v1668 = vpop.permute.xlu0 %1667
    %v1670 = vmul.f32 %v1665, %v1668
    %v1671 = vmul.f32 %v1653, %v619
    %v1672 = vadd.f32 %v1670, %v1671
    %v1673 = vpack.c.bf16 %v1672, %v1672
    %v1674 = vld [vmem:[%s11] sm:$0xf]
    %v1675 = vld [vmem:[%s11 + $0x4] sm:$0xf]
    %v1676 = vld [vmem:[%s11 + $0x8] sm:$0xf]
    %v1677 = vld [vmem:[%s11 + $0xc] sm:$0xf]
    %1679 = vrot.lane.b32.xlu0 %v1673, 96
    %v1680 = vpop.permute.xlu0 %1679
    %v1685 = vunpack.c.l.b16 %v1674
    %v1686 = vunpack.c.l.b16 %v1675
    %v1687 = vunpack.c.l.b16 %v1676
    %v1688 = vunpack.c.l.b16 %v1677
    %v1689 = vpack.c.b16 %v1686, %v1685
    %v1690 = vpack.c.b16 %v1688, %v1687
    %v1694 = vsel %vm195, %v1680, 0
    %1696 = vmatprep.subr.bf16.mxu0 0
    %1697 = vmatpush1.bf16.msra.mxu0 %v1689
    %1698 = vmatprep.subr.bf16.mxu0 0
    %1699 = vmatpush1.bf16.msra.mxu0 %v1690
    %1700 = vmatprep.subr.bf16.mxu0 0
    %1701 = vmatpush1.bf16.msra.mxu0 0
    %1702 = vmatprep.subr.bf16.mxu0 0
    %1703 = vmatpush1.bf16.msra.mxu0 0
    %1704 = vmatprep.subr.bf16.mxu0 0
    %1705 = vmatpush1.bf16.msra.mxu0 0
    %1706 = vmatprep.subr.bf16.mxu0 0
    %1707 = vmatpush1.bf16.msra.mxu0 0
    %1708 = vmatprep.subr.bf16.mxu0 0
    %1709 = vmatpush1.bf16.msra.mxu0 0
    %1710 = vmatprep.subr.bf16.mxu0 0
    %1711 = vmatpush1.bf16.msra.mxu0 0
    %1712 = vmatprep.subr.bf16.mxu0 0
    %1713 = vmatpush1.bf16.msra.mxu0 0
    %1714 = vmatprep.subr.bf16.mxu0 0
    %1715 = vmatpush1.bf16.msra.mxu0 0
    %1716 = vmatprep.subr.bf16.mxu0 0
    %1717 = vmatpush1.bf16.msra.mxu0 0
    %1718 = vmatprep.subr.bf16.mxu0 0
    %1719 = vmatpush1.bf16.msra.mxu0 0
    %1720 = vmatprep.subr.bf16.mxu0 0
    %1721 = vmatpush1.bf16.msra.mxu0 0
    %1722 = vmatprep.subr.bf16.mxu0 0
    %1723 = vmatpush1.bf16.msra.mxu0 0
    %1724 = vmatprep.subr.bf16.mxu0 0
    %1725 = vmatpush1.bf16.msra.mxu0 0
    %1726 = vmatprep.subr.bf16.mxu0 0
    %1727 = vmatpush1.bf16.msra.mxu0 0
    %1728 = vmatprep.mubr.bf16.mxu0 0
    %1729 = vmatmul.mubr.bf16.gmra.mrb[0].mxu0 %v1694
    %v1730 = vpop.f32.mrb[0].mxu0
    %v1731 = vadd.f32 %v629, %v1730
    %v1732 = vpop.f32.mrb[0].mxu0
    %v1733 = vpop.f32.mrb[0].mxu0
    %v1734 = vpop.f32.mrb[0].mxu0
    %1735 = vdwg.mxu0
    %v1738 = vunpack.c.l.s4 1966171168
    %v1739 = vunpack.c.0.s8 %v1738
    %v1740 = vlaneseq
    %v1741 = vshrl.u32 %v1740, 7
    %v1742 = vsub.s32 %v1739, %v1741
    %v1743 = vrot.slane %v1731, %v1742
    %v1744 = vcombine.high %v1743, %v1743
    %v1746 = vunpack.c.l.s4 1966171168
    %v1747 = vunpack.c.0.s8 %v1746
    %v1748 = vlaneseq
    %v1749 = vshrl.u32 %v1748, 7
    %v1750 = vsub.s32 %v1747, %v1749
    %v1751 = vrot.slane %v1743, %v1750
    %v1753 = vunpack.c.l.s4 1966171168
    %v1754 = vunpack.c.0.s8 %v1753
    %v1755 = vlaneseq
    %v1756 = vshrl.u32 %v1755, 7
    %v1757 = vsub.s32 %v1754, %v1756
    %v1758 = vrot.slane %v1744, %v1757
    %v1759 = vlaneseq
    %v1760 = vshrl.u32 %v1759, 7
    %v1761 = vsub.s32 0, %v1760
    %v1762 = vrot.slane %v1751, %v1761
    %v1763 = vlaneseq
    %v1764 = vshrl.u32 %v1763, 7
    %v1765 = vsub.s32 0, %v1764
    %v1766 = vrot.slane %v1758, %v1765
    %v1769 = vadd.f32 %v1762, %v511
    %v1770 = vadd.f32 %v1766, %v512
    %v1771 = vtanh.pop %v1769
    %v1772 = vtanh.pop %v1770
    %v1773 = vmul.f32 %v1771, %v730
    %v1774 = vmul.f32 %v1772, %v730
    %v1775 = vsel %vm195, %v1773, 0.0
    %1776 = vadd.xlane.f32.xlu0 %v1775
    %v1777 = vpop.xlane.xlu0 %1776
    %v1778 = vsel %vm195, %v1774, 0.0
    %1779 = vadd.xlane.f32.xlu0 %v1778
    %v1780 = vpop.xlane.xlu0 %1779
    %v1781 = vadd.f32 %v1777, %v747
    %v1782 = vadd.f32 %v1780, %v754
    %1785 = vset.pattern.permute.xlu0 0
    %1786 = vperm.xlu0 %1785, %v1781
    %v1787 = vpop.permute.xlu0 %1786
    %1788 = vset.pattern.permute.xlu0 0
    %1789 = vperm.xlu0 %1788, %v1782
    %v1790 = vpop.permute.xlu0 %1789
    %v1791 = vlaneseq
    %v1792 = vshrl.u32 %v1791, 7
    %v1793 = vsub.s32 %v514, %v1792
    %v1794 = vrot.slane %v1787, %v1793
    %v1795 = vlaneseq
    %v1796 = vshrl.u32 %v1795, 7
    %v1797 = vsub.s32 %v514, %v1796
    %v1798 = vrot.slane %v1790, %v1797
    %v1799 = vsel %vm775, %v1798, %v1794
    %v1801 = vsel %vm778, %v1799, -inf
    %1802 = vmax.xlane.f32.xlu0 %v1801
    %v1803 = vpop.xlane.xlu0 %1802
    %v1805 = vlaneseq
    %v1806 = vshrl.u32 %v1805, 7
    %v1807 = vsub.s32 0, %v1806
    %v1808 = vrot.slane %v1803, %v1807
    %v1809 = vlaneseq
    %v1810 = vshrl.u32 %v1809, 7
    %v1811 = vsub.s32 1, %v1810
    %v1812 = vrot.slane %v1803, %v1811
    %v1815 = vsub.f32 %v1781, %v1808
    %v1816 = vsub.f32 %v1782, %v1812
    %v1817 = vmul.f32 %v1815, 1.442695
    %v1818 = vpow.pop %v1817
    %v1819 = vmul.f32 %v1816, 1.442695
    %v1820 = vpow.pop %v1819
    %1823 = vset.pattern.permute.xlu0 0
    %1824 = vperm.xlu0 %1823, %v1818
    %v1825 = vpop.permute.xlu0 %1824
    %1826 = vset.pattern.permute.xlu0 0
    %1827 = vperm.xlu0 %1826, %v1820
    %v1828 = vpop.permute.xlu0 %1827
    %v1829 = vlaneseq
    %v1830 = vshrl.u32 %v1829, 7
    %v1831 = vsub.s32 %v514, %v1830
    %v1832 = vrot.slane %v1825, %v1831
    %v1833 = vlaneseq
    %v1834 = vshrl.u32 %v1833, 7
    %v1835 = vsub.s32 %v514, %v1834
    %v1836 = vrot.slane %v1828, %v1835
    %v1837 = vsel %vm775, %v1836, %v1832
    %v1839 = vsel %vm778, %v1837, 0.0
    %1840 = vadd.xlane.f32.xlu0 %v1839
    %v1841 = vpop.xlane.xlu0 %1840
    %v1842 = vrcp.pop %v1841
    %v1844 = vlaneseq
    %v1845 = vshrl.u32 %v1844, 7
    %v1846 = vsub.s32 0, %v1845
    %v1847 = vrot.slane %v1842, %v1846
    %v1848 = vlaneseq
    %v1849 = vshrl.u32 %v1848, 7
    %v1850 = vsub.s32 1, %v1849
    %v1851 = vrot.slane %v1842, %v1850
    %v1854 = vmul.f32 %v1818, %v1847
    %v1855 = vmul.f32 %v1820, %v1851
    %1857 = vset.pattern.permute.xlu0 0
    %1858 = vperm.xlu0 %1857, %v1854
    %v1859 = vpop.permute.xlu0 %1858
    %1862 = vset.pattern.permute.xlu0 0
    %1863 = vperm.xlu0 %1862, %v1855
    %v1864 = vpop.permute.xlu0 %1863
    %v1866 = vmul.f32 %v1859, %v509
    %v1867 = vmul.f32 %v1864, %v510
    %v1868 = vsel %vm195, %v1866, 0.0
    %v1869 = vrot.slane %v1868, 4
    %v1870 = vadd.f32 %v1868, %v1869
    %v1871 = vrot.slane %v1870, 2
    %v1872 = vadd.f32 %v1870, %v1871
    %v1873 = vrot.slane %v1872, 1
    %v1874 = vadd.f32 %v1872, %v1873
    %v1875 = vsel %vm195, %v1867, 0.0
    %v1876 = vrot.slane %v1875, 4
    %v1877 = vadd.f32 %v1875, %v1876
    %v1878 = vrot.slane %v1877, 2
    %v1879 = vadd.f32 %v1877, %v1878
    %v1880 = vrot.slane %v1879, 1
    %v1881 = vadd.f32 %v1879, %v1880
    %1883 = vrot.lane.b32.xlu0 %v1672, 96
    %v1884 = vpop.permute.xlu0 %1883
    %v1888 = vsel %vm775, %v1881, %v1874
    %1889 = vrot.lane.b32.xlu0 %v1888, 32
    %v1890 = vpop.permute.xlu0 %1889
    %v1892 = vsel %vm195, %v1884, %v1890
    %v1893 = vsel %vm871, %v1892, %v1178
    %v1894 = vpack.c.bf16 %v1893, %v1893
    %v1895 = vld [vmem:[#allocation14] sm:$0xff]
    %v1896 = vld [vmem:[#allocation14 + $0x8] sm:$0xf]
    %v1897 = vld [vmem:[#allocation14 + $0xc] sm:$0xff]
    %v1898 = vld [vmem:[#allocation14 + $0x14] sm:$0xf]
    %v1899 = vld [vmem:[#allocation14 + $0x18] sm:$0xff]
    %v1900 = vld [vmem:[#allocation14 + $0x20] sm:$0xf]
    %v1901 = vld [vmem:[#allocation14 + $0x24] sm:$0xff]
    %v1902 = vld [vmem:[#allocation14 + $0x2c] sm:$0xf]
    %v1903 = vld [vmem:[#allocation14 + $0x30] sm:$0xff]
    %v1904 = vld [vmem:[#allocation14 + $0x38] sm:$0xf]
    %v1905 = vld [vmem:[#allocation14 + $0x3c] sm:$0xff]
    %v1906 = vld [vmem:[#allocation14 + $0x44] sm:$0xf]
    %v1907 = vld [vmem:[#allocation14 + $0x48] sm:$0xff]
    %v1908 = vld [vmem:[#allocation14 + $0x50] sm:$0xf]
    %v1909 = vld [vmem:[#allocation14 + $0x54] sm:$0xff]
    %v1910 = vld [vmem:[#allocation14 + $0x5c] sm:$0xf]
    %v1911 = vld [vmem:[#allocation14 + $0x60] sm:$0xff]
    %v1912 = vld [vmem:[#allocation14 + $0x68] sm:$0xf]
    %v1913 = vld [vmem:[#allocation14 + $0x6c] sm:$0xff]
    %v1914 = vld [vmem:[#allocation14 + $0x74] sm:$0xf]
    %v1915 = vld [vmem:[#allocation14 + $0x78] sm:$0xff]
    %v1916 = vld [vmem:[#allocation14 + $0x80] sm:$0xf]
    %v1917 = vld [vmem:[#allocation14 + $0x84] sm:$0xff]
    %v1918 = vld [vmem:[#allocation14 + $0x8c] sm:$0xf]
    %v1919 = vld [vmem:[#allocation14 + $0x90] sm:$0xff]
    %v1920 = vld [vmem:[#allocation14 + $0x98] sm:$0xf]
    %v1921 = vld [vmem:[#allocation14 + $0x9c] sm:$0xff]
    %v1922 = vld [vmem:[#allocation14 + $0xa4] sm:$0xf]
    %v1923 = vld [vmem:[#allocation14 + $0xa8] sm:$0xff]
    %v1924 = vld [vmem:[#allocation14 + $0xb0] sm:$0xf]
    %v1925 = vld [vmem:[#allocation14 + $0xb4] sm:$0xff]
    %v1926 = vld [vmem:[#allocation14 + $0xbc] sm:$0xf]
    %v1959 = vunpack.c.l.b16 %v1895
    %v1960 = vunpack.c.h.b16 %v1895
    %v1961 = vunpack.c.l.b16 %v1896
    %v1962 = vunpack.c.l.b16 %v1897
    %v1963 = vunpack.c.h.b16 %v1897
    %v1964 = vunpack.c.l.b16 %v1898
    %v1965 = vunpack.c.l.b16 %v1899
    %v1966 = vunpack.c.h.b16 %v1899
    %v1967 = vunpack.c.l.b16 %v1900
    %v1968 = vunpack.c.l.b16 %v1901
    %v1969 = vunpack.c.h.b16 %v1901
    %v1970 = vunpack.c.l.b16 %v1902
    %v1971 = vunpack.c.l.b16 %v1903
    %v1972 = vunpack.c.h.b16 %v1903
    %v1973 = vunpack.c.l.b16 %v1904
    %v1974 = vunpack.c.l.b16 %v1905
    %v1975 = vunpack.c.h.b16 %v1905
    %v1976 = vunpack.c.l.b16 %v1906
    %v1977 = vunpack.c.l.b16 %v1907
    %v1978 = vunpack.c.h.b16 %v1907
    %v1979 = vunpack.c.l.b16 %v1908
    %v1980 = vunpack.c.l.b16 %v1909
    %v1981 = vunpack.c.h.b16 %v1909
    %v1982 = vunpack.c.l.b16 %v1910
    %v1983 = vunpack.c.l.b16 %v1911
    %v1984 = vunpack.c.h.b16 %v1911
    %v1985 = vunpack.c.l.b16 %v1912
    %v1986 = vunpack.c.l.b16 %v1913
    %v1987 = vunpack.c.h.b16 %v1913
    %v1988 = vunpack.c.l.b16 %v1914
    %v1989 = vunpack.c.l.b16 %v1915
    %v1990 = vunpack.c.h.b16 %v1915
    %v1991 = vunpack.c.l.b16 %v1916
    %v1992 = vunpack.c.l.b16 %v1917
    %v1993 = vunpack.c.h.b16 %v1917
    %v1994 = vunpack.c.l.b16 %v1918
    %v1995 = vunpack.c.l.b16 %v1919
    %v1996 = vunpack.c.h.b16 %v1919
    %v1997 = vunpack.c.l.b16 %v1920
    %v1998 = vunpack.c.l.b16 %v1921
    %v1999 = vunpack.c.h.b16 %v1921
    %v2000 = vunpack.c.l.b16 %v1922
    %v2001 = vunpack.c.l.b16 %v1923
    %v2002 = vunpack.c.h.b16 %v1923
    %v2003 = vunpack.c.l.b16 %v1924
    %v2004 = vunpack.c.l.b16 %v1925
    %v2005 = vunpack.c.h.b16 %v1925
    %v2006 = vunpack.c.l.b16 %v1926
    %v2007 = vpack.c.b16 %v1962, %v1959
    %v2008 = vpack.c.b16 %v1963, %v1960
    %v2009 = vpack.c.b16 %v1964, %v1961
    %v2010 = vpack.c.b16 %v1968, %v1965
    %v2011 = vpack.c.b16 %v1969, %v1966
    %v2012 = vpack.c.b16 %v1970, %v1967
    %v2013 = vpack.c.b16 %v1974, %v1971
    %v2014 = vpack.c.b16 %v1975, %v1972
    %v2015 = vpack.c.b16 %v1976, %v1973
    %v2016 = vpack.c.b16 %v1980, %v1977
    %v2017 = vpack.c.b16 %v1981, %v1978
    %v2018 = vpack.c.b16 %v1982, %v1979
    %v2019 = vpack.c.b16 %v1986, %v1983
    %v2020 = vpack.c.b16 %v1987, %v1984
    %v2021 = vpack.c.b16 %v1988, %v1985
    %v2022 = vpack.c.b16 %v1992, %v1989
    %v2023 = vpack.c.b16 %v1993, %v1990
    %v2024 = vpack.c.b16 %v1994, %v1991
    %v2025 = vpack.c.b16 %v1998, %v1995
    %v2026 = vpack.c.b16 %v1999, %v1996
    %v2027 = vpack.c.b16 %v2000, %v1997
    %v2028 = vpack.c.b16 %v2004, %v2001
    %v2029 = vpack.c.b16 %v2005, %v2002
    %v2030 = vpack.c.b16 %v2006, %v2003
    %2055 = vmatprep.subr.bf16.mxu0 %v2008
    %2056 = vmatpush1.bf16.msra.mxu0 %v2007
    %2057 = vmatprep.subr.bf16.mxu0 %v2011
    %2058 = vmatpush1.bf16.msra.mxu0 %v2010
    %2059 = vmatprep.subr.bf16.mxu0 %v2014
    %2060 = vmatpush1.bf16.msra.mxu0 %v2013
    %2061 = vmatprep.subr.bf16.mxu0 %v2017
    %2062 = vmatpush1.bf16.msra.mxu0 %v2016
    %2063 = vmatprep.subr.bf16.mxu0 %v2020
    %2064 = vmatpush1.bf16.msra.mxu0 %v2019
    %2065 = vmatprep.subr.bf16.mxu0 %v2023
    %2066 = vmatpush1.bf16.msra.mxu0 %v2022
    %2067 = vmatprep.subr.bf16.mxu0 %v2026
    %2068 = vmatpush1.bf16.msra.mxu0 %v2025
    %2069 = vmatprep.subr.bf16.mxu0 %v2029
    %2070 = vmatpush1.bf16.msra.mxu0 %v2028
    %2071 = vmatprep.subr.bf16.mxu0 0
    %2072 = vmatpush1.bf16.msra.mxu0 0
    %2073 = vmatprep.subr.bf16.mxu0 0
    %2074 = vmatpush1.bf16.msra.mxu0 0
    %2075 = vmatprep.subr.bf16.mxu0 0
    %2076 = vmatpush1.bf16.msra.mxu0 0
    %2077 = vmatprep.subr.bf16.mxu0 0
    %2078 = vmatpush1.bf16.msra.mxu0 0
    %2079 = vmatprep.subr.bf16.mxu0 0
    %2080 = vmatpush1.bf16.msra.mxu0 0
    %2081 = vmatprep.subr.bf16.mxu0 0
    %2082 = vmatpush1.bf16.msra.mxu0 0
    %2083 = vmatprep.subr.bf16.mxu0 0
    %2084 = vmatpush1.bf16.msra.mxu0 0
    %2085 = vmatprep.subr.bf16.mxu0 0
    %2086 = vmatpush1.bf16.msra.mxu0 0
    %2087 = vmatprep.mubr.bf16.mxu0 0
    %2088 = vmatmul.mubr.bf16.gmra.mrb[0].mxu0 %v1894
    %v2089 = vpop.f32.mrb[0].mxu0
    %v2090 = vadd.f32 0.0, %v2089
    %v2091 = vpop.f32.mrb[0].mxu0
    %v2092 = vadd.f32 0.0, %v2091
    %v2093 = vpop.f32.mrb[0].mxu0
    %v2094 = vpop.f32.mrb[0].mxu0
    %2095 = vdwg.mxu0
    %2096 = vmatprep.subr.bf16.mxu0 0
    %2097 = vmatpush1.bf16.msra.mxu0 %v2009
    %2098 = vmatprep.subr.bf16.mxu0 0
    %2099 = vmatpush1.bf16.msra.mxu0 %v2012
    %2100 = vmatprep.subr.bf16.mxu0 0
    %2101 = vmatpush1.bf16.msra.mxu0 %v2015
    %2102 = vmatprep.subr.bf16.mxu0 0
    %2103 = vmatpush1.bf16.msra.mxu0 %v2018
    %2104 = vmatprep.subr.bf16.mxu0 0
    %2105 = vmatpush1.bf16.msra.mxu0 %v2021
    %2106 = vmatprep.subr.bf16.mxu0 0
    %2107 = vmatpush1.bf16.msra.mxu0 %v2024
    %2108 = vmatprep.subr.bf16.mxu0 0
    %2109 = vmatpush1.bf16.msra.mxu0 %v2027
    %2110 = vmatprep.subr.bf16.mxu0 0
    %2111 = vmatpush1.bf16.msra.mxu0 %v2030
    %2112 = vmatprep.subr.bf16.mxu0 0
    %2113 = vmatpush1.bf16.msra.mxu0 0
    %2114 = vmatprep.subr.bf16.mxu0 0
    %2115 = vmatpush1.bf16.msra.mxu0 0
    %2116 = vmatprep.subr.bf16.mxu0 0
    %2117 = vmatpush1.bf16.msra.mxu0 0
    %2118 = vmatprep.subr.bf16.mxu0 0
    %2119 = vmatpush1.bf16.msra.mxu0 0
    %2120 = vmatprep.subr.bf16.mxu0 0
    %2121 = vmatpush1.bf16.msra.mxu0 0
    %2122 = vmatprep.subr.bf16.mxu0 0
    %2123 = vmatpush1.bf16.msra.mxu0 0
    %2124 = vmatprep.subr.bf16.mxu0 0
    %2125 = vmatpush1.bf16.msra.mxu0 0
    %2126 = vmatprep.subr.bf16.mxu0 0
    %2127 = vmatpush1.bf16.msra.mxu0 0
    %2128 = vmatprep.mubr.bf16.mxu0 0
    %2129 = vmatmul.mubr.bf16.gmra.mrb[0].mxu0 %v1894
    %v2130 = vpop.f32.mrb[0].mxu0
    %v2131 = vadd.f32 0.0, %v2130
    %v2132 = vpop.f32.mrb[0].mxu0
    %v2133 = vpop.f32.mrb[0].mxu0
    %v2134 = vpop.f32.mrb[0].mxu0
    %2135 = vdwg.mxu0
    %v2136 = vadd.f32 %v2090, %v1119
    %v2137 = vadd.f32 %v2092, %v1123
    %v2138 = vadd.f32 %v2092, %v1138
    %v2139 = vadd.f32 %v2131, %v1141
    %2141 = vrot.lane.b32.xlu0 %v2138, 64
    %v2142 = vpop.permute.xlu0 %2141
    %v2144 = vadd.f32 %v2136, %v2142
    %v2145 = vxor.u32 %v2144, 2147483648
    %v2146 = vmul.f32 %v2145, 1.442695
    %v2147 = vpow.pop %v2146
    %v2148 = vadd.f32 %v2147, 1.0
    %v2149 = vrcp.pop %v2148
    %v2150 = vmul.f32 1.0, %v2149
    %2152 = vrot.lane.b32.xlu0 %v2139, 64
    %v2153 = vpop.permute.xlu0 %2152
    %v2155 = vadd.f32 %v2136, %v2153
    %v2156 = vxor.u32 %v2155, 2147483648
    %v2157 = vmul.f32 %v2156, 1.442695
    %v2158 = vpow.pop %v2157
    %v2159 = vadd.f32 %v2158, 1.0
    %v2160 = vrcp.pop %v2159
    %v2161 = vmul.f32 1.0, %v2160
    %v2162 = vmul.f32 %v2150, %v2153
    %v2163 = vadd.f32 %v2137, %v2162
    %v2164 = vtanh.pop %v2163
    %v2165 = vsub.f32 1.0, %v2161
    %2167 = vrot.lane.b32.xlu0 %v2164, 64
    %v2168 = vpop.permute.xlu0 %2167
    %v2170 = vmul.f32 %v2165, %v2168
    %v2171 = vmul.f32 %v2161, %v1178
    %v2172 = vadd.f32 %v2170, %v2171
    %2174 = vrot.lane.b32.xlu0 %v2172, 64
    %v2175 = vpop.permute.xlu0 %2174
    %v2177 = vadd.f32 %v1892, %v2175
    %v2178 = vsel %vm871, %v2177, %v1490
    %v2179 = vpack.c.bf16 %v2178, %v2178
    %v2180 = vld [vmem:[#allocation16] sm:$0xff]
    %v2181 = vld [vmem:[#allocation16 + $0x8] sm:$0xf]
    %v2182 = vld [vmem:[#allocation16 + $0xc] sm:$0xff]
    %v2183 = vld [vmem:[#allocation16 + $0x14] sm:$0xf]
    %v2184 = vld [vmem:[#allocation16 + $0x18] sm:$0xff]
    %v2185 = vld [vmem:[#allocation16 + $0x20] sm:$0xf]
    %v2186 = vld [vmem:[#allocation16 + $0x24] sm:$0xff]
    %v2187 = vld [vmem:[#allocation16 + $0x2c] sm:$0xf]
    %v2188 = vld [vmem:[#allocation16 + $0x30] sm:$0xff]
    %v2189 = vld [vmem:[#allocation16 + $0x38] sm:$0xf]
    %v2190 = vld [vmem:[#allocation16 + $0x3c] sm:$0xff]
    %v2191 = vld [vmem:[#allocation16 + $0x44] sm:$0xf]
    %v2192 = vld [vmem:[#allocation16 + $0x48] sm:$0xff]
    %v2193 = vld [vmem:[#allocation16 + $0x50] sm:$0xf]
    %v2194 = vld [vmem:[#allocation16 + $0x54] sm:$0xff]
    %v2195 = vld [vmem:[#allocation16 + $0x5c] sm:$0xf]
    %v2196 = vld [vmem:[#allocation16 + $0x60] sm:$0xff]
    %v2197 = vld [vmem:[#allocation16 + $0x68] sm:$0xf]
    %v2198 = vld [vmem:[#allocation16 + $0x6c] sm:$0xff]
    %v2199 = vld [vmem:[#allocation16 + $0x74] sm:$0xf]
    %v2200 = vld [vmem:[#allocation16 + $0x78] sm:$0xff]
    %v2201 = vld [vmem:[#allocation16 + $0x80] sm:$0xf]
    %v2202 = vld [vmem:[#allocation16 + $0x84] sm:$0xff]
    %v2203 = vld [vmem:[#allocation16 + $0x8c] sm:$0xf]
    %v2204 = vld [vmem:[#allocation16 + $0x90] sm:$0xff]
    %v2205 = vld [vmem:[#allocation16 + $0x98] sm:$0xf]
    %v2206 = vld [vmem:[#allocation16 + $0x9c] sm:$0xff]
    %v2207 = vld [vmem:[#allocation16 + $0xa4] sm:$0xf]
    %v2208 = vld [vmem:[#allocation16 + $0xa8] sm:$0xff]
    %v2209 = vld [vmem:[#allocation16 + $0xb0] sm:$0xf]
    %v2210 = vld [vmem:[#allocation16 + $0xb4] sm:$0xff]
    %v2211 = vld [vmem:[#allocation16 + $0xbc] sm:$0xf]
    %v2244 = vunpack.c.l.b16 %v2180
    %v2245 = vunpack.c.h.b16 %v2180
    %v2246 = vunpack.c.l.b16 %v2181
    %v2247 = vunpack.c.l.b16 %v2182
    %v2248 = vunpack.c.h.b16 %v2182
    %v2249 = vunpack.c.l.b16 %v2183
    %v2250 = vunpack.c.l.b16 %v2184
    %v2251 = vunpack.c.h.b16 %v2184
    %v2252 = vunpack.c.l.b16 %v2185
    %v2253 = vunpack.c.l.b16 %v2186
    %v2254 = vunpack.c.h.b16 %v2186
    %v2255 = vunpack.c.l.b16 %v2187
    %v2256 = vunpack.c.l.b16 %v2188
    %v2257 = vunpack.c.h.b16 %v2188
    %v2258 = vunpack.c.l.b16 %v2189
    %v2259 = vunpack.c.l.b16 %v2190
    %v2260 = vunpack.c.h.b16 %v2190
    %v2261 = vunpack.c.l.b16 %v2191
    %v2262 = vunpack.c.l.b16 %v2192
    %v2263 = vunpack.c.h.b16 %v2192
    %v2264 = vunpack.c.l.b16 %v2193
    %v2265 = vunpack.c.l.b16 %v2194
    %v2266 = vunpack.c.h.b16 %v2194
    %v2267 = vunpack.c.l.b16 %v2195
    %v2268 = vunpack.c.l.b16 %v2196
    %v2269 = vunpack.c.h.b16 %v2196
    %v2270 = vunpack.c.l.b16 %v2197
    %v2271 = vunpack.c.l.b16 %v2198
    %v2272 = vunpack.c.h.b16 %v2198
    %v2273 = vunpack.c.l.b16 %v2199
    %v2274 = vunpack.c.l.b16 %v2200
    %v2275 = vunpack.c.h.b16 %v2200
    %v2276 = vunpack.c.l.b16 %v2201
    %v2277 = vunpack.c.l.b16 %v2202
    %v2278 = vunpack.c.h.b16 %v2202
    %v2279 = vunpack.c.l.b16 %v2203
    %v2280 = vunpack.c.l.b16 %v2204
    %v2281 = vunpack.c.h.b16 %v2204
    %v2282 = vunpack.c.l.b16 %v2205
    %v2283 = vunpack.c.l.b16 %v2206
    %v2284 = vunpack.c.h.b16 %v2206
    %v2285 = vunpack.c.l.b16 %v2207
    %v2286 = vunpack.c.l.b16 %v2208
    %v2287 = vunpack.c.h.b16 %v2208
    %v2288 = vunpack.c.l.b16 %v2209
    %v2289 = vunpack.c.l.b16 %v2210
    %v2290 = vunpack.c.h.b16 %v2210
    %v2291 = vunpack.c.l.b16 %v2211
    %v2292 = vpack.c.b16 %v2247, %v2244
    %v2293 = vpack.c.b16 %v2248, %v2245
    %v2294 = vpack.c.b16 %v2249, %v2246
    %v2295 = vpack.c.b16 %v2253, %v2250
    %v2296 = vpack.c.b16 %v2254, %v2251
    %v2297 = vpack.c.b16 %v2255, %v2252
    %v2298 = vpack.c.b16 %v2259, %v2256
    %v2299 = vpack.c.b16 %v2260, %v2257
    %v2300 = vpack.c.b16 %v2261, %v2258
    %v2301 = vpack.c.b16 %v2265, %v2262
    %v2302 = vpack.c.b16 %v2266, %v2263
    %v2303 = vpack.c.b16 %v2267, %v2264
    %v2304 = vpack.c.b16 %v2271, %v2268
    %v2305 = vpack.c.b16 %v2272, %v2269
    %v2306 = vpack.c.b16 %v2273, %v2270
    %v2307 = vpack.c.b16 %v2277, %v2274
    %v2308 = vpack.c.b16 %v2278, %v2275
    %v2309 = vpack.c.b16 %v2279, %v2276
    %v2310 = vpack.c.b16 %v2283, %v2280
    %v2311 = vpack.c.b16 %v2284, %v2281
    %v2312 = vpack.c.b16 %v2285, %v2282
    %v2313 = vpack.c.b16 %v2289, %v2286
    %v2314 = vpack.c.b16 %v2290, %v2287
    %v2315 = vpack.c.b16 %v2291, %v2288
    %2340 = vmatprep.subr.bf16.mxu0 %v2293
    %2341 = vmatpush1.bf16.msra.mxu0 %v2292
    %2342 = vmatprep.subr.bf16.mxu0 %v2296
    %2343 = vmatpush1.bf16.msra.mxu0 %v2295
    %2344 = vmatprep.subr.bf16.mxu0 %v2299
    %2345 = vmatpush1.bf16.msra.mxu0 %v2298
    %2346 = vmatprep.subr.bf16.mxu0 %v2302
    %2347 = vmatpush1.bf16.msra.mxu0 %v2301
    %2348 = vmatprep.subr.bf16.mxu0 %v2305
    %2349 = vmatpush1.bf16.msra.mxu0 %v2304
    %2350 = vmatprep.subr.bf16.mxu0 %v2308
    %2351 = vmatpush1.bf16.msra.mxu0 %v2307
    %2352 = vmatprep.subr.bf16.mxu0 %v2311
    %2353 = vmatpush1.bf16.msra.mxu0 %v2310
    %2354 = vmatprep.subr.bf16.mxu0 %v2314
    %2355 = vmatpush1.bf16.msra.mxu0 %v2313
    %2356 = vmatprep.subr.bf16.mxu0 0
    %2357 = vmatpush1.bf16.msra.mxu0 0
    %2358 = vmatprep.subr.bf16.mxu0 0
    %2359 = vmatpush1.bf16.msra.mxu0 0
    %2360 = vmatprep.subr.bf16.mxu0 0
    %2361 = vmatpush1.bf16.msra.mxu0 0
    %2362 = vmatprep.subr.bf16.mxu0 0
    %2363 = vmatpush1.bf16.msra.mxu0 0
    %2364 = vmatprep.subr.bf16.mxu0 0
    %2365 = vmatpush1.bf16.msra.mxu0 0
    %2366 = vmatprep.subr.bf16.mxu0 0
    %2367 = vmatpush1.bf16.msra.mxu0 0
    %2368 = vmatprep.subr.bf16.mxu0 0
    %2369 = vmatpush1.bf16.msra.mxu0 0
    %2370 = vmatprep.subr.bf16.mxu0 0
    %2371 = vmatpush1.bf16.msra.mxu0 0
    %2372 = vmatprep.mubr.bf16.mxu0 0
    %2373 = vmatmul.mubr.bf16.gmra.mrb[0].mxu0 %v2179
    %v2374 = vpop.f32.mrb[0].mxu0
    %v2375 = vadd.f32 0.0, %v2374
    %v2376 = vpop.f32.mrb[0].mxu0
    %v2377 = vadd.f32 0.0, %v2376
    %v2378 = vpop.f32.mrb[0].mxu0
    %v2379 = vpop.f32.mrb[0].mxu0
    %2380 = vdwg.mxu0
    %2381 = vmatprep.subr.bf16.mxu0 0
    %2382 = vmatpush1.bf16.msra.mxu0 %v2294
    %2383 = vmatprep.subr.bf16.mxu0 0
    %2384 = vmatpush1.bf16.msra.mxu0 %v2297
    %2385 = vmatprep.subr.bf16.mxu0 0
    %2386 = vmatpush1.bf16.msra.mxu0 %v2300
    %2387 = vmatprep.subr.bf16.mxu0 0
    %2388 = vmatpush1.bf16.msra.mxu0 %v2303
    %2389 = vmatprep.subr.bf16.mxu0 0
    %2390 = vmatpush1.bf16.msra.mxu0 %v2306
    %2391 = vmatprep.subr.bf16.mxu0 0
    %2392 = vmatpush1.bf16.msra.mxu0 %v2309
    %2393 = vmatprep.subr.bf16.mxu0 0
    %2394 = vmatpush1.bf16.msra.mxu0 %v2312
    %2395 = vmatprep.subr.bf16.mxu0 0
    %2396 = vmatpush1.bf16.msra.mxu0 %v2315
    %2397 = vmatprep.subr.bf16.mxu0 0
    %2398 = vmatpush1.bf16.msra.mxu0 0
    %2399 = vmatprep.subr.bf16.mxu0 0
    %2400 = vmatpush1.bf16.msra.mxu0 0
    %2401 = vmatprep.subr.bf16.mxu0 0
    %2402 = vmatpush1.bf16.msra.mxu0 0
    %2403 = vmatprep.subr.bf16.mxu0 0
    %2404 = vmatpush1.bf16.msra.mxu0 0
    %2405 = vmatprep.subr.bf16.mxu0 0
    %2406 = vmatpush1.bf16.msra.mxu0 0
    %2407 = vmatprep.subr.bf16.mxu0 0
    %2408 = vmatpush1.bf16.msra.mxu0 0
    %2409 = vmatprep.subr.bf16.mxu0 0
    %2410 = vmatpush1.bf16.msra.mxu0 0
    %2411 = vmatprep.subr.bf16.mxu0 0
    %2412 = vmatpush1.bf16.msra.mxu0 0
    %2413 = vmatprep.mubr.bf16.mxu0 0
    %2414 = vmatmul.mubr.bf16.gmra.mrb[0].mxu0 %v2179
    %v2415 = vpop.f32.mrb[0].mxu0
    %v2416 = vadd.f32 0.0, %v2415
    %v2417 = vpop.f32.mrb[0].mxu0
    %v2418 = vpop.f32.mrb[0].mxu0
    %v2419 = vpop.f32.mrb[0].mxu0
    %2420 = vdwg.mxu0
    %v2421 = vadd.f32 %v2375, %v1431
    %v2422 = vadd.f32 %v2377, %v1435
    %v2423 = vadd.f32 %v2377, %v1450
    %v2424 = vadd.f32 %v2416, %v1453
    %2426 = vrot.lane.b32.xlu0 %v2423, 64
    %v2427 = vpop.permute.xlu0 %2426
    %v2429 = vadd.f32 %v2421, %v2427
    %v2430 = vxor.u32 %v2429, 2147483648
    %v2431 = vmul.f32 %v2430, 1.442695
    %v2432 = vpow.pop %v2431
    %v2433 = vadd.f32 %v2432, 1.0
    %v2434 = vrcp.pop %v2433
    %v2435 = vmul.f32 1.0, %v2434
    %2437 = vrot.lane.b32.xlu0 %v2424, 64
    %v2438 = vpop.permute.xlu0 %2437
    %v2440 = vadd.f32 %v2421, %v2438
    %v2441 = vxor.u32 %v2440, 2147483648
    %v2442 = vmul.f32 %v2441, 1.442695
    %v2443 = vpow.pop %v2442
    %v2444 = vadd.f32 %v2443, 1.0
    %v2445 = vrcp.pop %v2444
    %v2446 = vmul.f32 1.0, %v2445
    %v2447 = vmul.f32 %v2435, %v2438
    %v2448 = vadd.f32 %v2422, %v2447
    %v2449 = vtanh.pop %v2448
    %v2450 = vsub.f32 1.0, %v2446
    %2452 = vrot.lane.b32.xlu0 %v2449, 64
    %v2453 = vpop.permute.xlu0 %2452
    %v2455 = vmul.f32 %v2450, %v2453
    %v2456 = vmul.f32 %v2446, %v1490
    %v2457 = vadd.f32 %v2455, %v2456
    %2459 = vrot.lane.b32.xlu0 %v2457, 64
    %v2460 = vpop.permute.xlu0 %2459
    %v2462 = vadd.f32 %v2177, %v2460
    %2463 = vst.msk [vmem:[#allocation4 + $0x2] sm:$0x3] %vm1496, %v2462
    %v2464 = vcombine.high %v1854, %v1854
    %v2466 = vunpack.c.l.s4 1983009808
    %v2467 = vunpack.c.0.s8 %v2466
    %v2468 = vlaneseq
    %v2469 = vshrl.u32 %v2468, 7
    %v2470 = vsub.s32 %v2467, %v2469
    %v2471 = vrot.slane %v1854, %v2470
    %v2473 = vunpack.c.l.s4 1983009808
    %v2474 = vunpack.c.0.s8 %v2473
    %v2475 = vlaneseq
    %v2476 = vshrl.u32 %v2475, 7
    %v2477 = vsub.s32 %v2474, %v2476
    %v2478 = vrot.slane %v2464, %v2477
    %v2479 = vcombine.high %v2471, %v2471
    %v2480 = vcombine.high %v2478, %v2478
    %v2481 = vcombine.high %v1855, %v1855
    %v2483 = vunpack.c.l.s4 1983009808
    %v2484 = vunpack.c.0.s8 %v2483
    %v2485 = vlaneseq
    %v2486 = vshrl.u32 %v2485, 7
    %v2487 = vsub.s32 %v2484, %v2486
    %v2488 = vrot.slane %v1855, %v2487
    %v2490 = vunpack.c.l.s4 1983009808
    %v2491 = vunpack.c.0.s8 %v2490
    %v2492 = vlaneseq
    %v2493 = vshrl.u32 %v2492, 7
    %v2494 = vsub.s32 %v2491, %v2493
    %v2495 = vrot.slane %v2481, %v2494
    %v2496 = vcombine.high %v2488, %v2488
    %v2497 = vcombine.high %v2495, %v2495
    %v2498 = vcombine.low %v2471, %v2479
    %v2499 = vcombine.low %v2478, %v2480
    %v2501 = vunpack.c.l.s4 1983009808
    %v2502 = vunpack.c.0.s8 %v2501
    %v2503 = vlaneseq
    %v2504 = vshrl.u32 %v2503, 7
    %v2505 = vsub.s32 %v2502, %v2504
    %v2506 = vrot.slane %v2498, %v2505
    %v2508 = vunpack.c.l.s4 1983009808
    %v2509 = vunpack.c.0.s8 %v2508
    %v2510 = vlaneseq
    %v2511 = vshrl.u32 %v2510, 7
    %v2512 = vsub.s32 %v2509, %v2511
    %v2513 = vrot.slane %v2499, %v2512
    %v2514 = vcombine.low %v2506, %v2513
    %v2515 = vcombine.low %v2488, %v2496
    %v2516 = vcombine.low %v2495, %v2497
    %v2518 = vunpack.c.l.s4 1983009808
    %v2519 = vunpack.c.0.s8 %v2518
    %v2520 = vlaneseq
    %v2521 = vshrl.u32 %v2520, 7
    %v2522 = vsub.s32 %v2519, %v2521
    %v2523 = vrot.slane %v2515, %v2522
    %v2525 = vunpack.c.l.s4 1983009808
    %v2526 = vunpack.c.0.s8 %v2525
    %v2527 = vlaneseq
    %v2528 = vshrl.u32 %v2527, 7
    %v2529 = vsub.s32 %v2526, %v2528
    %v2530 = vrot.slane %v2516, %v2529
    %v2531 = vcombine.low %v2523, %v2530
    %2532 = vset.pattern.permute.xlu0 0
    %2533 = vperm.xlu0 %2532, %v2514
    %v2534 = vpop.permute.xlu0 %2533
    %2535 = vset.pattern.permute.xlu0 0
    %2536 = vperm.xlu0 %2535, %v2531
    %v2537 = vpop.permute.xlu0 %2536
    %v2538 = vadd.s32 %v514, 4294967288
    %v2539 = vlaneseq
    %v2540 = vshrl.u32 %v2539, 7
    %v2541 = vsub.s32 %v2538, %v2540
    %v2542 = vrot.slane %v2534, %v2541
    %v2543 = vlaneseq
    %v2544 = vshrl.u32 %v2543, 7
    %v2545 = vsub.s32 %v2538, %v2544
    %v2546 = vrot.slane %v2537, %v2545
    %v2547 = vsel %vm775, %v2546, %v2542
    %v2549 = vunpack.c.l.s4 1983009808
    %v2550 = vunpack.c.0.s8 %v2549
    %v2551 = vlaneseq
    %v2552 = vshrl.u32 %v2551, 7
    %v2553 = vsub.s32 %v2550, %v2552
    %v2554 = vrot.slane %v2547, %v2553
    %vm2556 = vcmask 123968
    %2557 = vst.msk [vmem:[#allocation18] sm:$0x3] %vm2556, %v2554
    %v2558 = vld [vmem:[#allocation2 + $0x4] sm:$0x3]
    %v2559 = vld [vmem:[%s8] sm:$0xf]
    %v2560 = vld [vmem:[%s8 + $0x4] sm:$0xf]
    %v2561 = vld [vmem:[%s8 + $0x8] sm:$0xf]
    %v2562 = vld [vmem:[%s8 + $0xc] sm:$0xf]
    %v2567 = vunpack.c.l.b16 %v2559
    %v2568 = vunpack.c.l.b16 %v2560
    %v2569 = vunpack.c.l.b16 %v2561
    %v2570 = vunpack.c.l.b16 %v2562
    %v2571 = vpack.c.b16 %v2568, %v2567
    %v2572 = vpack.c.b16 %v2570, %v2569
    %2575 = vmatprep.subr.bf16.mxu0 0
    %2576 = vmatpush1.bf16.msra.mxu0 %v2571
    %2577 = vmatprep.subr.bf16.mxu0 0
    %2578 = vmatpush1.bf16.msra.mxu0 %v2572
    %2579 = vmatprep.subr.bf16.mxu0 0
    %2580 = vmatpush1.bf16.msra.mxu0 0
    %2581 = vmatprep.subr.bf16.mxu0 0
    %2582 = vmatpush1.bf16.msra.mxu0 0
    %2583 = vmatprep.subr.bf16.mxu0 0
    %2584 = vmatpush1.bf16.msra.mxu0 0
    %2585 = vmatprep.subr.bf16.mxu0 0
    %2586 = vmatpush1.bf16.msra.mxu0 0
    %2587 = vmatprep.subr.bf16.mxu0 0
    %2588 = vmatpush1.bf16.msra.mxu0 0
    %2589 = vmatprep.subr.bf16.mxu0 0
    %2590 = vmatpush1.bf16.msra.mxu0 0
    %2591 = vmatprep.subr.bf16.mxu0 0
    %2592 = vmatpush1.bf16.msra.mxu0 0
    %2593 = vmatprep.subr.bf16.mxu0 0
    %2594 = vmatpush1.bf16.msra.mxu0 0
    %2595 = vmatprep.subr.bf16.mxu0 0
    %2596 = vmatpush1.bf16.msra.mxu0 0
    %2597 = vmatprep.subr.bf16.mxu0 0
    %2598 = vmatpush1.bf16.msra.mxu0 0
    %2599 = vmatprep.subr.bf16.mxu0 0
    %2600 = vmatpush1.bf16.msra.mxu0 0
    %2601 = vmatprep.subr.bf16.mxu0 0
    %2602 = vmatpush1.bf16.msra.mxu0 0
    %2603 = vmatprep.subr.bf16.mxu0 0
    %2604 = vmatpush1.bf16.msra.mxu0 0
    %2605 = vmatprep.subr.bf16.mxu0 0
    %2606 = vmatpush1.bf16.msra.mxu0 0
    %2607 = vmatprep.mubr.bf16.mxu0 0
    %2608 = vmatmul.mubr.bf16.gmra.mrb[0].mxu0 %v1694
    %v2609 = vpop.f32.mrb[0].mxu0
    %v2610 = vadd.f32 %v537, %v2609
    %v2611 = vpop.f32.mrb[0].mxu0
    %v2612 = vpop.f32.mrb[0].mxu0
    %v2613 = vpop.f32.mrb[0].mxu0
    %2614 = vdwg.mxu0
    %v2615 = vadd.f32 %v2558, %v2610
    %v2616 = vxor.u32 %v2615, 2147483648
    %v2617 = vmul.f32 %v2616, 1.442695
    %v2618 = vpow.pop %v2617
    %v2619 = vadd.f32 %v2618, 1.0
    %v2620 = vrcp.pop %v2619
    %v2621 = vmul.f32 1.0, %v2620
    %2623 = vrot.lane.b32.xlu0 %v2610, 64
    %v2624 = vpop.permute.xlu0 %2623
    %v2626 = vmul.f32 %v2621, %v2624
    %2628 = vrot.lane.b32.xlu0 %v2626, 64
    %v2629 = vpop.permute.xlu0 %2628
    %v2631 = vadd.f32 %v2558, %v2629
    %v2632 = vtanh.pop %v2631
    %v2633 = vsub.f32 1.0, %v2621
    %2635 = vrot.lane.b32.xlu0 %v2632, 96
    %v2636 = vpop.permute.xlu0 %2635
    %v2638 = vmul.f32 %v2633, %v2636
    %v2639 = vmul.f32 %v2621, %v1672
    %v2640 = vadd.f32 %v2638, %v2639
    %v2641 = vpack.c.bf16 %v2640, %v2640
    %v2642 = vld [vmem:[%s11] sm:$0xf]
    %v2643 = vld [vmem:[%s11 + $0x4] sm:$0xf]
    %v2644 = vld [vmem:[%s11 + $0x8] sm:$0xf]
    %v2645 = vld [vmem:[%s11 + $0xc] sm:$0xf]
    %2647 = vrot.lane.b32.xlu0 %v2641, 96
    %v2648 = vpop.permute.xlu0 %2647
    %v2653 = vunpack.c.l.b16 %v2642
    %v2654 = vunpack.c.l.b16 %v2643
    %v2655 = vunpack.c.l.b16 %v2644
    %v2656 = vunpack.c.l.b16 %v2645
    %v2657 = vpack.c.b16 %v2654, %v2653
    %v2658 = vpack.c.b16 %v2656, %v2655
    %v2662 = vsel %vm195, %v2648, 0
    %2664 = vmatprep.subr.bf16.mxu0 0
    %2665 = vmatpush1.bf16.msra.mxu0 %v2657
    %2666 = vmatprep.subr.bf16.mxu0 0
    %2667 = vmatpush1.bf16.msra.mxu0 %v2658
    %2668 = vmatprep.subr.bf16.mxu0 0
    %2669 = vmatpush1.bf16.msra.mxu0 0
    %2670 = vmatprep.subr.bf16.mxu0 0
    %2671 = vmatpush1.bf16.msra.mxu0 0
    %2672 = vmatprep.subr.bf16.mxu0 0
    %2673 = vmatpush1.bf16.msra.mxu0 0
    %2674 = vmatprep.subr.bf16.mxu0 0
    %2675 = vmatpush1.bf16.msra.mxu0 0
    %2676 = vmatprep.subr.bf16.mxu0 0
    %2677 = vmatpush1.bf16.msra.mxu0 0
    %2678 = vmatprep.subr.bf16.mxu0 0
    %2679 = vmatpush1.bf16.msra.mxu0 0
    %2680 = vmatprep.subr.bf16.mxu0 0
    %2681 = vmatpush1.bf16.msra.mxu0 0
    %2682 = vmatprep.subr.bf16.mxu0 0
    %2683 = vmatpush1.bf16.msra.mxu0 0
    %2684 = vmatprep.subr.bf16.mxu0 0
    %2685 = vmatpush1.bf16.msra.mxu0 0
    %2686 = vmatprep.subr.bf16.mxu0 0
    %2687 = vmatpush1.bf16.msra.mxu0 0
    %2688 = vmatprep.subr.bf16.mxu0 0
    %2689 = vmatpush1.bf16.msra.mxu0 0
    %2690 = vmatprep.subr.bf16.mxu0 0
    %2691 = vmatpush1.bf16.msra.mxu0 0
    %2692 = vmatprep.subr.bf16.mxu0 0
    %2693 = vmatpush1.bf16.msra.mxu0 0
    %2694 = vmatprep.subr.bf16.mxu0 0
    %2695 = vmatpush1.bf16.msra.mxu0 0
    %2696 = vmatprep.mubr.bf16.mxu0 0
    %2697 = vmatmul.mubr.bf16.gmra.mrb[0].mxu0 %v2662
    %v2698 = vpop.f32.mrb[0].mxu0
    %v2699 = vadd.f32 %v629, %v2698
    %v2700 = vpop.f32.mrb[0].mxu0
    %v2701 = vpop.f32.mrb[0].mxu0
    %v2702 = vpop.f32.mrb[0].mxu0
    %2703 = vdwg.mxu0
    %v2706 = vunpack.c.l.s4 1966171168
    %v2707 = vunpack.c.0.s8 %v2706
    %v2708 = vlaneseq
    %v2709 = vshrl.u32 %v2708, 7
    %v2710 = vsub.s32 %v2707, %v2709
    %v2711 = vrot.slane %v2699, %v2710
    %v2712 = vcombine.high %v2711, %v2711
    %v2714 = vunpack.c.l.s4 1966171168
    %v2715 = vunpack.c.0.s8 %v2714
    %v2716 = vlaneseq
    %v2717 = vshrl.u32 %v2716, 7
    %v2718 = vsub.s32 %v2715, %v2717
    %v2719 = vrot.slane %v2711, %v2718
    %v2721 = vunpack.c.l.s4 1966171168
    %v2722 = vunpack.c.0.s8 %v2721
    %v2723 = vlaneseq
    %v2724 = vshrl.u32 %v2723, 7
    %v2725 = vsub.s32 %v2722, %v2724
    %v2726 = vrot.slane %v2712, %v2725
    %v2727 = vlaneseq
    %v2728 = vshrl.u32 %v2727, 7
    %v2729 = vsub.s32 0, %v2728
    %v2730 = vrot.slane %v2719, %v2729
    %v2731 = vlaneseq
    %v2732 = vshrl.u32 %v2731, 7
    %v2733 = vsub.s32 0, %v2732
    %v2734 = vrot.slane %v2726, %v2733
    %v2737 = vadd.f32 %v2730, %v511
    %v2738 = vadd.f32 %v2734, %v512
    %v2739 = vtanh.pop %v2737
    %v2740 = vtanh.pop %v2738
    %v2741 = vmul.f32 %v2739, %v730
    %v2742 = vmul.f32 %v2740, %v730
    %v2743 = vsel %vm195, %v2741, 0.0
    %2744 = vadd.xlane.f32.xlu0 %v2743
    %v2745 = vpop.xlane.xlu0 %2744
    %v2746 = vsel %vm195, %v2742, 0.0
    %2747 = vadd.xlane.f32.xlu0 %v2746
    %v2748 = vpop.xlane.xlu0 %2747
    %v2749 = vadd.f32 %v2745, %v747
    %v2750 = vadd.f32 %v2748, %v754
    %2753 = vset.pattern.permute.xlu0 0
    %2754 = vperm.xlu0 %2753, %v2749
    %v2755 = vpop.permute.xlu0 %2754
    %2756 = vset.pattern.permute.xlu0 0
    %2757 = vperm.xlu0 %2756, %v2750
    %v2758 = vpop.permute.xlu0 %2757
    %v2759 = vlaneseq
    %v2760 = vshrl.u32 %v2759, 7
    %v2761 = vsub.s32 %v514, %v2760
    %v2762 = vrot.slane %v2755, %v2761
    %v2763 = vlaneseq
    %v2764 = vshrl.u32 %v2763, 7
    %v2765 = vsub.s32 %v514, %v2764
    %v2766 = vrot.slane %v2758, %v2765
    %v2767 = vsel %vm775, %v2766, %v2762
    %v2769 = vsel %vm778, %v2767, -inf
    %2770 = vmax.xlane.f32.xlu0 %v2769
    %v2771 = vpop.xlane.xlu0 %2770
    %v2773 = vlaneseq
    %v2774 = vshrl.u32 %v2773, 7
    %v2775 = vsub.s32 0, %v2774
    %v2776 = vrot.slane %v2771, %v2775
    %v2777 = vlaneseq
    %v2778 = vshrl.u32 %v2777, 7
    %v2779 = vsub.s32 1, %v2778
    %v2780 = vrot.slane %v2771, %v2779
    %v2783 = vsub.f32 %v2749, %v2776
    %v2784 = vsub.f32 %v2750, %v2780
    %v2785 = vmul.f32 %v2783, 1.442695
    %v2786 = vpow.pop %v2785
    %v2787 = vmul.f32 %v2784, 1.442695
    %v2788 = vpow.pop %v2787
    %2791 = vset.pattern.permute.xlu0 0
    %2792 = vperm.xlu0 %2791, %v2786
    %v2793 = vpop.permute.xlu0 %2792
    %2794 = vset.pattern.permute.xlu0 0
    %2795 = vperm.xlu0 %2794, %v2788
    %v2796 = vpop.permute.xlu0 %2795
    %v2797 = vlaneseq
    %v2798 = vshrl.u32 %v2797, 7
    %v2799 = vsub.s32 %v514, %v2798
    %v2800 = vrot.slane %v2793, %v2799
    %v2801 = vlaneseq
    %v2802 = vshrl.u32 %v2801, 7
    %v2803 = vsub.s32 %v514, %v2802
    %v2804 = vrot.slane %v2796, %v2803
    %v2805 = vsel %vm775, %v2804, %v2800
    %v2807 = vsel %vm778, %v2805, 0.0
    %2808 = vadd.xlane.f32.xlu0 %v2807
    %v2809 = vpop.xlane.xlu0 %2808
    %v2810 = vrcp.pop %v2809
    %v2812 = vlaneseq
    %v2813 = vshrl.u32 %v2812, 7
    %v2814 = vsub.s32 0, %v2813
    %v2815 = vrot.slane %v2810, %v2814
    %v2816 = vlaneseq
    %v2817 = vshrl.u32 %v2816, 7
    %v2818 = vsub.s32 1, %v2817
    %v2819 = vrot.slane %v2810, %v2818
    %v2822 = vmul.f32 %v2786, %v2815
    %v2823 = vmul.f32 %v2788, %v2819
    %2825 = vset.pattern.permute.xlu0 0
    %2826 = vperm.xlu0 %2825, %v2822
    %v2827 = vpop.permute.xlu0 %2826
    %2830 = vset.pattern.permute.xlu0 0
    %2831 = vperm.xlu0 %2830, %v2823
    %v2832 = vpop.permute.xlu0 %2831
    %v2834 = vmul.f32 %v2827, %v509
    %v2835 = vmul.f32 %v2832, %v510
    %v2836 = vsel %vm195, %v2834, 0.0
    %v2837 = vrot.slane %v2836, 4
    %v2838 = vadd.f32 %v2836, %v2837
    %v2839 = vrot.slane %v2838, 2
    %v2840 = vadd.f32 %v2838, %v2839
    %v2841 = vrot.slane %v2840, 1
    %v2842 = vadd.f32 %v2840, %v2841
    %v2843 = vsel %vm195, %v2835, 0.0
    %v2844 = vrot.slane %v2843, 4
    %v2845 = vadd.f32 %v2843, %v2844
    %v2846 = vrot.slane %v2845, 2
    %v2847 = vadd.f32 %v2845, %v2846
    %v2848 = vrot.slane %v2847, 1
    %v2849 = vadd.f32 %v2847, %v2848
    %2851 = vrot.lane.b32.xlu0 %v2640, 96
    %v2852 = vpop.permute.xlu0 %2851
    %v2856 = vsel %vm775, %v2849, %v2842
    %2857 = vrot.lane.b32.xlu0 %v2856, 32
    %v2858 = vpop.permute.xlu0 %2857
    %v2860 = vsel %vm195, %v2852, %v2858
    %v2861 = vsel %vm871, %v2860, %v2172
    %v2862 = vpack.c.bf16 %v2861, %v2861
    %v2863 = vld [vmem:[#allocation14] sm:$0xff]
    %v2864 = vld [vmem:[#allocation14 + $0x8] sm:$0xf]
    %v2865 = vld [vmem:[#allocation14 + $0xc] sm:$0xff]
    %v2866 = vld [vmem:[#allocation14 + $0x14] sm:$0xf]
    %v2867 = vld [vmem:[#allocation14 + $0x18] sm:$0xff]
    %v2868 = vld [vmem:[#allocation14 + $0x20] sm:$0xf]
    %v2869 = vld [vmem:[#allocation14 + $0x24] sm:$0xff]
    %v2870 = vld [vmem:[#allocation14 + $0x2c] sm:$0xf]
    %v2871 = vld [vmem:[#allocation14 + $0x30] sm:$0xff]
    %v2872 = vld [vmem:[#allocation14 + $0x38] sm:$0xf]
    %v2873 = vld [vmem:[#allocation14 + $0x3c] sm:$0xff]
    %v2874 = vld [vmem:[#allocation14 + $0x44] sm:$0xf]
    %v2875 = vld [vmem:[#allocation14 + $0x48] sm:$0xff]
    %v2876 = vld [vmem:[#allocation14 + $0x50] sm:$0xf]
    %v2877 = vld [vmem:[#allocation14 + $0x54] sm:$0xff]
    %v2878 = vld [vmem:[#allocation14 + $0x5c] sm:$0xf]
    %v2879 = vld [vmem:[#allocation14 + $0x60] sm:$0xff]
    %v2880 = vld [vmem:[#allocation14 + $0x68] sm:$0xf]
    %v2881 = vld [vmem:[#allocation14 + $0x6c] sm:$0xff]
    %v2882 = vld [vmem:[#allocation14 + $0x74] sm:$0xf]
    %v2883 = vld [vmem:[#allocation14 + $0x78] sm:$0xff]
    %v2884 = vld [vmem:[#allocation14 + $0x80] sm:$0xf]
    %v2885 = vld [vmem:[#allocation14 + $0x84] sm:$0xff]
    %v2886 = vld [vmem:[#allocation14 + $0x8c] sm:$0xf]
    %v2887 = vld [vmem:[#allocation14 + $0x90] sm:$0xff]
    %v2888 = vld [vmem:[#allocation14 + $0x98] sm:$0xf]
    %v2889 = vld [vmem:[#allocation14 + $0x9c] sm:$0xff]
    %v2890 = vld [vmem:[#allocation14 + $0xa4] sm:$0xf]
    %v2891 = vld [vmem:[#allocation14 + $0xa8] sm:$0xff]
    %v2892 = vld [vmem:[#allocation14 + $0xb0] sm:$0xf]
    %v2893 = vld [vmem:[#allocation14 + $0xb4] sm:$0xff]
    %v2894 = vld [vmem:[#allocation14 + $0xbc] sm:$0xf]
    %v2927 = vunpack.c.l.b16 %v2863
    %v2928 = vunpack.c.h.b16 %v2863
    %v2929 = vunpack.c.l.b16 %v2864
    %v2930 = vunpack.c.l.b16 %v2865
    %v2931 = vunpack.c.h.b16 %v2865
    %v2932 = vunpack.c.l.b16 %v2866
    %v2933 = vunpack.c.l.b16 %v2867
    %v2934 = vunpack.c.h.b16 %v2867
    %v2935 = vunpack.c.l.b16 %v2868
    %v2936 = vunpack.c.l.b16 %v2869
    %v2937 = vunpack.c.h.b16 %v2869
    %v2938 = vunpack.c.l.b16 %v2870
    %v2939 = vunpack.c.l.b16 %v2871
    %v2940 = vunpack.c.h.b16 %v2871
    %v2941 = vunpack.c.l.b16 %v2872
    %v2942 = vunpack.c.l.b16 %v2873
    %v2943 = vunpack.c.h.b16 %v2873
    %v2944 = vunpack.c.l.b16 %v2874
    %v2945 = vunpack.c.l.b16 %v2875
    %v2946 = vunpack.c.h.b16 %v2875
    %v2947 = vunpack.c.l.b16 %v2876
    %v2948 = vunpack.c.l.b16 %v2877
    %v2949 = vunpack.c.h.b16 %v2877
    %v2950 = vunpack.c.l.b16 %v2878
    %v2951 = vunpack.c.l.b16 %v2879
    %v2952 = vunpack.c.h.b16 %v2879
    %v2953 = vunpack.c.l.b16 %v2880
    %v2954 = vunpack.c.l.b16 %v2881
    %v2955 = vunpack.c.h.b16 %v2881
    %v2956 = vunpack.c.l.b16 %v2882
    %v2957 = vunpack.c.l.b16 %v2883
    %v2958 = vunpack.c.h.b16 %v2883
    %v2959 = vunpack.c.l.b16 %v2884
    %v2960 = vunpack.c.l.b16 %v2885
    %v2961 = vunpack.c.h.b16 %v2885
    %v2962 = vunpack.c.l.b16 %v2886
    %v2963 = vunpack.c.l.b16 %v2887
    %v2964 = vunpack.c.h.b16 %v2887
    %v2965 = vunpack.c.l.b16 %v2888
    %v2966 = vunpack.c.l.b16 %v2889
    %v2967 = vunpack.c.h.b16 %v2889
    %v2968 = vunpack.c.l.b16 %v2890
    %v2969 = vunpack.c.l.b16 %v2891
    %v2970 = vunpack.c.h.b16 %v2891
    %v2971 = vunpack.c.l.b16 %v2892
    %v2972 = vunpack.c.l.b16 %v2893
    %v2973 = vunpack.c.h.b16 %v2893
    %v2974 = vunpack.c.l.b16 %v2894
    %v2975 = vpack.c.b16 %v2930, %v2927
    %v2976 = vpack.c.b16 %v2931, %v2928
    %v2977 = vpack.c.b16 %v2932, %v2929
    %v2978 = vpack.c.b16 %v2936, %v2933
    %v2979 = vpack.c.b16 %v2937, %v2934
    %v2980 = vpack.c.b16 %v2938, %v2935
    %v2981 = vpack.c.b16 %v2942, %v2939
    %v2982 = vpack.c.b16 %v2943, %v2940
    %v2983 = vpack.c.b16 %v2944, %v2941
    %v2984 = vpack.c.b16 %v2948, %v2945
    %v2985 = vpack.c.b16 %v2949, %v2946
    %v2986 = vpack.c.b16 %v2950, %v2947
    %v2987 = vpack.c.b16 %v2954, %v2951
    %v2988 = vpack.c.b16 %v2955, %v2952
    %v2989 = vpack.c.b16 %v2956, %v2953
    %v2990 = vpack.c.b16 %v2960, %v2957
    %v2991 = vpack.c.b16 %v2961, %v2958
    %v2992 = vpack.c.b16 %v2962, %v2959
    %v2993 = vpack.c.b16 %v2966, %v2963
    %v2994 = vpack.c.b16 %v2967, %v2964
    %v2995 = vpack.c.b16 %v2968, %v2965
    %v2996 = vpack.c.b16 %v2972, %v2969
    %v2997 = vpack.c.b16 %v2973, %v2970
    %v2998 = vpack.c.b16 %v2974, %v2971
    %3023 = vmatprep.subr.bf16.mxu0 %v2976
    %3024 = vmatpush1.bf16.msra.mxu0 %v2975
    %3025 = vmatprep.subr.bf16.mxu0 %v2979
    %3026 = vmatpush1.bf16.msra.mxu0 %v2978
    %3027 = vmatprep.subr.bf16.mxu0 %v2982
    %3028 = vmatpush1.bf16.msra.mxu0 %v2981
    %3029 = vmatprep.subr.bf16.mxu0 %v2985
    %3030 = vmatpush1.bf16.msra.mxu0 %v2984
    %3031 = vmatprep.subr.bf16.mxu0 %v2988
    %3032 = vmatpush1.bf16.msra.mxu0 %v2987
    %3033 = vmatprep.subr.bf16.mxu0 %v2991
    %3034 = vmatpush1.bf16.msra.mxu0 %v2990
    %3035 = vmatprep.subr.bf16.mxu0 %v2994
    %3036 = vmatpush1.bf16.msra.mxu0 %v2993
    %3037 = vmatprep.subr.bf16.mxu0 %v2997
    %3038 = vmatpush1.bf16.msra.mxu0 %v2996
    %3039 = vmatprep.subr.bf16.mxu0 0
    %3040 = vmatpush1.bf16.msra.mxu0 0
    %3041 = vmatprep.subr.bf16.mxu0 0
    %3042 = vmatpush1.bf16.msra.mxu0 0
    %3043 = vmatprep.subr.bf16.mxu0 0
    %3044 = vmatpush1.bf16.msra.mxu0 0
    %3045 = vmatprep.subr.bf16.mxu0 0
    %3046 = vmatpush1.bf16.msra.mxu0 0
    %3047 = vmatprep.subr.bf16.mxu0 0
    %3048 = vmatpush1.bf16.msra.mxu0 0
    %3049 = vmatprep.subr.bf16.mxu0 0
    %3050 = vmatpush1.bf16.msra.mxu0 0
    %3051 = vmatprep.subr.bf16.mxu0 0
    %3052 = vmatpush1.bf16.msra.mxu0 0
    %3053 = vmatprep.subr.bf16.mxu0 0
    %3054 = vmatpush1.bf16.msra.mxu0 0
    %3055 = vmatprep.mubr.bf16.mxu0 0
    %3056 = vmatmul.mubr.bf16.gmra.mrb[0].mxu0 %v2862
    %v3057 = vpop.f32.mrb[0].mxu0
    %v3058 = vadd.f32 0.0, %v3057
    %v3059 = vpop.f32.mrb[0].mxu0
    %v3060 = vadd.f32 0.0, %v3059
    %v3061 = vpop.f32.mrb[0].mxu0
    %v3062 = vpop.f32.mrb[0].mxu0
    %3063 = vdwg.mxu0
    %3064 = vmatprep.subr.bf16.mxu0 0
    %3065 = vmatpush1.bf16.msra.mxu0 %v2977
    %3066 = vmatprep.subr.bf16.mxu0 0
    %3067 = vmatpush1.bf16.msra.mxu0 %v2980
    %3068 = vmatprep.subr.bf16.mxu0 0
    %3069 = vmatpush1.bf16.msra.mxu0 %v2983
    %3070 = vmatprep.subr.bf16.mxu0 0
    %3071 = vmatpush1.bf16.msra.mxu0 %v2986
    %3072 = vmatprep.subr.bf16.mxu0 0
    %3073 = vmatpush1.bf16.msra.mxu0 %v2989
    %3074 = vmatprep.subr.bf16.mxu0 0
    %3075 = vmatpush1.bf16.msra.mxu0 %v2992
    %3076 = vmatprep.subr.bf16.mxu0 0
    %3077 = vmatpush1.bf16.msra.mxu0 %v2995
    %3078 = vmatprep.subr.bf16.mxu0 0
    %3079 = vmatpush1.bf16.msra.mxu0 %v2998
    %3080 = vmatprep.subr.bf16.mxu0 0
    %3081 = vmatpush1.bf16.msra.mxu0 0
    %3082 = vmatprep.subr.bf16.mxu0 0
    %3083 = vmatpush1.bf16.msra.mxu0 0
    %3084 = vmatprep.subr.bf16.mxu0 0
    %3085 = vmatpush1.bf16.msra.mxu0 0
    %3086 = vmatprep.subr.bf16.mxu0 0
    %3087 = vmatpush1.bf16.msra.mxu0 0
    %3088 = vmatprep.subr.bf16.mxu0 0
    %3089 = vmatpush1.bf16.msra.mxu0 0
    %3090 = vmatprep.subr.bf16.mxu0 0
    %3091 = vmatpush1.bf16.msra.mxu0 0
    %3092 = vmatprep.subr.bf16.mxu0 0
    %3093 = vmatpush1.bf16.msra.mxu0 0
    %3094 = vmatprep.subr.bf16.mxu0 0
    %3095 = vmatpush1.bf16.msra.mxu0 0
    %3096 = vmatprep.mubr.bf16.mxu0 0
    %3097 = vmatmul.mubr.bf16.gmra.mrb[0].mxu0 %v2862
    %v3098 = vpop.f32.mrb[0].mxu0
    %v3099 = vadd.f32 0.0, %v3098
    %v3100 = vpop.f32.mrb[0].mxu0
    %v3101 = vpop.f32.mrb[0].mxu0
    %v3102 = vpop.f32.mrb[0].mxu0
    %3103 = vdwg.mxu0
    %v3104 = vadd.f32 %v3058, %v1119
    %v3105 = vadd.f32 %v3060, %v1123
    %v3106 = vadd.f32 %v3060, %v1138
    %v3107 = vadd.f32 %v3099, %v1141
    %3109 = vrot.lane.b32.xlu0 %v3106, 64
    %v3110 = vpop.permute.xlu0 %3109
    %v3112 = vadd.f32 %v3104, %v3110
    %v3113 = vxor.u32 %v3112, 2147483648
    %v3114 = vmul.f32 %v3113, 1.442695
    %v3115 = vpow.pop %v3114
    %v3116 = vadd.f32 %v3115, 1.0
    %v3117 = vrcp.pop %v3116
    %v3118 = vmul.f32 1.0, %v3117
    %3120 = vrot.lane.b32.xlu0 %v3107, 64
    %v3121 = vpop.permute.xlu0 %3120
    %v3123 = vadd.f32 %v3104, %v3121
    %v3124 = vxor.u32 %v3123, 2147483648
    %v3125 = vmul.f32 %v3124, 1.442695
    %v3126 = vpow.pop %v3125
    %v3127 = vadd.f32 %v3126, 1.0
    %v3128 = vrcp.pop %v3127
    %v3129 = vmul.f32 1.0, %v3128
    %v3130 = vmul.f32 %v3118, %v3121
    %v3131 = vadd.f32 %v3105, %v3130
    %v3132 = vtanh.pop %v3131
    %v3133 = vsub.f32 1.0, %v3129
    %3135 = vrot.lane.b32.xlu0 %v3132, 64
    %v3136 = vpop.permute.xlu0 %3135
    %v3138 = vmul.f32 %v3133, %v3136
    %v3139 = vmul.f32 %v3129, %v2172
    %v3140 = vadd.f32 %v3138, %v3139
    %3142 = vrot.lane.b32.xlu0 %v3140, 64
    %v3143 = vpop.permute.xlu0 %3142
    %v3145 = vadd.f32 %v2860, %v3143
    %v3146 = vsel %vm871, %v3145, %v2457
    %v3147 = vpack.c.bf16 %v3146, %v3146
    %v3148 = vld [vmem:[#allocation16] sm:$0xff]
    %v3149 = vld [vmem:[#allocation16 + $0x8] sm:$0xf]
    %v3150 = vld [vmem:[#allocation16 + $0xc] sm:$0xff]
    %v3151 = vld [vmem:[#allocation16 + $0x14] sm:$0xf]
    %v3152 = vld [vmem:[#allocation16 + $0x18] sm:$0xff]
    %v3153 = vld [vmem:[#allocation16 + $0x20] sm:$0xf]
    %v3154 = vld [vmem:[#allocation16 + $0x24] sm:$0xff]
    %v3155 = vld [vmem:[#allocation16 + $0x2c] sm:$0xf]
    %v3156 = vld [vmem:[#allocation16 + $0x30] sm:$0xff]
    %v3157 = vld [vmem:[#allocation16 + $0x38] sm:$0xf]
    %v3158 = vld [vmem:[#allocation16 + $0x3c] sm:$0xff]
    %v3159 = vld [vmem:[#allocation16 + $0x44] sm:$0xf]
    %v3160 = vld [vmem:[#allocation16 + $0x48] sm:$0xff]
    %v3161 = vld [vmem:[#allocation16 + $0x50] sm:$0xf]
    %v3162 = vld [vmem:[#allocation16 + $0x54] sm:$0xff]
    %v3163 = vld [vmem:[#allocation16 + $0x5c] sm:$0xf]
    %v3164 = vld [vmem:[#allocation16 + $0x60] sm:$0xff]
    %v3165 = vld [vmem:[#allocation16 + $0x68] sm:$0xf]
    %v3166 = vld [vmem:[#allocation16 + $0x6c] sm:$0xff]
    %v3167 = vld [vmem:[#allocation16 + $0x74] sm:$0xf]
    %v3168 = vld [vmem:[#allocation16 + $0x78] sm:$0xff]
    %v3169 = vld [vmem:[#allocation16 + $0x80] sm:$0xf]
    %v3170 = vld [vmem:[#allocation16 + $0x84] sm:$0xff]
    %v3171 = vld [vmem:[#allocation16 + $0x8c] sm:$0xf]
    %v3172 = vld [vmem:[#allocation16 + $0x90] sm:$0xff]
    %v3173 = vld [vmem:[#allocation16 + $0x98] sm:$0xf]
    %v3174 = vld [vmem:[#allocation16 + $0x9c] sm:$0xff]
    %v3175 = vld [vmem:[#allocation16 + $0xa4] sm:$0xf]
    %v3176 = vld [vmem:[#allocation16 + $0xa8] sm:$0xff]
    %v3177 = vld [vmem:[#allocation16 + $0xb0] sm:$0xf]
    %v3178 = vld [vmem:[#allocation16 + $0xb4] sm:$0xff]
    %v3179 = vld [vmem:[#allocation16 + $0xbc] sm:$0xf]
    %v3212 = vunpack.c.l.b16 %v3148
    %v3213 = vunpack.c.h.b16 %v3148
    %v3214 = vunpack.c.l.b16 %v3149
    %v3215 = vunpack.c.l.b16 %v3150
    %v3216 = vunpack.c.h.b16 %v3150
    %v3217 = vunpack.c.l.b16 %v3151
    %v3218 = vunpack.c.l.b16 %v3152
    %v3219 = vunpack.c.h.b16 %v3152
    %v3220 = vunpack.c.l.b16 %v3153
    %v3221 = vunpack.c.l.b16 %v3154
    %v3222 = vunpack.c.h.b16 %v3154
    %v3223 = vunpack.c.l.b16 %v3155
    %v3224 = vunpack.c.l.b16 %v3156
    %v3225 = vunpack.c.h.b16 %v3156
    %v3226 = vunpack.c.l.b16 %v3157
    %v3227 = vunpack.c.l.b16 %v3158
    %v3228 = vunpack.c.h.b16 %v3158
    %v3229 = vunpack.c.l.b16 %v3159
    %v3230 = vunpack.c.l.b16 %v3160
    %v3231 = vunpack.c.h.b16 %v3160
    %v3232 = vunpack.c.l.b16 %v3161
    %v3233 = vunpack.c.l.b16 %v3162
    %v3234 = vunpack.c.h.b16 %v3162
    %v3235 = vunpack.c.l.b16 %v3163
    %v3236 = vunpack.c.l.b16 %v3164
    %v3237 = vunpack.c.h.b16 %v3164
    %v3238 = vunpack.c.l.b16 %v3165
    %v3239 = vunpack.c.l.b16 %v3166
    %v3240 = vunpack.c.h.b16 %v3166
    %v3241 = vunpack.c.l.b16 %v3167
    %v3242 = vunpack.c.l.b16 %v3168
    %v3243 = vunpack.c.h.b16 %v3168
    %v3244 = vunpack.c.l.b16 %v3169
    %v3245 = vunpack.c.l.b16 %v3170
    %v3246 = vunpack.c.h.b16 %v3170
    %v3247 = vunpack.c.l.b16 %v3171
    %v3248 = vunpack.c.l.b16 %v3172
    %v3249 = vunpack.c.h.b16 %v3172
    %v3250 = vunpack.c.l.b16 %v3173
    %v3251 = vunpack.c.l.b16 %v3174
    %v3252 = vunpack.c.h.b16 %v3174
    %v3253 = vunpack.c.l.b16 %v3175
    %v3254 = vunpack.c.l.b16 %v3176
    %v3255 = vunpack.c.h.b16 %v3176
    %v3256 = vunpack.c.l.b16 %v3177
    %v3257 = vunpack.c.l.b16 %v3178
    %v3258 = vunpack.c.h.b16 %v3178
    %v3259 = vunpack.c.l.b16 %v3179
    %v3260 = vpack.c.b16 %v3215, %v3212
    %v3261 = vpack.c.b16 %v3216, %v3213
    %v3262 = vpack.c.b16 %v3217, %v3214
    %v3263 = vpack.c.b16 %v3221, %v3218
    %v3264 = vpack.c.b16 %v3222, %v3219
    %v3265 = vpack.c.b16 %v3223, %v3220
    %v3266 = vpack.c.b16 %v3227, %v3224
    %v3267 = vpack.c.b16 %v3228, %v3225
    %v3268 = vpack.c.b16 %v3229, %v3226
    %v3269 = vpack.c.b16 %v3233, %v3230
    %v3270 = vpack.c.b16 %v3234, %v3231
    %v3271 = vpack.c.b16 %v3235, %v3232
    %v3272 = vpack.c.b16 %v3239, %v3236
    %v3273 = vpack.c.b16 %v3240, %v3237
    %v3274 = vpack.c.b16 %v3241, %v3238
    %v3275 = vpack.c.b16 %v3245, %v3242
    %v3276 = vpack.c.b16 %v3246, %v3243
    %v3277 = vpack.c.b16 %v3247, %v3244
    %v3278 = vpack.c.b16 %v3251, %v3248
    %v3279 = vpack.c.b16 %v3252, %v3249
    %v3280 = vpack.c.b16 %v3253, %v3250
    %v3281 = vpack.c.b16 %v3257, %v3254
    %v3282 = vpack.c.b16 %v3258, %v3255
    %v3283 = vpack.c.b16 %v3259, %v3256
    %3308 = vmatprep.subr.bf16.mxu0 %v3261
    %3309 = vmatpush1.bf16.msra.mxu0 %v3260
    %3310 = vmatprep.subr.bf16.mxu0 %v3264
    %3311 = vmatpush1.bf16.msra.mxu0 %v3263
    %3312 = vmatprep.subr.bf16.mxu0 %v3267
    %3313 = vmatpush1.bf16.msra.mxu0 %v3266
    %3314 = vmatprep.subr.bf16.mxu0 %v3270
    %3315 = vmatpush1.bf16.msra.mxu0 %v3269
    %3316 = vmatprep.subr.bf16.mxu0 %v3273
    %3317 = vmatpush1.bf16.msra.mxu0 %v3272
    %3318 = vmatprep.subr.bf16.mxu0 %v3276
    %3319 = vmatpush1.bf16.msra.mxu0 %v3275
    %3320 = vmatprep.subr.bf16.mxu0 %v3279
    %3321 = vmatpush1.bf16.msra.mxu0 %v3278
    %3322 = vmatprep.subr.bf16.mxu0 %v3282
    %3323 = vmatpush1.bf16.msra.mxu0 %v3281
    %3324 = vmatprep.subr.bf16.mxu0 0
    %3325 = vmatpush1.bf16.msra.mxu0 0
    %3326 = vmatprep.subr.bf16.mxu0 0
    %3327 = vmatpush1.bf16.msra.mxu0 0
    %3328 = vmatprep.subr.bf16.mxu0 0
    %3329 = vmatpush1.bf16.msra.mxu0 0
    %3330 = vmatprep.subr.bf16.mxu0 0
    %3331 = vmatpush1.bf16.msra.mxu0 0
    %3332 = vmatprep.subr.bf16.mxu0 0
    %3333 = vmatpush1.bf16.msra.mxu0 0
    %3334 = vmatprep.subr.bf16.mxu0 0
    %3335 = vmatpush1.bf16.msra.mxu0 0
    %3336 = vmatprep.subr.bf16.mxu0 0
    %3337 = vmatpush1.bf16.msra.mxu0 0
    %3338 = vmatprep.subr.bf16.mxu0 0
    %3339 = vmatpush1.bf16.msra.mxu0 0
    %3340 = vmatprep.mubr.bf16.mxu0 0
    %3341 = vmatmul.mubr.bf16.gmra.mrb[0].mxu0 %v3147
    %v3342 = vpop.f32.mrb[0].mxu0
    %v3343 = vadd.f32 0.0, %v3342
    %v3344 = vpop.f32.mrb[0].mxu0
    %v3345 = vadd.f32 0.0, %v3344
    %v3346 = vpop.f32.mrb[0].mxu0
    %v3347 = vpop.f32.mrb[0].mxu0
    %3348 = vdwg.mxu0
    %3349 = vmatprep.subr.bf16.mxu0 0
    %3350 = vmatpush1.bf16.msra.mxu0 %v3262
    %3351 = vmatprep.subr.bf16.mxu0 0
    %3352 = vmatpush1.bf16.msra.mxu0 %v3265
    %3353 = vmatprep.subr.bf16.mxu0 0
    %3354 = vmatpush1.bf16.msra.mxu0 %v3268
    %3355 = vmatprep.subr.bf16.mxu0 0
    %3356 = vmatpush1.bf16.msra.mxu0 %v3271
    %3357 = vmatprep.subr.bf16.mxu0 0
    %3358 = vmatpush1.bf16.msra.mxu0 %v3274
    %3359 = vmatprep.subr.bf16.mxu0 0
    %3360 = vmatpush1.bf16.msra.mxu0 %v3277
    %3361 = vmatprep.subr.bf16.mxu0 0
    %3362 = vmatpush1.bf16.msra.mxu0 %v3280
    %3363 = vmatprep.subr.bf16.mxu0 0
    %3364 = vmatpush1.bf16.msra.mxu0 %v3283
    %3365 = vmatprep.subr.bf16.mxu0 0
    %3366 = vmatpush1.bf16.msra.mxu0 0
    %3367 = vmatprep.subr.bf16.mxu0 0
    %3368 = vmatpush1.bf16.msra.mxu0 0
    %3369 = vmatprep.subr.bf16.mxu0 0
    %3370 = vmatpush1.bf16.msra.mxu0 0
    %3371 = vmatprep.subr.bf16.mxu0 0
    %3372 = vmatpush1.bf16.msra.mxu0 0
    %3373 = vmatprep.subr.bf16.mxu0 0
    %3374 = vmatpush1.bf16.msra.mxu0 0
    %3375 = vmatprep.subr.bf16.mxu0 0
    %3376 = vmatpush1.bf16.msra.mxu0 0
    %3377 = vmatprep.subr.bf16.mxu0 0
    %3378 = vmatpush1.bf16.msra.mxu0 0
    %3379 = vmatprep.subr.bf16.mxu0 0
    %3380 = vmatpush1.bf16.msra.mxu0 0
    %3381 = vmatprep.mubr.bf16.mxu0 0
    %3382 = vmatmul.mubr.bf16.gmra.mrb[0].mxu0 %v3147
    %v3383 = vpop.f32.mrb[0].mxu0
    %v3384 = vadd.f32 0.0, %v3383
    %v3385 = vpop.f32.mrb[0].mxu0
    %v3386 = vpop.f32.mrb[0].mxu0
    %v3387 = vpop.f32.mrb[0].mxu0
    %3388 = vdwg.mxu0
    %v3389 = vadd.f32 %v3343, %v1431
    %v3390 = vadd.f32 %v3345, %v1435
    %v3391 = vadd.f32 %v3345, %v1450
    %v3392 = vadd.f32 %v3384, %v1453
    %3394 = vrot.lane.b32.xlu0 %v3391, 64
    %v3395 = vpop.permute.xlu0 %3394
    %v3397 = vadd.f32 %v3389, %v3395
    %v3398 = vxor.u32 %v3397, 2147483648
    %v3399 = vmul.f32 %v3398, 1.442695
    %v3400 = vpow.pop %v3399
    %v3401 = vadd.f32 %v3400, 1.0
    %v3402 = vrcp.pop %v3401
    %v3403 = vmul.f32 1.0, %v3402
    %3405 = vrot.lane.b32.xlu0 %v3392, 64
    %v3406 = vpop.permute.xlu0 %3405
    %v3408 = vadd.f32 %v3389, %v3406
    %v3409 = vxor.u32 %v3408, 2147483648
    %v3410 = vmul.f32 %v3409, 1.442695
    %v3411 = vpow.pop %v3410
    %v3412 = vadd.f32 %v3411, 1.0
    %v3413 = vrcp.pop %v3412
    %v3414 = vmul.f32 1.0, %v3413
    %v3415 = vmul.f32 %v3403, %v3406
    %v3416 = vadd.f32 %v3390, %v3415
    %v3417 = vtanh.pop %v3416
    %v3418 = vsub.f32 1.0, %v3414
    %3420 = vrot.lane.b32.xlu0 %v3417, 64
    %v3421 = vpop.permute.xlu0 %3420
    %v3423 = vmul.f32 %v3418, %v3421
    %v3424 = vmul.f32 %v3414, %v2457
    %v3425 = vadd.f32 %v3423, %v3424
    %3427 = vrot.lane.b32.xlu0 %v3425, 64
    %v3428 = vpop.permute.xlu0 %3427
    %v3430 = vadd.f32 %v3145, %v3428
    %3431 = vst.msk [vmem:[#allocation4 + $0x4] sm:$0x3] %vm1496, %v3430
    %v3432 = vcombine.high %v2822, %v2822
    %v3434 = vunpack.c.l.s4 1983009808
    %v3435 = vunpack.c.0.s8 %v3434
    %v3436 = vlaneseq
    %v3437 = vshrl.u32 %v3436, 7
    %v3438 = vsub.s32 %v3435, %v3437
    %v3439 = vrot.slane %v2822, %v3438
    %v3441 = vunpack.c.l.s4 1983009808
    %v3442 = vunpack.c.0.s8 %v3441
    %v3443 = vlaneseq
    %v3444 = vshrl.u32 %v3443, 7
    %v3445 = vsub.s32 %v3442, %v3444
    %v3446 = vrot.slane %v3432, %v3445
    %v3447 = vcombine.high %v3439, %v3439
    %v3448 = vcombine.high %v3446, %v3446
    %v3449 = vcombine.high %v2823, %v2823
    %v3451 = vunpack.c.l.s4 1983009808
    %v3452 = vunpack.c.0.s8 %v3451
    %v3453 = vlaneseq
    %v3454 = vshrl.u32 %v3453, 7
    %v3455 = vsub.s32 %v3452, %v3454
    %v3456 = vrot.slane %v2823, %v3455
    %v3458 = vunpack.c.l.s4 1983009808
    %v3459 = vunpack.c.0.s8 %v3458
    %v3460 = vlaneseq
    %v3461 = vshrl.u32 %v3460, 7
    %v3462 = vsub.s32 %v3459, %v3461
    %v3463 = vrot.slane %v3449, %v3462
    %v3464 = vcombine.high %v3456, %v3456
    %v3465 = vcombine.high %v3463, %v3463
    %v3466 = vcombine.low %v3439, %v3447
    %v3467 = vcombine.low %v3446, %v3448
    %v3469 = vunpack.c.l.s4 1983009808
    %v3470 = vunpack.c.0.s8 %v3469
    %v3471 = vlaneseq
    %v3472 = vshrl.u32 %v3471, 7
    %v3473 = vsub.s32 %v3470, %v3472
    %v3474 = vrot.slane %v3466, %v3473
    %v3476 = vunpack.c.l.s4 1983009808
    %v3477 = vunpack.c.0.s8 %v3476
    %v3478 = vlaneseq
    %v3479 = vshrl.u32 %v3478, 7
    %v3480 = vsub.s32 %v3477, %v3479
    %v3481 = vrot.slane %v3467, %v3480
    %v3482 = vcombine.low %v3474, %v3481
    %v3483 = vcombine.low %v3456, %v3464
    %v3484 = vcombine.low %v3463, %v3465
    %v3486 = vunpack.c.l.s4 1983009808
    %v3487 = vunpack.c.0.s8 %v3486
    %v3488 = vlaneseq
    %v3489 = vshrl.u32 %v3488, 7
    %v3490 = vsub.s32 %v3487, %v3489
    %v3491 = vrot.slane %v3483, %v3490
    %v3493 = vunpack.c.l.s4 1983009808
    %v3494 = vunpack.c.0.s8 %v3493
    %v3495 = vlaneseq
    %v3496 = vshrl.u32 %v3495, 7
    %v3497 = vsub.s32 %v3494, %v3496
    %v3498 = vrot.slane %v3484, %v3497
    %v3499 = vcombine.low %v3491, %v3498
    %3500 = vset.pattern.permute.xlu0 0
    %3501 = vperm.xlu0 %3500, %v3482
    %v3502 = vpop.permute.xlu0 %3501
    %3503 = vset.pattern.permute.xlu0 0
    %3504 = vperm.xlu0 %3503, %v3499
    %v3505 = vpop.permute.xlu0 %3504
    %v3506 = vadd.s32 %v514, 4294967280
    %v3507 = vlaneseq
    %v3508 = vshrl.u32 %v3507, 7
    %v3509 = vsub.s32 %v3506, %v3508
    %v3510 = vrot.slane %v3502, %v3509
    %v3511 = vlaneseq
    %v3512 = vshrl.u32 %v3511, 7
    %v3513 = vsub.s32 %v3506, %v3512
    %v3514 = vrot.slane %v3505, %v3513
    %v3515 = vsel %vm775, %v3514, %v3510
    %v3517 = vunpack.c.l.s4 1983009808
    %v3518 = vunpack.c.0.s8 %v3517
    %v3519 = vlaneseq
    %v3520 = vshrl.u32 %v3519, 7
    %v3521 = vsub.s32 %v3518, %v3520
    %v3522 = vrot.slane %v3515, %v3521
    %vm3524 = vcmask 189568
    %3525 = vst.msk [vmem:[#allocation18] sm:$0x3] %vm3524, %v3522
    %v3526 = vld [vmem:[#allocation2 + $0x6] sm:$0x3]
    %v3527 = vld [vmem:[%s8] sm:$0xf]
    %v3528 = vld [vmem:[%s8 + $0x4] sm:$0xf]
    %v3529 = vld [vmem:[%s8 + $0x8] sm:$0xf]
    %v3530 = vld [vmem:[%s8 + $0xc] sm:$0xf]
    %v3535 = vunpack.c.l.b16 %v3527
    %v3536 = vunpack.c.l.b16 %v3528
    %v3537 = vunpack.c.l.b16 %v3529
    %v3538 = vunpack.c.l.b16 %v3530
    %v3539 = vpack.c.b16 %v3536, %v3535
    %v3540 = vpack.c.b16 %v3538, %v3537
    %3543 = vmatprep.subr.bf16.mxu0 0
    %3544 = vmatpush1.bf16.msra.mxu0 %v3539
    %3545 = vmatprep.subr.bf16.mxu0 0
    %3546 = vmatpush1.bf16.msra.mxu0 %v3540
    %3547 = vmatprep.subr.bf16.mxu0 0
    %3548 = vmatpush1.bf16.msra.mxu0 0
    %3549 = vmatprep.subr.bf16.mxu0 0
    %3550 = vmatpush1.bf16.msra.mxu0 0
    %3551 = vmatprep.subr.bf16.mxu0 0
    %3552 = vmatpush1.bf16.msra.mxu0 0
    %3553 = vmatprep.subr.bf16.mxu0 0
    %3554 = vmatpush1.bf16.msra.mxu0 0
    %3555 = vmatprep.subr.bf16.mxu0 0
    %3556 = vmatpush1.bf16.msra.mxu0 0
    %3557 = vmatprep.subr.bf16.mxu0 0
    %3558 = vmatpush1.bf16.msra.mxu0 0
    %3559 = vmatprep.subr.bf16.mxu0 0
    %3560 = vmatpush1.bf16.msra.mxu0 0
    %3561 = vmatprep.subr.bf16.mxu0 0
    %3562 = vmatpush1.bf16.msra.mxu0 0
    %3563 = vmatprep.subr.bf16.mxu0 0
    %3564 = vmatpush1.bf16.msra.mxu0 0
    %3565 = vmatprep.subr.bf16.mxu0 0
    %3566 = vmatpush1.bf16.msra.mxu0 0
    %3567 = vmatprep.subr.bf16.mxu0 0
    %3568 = vmatpush1.bf16.msra.mxu0 0
    %3569 = vmatprep.subr.bf16.mxu0 0
    %3570 = vmatpush1.bf16.msra.mxu0 0
    %3571 = vmatprep.subr.bf16.mxu0 0
    %3572 = vmatpush1.bf16.msra.mxu0 0
    %3573 = vmatprep.subr.bf16.mxu0 0
    %3574 = vmatpush1.bf16.msra.mxu0 0
    %3575 = vmatprep.mubr.bf16.mxu0 0
    %3576 = vmatmul.mubr.bf16.gmra.mrb[0].mxu0 %v2662
    %v3577 = vpop.f32.mrb[0].mxu0
    %v3578 = vadd.f32 %v537, %v3577
    %v3579 = vpop.f32.mrb[0].mxu0
    %v3580 = vpop.f32.mrb[0].mxu0
    %v3581 = vpop.f32.mrb[0].mxu0
    %3582 = vdwg.mxu0
    %v3583 = vadd.f32 %v3526, %v3578
    %v3584 = vxor.u32 %v3583, 2147483648
    %v3585 = vmul.f32 %v3584, 1.442695
    %v3586 = vpow.pop %v3585
    %v3587 = vadd.f32 %v3586, 1.0
    %v3588 = vrcp.pop %v3587
    %v3589 = vmul.f32 1.0, %v3588
    %3591 = vrot.lane.b32.xlu0 %v3578, 64
    %v3592 = vpop.permute.xlu0 %3591
    %v3594 = vmul.f32 %v3589, %v3592
    %3596 = vrot.lane.b32.xlu0 %v3594, 64
    %v3597 = vpop.permute.xlu0 %3596
    %v3599 = vadd.f32 %v3526, %v3597
    %v3600 = vtanh.pop %v3599
    %v3601 = vsub.f32 1.0, %v3589
    %3603 = vrot.lane.b32.xlu0 %v3600, 96
    %v3604 = vpop.permute.xlu0 %3603
    %v3606 = vmul.f32 %v3601, %v3604
    %v3607 = vmul.f32 %v3589, %v2640
    %v3608 = vadd.f32 %v3606, %v3607
    %v3609 = vpack.c.bf16 %v3608, %v3608
    %v3610 = vld [vmem:[%s11] sm:$0xf]
    %v3611 = vld [vmem:[%s11 + $0x4] sm:$0xf]
    %v3612 = vld [vmem:[%s11 + $0x8] sm:$0xf]
    %v3613 = vld [vmem:[%s11 + $0xc] sm:$0xf]
    %3615 = vrot.lane.b32.xlu0 %v3609, 96
    %v3616 = vpop.permute.xlu0 %3615
    %v3621 = vunpack.c.l.b16 %v3610
    %v3622 = vunpack.c.l.b16 %v3611
    %v3623 = vunpack.c.l.b16 %v3612
    %v3624 = vunpack.c.l.b16 %v3613
    %v3625 = vpack.c.b16 %v3622, %v3621
    %v3626 = vpack.c.b16 %v3624, %v3623
    %v3630 = vsel %vm195, %v3616, 0
    %3632 = vmatprep.subr.bf16.mxu0 0
    %3633 = vmatpush1.bf16.msra.mxu0 %v3625
    %3634 = vmatprep.subr.bf16.mxu0 0
    %3635 = vmatpush1.bf16.msra.mxu0 %v3626
    %3636 = vmatprep.subr.bf16.mxu0 0
    %3637 = vmatpush1.bf16.msra.mxu0 0
    %3638 = vmatprep.subr.bf16.mxu0 0
    %3639 = vmatpush1.bf16.msra.mxu0 0
    %3640 = vmatprep.subr.bf16.mxu0 0
    %3641 = vmatpush1.bf16.msra.mxu0 0
    %3642 = vmatprep.subr.bf16.mxu0 0
    %3643 = vmatpush1.bf16.msra.mxu0 0
    %3644 = vmatprep.subr.bf16.mxu0 0
    %3645 = vmatpush1.bf16.msra.mxu0 0
    %3646 = vmatprep.subr.bf16.mxu0 0
    %3647 = vmatpush1.bf16.msra.mxu0 0
    %3648 = vmatprep.subr.bf16.mxu0 0
    %3649 = vmatpush1.bf16.msra.mxu0 0
    %3650 = vmatprep.subr.bf16.mxu0 0
    %3651 = vmatpush1.bf16.msra.mxu0 0
    %3652 = vmatprep.subr.bf16.mxu0 0
    %3653 = vmatpush1.bf16.msra.mxu0 0
    %3654 = vmatprep.subr.bf16.mxu0 0
    %3655 = vmatpush1.bf16.msra.mxu0 0
    %3656 = vmatprep.subr.bf16.mxu0 0
    %3657 = vmatpush1.bf16.msra.mxu0 0
    %3658 = vmatprep.subr.bf16.mxu0 0
    %3659 = vmatpush1.bf16.msra.mxu0 0
    %3660 = vmatprep.subr.bf16.mxu0 0
    %3661 = vmatpush1.bf16.msra.mxu0 0
    %3662 = vmatprep.subr.bf16.mxu0 0
    %3663 = vmatpush1.bf16.msra.mxu0 0
    %3664 = vmatprep.mubr.bf16.mxu0 0
    %3665 = vmatmul.mubr.bf16.gmra.mrb[0].mxu0 %v3630
    %v3666 = vpop.f32.mrb[0].mxu0
    %v3667 = vadd.f32 %v629, %v3666
    %v3668 = vpop.f32.mrb[0].mxu0
    %v3669 = vpop.f32.mrb[0].mxu0
    %v3670 = vpop.f32.mrb[0].mxu0
    %3671 = vdwg.mxu0
    %v3674 = vunpack.c.l.s4 1966171168
    %v3675 = vunpack.c.0.s8 %v3674
    %v3676 = vlaneseq
    %v3677 = vshrl.u32 %v3676, 7
    %v3678 = vsub.s32 %v3675, %v3677
    %v3679 = vrot.slane %v3667, %v3678
    %v3680 = vcombine.high %v3679, %v3679
    %v3682 = vunpack.c.l.s4 1966171168
    %v3683 = vunpack.c.0.s8 %v3682
    %v3684 = vlaneseq
    %v3685 = vshrl.u32 %v3684, 7
    %v3686 = vsub.s32 %v3683, %v3685
    %v3687 = vrot.slane %v3679, %v3686
    %v3689 = vunpack.c.l.s4 1966171168
    %v3690 = vunpack.c.0.s8 %v3689
    %v3691 = vlaneseq
    %v3692 = vshrl.u32 %v3691, 7
    %v3693 = vsub.s32 %v3690, %v3692
    %v3694 = vrot.slane %v3680, %v3693
    %v3695 = vlaneseq
    %v3696 = vshrl.u32 %v3695, 7
    %v3697 = vsub.s32 0, %v3696
    %v3698 = vrot.slane %v3687, %v3697
    %v3699 = vlaneseq
    %v3700 = vshrl.u32 %v3699, 7
    %v3701 = vsub.s32 0, %v3700
    %v3702 = vrot.slane %v3694, %v3701
    %v3705 = vadd.f32 %v3698, %v511
    %v3706 = vadd.f32 %v3702, %v512
    %v3707 = vtanh.pop %v3705
    %v3708 = vtanh.pop %v3706
    %v3709 = vmul.f32 %v3707, %v730
    %v3710 = vmul.f32 %v3708, %v730
    %v3711 = vsel %vm195, %v3709, 0.0
    %3712 = vadd.xlane.f32.xlu0 %v3711
    %v3713 = vpop.xlane.xlu0 %3712
    %v3714 = vsel %vm195, %v3710, 0.0
    %3715 = vadd.xlane.f32.xlu0 %v3714
    %v3716 = vpop.xlane.xlu0 %3715
    %v3717 = vadd.f32 %v3713, %v747
    %v3718 = vadd.f32 %v3716, %v754
    %3721 = vset.pattern.permute.xlu0 0
    %3722 = vperm.xlu0 %3721, %v3717
    %v3723 = vpop.permute.xlu0 %3722
    %3724 = vset.pattern.permute.xlu0 0
    %3725 = vperm.xlu0 %3724, %v3718
    %v3726 = vpop.permute.xlu0 %3725
    %v3727 = vlaneseq
    %v3728 = vshrl.u32 %v3727, 7
    %v3729 = vsub.s32 %v514, %v3728
    %v3730 = vrot.slane %v3723, %v3729
    %v3731 = vlaneseq
    %v3732 = vshrl.u32 %v3731, 7
    %v3733 = vsub.s32 %v514, %v3732
    %v3734 = vrot.slane %v3726, %v3733
    %v3735 = vsel %vm775, %v3734, %v3730
    %v3737 = vsel %vm778, %v3735, -inf
    %3738 = vmax.xlane.f32.xlu0 %v3737
    %v3739 = vpop.xlane.xlu0 %3738
    %v3741 = vlaneseq
    %v3742 = vshrl.u32 %v3741, 7
    %v3743 = vsub.s32 0, %v3742
    %v3744 = vrot.slane %v3739, %v3743
    %v3745 = vlaneseq
    %v3746 = vshrl.u32 %v3745, 7
    %v3747 = vsub.s32 1, %v3746
    %v3748 = vrot.slane %v3739, %v3747
    %v3751 = vsub.f32 %v3717, %v3744
    %v3752 = vsub.f32 %v3718, %v3748
    %v3753 = vmul.f32 %v3751, 1.442695
    %v3754 = vpow.pop %v3753
    %v3755 = vmul.f32 %v3752, 1.442695
    %v3756 = vpow.pop %v3755
    %3759 = vset.pattern.permute.xlu0 0
    %3760 = vperm.xlu0 %3759, %v3754
    %v3761 = vpop.permute.xlu0 %3760
    %3762 = vset.pattern.permute.xlu0 0
    %3763 = vperm.xlu0 %3762, %v3756
    %v3764 = vpop.permute.xlu0 %3763
    %v3765 = vlaneseq
    %v3766 = vshrl.u32 %v3765, 7
    %v3767 = vsub.s32 %v514, %v3766
    %v3768 = vrot.slane %v3761, %v3767
    %v3769 = vlaneseq
    %v3770 = vshrl.u32 %v3769, 7
    %v3771 = vsub.s32 %v514, %v3770
    %v3772 = vrot.slane %v3764, %v3771
    %v3773 = vsel %vm775, %v3772, %v3768
    %v3775 = vsel %vm778, %v3773, 0.0
    %3776 = vadd.xlane.f32.xlu0 %v3775
    %v3777 = vpop.xlane.xlu0 %3776
    %v3778 = vrcp.pop %v3777
    %v3780 = vlaneseq
    %v3781 = vshrl.u32 %v3780, 7
    %v3782 = vsub.s32 0, %v3781
    %v3783 = vrot.slane %v3778, %v3782
    %v3784 = vlaneseq
    %v3785 = vshrl.u32 %v3784, 7
    %v3786 = vsub.s32 1, %v3785
    %v3787 = vrot.slane %v3778, %v3786
    %v3790 = vmul.f32 %v3754, %v3783
    %v3791 = vmul.f32 %v3756, %v3787
    %3793 = vset.pattern.permute.xlu0 0
    %3794 = vperm.xlu0 %3793, %v3790
    %v3795 = vpop.permute.xlu0 %3794
    %3798 = vset.pattern.permute.xlu0 0
    %3799 = vperm.xlu0 %3798, %v3791
    %v3800 = vpop.permute.xlu0 %3799
    %v3802 = vmul.f32 %v3795, %v509
    %v3803 = vmul.f32 %v3800, %v510
    %v3804 = vsel %vm195, %v3802, 0.0
    %v3805 = vrot.slane %v3804, 4
    %v3806 = vadd.f32 %v3804, %v3805
    %v3807 = vrot.slane %v3806, 2
    %v3808 = vadd.f32 %v3806, %v3807
    %v3809 = vrot.slane %v3808, 1
    %v3810 = vadd.f32 %v3808, %v3809
    %v3811 = vsel %vm195, %v3803, 0.0
    %v3812 = vrot.slane %v3811, 4
    %v3813 = vadd.f32 %v3811, %v3812
    %v3814 = vrot.slane %v3813, 2
    %v3815 = vadd.f32 %v3813, %v3814
    %v3816 = vrot.slane %v3815, 1
    %v3817 = vadd.f32 %v3815, %v3816
    %3819 = vrot.lane.b32.xlu0 %v3608, 96
    %v3820 = vpop.permute.xlu0 %3819
    %v3824 = vsel %vm775, %v3817, %v3810
    %3825 = vrot.lane.b32.xlu0 %v3824, 32
    %v3826 = vpop.permute.xlu0 %3825
    %v3828 = vsel %vm195, %v3820, %v3826
    %v3829 = vsel %vm871, %v3828, %v3140
    %v3830 = vpack.c.bf16 %v3829, %v3829
    %v3831 = vld [vmem:[#allocation14] sm:$0xff]
    %v3832 = vld [vmem:[#allocation14 + $0x8] sm:$0xf]
    %v3833 = vld [vmem:[#allocation14 + $0xc] sm:$0xff]
    %v3834 = vld [vmem:[#allocation14 + $0x14] sm:$0xf]
    %v3835 = vld [vmem:[#allocation14 + $0x18] sm:$0xff]
    %v3836 = vld [vmem:[#allocation14 + $0x20] sm:$0xf]
    %v3837 = vld [vmem:[#allocation14 + $0x24] sm:$0xff]
    %v3838 = vld [vmem:[#allocation14 + $0x2c] sm:$0xf]
    %v3839 = vld [vmem:[#allocation14 + $0x30] sm:$0xff]
    %v3840 = vld [vmem:[#allocation14 + $0x38] sm:$0xf]
    %v3841 = vld [vmem:[#allocation14 + $0x3c] sm:$0xff]
    %v3842 = vld [vmem:[#allocation14 + $0x44] sm:$0xf]
    %v3843 = vld [vmem:[#allocation14 + $0x48] sm:$0xff]
    %v3844 = vld [vmem:[#allocation14 + $0x50] sm:$0xf]
    %v3845 = vld [vmem:[#allocation14 + $0x54] sm:$0xff]
    %v3846 = vld [vmem:[#allocation14 + $0x5c] sm:$0xf]
    %v3847 = vld [vmem:[#allocation14 + $0x60] sm:$0xff]
    %v3848 = vld [vmem:[#allocation14 + $0x68] sm:$0xf]
    %v3849 = vld [vmem:[#allocation14 + $0x6c] sm:$0xff]
    %v3850 = vld [vmem:[#allocation14 + $0x74] sm:$0xf]
    %v3851 = vld [vmem:[#allocation14 + $0x78] sm:$0xff]
    %v3852 = vld [vmem:[#allocation14 + $0x80] sm:$0xf]
    %v3853 = vld [vmem:[#allocation14 + $0x84] sm:$0xff]
    %v3854 = vld [vmem:[#allocation14 + $0x8c] sm:$0xf]
    %v3855 = vld [vmem:[#allocation14 + $0x90] sm:$0xff]
    %v3856 = vld [vmem:[#allocation14 + $0x98] sm:$0xf]
    %v3857 = vld [vmem:[#allocation14 + $0x9c] sm:$0xff]
    %v3858 = vld [vmem:[#allocation14 + $0xa4] sm:$0xf]
    %v3859 = vld [vmem:[#allocation14 + $0xa8] sm:$0xff]
    %v3860 = vld [vmem:[#allocation14 + $0xb0] sm:$0xf]
    %v3861 = vld [vmem:[#allocation14 + $0xb4] sm:$0xff]
    %v3862 = vld [vmem:[#allocation14 + $0xbc] sm:$0xf]
    %v3895 = vunpack.c.l.b16 %v3831
    %v3896 = vunpack.c.h.b16 %v3831
    %v3897 = vunpack.c.l.b16 %v3832
    %v3898 = vunpack.c.l.b16 %v3833
    %v3899 = vunpack.c.h.b16 %v3833
    %v3900 = vunpack.c.l.b16 %v3834
    %v3901 = vunpack.c.l.b16 %v3835
    %v3902 = vunpack.c.h.b16 %v3835
    %v3903 = vunpack.c.l.b16 %v3836
    %v3904 = vunpack.c.l.b16 %v3837
    %v3905 = vunpack.c.h.b16 %v3837
    %v3906 = vunpack.c.l.b16 %v3838
    %v3907 = vunpack.c.l.b16 %v3839
    %v3908 = vunpack.c.h.b16 %v3839
    %v3909 = vunpack.c.l.b16 %v3840
    %v3910 = vunpack.c.l.b16 %v3841
    %v3911 = vunpack.c.h.b16 %v3841
    %v3912 = vunpack.c.l.b16 %v3842
    %v3913 = vunpack.c.l.b16 %v3843
    %v3914 = vunpack.c.h.b16 %v3843
    %v3915 = vunpack.c.l.b16 %v3844
    %v3916 = vunpack.c.l.b16 %v3845
    %v3917 = vunpack.c.h.b16 %v3845
    %v3918 = vunpack.c.l.b16 %v3846
    %v3919 = vunpack.c.l.b16 %v3847
    %v3920 = vunpack.c.h.b16 %v3847
    %v3921 = vunpack.c.l.b16 %v3848
    %v3922 = vunpack.c.l.b16 %v3849
    %v3923 = vunpack.c.h.b16 %v3849
    %v3924 = vunpack.c.l.b16 %v3850
    %v3925 = vunpack.c.l.b16 %v3851
    %v3926 = vunpack.c.h.b16 %v3851
    %v3927 = vunpack.c.l.b16 %v3852
    %v3928 = vunpack.c.l.b16 %v3853
    %v3929 = vunpack.c.h.b16 %v3853
    %v3930 = vunpack.c.l.b16 %v3854
    %v3931 = vunpack.c.l.b16 %v3855
    %v3932 = vunpack.c.h.b16 %v3855
    %v3933 = vunpack.c.l.b16 %v3856
    %v3934 = vunpack.c.l.b16 %v3857
    %v3935 = vunpack.c.h.b16 %v3857
    %v3936 = vunpack.c.l.b16 %v3858
    %v3937 = vunpack.c.l.b16 %v3859
    %v3938 = vunpack.c.h.b16 %v3859
    %v3939 = vunpack.c.l.b16 %v3860
    %v3940 = vunpack.c.l.b16 %v3861
    %v3941 = vunpack.c.h.b16 %v3861
    %v3942 = vunpack.c.l.b16 %v3862
    %v3943 = vpack.c.b16 %v3898, %v3895
    %v3944 = vpack.c.b16 %v3899, %v3896
    %v3945 = vpack.c.b16 %v3900, %v3897
    %v3946 = vpack.c.b16 %v3904, %v3901
    %v3947 = vpack.c.b16 %v3905, %v3902
    %v3948 = vpack.c.b16 %v3906, %v3903
    %v3949 = vpack.c.b16 %v3910, %v3907
    %v3950 = vpack.c.b16 %v3911, %v3908
    %v3951 = vpack.c.b16 %v3912, %v3909
    %v3952 = vpack.c.b16 %v3916, %v3913
    %v3953 = vpack.c.b16 %v3917, %v3914
    %v3954 = vpack.c.b16 %v3918, %v3915
    %v3955 = vpack.c.b16 %v3922, %v3919
    %v3956 = vpack.c.b16 %v3923, %v3920
    %v3957 = vpack.c.b16 %v3924, %v3921
    %v3958 = vpack.c.b16 %v3928, %v3925
    %v3959 = vpack.c.b16 %v3929, %v3926
    %v3960 = vpack.c.b16 %v3930, %v3927
    %v3961 = vpack.c.b16 %v3934, %v3931
    %v3962 = vpack.c.b16 %v3935, %v3932
    %v3963 = vpack.c.b16 %v3936, %v3933
    %v3964 = vpack.c.b16 %v3940, %v3937
    %v3965 = vpack.c.b16 %v3941, %v3938
    %v3966 = vpack.c.b16 %v3942, %v3939
    %3991 = vmatprep.subr.bf16.mxu0 %v3944
    %3992 = vmatpush1.bf16.msra.mxu0 %v3943
    %3993 = vmatprep.subr.bf16.mxu0 %v3947
    %3994 = vmatpush1.bf16.msra.mxu0 %v3946
    %3995 = vmatprep.subr.bf16.mxu0 %v3950
    %3996 = vmatpush1.bf16.msra.mxu0 %v3949
    %3997 = vmatprep.subr.bf16.mxu0 %v3953
    %3998 = vmatpush1.bf16.msra.mxu0 %v3952
    %3999 = vmatprep.subr.bf16.mxu0 %v3956
    %4000 = vmatpush1.bf16.msra.mxu0 %v3955
    %4001 = vmatprep.subr.bf16.mxu0 %v3959
    %4002 = vmatpush1.bf16.msra.mxu0 %v3958
    %4003 = vmatprep.subr.bf16.mxu0 %v3962
    %4004 = vmatpush1.bf16.msra.mxu0 %v3961
    %4005 = vmatprep.subr.bf16.mxu0 %v3965
    %4006 = vmatpush1.bf16.msra.mxu0 %v3964
    %4007 = vmatprep.subr.bf16.mxu0 0
    %4008 = vmatpush1.bf16.msra.mxu0 0
    %4009 = vmatprep.subr.bf16.mxu0 0
    %4010 = vmatpush1.bf16.msra.mxu0 0
    %4011 = vmatprep.subr.bf16.mxu0 0
    %4012 = vmatpush1.bf16.msra.mxu0 0
    %4013 = vmatprep.subr.bf16.mxu0 0
    %4014 = vmatpush1.bf16.msra.mxu0 0
    %4015 = vmatprep.subr.bf16.mxu0 0
    %4016 = vmatpush1.bf16.msra.mxu0 0
    %4017 = vmatprep.subr.bf16.mxu0 0
    %4018 = vmatpush1.bf16.msra.mxu0 0
    %4019 = vmatprep.subr.bf16.mxu0 0
    %4020 = vmatpush1.bf16.msra.mxu0 0
    %4021 = vmatprep.subr.bf16.mxu0 0
    %4022 = vmatpush1.bf16.msra.mxu0 0
    %4023 = vmatprep.mubr.bf16.mxu0 0
    %4024 = vmatmul.mubr.bf16.gmra.mrb[0].mxu0 %v3830
    %v4025 = vpop.f32.mrb[0].mxu0
    %v4026 = vadd.f32 0.0, %v4025
    %v4027 = vpop.f32.mrb[0].mxu0
    %v4028 = vadd.f32 0.0, %v4027
    %v4029 = vpop.f32.mrb[0].mxu0
    %v4030 = vpop.f32.mrb[0].mxu0
    %4031 = vdwg.mxu0
    %4032 = vmatprep.subr.bf16.mxu0 0
    %4033 = vmatpush1.bf16.msra.mxu0 %v3945
    %4034 = vmatprep.subr.bf16.mxu0 0
    %4035 = vmatpush1.bf16.msra.mxu0 %v3948
    %4036 = vmatprep.subr.bf16.mxu0 0
    %4037 = vmatpush1.bf16.msra.mxu0 %v3951
    %4038 = vmatprep.subr.bf16.mxu0 0
    %4039 = vmatpush1.bf16.msra.mxu0 %v3954
    %4040 = vmatprep.subr.bf16.mxu0 0
    %4041 = vmatpush1.bf16.msra.mxu0 %v3957
    %4042 = vmatprep.subr.bf16.mxu0 0
    %4043 = vmatpush1.bf16.msra.mxu0 %v3960
    %4044 = vmatprep.subr.bf16.mxu0 0
    %4045 = vmatpush1.bf16.msra.mxu0 %v3963
    %4046 = vmatprep.subr.bf16.mxu0 0
    %4047 = vmatpush1.bf16.msra.mxu0 %v3966
    %4048 = vmatprep.subr.bf16.mxu0 0
    %4049 = vmatpush1.bf16.msra.mxu0 0
    %4050 = vmatprep.subr.bf16.mxu0 0
    %4051 = vmatpush1.bf16.msra.mxu0 0
    %4052 = vmatprep.subr.bf16.mxu0 0
    %4053 = vmatpush1.bf16.msra.mxu0 0
    %4054 = vmatprep.subr.bf16.mxu0 0
    %4055 = vmatpush1.bf16.msra.mxu0 0
    %4056 = vmatprep.subr.bf16.mxu0 0
    %4057 = vmatpush1.bf16.msra.mxu0 0
    %4058 = vmatprep.subr.bf16.mxu0 0
    %4059 = vmatpush1.bf16.msra.mxu0 0
    %4060 = vmatprep.subr.bf16.mxu0 0
    %4061 = vmatpush1.bf16.msra.mxu0 0
    %4062 = vmatprep.subr.bf16.mxu0 0
    %4063 = vmatpush1.bf16.msra.mxu0 0
    %4064 = vmatprep.mubr.bf16.mxu0 0
    %4065 = vmatmul.mubr.bf16.gmra.mrb[0].mxu0 %v3830
    %v4066 = vpop.f32.mrb[0].mxu0
    %v4067 = vadd.f32 0.0, %v4066
    %v4068 = vpop.f32.mrb[0].mxu0
    %v4069 = vpop.f32.mrb[0].mxu0
    %v4070 = vpop.f32.mrb[0].mxu0
    %4071 = vdwg.mxu0
    %v4072 = vadd.f32 %v4026, %v1119
    %v4073 = vadd.f32 %v4028, %v1123
    %v4074 = vadd.f32 %v4028, %v1138
    %v4075 = vadd.f32 %v4067, %v1141
    %4077 = vrot.lane.b32.xlu0 %v4074, 64
    %v4078 = vpop.permute.xlu0 %4077
    %v4080 = vadd.f32 %v4072, %v4078
    %v4081 = vxor.u32 %v4080, 2147483648
    %v4082 = vmul.f32 %v4081, 1.442695
    %v4083 = vpow.pop %v4082
    %v4084 = vadd.f32 %v4083, 1.0
    %v4085 = vrcp.pop %v4084
    %v4086 = vmul.f32 1.0, %v4085
    %4088 = vrot.lane.b32.xlu0 %v4075, 64
    %v4089 = vpop.permute.xlu0 %4088
    %v4091 = vadd.f32 %v4072, %v4089
    %v4092 = vxor.u32 %v4091, 2147483648
    %v4093 = vmul.f32 %v4092, 1.442695
    %v4094 = vpow.pop %v4093
    %v4095 = vadd.f32 %v4094, 1.0
    %v4096 = vrcp.pop %v4095
    %v4097 = vmul.f32 1.0, %v4096
    %v4098 = vmul.f32 %v4086, %v4089
    %v4099 = vadd.f32 %v4073, %v4098
    %v4100 = vtanh.pop %v4099
    %v4101 = vsub.f32 1.0, %v4097
    %4103 = vrot.lane.b32.xlu0 %v4100, 64
    %v4104 = vpop.permute.xlu0 %4103
    %v4106 = vmul.f32 %v4101, %v4104
    %v4107 = vmul.f32 %v4097, %v3140
    %v4108 = vadd.f32 %v4106, %v4107
    %4110 = vrot.lane.b32.xlu0 %v4108, 64
    %v4111 = vpop.permute.xlu0 %4110
    %v4113 = vadd.f32 %v3828, %v4111
    %v4114 = vsel %vm871, %v4113, %v3425
    %v4115 = vpack.c.bf16 %v4114, %v4114
    %v4116 = vld [vmem:[#allocation16] sm:$0xff]
    %v4117 = vld [vmem:[#allocation16 + $0x8] sm:$0xf]
    %v4118 = vld [vmem:[#allocation16 + $0xc] sm:$0xff]
    %v4119 = vld [vmem:[#allocation16 + $0x14] sm:$0xf]
    %v4120 = vld [vmem:[#allocation16 + $0x18] sm:$0xff]
    %v4121 = vld [vmem:[#allocation16 + $0x20] sm:$0xf]
    %v4122 = vld [vmem:[#allocation16 + $0x24] sm:$0xff]
    %v4123 = vld [vmem:[#allocation16 + $0x2c] sm:$0xf]
    %v4124 = vld [vmem:[#allocation16 + $0x30] sm:$0xff]
    %v4125 = vld [vmem:[#allocation16 + $0x38] sm:$0xf]
    %v4126 = vld [vmem:[#allocation16 + $0x3c] sm:$0xff]
    %v4127 = vld [vmem:[#allocation16 + $0x44] sm:$0xf]
    %v4128 = vld [vmem:[#allocation16 + $0x48] sm:$0xff]
    %v4129 = vld [vmem:[#allocation16 + $0x50] sm:$0xf]
    %v4130 = vld [vmem:[#allocation16 + $0x54] sm:$0xff]
    %v4131 = vld [vmem:[#allocation16 + $0x5c] sm:$0xf]
    %v4132 = vld [vmem:[#allocation16 + $0x60] sm:$0xff]
    %v4133 = vld [vmem:[#allocation16 + $0x68] sm:$0xf]
    %v4134 = vld [vmem:[#allocation16 + $0x6c] sm:$0xff]
    %v4135 = vld [vmem:[#allocation16 + $0x74] sm:$0xf]
    %v4136 = vld [vmem:[#allocation16 + $0x78] sm:$0xff]
    %v4137 = vld [vmem:[#allocation16 + $0x80] sm:$0xf]
    %v4138 = vld [vmem:[#allocation16 + $0x84] sm:$0xff]
    %v4139 = vld [vmem:[#allocation16 + $0x8c] sm:$0xf]
    %v4140 = vld [vmem:[#allocation16 + $0x90] sm:$0xff]
    %v4141 = vld [vmem:[#allocation16 + $0x98] sm:$0xf]
    %v4142 = vld [vmem:[#allocation16 + $0x9c] sm:$0xff]
    %v4143 = vld [vmem:[#allocation16 + $0xa4] sm:$0xf]
    %v4144 = vld [vmem:[#allocation16 + $0xa8] sm:$0xff]
    %v4145 = vld [vmem:[#allocation16 + $0xb0] sm:$0xf]
    %v4146 = vld [vmem:[#allocation16 + $0xb4] sm:$0xff]
    %v4147 = vld [vmem:[#allocation16 + $0xbc] sm:$0xf]
    %v4180 = vunpack.c.l.b16 %v4116
    %v4181 = vunpack.c.h.b16 %v4116
    %v4182 = vunpack.c.l.b16 %v4117
    %v4183 = vunpack.c.l.b16 %v4118
    %v4184 = vunpack.c.h.b16 %v4118
    %v4185 = vunpack.c.l.b16 %v4119
    %v4186 = vunpack.c.l.b16 %v4120
    %v4187 = vunpack.c.h.b16 %v4120
    %v4188 = vunpack.c.l.b16 %v4121
    %v4189 = vunpack.c.l.b16 %v4122
    %v4190 = vunpack.c.h.b16 %v4122
    %v4191 = vunpack.c.l.b16 %v4123
    %v4192 = vunpack.c.l.b16 %v4124
    %v4193 = vunpack.c.h.b16 %v4124
    %v4194 = vunpack.c.l.b16 %v4125
    %v4195 = vunpack.c.l.b16 %v4126
    %v4196 = vunpack.c.h.b16 %v4126
    %v4197 = vunpack.c.l.b16 %v4127
    %v4198 = vunpack.c.l.b16 %v4128
    %v4199 = vunpack.c.h.b16 %v4128
    %v4200 = vunpack.c.l.b16 %v4129
    %v4201 = vunpack.c.l.b16 %v4130
    %v4202 = vunpack.c.h.b16 %v4130
    %v4203 = vunpack.c.l.b16 %v4131
    %v4204 = vunpack.c.l.b16 %v4132
    %v4205 = vunpack.c.h.b16 %v4132
    %v4206 = vunpack.c.l.b16 %v4133
    %v4207 = vunpack.c.l.b16 %v4134
    %v4208 = vunpack.c.h.b16 %v4134
    %v4209 = vunpack.c.l.b16 %v4135
    %v4210 = vunpack.c.l.b16 %v4136
    %v4211 = vunpack.c.h.b16 %v4136
    %v4212 = vunpack.c.l.b16 %v4137
    %v4213 = vunpack.c.l.b16 %v4138
    %v4214 = vunpack.c.h.b16 %v4138
    %v4215 = vunpack.c.l.b16 %v4139
    %v4216 = vunpack.c.l.b16 %v4140
    %v4217 = vunpack.c.h.b16 %v4140
    %v4218 = vunpack.c.l.b16 %v4141
    %v4219 = vunpack.c.l.b16 %v4142
    %v4220 = vunpack.c.h.b16 %v4142
    %v4221 = vunpack.c.l.b16 %v4143
    %v4222 = vunpack.c.l.b16 %v4144
    %v4223 = vunpack.c.h.b16 %v4144
    %v4224 = vunpack.c.l.b16 %v4145
    %v4225 = vunpack.c.l.b16 %v4146
    %v4226 = vunpack.c.h.b16 %v4146
    %v4227 = vunpack.c.l.b16 %v4147
    %v4228 = vpack.c.b16 %v4183, %v4180
    %v4229 = vpack.c.b16 %v4184, %v4181
    %v4230 = vpack.c.b16 %v4185, %v4182
    %v4231 = vpack.c.b16 %v4189, %v4186
    %v4232 = vpack.c.b16 %v4190, %v4187
    %v4233 = vpack.c.b16 %v4191, %v4188
    %v4234 = vpack.c.b16 %v4195, %v4192
    %v4235 = vpack.c.b16 %v4196, %v4193
    %v4236 = vpack.c.b16 %v4197, %v4194
    %v4237 = vpack.c.b16 %v4201, %v4198
    %v4238 = vpack.c.b16 %v4202, %v4199
    %v4239 = vpack.c.b16 %v4203, %v4200
    %v4240 = vpack.c.b16 %v4207, %v4204
    %v4241 = vpack.c.b16 %v4208, %v4205
    %v4242 = vpack.c.b16 %v4209, %v4206
    %v4243 = vpack.c.b16 %v4213, %v4210
    %v4244 = vpack.c.b16 %v4214, %v4211
    %v4245 = vpack.c.b16 %v4215, %v4212
    %v4246 = vpack.c.b16 %v4219, %v4216
    %v4247 = vpack.c.b16 %v4220, %v4217
    %v4248 = vpack.c.b16 %v4221, %v4218
    %v4249 = vpack.c.b16 %v4225, %v4222
    %v4250 = vpack.c.b16 %v4226, %v4223
    %v4251 = vpack.c.b16 %v4227, %v4224
    %4276 = vmatprep.subr.bf16.mxu0 %v4229
    %4277 = vmatpush1.bf16.msra.mxu0 %v4228
    %4278 = vmatprep.subr.bf16.mxu0 %v4232
    %4279 = vmatpush1.bf16.msra.mxu0 %v4231
    %4280 = vmatprep.subr.bf16.mxu0 %v4235
    %4281 = vmatpush1.bf16.msra.mxu0 %v4234
    %4282 = vmatprep.subr.bf16.mxu0 %v4238
    %4283 = vmatpush1.bf16.msra.mxu0 %v4237
    %4284 = vmatprep.subr.bf16.mxu0 %v4241
    %4285 = vmatpush1.bf16.msra.mxu0 %v4240
    %4286 = vmatprep.subr.bf16.mxu0 %v4244
    %4287 = vmatpush1.bf16.msra.mxu0 %v4243
    %4288 = vmatprep.subr.bf16.mxu0 %v4247
    %4289 = vmatpush1.bf16.msra.mxu0 %v4246
    %4290 = vmatprep.subr.bf16.mxu0 %v4250
    %4291 = vmatpush1.bf16.msra.mxu0 %v4249
    %4292 = vmatprep.subr.bf16.mxu0 0
    %4293 = vmatpush1.bf16.msra.mxu0 0
    %4294 = vmatprep.subr.bf16.mxu0 0
    %4295 = vmatpush1.bf16.msra.mxu0 0
    %4296 = vmatprep.subr.bf16.mxu0 0
    %4297 = vmatpush1.bf16.msra.mxu0 0
    %4298 = vmatprep.subr.bf16.mxu0 0
    %4299 = vmatpush1.bf16.msra.mxu0 0
    %4300 = vmatprep.subr.bf16.mxu0 0
    %4301 = vmatpush1.bf16.msra.mxu0 0
    %4302 = vmatprep.subr.bf16.mxu0 0
    %4303 = vmatpush1.bf16.msra.mxu0 0
    %4304 = vmatprep.subr.bf16.mxu0 0
    %4305 = vmatpush1.bf16.msra.mxu0 0
    %4306 = vmatprep.subr.bf16.mxu0 0
    %4307 = vmatpush1.bf16.msra.mxu0 0
    %4308 = vmatprep.mubr.bf16.mxu0 0
    %4309 = vmatmul.mubr.bf16.gmra.mrb[0].mxu0 %v4115
    %v4310 = vpop.f32.mrb[0].mxu0
    %v4311 = vadd.f32 0.0, %v4310
    %v4312 = vpop.f32.mrb[0].mxu0
    %v4313 = vadd.f32 0.0, %v4312
    %v4314 = vpop.f32.mrb[0].mxu0
    %v4315 = vpop.f32.mrb[0].mxu0
    %4316 = vdwg.mxu0
    %4317 = vmatprep.subr.bf16.mxu0 0
    %4318 = vmatpush1.bf16.msra.mxu0 %v4230
    %4319 = vmatprep.subr.bf16.mxu0 0
    %4320 = vmatpush1.bf16.msra.mxu0 %v4233
    %4321 = vmatprep.subr.bf16.mxu0 0
    %4322 = vmatpush1.bf16.msra.mxu0 %v4236
    %4323 = vmatprep.subr.bf16.mxu0 0
    %4324 = vmatpush1.bf16.msra.mxu0 %v4239
    %4325 = vmatprep.subr.bf16.mxu0 0
    %4326 = vmatpush1.bf16.msra.mxu0 %v4242
    %4327 = vmatprep.subr.bf16.mxu0 0
    %4328 = vmatpush1.bf16.msra.mxu0 %v4245
    %4329 = vmatprep.subr.bf16.mxu0 0
    %4330 = vmatpush1.bf16.msra.mxu0 %v4248
    %4331 = vmatprep.subr.bf16.mxu0 0
    %4332 = vmatpush1.bf16.msra.mxu0 %v4251
    %4333 = vmatprep.subr.bf16.mxu0 0
    %4334 = vmatpush1.bf16.msra.mxu0 0
    %4335 = vmatprep.subr.bf16.mxu0 0
    %4336 = vmatpush1.bf16.msra.mxu0 0
    %4337 = vmatprep.subr.bf16.mxu0 0
    %4338 = vmatpush1.bf16.msra.mxu0 0
    %4339 = vmatprep.subr.bf16.mxu0 0
    %4340 = vmatpush1.bf16.msra.mxu0 0
    %4341 = vmatprep.subr.bf16.mxu0 0
    %4342 = vmatpush1.bf16.msra.mxu0 0
    %4343 = vmatprep.subr.bf16.mxu0 0
    %4344 = vmatpush1.bf16.msra.mxu0 0
    %4345 = vmatprep.subr.bf16.mxu0 0
    %4346 = vmatpush1.bf16.msra.mxu0 0
    %4347 = vmatprep.subr.bf16.mxu0 0
    %4348 = vmatpush1.bf16.msra.mxu0 0
    %4349 = vmatprep.mubr.bf16.mxu0 0
    %4350 = vmatmul.mubr.bf16.gmra.mrb[0].mxu0 %v4115
    %v4351 = vpop.f32.mrb[0].mxu0
    %v4352 = vadd.f32 0.0, %v4351
    %v4353 = vpop.f32.mrb[0].mxu0
    %v4354 = vpop.f32.mrb[0].mxu0
    %v4355 = vpop.f32.mrb[0].mxu0
    %4356 = vdwg.mxu0
    %v4357 = vadd.f32 %v4311, %v1431
    %v4358 = vadd.f32 %v4313, %v1435
    %v4359 = vadd.f32 %v4313, %v1450
    %v4360 = vadd.f32 %v4352, %v1453
    %4362 = vrot.lane.b32.xlu0 %v4359, 64
    %v4363 = vpop.permute.xlu0 %4362
    %v4365 = vadd.f32 %v4357, %v4363
    %v4366 = vxor.u32 %v4365, 2147483648
    %v4367 = vmul.f32 %v4366, 1.442695
    %v4368 = vpow.pop %v4367
    %v4369 = vadd.f32 %v4368, 1.0
    %v4370 = vrcp.pop %v4369
    %v4371 = vmul.f32 1.0, %v4370
    %4373 = vrot.lane.b32.xlu0 %v4360, 64
    %v4374 = vpop.permute.xlu0 %4373
    %v4376 = vadd.f32 %v4357, %v4374
    %v4377 = vxor.u32 %v4376, 2147483648
    %v4378 = vmul.f32 %v4377, 1.442695
    %v4379 = vpow.pop %v4378
    %v4380 = vadd.f32 %v4379, 1.0
    %v4381 = vrcp.pop %v4380
    %v4382 = vmul.f32 1.0, %v4381
    %v4383 = vmul.f32 %v4371, %v4374
    %v4384 = vadd.f32 %v4358, %v4383
    %v4385 = vtanh.pop %v4384
    %v4386 = vsub.f32 1.0, %v4382
    %4388 = vrot.lane.b32.xlu0 %v4385, 64
    %v4389 = vpop.permute.xlu0 %4388
    %v4391 = vmul.f32 %v4386, %v4389
    %v4392 = vmul.f32 %v4382, %v3425
    %v4393 = vadd.f32 %v4391, %v4392
    %4395 = vrot.lane.b32.xlu0 %v4393, 64
    %v4396 = vpop.permute.xlu0 %4395
    %v4398 = vadd.f32 %v4113, %v4396
    %4399 = vst.msk [vmem:[#allocation4 + $0x6] sm:$0x3] %vm1496, %v4398
    %v4400 = vcombine.high %v3790, %v3790
    %v4402 = vunpack.c.l.s4 1983009808
    %v4403 = vunpack.c.0.s8 %v4402
    %v4404 = vlaneseq
    %v4405 = vshrl.u32 %v4404, 7
    %v4406 = vsub.s32 %v4403, %v4405
    %v4407 = vrot.slane %v3790, %v4406
    %v4409 = vunpack.c.l.s4 1983009808
    %v4410 = vunpack.c.0.s8 %v4409
    %v4411 = vlaneseq
    %v4412 = vshrl.u32 %v4411, 7
    %v4413 = vsub.s32 %v4410, %v4412
    %v4414 = vrot.slane %v4400, %v4413
    %v4415 = vcombine.high %v4407, %v4407
    %v4416 = vcombine.high %v4414, %v4414
    %v4417 = vcombine.high %v3791, %v3791
    %v4419 = vunpack.c.l.s4 1983009808
    %v4420 = vunpack.c.0.s8 %v4419
    %v4421 = vlaneseq
    %v4422 = vshrl.u32 %v4421, 7
    %v4423 = vsub.s32 %v4420, %v4422
    %v4424 = vrot.slane %v3791, %v4423
    %v4426 = vunpack.c.l.s4 1983009808
    %v4427 = vunpack.c.0.s8 %v4426
    %v4428 = vlaneseq
    %v4429 = vshrl.u32 %v4428, 7
    %v4430 = vsub.s32 %v4427, %v4429
    %v4431 = vrot.slane %v4417, %v4430
    %v4432 = vcombine.high %v4424, %v4424
    %v4433 = vcombine.high %v4431, %v4431
    %v4434 = vcombine.low %v4407, %v4415
    %v4435 = vcombine.low %v4414, %v4416
    %v4437 = vunpack.c.l.s4 1983009808
    %v4438 = vunpack.c.0.s8 %v4437
    %v4439 = vlaneseq
    %v4440 = vshrl.u32 %v4439, 7
    %v4441 = vsub.s32 %v4438, %v4440
    %v4442 = vrot.slane %v4434, %v4441
    %v4444 = vunpack.c.l.s4 1983009808
    %v4445 = vunpack.c.0.s8 %v4444
    %v4446 = vlaneseq
    %v4447 = vshrl.u32 %v4446, 7
    %v4448 = vsub.s32 %v4445, %v4447
    %v4449 = vrot.slane %v4435, %v4448
    %v4450 = vcombine.low %v4442, %v4449
    %v4451 = vcombine.low %v4424, %v4432
    %v4452 = vcombine.low %v4431, %v4433
    %v4454 = vunpack.c.l.s4 1983009808
    %v4455 = vunpack.c.0.s8 %v4454
    %v4456 = vlaneseq
    %v4457 = vshrl.u32 %v4456, 7
    %v4458 = vsub.s32 %v4455, %v4457
    %v4459 = vrot.slane %v4451, %v4458
    %v4461 = vunpack.c.l.s4 1983009808
    %v4462 = vunpack.c.0.s8 %v4461
    %v4463 = vlaneseq
    %v4464 = vshrl.u32 %v4463, 7
    %v4465 = vsub.s32 %v4462, %v4464
    %v4466 = vrot.slane %v4452, %v4465
    %v4467 = vcombine.low %v4459, %v4466
    %4468 = vset.pattern.permute.xlu0 0
    %4469 = vperm.xlu0 %4468, %v4450
    %v4470 = vpop.permute.xlu0 %4469
    %4471 = vset.pattern.permute.xlu0 0
    %4472 = vperm.xlu0 %4471, %v4467
    %v4473 = vpop.permute.xlu0 %4472
    %v4474 = vadd.s32 %v514, 4294967272
    %v4475 = vlaneseq
    %v4476 = vshrl.u32 %v4475, 7
    %v4477 = vsub.s32 %v4474, %v4476
    %v4478 = vrot.slane %v4470, %v4477
    %v4479 = vlaneseq
    %v4480 = vshrl.u32 %v4479, 7
    %v4481 = vsub.s32 %v4474, %v4480
    %v4482 = vrot.slane %v4473, %v4481
    %v4483 = vsel %vm775, %v4482, %v4478
    %v4485 = vunpack.c.l.s4 1983009808
    %v4486 = vunpack.c.0.s8 %v4485
    %v4487 = vlaneseq
    %v4488 = vshrl.u32 %v4487, 7
    %v4489 = vsub.s32 %v4486, %v4488
    %v4490 = vrot.slane %v4483, %v4489
    %vm4492 = vcmask 255168
    %4493 = vst.msk [vmem:[#allocation18] sm:$0x3] %vm4492, %v4490
    %v4494 = vld [vmem:[#allocation2 + $0x8] sm:$0x3]
    %v4495 = vld [vmem:[%s8] sm:$0xf]
    %v4496 = vld [vmem:[%s8 + $0x4] sm:$0xf]
    %v4497 = vld [vmem:[%s8 + $0x8] sm:$0xf]
    %v4498 = vld [vmem:[%s8 + $0xc] sm:$0xf]
    %v4503 = vunpack.c.l.b16 %v4495
    %v4504 = vunpack.c.l.b16 %v4496
    %v4505 = vunpack.c.l.b16 %v4497
    %v4506 = vunpack.c.l.b16 %v4498
    %v4507 = vpack.c.b16 %v4504, %v4503
    %v4508 = vpack.c.b16 %v4506, %v4505
    %4511 = vmatprep.subr.bf16.mxu0 0
    %4512 = vmatpush1.bf16.msra.mxu0 %v4507
    %4513 = vmatprep.subr.bf16.mxu0 0
    %4514 = vmatpush1.bf16.msra.mxu0 %v4508
    %4515 = vmatprep.subr.bf16.mxu0 0
    %4516 = vmatpush1.bf16.msra.mxu0 0
    %4517 = vmatprep.subr.bf16.mxu0 0
    %4518 = vmatpush1.bf16.msra.mxu0 0
    %4519 = vmatprep.subr.bf16.mxu0 0
    %4520 = vmatpush1.bf16.msra.mxu0 0
    %4521 = vmatprep.subr.bf16.mxu0 0
    %4522 = vmatpush1.bf16.msra.mxu0 0
    %4523 = vmatprep.subr.bf16.mxu0 0
    %4524 = vmatpush1.bf16.msra.mxu0 0
    %4525 = vmatprep.subr.bf16.mxu0 0
    %4526 = vmatpush1.bf16.msra.mxu0 0
    %4527 = vmatprep.subr.bf16.mxu0 0
    %4528 = vmatpush1.bf16.msra.mxu0 0
    %4529 = vmatprep.subr.bf16.mxu0 0
    %4530 = vmatpush1.bf16.msra.mxu0 0
    %4531 = vmatprep.subr.bf16.mxu0 0
    %4532 = vmatpush1.bf16.msra.mxu0 0
    %4533 = vmatprep.subr.bf16.mxu0 0
    %4534 = vmatpush1.bf16.msra.mxu0 0
    %4535 = vmatprep.subr.bf16.mxu0 0
    %4536 = vmatpush1.bf16.msra.mxu0 0
    %4537 = vmatprep.subr.bf16.mxu0 0
    %4538 = vmatpush1.bf16.msra.mxu0 0
    %4539 = vmatprep.subr.bf16.mxu0 0
    %4540 = vmatpush1.bf16.msra.mxu0 0
    %4541 = vmatprep.subr.bf16.mxu0 0
    %4542 = vmatpush1.bf16.msra.mxu0 0
    %4543 = vmatprep.mubr.bf16.mxu0 0
    %4544 = vmatmul.mubr.bf16.gmra.mrb[0].mxu0 %v3630
    %v4545 = vpop.f32.mrb[0].mxu0
    %v4546 = vadd.f32 %v537, %v4545
    %v4547 = vpop.f32.mrb[0].mxu0
    %v4548 = vpop.f32.mrb[0].mxu0
    %v4549 = vpop.f32.mrb[0].mxu0
    %4550 = vdwg.mxu0
    %v4551 = vadd.f32 %v4494, %v4546
    %v4552 = vxor.u32 %v4551, 2147483648
    %v4553 = vmul.f32 %v4552, 1.442695
    %v4554 = vpow.pop %v4553
    %v4555 = vadd.f32 %v4554, 1.0
    %v4556 = vrcp.pop %v4555
    %v4557 = vmul.f32 1.0, %v4556
    %4559 = vrot.lane.b32.xlu0 %v4546, 64
    %v4560 = vpop.permute.xlu0 %4559
    %v4562 = vmul.f32 %v4557, %v4560
    %4564 = vrot.lane.b32.xlu0 %v4562, 64
    %v4565 = vpop.permute.xlu0 %4564
    %v4567 = vadd.f32 %v4494, %v4565
    %v4568 = vtanh.pop %v4567
    %v4569 = vsub.f32 1.0, %v4557
    %4571 = vrot.lane.b32.xlu0 %v4568, 96
    %v4572 = vpop.permute.xlu0 %4571
    %v4574 = vmul.f32 %v4569, %v4572
    %v4575 = vmul.f32 %v4557, %v3608
    %v4576 = vadd.f32 %v4574, %v4575
    %v4577 = vpack.c.bf16 %v4576, %v4576
    %v4578 = vld [vmem:[%s11] sm:$0xf]
    %v4579 = vld [vmem:[%s11 + $0x4] sm:$0xf]
    %v4580 = vld [vmem:[%s11 + $0x8] sm:$0xf]
    %v4581 = vld [vmem:[%s11 + $0xc] sm:$0xf]
    %4583 = vrot.lane.b32.xlu0 %v4577, 96
    %v4584 = vpop.permute.xlu0 %4583
    %v4589 = vunpack.c.l.b16 %v4578
    %v4590 = vunpack.c.l.b16 %v4579
    %v4591 = vunpack.c.l.b16 %v4580
    %v4592 = vunpack.c.l.b16 %v4581
    %v4593 = vpack.c.b16 %v4590, %v4589
    %v4594 = vpack.c.b16 %v4592, %v4591
    %v4598 = vsel %vm195, %v4584, 0
    %4600 = vmatprep.subr.bf16.mxu0 0
    %4601 = vmatpush1.bf16.msra.mxu0 %v4593
    %4602 = vmatprep.subr.bf16.mxu0 0
    %4603 = vmatpush1.bf16.msra.mxu0 %v4594
    %4604 = vmatprep.subr.bf16.mxu0 0
    %4605 = vmatpush1.bf16.msra.mxu0 0
    %4606 = vmatprep.subr.bf16.mxu0 0
    %4607 = vmatpush1.bf16.msra.mxu0 0
    %4608 = vmatprep.subr.bf16.mxu0 0
    %4609 = vmatpush1.bf16.msra.mxu0 0
    %4610 = vmatprep.subr.bf16.mxu0 0
    %4611 = vmatpush1.bf16.msra.mxu0 0
    %4612 = vmatprep.subr.bf16.mxu0 0
    %4613 = vmatpush1.bf16.msra.mxu0 0
    %4614 = vmatprep.subr.bf16.mxu0 0
    %4615 = vmatpush1.bf16.msra.mxu0 0
    %4616 = vmatprep.subr.bf16.mxu0 0
    %4617 = vmatpush1.bf16.msra.mxu0 0
    %4618 = vmatprep.subr.bf16.mxu0 0
    %4619 = vmatpush1.bf16.msra.mxu0 0
    %4620 = vmatprep.subr.bf16.mxu0 0
    %4621 = vmatpush1.bf16.msra.mxu0 0
    %4622 = vmatprep.subr.bf16.mxu0 0
    %4623 = vmatpush1.bf16.msra.mxu0 0
    %4624 = vmatprep.subr.bf16.mxu0 0
    %4625 = vmatpush1.bf16.msra.mxu0 0
    %4626 = vmatprep.subr.bf16.mxu0 0
    %4627 = vmatpush1.bf16.msra.mxu0 0
    %4628 = vmatprep.subr.bf16.mxu0 0
    %4629 = vmatpush1.bf16.msra.mxu0 0
    %4630 = vmatprep.subr.bf16.mxu0 0
    %4631 = vmatpush1.bf16.msra.mxu0 0
    %4632 = vmatprep.mubr.bf16.mxu0 0
    %4633 = vmatmul.mubr.bf16.gmra.mrb[0].mxu0 %v4598
    %v4634 = vpop.f32.mrb[0].mxu0
    %v4635 = vadd.f32 %v629, %v4634
    %v4636 = vpop.f32.mrb[0].mxu0
    %v4637 = vpop.f32.mrb[0].mxu0
    %v4638 = vpop.f32.mrb[0].mxu0
    %4639 = vdwg.mxu0
    %v4642 = vunpack.c.l.s4 1966171168
    %v4643 = vunpack.c.0.s8 %v4642
    %v4644 = vlaneseq
    %v4645 = vshrl.u32 %v4644, 7
    %v4646 = vsub.s32 %v4643, %v4645
    %v4647 = vrot.slane %v4635, %v4646
    %v4648 = vcombine.high %v4647, %v4647
    %v4650 = vunpack.c.l.s4 1966171168
    %v4651 = vunpack.c.0.s8 %v4650
    %v4652 = vlaneseq
    %v4653 = vshrl.u32 %v4652, 7
    %v4654 = vsub.s32 %v4651, %v4653
    %v4655 = vrot.slane %v4647, %v4654
    %v4657 = vunpack.c.l.s4 1966171168
    %v4658 = vunpack.c.0.s8 %v4657
    %v4659 = vlaneseq
    %v4660 = vshrl.u32 %v4659, 7
    %v4661 = vsub.s32 %v4658, %v4660
    %v4662 = vrot.slane %v4648, %v4661
    %v4663 = vlaneseq
    %v4664 = vshrl.u32 %v4663, 7
    %v4665 = vsub.s32 0, %v4664
    %v4666 = vrot.slane %v4655, %v4665
    %v4667 = vlaneseq
    %v4668 = vshrl.u32 %v4667, 7
    %v4669 = vsub.s32 0, %v4668
    %v4670 = vrot.slane %v4662, %v4669
    %v4673 = vadd.f32 %v4666, %v511
    %v4674 = vadd.f32 %v4670, %v512
    %v4675 = vtanh.pop %v4673
    %v4676 = vtanh.pop %v4674
    %v4677 = vmul.f32 %v4675, %v730
    %v4678 = vmul.f32 %v4676, %v730
    %v4679 = vsel %vm195, %v4677, 0.0
    %4680 = vadd.xlane.f32.xlu0 %v4679
    %v4681 = vpop.xlane.xlu0 %4680
    %v4682 = vsel %vm195, %v4678, 0.0
    %4683 = vadd.xlane.f32.xlu0 %v4682
    %v4684 = vpop.xlane.xlu0 %4683
    %v4685 = vadd.f32 %v4681, %v747
    %v4686 = vadd.f32 %v4684, %v754
    %4689 = vset.pattern.permute.xlu0 0
    %4690 = vperm.xlu0 %4689, %v4685
    %v4691 = vpop.permute.xlu0 %4690
    %4692 = vset.pattern.permute.xlu0 0
    %4693 = vperm.xlu0 %4692, %v4686
    %v4694 = vpop.permute.xlu0 %4693
    %v4695 = vlaneseq
    %v4696 = vshrl.u32 %v4695, 7
    %v4697 = vsub.s32 %v514, %v4696
    %v4698 = vrot.slane %v4691, %v4697
    %v4699 = vlaneseq
    %v4700 = vshrl.u32 %v4699, 7
    %v4701 = vsub.s32 %v514, %v4700
    %v4702 = vrot.slane %v4694, %v4701
    %v4703 = vsel %vm775, %v4702, %v4698
    %v4705 = vsel %vm778, %v4703, -inf
    %4706 = vmax.xlane.f32.xlu0 %v4705
    %v4707 = vpop.xlane.xlu0 %4706
    %v4709 = vlaneseq
    %v4710 = vshrl.u32 %v4709, 7
    %v4711 = vsub.s32 0, %v4710
    %v4712 = vrot.slane %v4707, %v4711
    %v4713 = vlaneseq
    %v4714 = vshrl.u32 %v4713, 7
    %v4715 = vsub.s32 1, %v4714
    %v4716 = vrot.slane %v4707, %v4715
    %v4719 = vsub.f32 %v4685, %v4712
    %v4720 = vsub.f32 %v4686, %v4716
    %v4721 = vmul.f32 %v4719, 1.442695
    %v4722 = vpow.pop %v4721
    %v4723 = vmul.f32 %v4720, 1.442695
    %v4724 = vpow.pop %v4723
    %4727 = vset.pattern.permute.xlu0 0
    %4728 = vperm.xlu0 %4727, %v4722
    %v4729 = vpop.permute.xlu0 %4728
    %4730 = vset.pattern.permute.xlu0 0
    %4731 = vperm.xlu0 %4730, %v4724
    %v4732 = vpop.permute.xlu0 %4731
    %v4733 = vlaneseq
    %v4734 = vshrl.u32 %v4733, 7
    %v4735 = vsub.s32 %v514, %v4734
    %v4736 = vrot.slane %v4729, %v4735
    %v4737 = vlaneseq
    %v4738 = vshrl.u32 %v4737, 7
    %v4739 = vsub.s32 %v514, %v4738
    %v4740 = vrot.slane %v4732, %v4739
    %v4741 = vsel %vm775, %v4740, %v4736
    %v4743 = vsel %vm778, %v4741, 0.0
    %4744 = vadd.xlane.f32.xlu0 %v4743
    %v4745 = vpop.xlane.xlu0 %4744
    %v4746 = vrcp.pop %v4745
    %v4748 = vlaneseq
    %v4749 = vshrl.u32 %v4748, 7
    %v4750 = vsub.s32 0, %v4749
    %v4751 = vrot.slane %v4746, %v4750
    %v4752 = vlaneseq
    %v4753 = vshrl.u32 %v4752, 7
    %v4754 = vsub.s32 1, %v4753
    %v4755 = vrot.slane %v4746, %v4754
    %v4758 = vmul.f32 %v4722, %v4751
    %v4759 = vmul.f32 %v4724, %v4755
    %4761 = vset.pattern.permute.xlu0 0
    %4762 = vperm.xlu0 %4761, %v4758
    %v4763 = vpop.permute.xlu0 %4762
    %4766 = vset.pattern.permute.xlu0 0
    %4767 = vperm.xlu0 %4766, %v4759
    %v4768 = vpop.permute.xlu0 %4767
    %v4770 = vmul.f32 %v4763, %v509
    %v4771 = vmul.f32 %v4768, %v510
    %v4772 = vsel %vm195, %v4770, 0.0
    %v4773 = vrot.slane %v4772, 4
    %v4774 = vadd.f32 %v4772, %v4773
    %v4775 = vrot.slane %v4774, 2
    %v4776 = vadd.f32 %v4774, %v4775
    %v4777 = vrot.slane %v4776, 1
    %v4778 = vadd.f32 %v4776, %v4777
    %v4779 = vsel %vm195, %v4771, 0.0
    %v4780 = vrot.slane %v4779, 4
    %v4781 = vadd.f32 %v4779, %v4780
    %v4782 = vrot.slane %v4781, 2
    %v4783 = vadd.f32 %v4781, %v4782
    %v4784 = vrot.slane %v4783, 1
    %v4785 = vadd.f32 %v4783, %v4784
    %4787 = vrot.lane.b32.xlu0 %v4576, 96
    %v4788 = vpop.permute.xlu0 %4787
    %v4792 = vsel %vm775, %v4785, %v4778
    %4793 = vrot.lane.b32.xlu0 %v4792, 32
    %v4794 = vpop.permute.xlu0 %4793
    %v4796 = vsel %vm195, %v4788, %v4794
    %v4797 = vsel %vm871, %v4796, %v4108
    %v4798 = vpack.c.bf16 %v4797, %v4797
    %v4799 = vld [vmem:[#allocation14] sm:$0xff]
    %v4800 = vld [vmem:[#allocation14 + $0x8] sm:$0xf]
    %v4801 = vld [vmem:[#allocation14 + $0xc] sm:$0xff]
    %v4802 = vld [vmem:[#allocation14 + $0x14] sm:$0xf]
    %v4803 = vld [vmem:[#allocation14 + $0x18] sm:$0xff]
    %v4804 = vld [vmem:[#allocation14 + $0x20] sm:$0xf]
    %v4805 = vld [vmem:[#allocation14 + $0x24] sm:$0xff]
    %v4806 = vld [vmem:[#allocation14 + $0x2c] sm:$0xf]
    %v4807 = vld [vmem:[#allocation14 + $0x30] sm:$0xff]
    %v4808 = vld [vmem:[#allocation14 + $0x38] sm:$0xf]
    %v4809 = vld [vmem:[#allocation14 + $0x3c] sm:$0xff]
    %v4810 = vld [vmem:[#allocation14 + $0x44] sm:$0xf]
    %v4811 = vld [vmem:[#allocation14 + $0x48] sm:$0xff]
    %v4812 = vld [vmem:[#allocation14 + $0x50] sm:$0xf]
    %v4813 = vld [vmem:[#allocation14 + $0x54] sm:$0xff]
    %v4814 = vld [vmem:[#allocation14 + $0x5c] sm:$0xf]
    %v4815 = vld [vmem:[#allocation14 + $0x60] sm:$0xff]
    %v4816 = vld [vmem:[#allocation14 + $0x68] sm:$0xf]
    %v4817 = vld [vmem:[#allocation14 + $0x6c] sm:$0xff]
    %v4818 = vld [vmem:[#allocation14 + $0x74] sm:$0xf]
    %v4819 = vld [vmem:[#allocation14 + $0x78] sm:$0xff]
    %v4820 = vld [vmem:[#allocation14 + $0x80] sm:$0xf]
    %v4821 = vld [vmem:[#allocation14 + $0x84] sm:$0xff]
    %v4822 = vld [vmem:[#allocation14 + $0x8c] sm:$0xf]
    %v4823 = vld [vmem:[#allocation14 + $0x90] sm:$0xff]
    %v4824 = vld [vmem:[#allocation14 + $0x98] sm:$0xf]
    %v4825 = vld [vmem:[#allocation14 + $0x9c] sm:$0xff]
    %v4826 = vld [vmem:[#allocation14 + $0xa4] sm:$0xf]
    %v4827 = vld [vmem:[#allocation14 + $0xa8] sm:$0xff]
    %v4828 = vld [vmem:[#allocation14 + $0xb0] sm:$0xf]
    %v4829 = vld [vmem:[#allocation14 + $0xb4] sm:$0xff]
    %v4830 = vld [vmem:[#allocation14 + $0xbc] sm:$0xf]
    %v4863 = vunpack.c.l.b16 %v4799
    %v4864 = vunpack.c.h.b16 %v4799
    %v4865 = vunpack.c.l.b16 %v4800
    %v4866 = vunpack.c.l.b16 %v4801
    %v4867 = vunpack.c.h.b16 %v4801
    %v4868 = vunpack.c.l.b16 %v4802
    %v4869 = vunpack.c.l.b16 %v4803
    %v4870 = vunpack.c.h.b16 %v4803
    %v4871 = vunpack.c.l.b16 %v4804
    %v4872 = vunpack.c.l.b16 %v4805
    %v4873 = vunpack.c.h.b16 %v4805
    %v4874 = vunpack.c.l.b16 %v4806
    %v4875 = vunpack.c.l.b16 %v4807
    %v4876 = vunpack.c.h.b16 %v4807
    %v4877 = vunpack.c.l.b16 %v4808
    %v4878 = vunpack.c.l.b16 %v4809
    %v4879 = vunpack.c.h.b16 %v4809
    %v4880 = vunpack.c.l.b16 %v4810
    %v4881 = vunpack.c.l.b16 %v4811
    %v4882 = vunpack.c.h.b16 %v4811
    %v4883 = vunpack.c.l.b16 %v4812
    %v4884 = vunpack.c.l.b16 %v4813
    %v4885 = vunpack.c.h.b16 %v4813
    %v4886 = vunpack.c.l.b16 %v4814
    %v4887 = vunpack.c.l.b16 %v4815
    %v4888 = vunpack.c.h.b16 %v4815
    %v4889 = vunpack.c.l.b16 %v4816
    %v4890 = vunpack.c.l.b16 %v4817
    %v4891 = vunpack.c.h.b16 %v4817
    %v4892 = vunpack.c.l.b16 %v4818
    %v4893 = vunpack.c.l.b16 %v4819
    %v4894 = vunpack.c.h.b16 %v4819
    %v4895 = vunpack.c.l.b16 %v4820
    %v4896 = vunpack.c.l.b16 %v4821
    %v4897 = vunpack.c.h.b16 %v4821
    %v4898 = vunpack.c.l.b16 %v4822
    %v4899 = vunpack.c.l.b16 %v4823
    %v4900 = vunpack.c.h.b16 %v4823
    %v4901 = vunpack.c.l.b16 %v4824
    %v4902 = vunpack.c.l.b16 %v4825
    %v4903 = vunpack.c.h.b16 %v4825
    %v4904 = vunpack.c.l.b16 %v4826
    %v4905 = vunpack.c.l.b16 %v4827
    %v4906 = vunpack.c.h.b16 %v4827
    %v4907 = vunpack.c.l.b16 %v4828
    %v4908 = vunpack.c.l.b16 %v4829
    %v4909 = vunpack.c.h.b16 %v4829
    %v4910 = vunpack.c.l.b16 %v4830
    %v4911 = vpack.c.b16 %v4866, %v4863
    %v4912 = vpack.c.b16 %v4867, %v4864
    %v4913 = vpack.c.b16 %v4868, %v4865
    %v4914 = vpack.c.b16 %v4872, %v4869
    %v4915 = vpack.c.b16 %v4873, %v4870
    %v4916 = vpack.c.b16 %v4874, %v4871
    %v4917 = vpack.c.b16 %v4878, %v4875
    %v4918 = vpack.c.b16 %v4879, %v4876
    %v4919 = vpack.c.b16 %v4880, %v4877
    %v4920 = vpack.c.b16 %v4884, %v4881
    %v4921 = vpack.c.b16 %v4885, %v4882
    %v4922 = vpack.c.b16 %v4886, %v4883
    %v4923 = vpack.c.b16 %v4890, %v4887
    %v4924 = vpack.c.b16 %v4891, %v4888
    %v4925 = vpack.c.b16 %v4892, %v4889
    %v4926 = vpack.c.b16 %v4896, %v4893
    %v4927 = vpack.c.b16 %v4897, %v4894
    %v4928 = vpack.c.b16 %v4898, %v4895
    %v4929 = vpack.c.b16 %v4902, %v4899
    %v4930 = vpack.c.b16 %v4903, %v4900
    %v4931 = vpack.c.b16 %v4904, %v4901
    %v4932 = vpack.c.b16 %v4908, %v4905
    %v4933 = vpack.c.b16 %v4909, %v4906
    %v4934 = vpack.c.b16 %v4910, %v4907
    %4959 = vmatprep.subr.bf16.mxu0 %v4912
    %4960 = vmatpush1.bf16.msra.mxu0 %v4911
    %4961 = vmatprep.subr.bf16.mxu0 %v4915
    %4962 = vmatpush1.bf16.msra.mxu0 %v4914
    %4963 = vmatprep.subr.bf16.mxu0 %v4918
    %4964 = vmatpush1.bf16.msra.mxu0 %v4917
    %4965 = vmatprep.subr.bf16.mxu0 %v4921
    %4966 = vmatpush1.bf16.msra.mxu0 %v4920
    %4967 = vmatprep.subr.bf16.mxu0 %v4924
    %4968 = vmatpush1.bf16.msra.mxu0 %v4923
    %4969 = vmatprep.subr.bf16.mxu0 %v4927
    %4970 = vmatpush1.bf16.msra.mxu0 %v4926
    %4971 = vmatprep.subr.bf16.mxu0 %v4930
    %4972 = vmatpush1.bf16.msra.mxu0 %v4929
    %4973 = vmatprep.subr.bf16.mxu0 %v4933
    %4974 = vmatpush1.bf16.msra.mxu0 %v4932
    %4975 = vmatprep.subr.bf16.mxu0 0
    %4976 = vmatpush1.bf16.msra.mxu0 0
    %4977 = vmatprep.subr.bf16.mxu0 0
    %4978 = vmatpush1.bf16.msra.mxu0 0
    %4979 = vmatprep.subr.bf16.mxu0 0
    %4980 = vmatpush1.bf16.msra.mxu0 0
    %4981 = vmatprep.subr.bf16.mxu0 0
    %4982 = vmatpush1.bf16.msra.mxu0 0
    %4983 = vmatprep.subr.bf16.mxu0 0
    %4984 = vmatpush1.bf16.msra.mxu0 0
    %4985 = vmatprep.subr.bf16.mxu0 0
    %4986 = vmatpush1.bf16.msra.mxu0 0
    %4987 = vmatprep.subr.bf16.mxu0 0
    %4988 = vmatpush1.bf16.msra.mxu0 0
    %4989 = vmatprep.subr.bf16.mxu0 0
    %4990 = vmatpush1.bf16.msra.mxu0 0
    %4991 = vmatprep.mubr.bf16.mxu0 0
    %4992 = vmatmul.mubr.bf16.gmra.mrb[0].mxu0 %v4798
    %v4993 = vpop.f32.mrb[0].mxu0
    %v4994 = vadd.f32 0.0, %v4993
    %v4995 = vpop.f32.mrb[0].mxu0
    %v4996 = vadd.f32 0.0, %v4995
    %v4997 = vpop.f32.mrb[0].mxu0
    %v4998 = vpop.f32.mrb[0].mxu0
    %4999 = vdwg.mxu0
    %5000 = vmatprep.subr.bf16.mxu0 0
    %5001 = vmatpush1.bf16.msra.mxu0 %v4913
    %5002 = vmatprep.subr.bf16.mxu0 0
    %5003 = vmatpush1.bf16.msra.mxu0 %v4916
    %5004 = vmatprep.subr.bf16.mxu0 0
    %5005 = vmatpush1.bf16.msra.mxu0 %v4919
    %5006 = vmatprep.subr.bf16.mxu0 0
    %5007 = vmatpush1.bf16.msra.mxu0 %v4922
    %5008 = vmatprep.subr.bf16.mxu0 0
    %5009 = vmatpush1.bf16.msra.mxu0 %v4925
    %5010 = vmatprep.subr.bf16.mxu0 0
    %5011 = vmatpush1.bf16.msra.mxu0 %v4928
    %5012 = vmatprep.subr.bf16.mxu0 0
    %5013 = vmatpush1.bf16.msra.mxu0 %v4931
    %5014 = vmatprep.subr.bf16.mxu0 0
    %5015 = vmatpush1.bf16.msra.mxu0 %v4934
    %5016 = vmatprep.subr.bf16.mxu0 0
    %5017 = vmatpush1.bf16.msra.mxu0 0
    %5018 = vmatprep.subr.bf16.mxu0 0
    %5019 = vmatpush1.bf16.msra.mxu0 0
    %5020 = vmatprep.subr.bf16.mxu0 0
    %5021 = vmatpush1.bf16.msra.mxu0 0
    %5022 = vmatprep.subr.bf16.mxu0 0
    %5023 = vmatpush1.bf16.msra.mxu0 0
    %5024 = vmatprep.subr.bf16.mxu0 0
    %5025 = vmatpush1.bf16.msra.mxu0 0
    %5026 = vmatprep.subr.bf16.mxu0 0
    %5027 = vmatpush1.bf16.msra.mxu0 0
    %5028 = vmatprep.subr.bf16.mxu0 0
    %5029 = vmatpush1.bf16.msra.mxu0 0
    %5030 = vmatprep.subr.bf16.mxu0 0
    %5031 = vmatpush1.bf16.msra.mxu0 0
    %5032 = vmatprep.mubr.bf16.mxu0 0
    %5033 = vmatmul.mubr.bf16.gmra.mrb[0].mxu0 %v4798
    %v5034 = vpop.f32.mrb[0].mxu0
    %v5035 = vadd.f32 0.0, %v5034
    %v5036 = vpop.f32.mrb[0].mxu0
    %v5037 = vpop.f32.mrb[0].mxu0
    %v5038 = vpop.f32.mrb[0].mxu0
    %5039 = vdwg.mxu0
    %v5040 = vadd.f32 %v4994, %v1119
    %v5041 = vadd.f32 %v4996, %v1123
    %v5042 = vadd.f32 %v4996, %v1138
    %v5043 = vadd.f32 %v5035, %v1141
    %5045 = vrot.lane.b32.xlu0 %v5042, 64
    %v5046 = vpop.permute.xlu0 %5045
    %v5048 = vadd.f32 %v5040, %v5046
    %v5049 = vxor.u32 %v5048, 2147483648
    %v5050 = vmul.f32 %v5049, 1.442695
    %v5051 = vpow.pop %v5050
    %v5052 = vadd.f32 %v5051, 1.0
    %v5053 = vrcp.pop %v5052
    %v5054 = vmul.f32 1.0, %v5053
    %5056 = vrot.lane.b32.xlu0 %v5043, 64
    %v5057 = vpop.permute.xlu0 %5056
    %v5059 = vadd.f32 %v5040, %v5057
    %v5060 = vxor.u32 %v5059, 2147483648
    %v5061 = vmul.f32 %v5060, 1.442695
    %v5062 = vpow.pop %v5061
    %v5063 = vadd.f32 %v5062, 1.0
    %v5064 = vrcp.pop %v5063
    %v5065 = vmul.f32 1.0, %v5064
    %v5066 = vmul.f32 %v5054, %v5057
    %v5067 = vadd.f32 %v5041, %v5066
    %v5068 = vtanh.pop %v5067
    %v5069 = vsub.f32 1.0, %v5065
    %5071 = vrot.lane.b32.xlu0 %v5068, 64
    %v5072 = vpop.permute.xlu0 %5071
    %v5074 = vmul.f32 %v5069, %v5072
    %v5075 = vmul.f32 %v5065, %v4108
    %v5076 = vadd.f32 %v5074, %v5075
    %5078 = vrot.lane.b32.xlu0 %v5076, 64
    %v5079 = vpop.permute.xlu0 %5078
    %v5081 = vadd.f32 %v4796, %v5079
    %v5082 = vsel %vm871, %v5081, %v4393
    %v5083 = vpack.c.bf16 %v5082, %v5082
    %v5084 = vld [vmem:[#allocation16] sm:$0xff]
    %v5085 = vld [vmem:[#allocation16 + $0x8] sm:$0xf]
    %v5086 = vld [vmem:[#allocation16 + $0xc] sm:$0xff]
    %v5087 = vld [vmem:[#allocation16 + $0x14] sm:$0xf]
    %v5088 = vld [vmem:[#allocation16 + $0x18] sm:$0xff]
    %v5089 = vld [vmem:[#allocation16 + $0x20] sm:$0xf]
    %v5090 = vld [vmem:[#allocation16 + $0x24] sm:$0xff]
    %v5091 = vld [vmem:[#allocation16 + $0x2c] sm:$0xf]
    %v5092 = vld [vmem:[#allocation16 + $0x30] sm:$0xff]
    %v5093 = vld [vmem:[#allocation16 + $0x38] sm:$0xf]
    %v5094 = vld [vmem:[#allocation16 + $0x3c] sm:$0xff]
    %v5095 = vld [vmem:[#allocation16 + $0x44] sm:$0xf]
    %v5096 = vld [vmem:[#allocation16 + $0x48] sm:$0xff]
    %v5097 = vld [vmem:[#allocation16 + $0x50] sm:$0xf]
    %v5098 = vld [vmem:[#allocation16 + $0x54] sm:$0xff]
    %v5099 = vld [vmem:[#allocation16 + $0x5c] sm:$0xf]
    %v5100 = vld [vmem:[#allocation16 + $0x60] sm:$0xff]
    %v5101 = vld [vmem:[#allocation16 + $0x68] sm:$0xf]
    %v5102 = vld [vmem:[#allocation16 + $0x6c] sm:$0xff]
    %v5103 = vld [vmem:[#allocation16 + $0x74] sm:$0xf]
    %v5104 = vld [vmem:[#allocation16 + $0x78] sm:$0xff]
    %v5105 = vld [vmem:[#allocation16 + $0x80] sm:$0xf]
    %v5106 = vld [vmem:[#allocation16 + $0x84] sm:$0xff]
    %v5107 = vld [vmem:[#allocation16 + $0x8c] sm:$0xf]
    %v5108 = vld [vmem:[#allocation16 + $0x90] sm:$0xff]
    %v5109 = vld [vmem:[#allocation16 + $0x98] sm:$0xf]
    %v5110 = vld [vmem:[#allocation16 + $0x9c] sm:$0xff]
    %v5111 = vld [vmem:[#allocation16 + $0xa4] sm:$0xf]
    %v5112 = vld [vmem:[#allocation16 + $0xa8] sm:$0xff]
    %v5113 = vld [vmem:[#allocation16 + $0xb0] sm:$0xf]
    %v5114 = vld [vmem:[#allocation16 + $0xb4] sm:$0xff]
    %v5115 = vld [vmem:[#allocation16 + $0xbc] sm:$0xf]
    %v5148 = vunpack.c.l.b16 %v5084
    %v5149 = vunpack.c.h.b16 %v5084
    %v5150 = vunpack.c.l.b16 %v5085
    %v5151 = vunpack.c.l.b16 %v5086
    %v5152 = vunpack.c.h.b16 %v5086
    %v5153 = vunpack.c.l.b16 %v5087
    %v5154 = vunpack.c.l.b16 %v5088
    %v5155 = vunpack.c.h.b16 %v5088
    %v5156 = vunpack.c.l.b16 %v5089
    %v5157 = vunpack.c.l.b16 %v5090
    %v5158 = vunpack.c.h.b16 %v5090
    %v5159 = vunpack.c.l.b16 %v5091
    %v5160 = vunpack.c.l.b16 %v5092
    %v5161 = vunpack.c.h.b16 %v5092
    %v5162 = vunpack.c.l.b16 %v5093
    %v5163 = vunpack.c.l.b16 %v5094
    %v5164 = vunpack.c.h.b16 %v5094
    %v5165 = vunpack.c.l.b16 %v5095
    %v5166 = vunpack.c.l.b16 %v5096
    %v5167 = vunpack.c.h.b16 %v5096
    %v5168 = vunpack.c.l.b16 %v5097
    %v5169 = vunpack.c.l.b16 %v5098
    %v5170 = vunpack.c.h.b16 %v5098
    %v5171 = vunpack.c.l.b16 %v5099
    %v5172 = vunpack.c.l.b16 %v5100
    %v5173 = vunpack.c.h.b16 %v5100
    %v5174 = vunpack.c.l.b16 %v5101
    %v5175 = vunpack.c.l.b16 %v5102
    %v5176 = vunpack.c.h.b16 %v5102
    %v5177 = vunpack.c.l.b16 %v5103
    %v5178 = vunpack.c.l.b16 %v5104
    %v5179 = vunpack.c.h.b16 %v5104
    %v5180 = vunpack.c.l.b16 %v5105
    %v5181 = vunpack.c.l.b16 %v5106
    %v5182 = vunpack.c.h.b16 %v5106
    %v5183 = vunpack.c.l.b16 %v5107
    %v5184 = vunpack.c.l.b16 %v5108
    %v5185 = vunpack.c.h.b16 %v5108
    %v5186 = vunpack.c.l.b16 %v5109
    %v5187 = vunpack.c.l.b16 %v5110
    %v5188 = vunpack.c.h.b16 %v5110
    %v5189 = vunpack.c.l.b16 %v5111
    %v5190 = vunpack.c.l.b16 %v5112
    %v5191 = vunpack.c.h.b16 %v5112
    %v5192 = vunpack.c.l.b16 %v5113
    %v5193 = vunpack.c.l.b16 %v5114
    %v5194 = vunpack.c.h.b16 %v5114
    %v5195 = vunpack.c.l.b16 %v5115
    %v5196 = vpack.c.b16 %v5151, %v5148
    %v5197 = vpack.c.b16 %v5152, %v5149
    %v5198 = vpack.c.b16 %v5153, %v5150
    %v5199 = vpack.c.b16 %v5157, %v5154
    %v5200 = vpack.c.b16 %v5158, %v5155
    %v5201 = vpack.c.b16 %v5159, %v5156
    %v5202 = vpack.c.b16 %v5163, %v5160
    %v5203 = vpack.c.b16 %v5164, %v5161
    %v5204 = vpack.c.b16 %v5165, %v5162
    %v5205 = vpack.c.b16 %v5169, %v5166
    %v5206 = vpack.c.b16 %v5170, %v5167
    %v5207 = vpack.c.b16 %v5171, %v5168
    %v5208 = vpack.c.b16 %v5175, %v5172
    %v5209 = vpack.c.b16 %v5176, %v5173
    %v5210 = vpack.c.b16 %v5177, %v5174
    %v5211 = vpack.c.b16 %v5181, %v5178
    %v5212 = vpack.c.b16 %v5182, %v5179
    %v5213 = vpack.c.b16 %v5183, %v5180
    %v5214 = vpack.c.b16 %v5187, %v5184
    %v5215 = vpack.c.b16 %v5188, %v5185
    %v5216 = vpack.c.b16 %v5189, %v5186
    %v5217 = vpack.c.b16 %v5193, %v5190
    %v5218 = vpack.c.b16 %v5194, %v5191
    %v5219 = vpack.c.b16 %v5195, %v5192
    %5244 = vmatprep.subr.bf16.mxu0 %v5197
    %5245 = vmatpush1.bf16.msra.mxu0 %v5196
    %5246 = vmatprep.subr.bf16.mxu0 %v5200
    %5247 = vmatpush1.bf16.msra.mxu0 %v5199
    %5248 = vmatprep.subr.bf16.mxu0 %v5203
    %5249 = vmatpush1.bf16.msra.mxu0 %v5202
    %5250 = vmatprep.subr.bf16.mxu0 %v5206
    %5251 = vmatpush1.bf16.msra.mxu0 %v5205
    %5252 = vmatprep.subr.bf16.mxu0 %v5209
    %5253 = vmatpush1.bf16.msra.mxu0 %v5208
    %5254 = vmatprep.subr.bf16.mxu0 %v5212
    %5255 = vmatpush1.bf16.msra.mxu0 %v5211
    %5256 = vmatprep.subr.bf16.mxu0 %v5215
    %5257 = vmatpush1.bf16.msra.mxu0 %v5214
    %5258 = vmatprep.subr.bf16.mxu0 %v5218
    %5259 = vmatpush1.bf16.msra.mxu0 %v5217
    %5260 = vmatprep.subr.bf16.mxu0 0
    %5261 = vmatpush1.bf16.msra.mxu0 0
    %5262 = vmatprep.subr.bf16.mxu0 0
    %5263 = vmatpush1.bf16.msra.mxu0 0
    %5264 = vmatprep.subr.bf16.mxu0 0
    %5265 = vmatpush1.bf16.msra.mxu0 0
    %5266 = vmatprep.subr.bf16.mxu0 0
    %5267 = vmatpush1.bf16.msra.mxu0 0
    %5268 = vmatprep.subr.bf16.mxu0 0
    %5269 = vmatpush1.bf16.msra.mxu0 0
    %5270 = vmatprep.subr.bf16.mxu0 0
    %5271 = vmatpush1.bf16.msra.mxu0 0
    %5272 = vmatprep.subr.bf16.mxu0 0
    %5273 = vmatpush1.bf16.msra.mxu0 0
    %5274 = vmatprep.subr.bf16.mxu0 0
    %5275 = vmatpush1.bf16.msra.mxu0 0
    %5276 = vmatprep.mubr.bf16.mxu0 0
    %5277 = vmatmul.mubr.bf16.gmra.mrb[0].mxu0 %v5083
    %v5278 = vpop.f32.mrb[0].mxu0
    %v5279 = vadd.f32 0.0, %v5278
    %v5280 = vpop.f32.mrb[0].mxu0
    %v5281 = vadd.f32 0.0, %v5280
    %v5282 = vpop.f32.mrb[0].mxu0
    %v5283 = vpop.f32.mrb[0].mxu0
    %5284 = vdwg.mxu0
    %5285 = vmatprep.subr.bf16.mxu0 0
    %5286 = vmatpush1.bf16.msra.mxu0 %v5198
    %5287 = vmatprep.subr.bf16.mxu0 0
    %5288 = vmatpush1.bf16.msra.mxu0 %v5201
    %5289 = vmatprep.subr.bf16.mxu0 0
    %5290 = vmatpush1.bf16.msra.mxu0 %v5204
    %5291 = vmatprep.subr.bf16.mxu0 0
    %5292 = vmatpush1.bf16.msra.mxu0 %v5207
    %5293 = vmatprep.subr.bf16.mxu0 0
    %5294 = vmatpush1.bf16.msra.mxu0 %v5210
    %5295 = vmatprep.subr.bf16.mxu0 0
    %5296 = vmatpush1.bf16.msra.mxu0 %v5213
    %5297 = vmatprep.subr.bf16.mxu0 0
    %5298 = vmatpush1.bf16.msra.mxu0 %v5216
    %5299 = vmatprep.subr.bf16.mxu0 0
    %5300 = vmatpush1.bf16.msra.mxu0 %v5219
    %5301 = vmatprep.subr.bf16.mxu0 0
    %5302 = vmatpush1.bf16.msra.mxu0 0
    %5303 = vmatprep.subr.bf16.mxu0 0
    %5304 = vmatpush1.bf16.msra.mxu0 0
    %5305 = vmatprep.subr.bf16.mxu0 0
    %5306 = vmatpush1.bf16.msra.mxu0 0
    %5307 = vmatprep.subr.bf16.mxu0 0
    %5308 = vmatpush1.bf16.msra.mxu0 0
    %5309 = vmatprep.subr.bf16.mxu0 0
    %5310 = vmatpush1.bf16.msra.mxu0 0
    %5311 = vmatprep.subr.bf16.mxu0 0
    %5312 = vmatpush1.bf16.msra.mxu0 0
    %5313 = vmatprep.subr.bf16.mxu0 0
    %5314 = vmatpush1.bf16.msra.mxu0 0
    %5315 = vmatprep.subr.bf16.mxu0 0
    %5316 = vmatpush1.bf16.msra.mxu0 0
    %5317 = vmatprep.mubr.bf16.mxu0 0
    %5318 = vmatmul.mubr.bf16.gmra.mrb[0].mxu0 %v5083
    %v5319 = vpop.f32.mrb[0].mxu0
    %v5320 = vadd.f32 0.0, %v5319
    %v5321 = vpop.f32.mrb[0].mxu0
    %v5322 = vpop.f32.mrb[0].mxu0
    %v5323 = vpop.f32.mrb[0].mxu0
    %5324 = vdwg.mxu0
    %v5325 = vadd.f32 %v5279, %v1431
    %v5326 = vadd.f32 %v5281, %v1435
    %v5327 = vadd.f32 %v5281, %v1450
    %v5328 = vadd.f32 %v5320, %v1453
    %5330 = vrot.lane.b32.xlu0 %v5327, 64
    %v5331 = vpop.permute.xlu0 %5330
    %v5333 = vadd.f32 %v5325, %v5331
    %v5334 = vxor.u32 %v5333, 2147483648
    %v5335 = vmul.f32 %v5334, 1.442695
    %v5336 = vpow.pop %v5335
    %v5337 = vadd.f32 %v5336, 1.0
    %v5338 = vrcp.pop %v5337
    %v5339 = vmul.f32 1.0, %v5338
    %5341 = vrot.lane.b32.xlu0 %v5328, 64
    %v5342 = vpop.permute.xlu0 %5341
    %v5344 = vadd.f32 %v5325, %v5342
    %v5345 = vxor.u32 %v5344, 2147483648
    %v5346 = vmul.f32 %v5345, 1.442695
    %v5347 = vpow.pop %v5346
    %v5348 = vadd.f32 %v5347, 1.0
    %v5349 = vrcp.pop %v5348
    %v5350 = vmul.f32 1.0, %v5349
    %v5351 = vmul.f32 %v5339, %v5342
    %v5352 = vadd.f32 %v5326, %v5351
    %v5353 = vtanh.pop %v5352
    %v5354 = vsub.f32 1.0, %v5350
    %5356 = vrot.lane.b32.xlu0 %v5353, 64
    %v5357 = vpop.permute.xlu0 %5356
    %v5359 = vmul.f32 %v5354, %v5357
    %v5360 = vmul.f32 %v5350, %v4393
    %v5361 = vadd.f32 %v5359, %v5360
    %5363 = vrot.lane.b32.xlu0 %v5361, 64
    %v5364 = vpop.permute.xlu0 %5363
    %v5366 = vadd.f32 %v5081, %v5364
    %5367 = vst.msk [vmem:[#allocation4 + $0x8] sm:$0x3] %vm1496, %v5366
    %v5368 = vcombine.high %v4758, %v4758
    %v5370 = vunpack.c.l.s4 1983009808
    %v5371 = vunpack.c.0.s8 %v5370
    %v5372 = vlaneseq
    %v5373 = vshrl.u32 %v5372, 7
    %v5374 = vsub.s32 %v5371, %v5373
    %v5375 = vrot.slane %v4758, %v5374
    %v5377 = vunpack.c.l.s4 1983009808
    %v5378 = vunpack.c.0.s8 %v5377
    %v5379 = vlaneseq
    %v5380 = vshrl.u32 %v5379, 7
    %v5381 = vsub.s32 %v5378, %v5380
    %v5382 = vrot.slane %v5368, %v5381
    %v5383 = vcombine.high %v5375, %v5375
    %v5384 = vcombine.high %v5382, %v5382
    %v5385 = vcombine.high %v4759, %v4759
    %v5387 = vunpack.c.l.s4 1983009808
    %v5388 = vunpack.c.0.s8 %v5387
    %v5389 = vlaneseq
    %v5390 = vshrl.u32 %v5389, 7
    %v5391 = vsub.s32 %v5388, %v5390
    %v5392 = vrot.slane %v4759, %v5391
    %v5394 = vunpack.c.l.s4 1983009808
    %v5395 = vunpack.c.0.s8 %v5394
    %v5396 = vlaneseq
    %v5397 = vshrl.u32 %v5396, 7
    %v5398 = vsub.s32 %v5395, %v5397
    %v5399 = vrot.slane %v5385, %v5398
    %v5400 = vcombine.high %v5392, %v5392
    %v5401 = vcombine.high %v5399, %v5399
    %v5402 = vcombine.low %v5375, %v5383
    %v5403 = vcombine.low %v5382, %v5384
    %v5405 = vunpack.c.l.s4 1983009808
    %v5406 = vunpack.c.0.s8 %v5405
    %v5407 = vlaneseq
    %v5408 = vshrl.u32 %v5407, 7
    %v5409 = vsub.s32 %v5406, %v5408
    %v5410 = vrot.slane %v5402, %v5409
    %v5412 = vunpack.c.l.s4 1983009808
    %v5413 = vunpack.c.0.s8 %v5412
    %v5414 = vlaneseq
    %v5415 = vshrl.u32 %v5414, 7
    %v5416 = vsub.s32 %v5413, %v5415
    %v5417 = vrot.slane %v5403, %v5416
    %v5418 = vcombine.low %v5410, %v5417
    %v5419 = vcombine.low %v5392, %v5400
    %v5420 = vcombine.low %v5399, %v5401
    %v5422 = vunpack.c.l.s4 1983009808
    %v5423 = vunpack.c.0.s8 %v5422
    %v5424 = vlaneseq
    %v5425 = vshrl.u32 %v5424, 7
    %v5426 = vsub.s32 %v5423, %v5425
    %v5427 = vrot.slane %v5419, %v5426
    %v5429 = vunpack.c.l.s4 1983009808
    %v5430 = vunpack.c.0.s8 %v5429
    %v5431 = vlaneseq
    %v5432 = vshrl.u32 %v5431, 7
    %v5433 = vsub.s32 %v5430, %v5432
    %v5434 = vrot.slane %v5420, %v5433
    %v5435 = vcombine.low %v5427, %v5434
    %5436 = vset.pattern.permute.xlu0 0
    %5437 = vperm.xlu0 %5436, %v5418
    %v5438 = vpop.permute.xlu0 %5437
    %5439 = vset.pattern.permute.xlu0 0
    %5440 = vperm.xlu0 %5439, %v5435
    %v5441 = vpop.permute.xlu0 %5440
    %v5442 = vadd.s32 %v514, 4294967264
    %v5443 = vlaneseq
    %v5444 = vshrl.u32 %v5443, 7
    %v5445 = vsub.s32 %v5442, %v5444
    %v5446 = vrot.slane %v5438, %v5445
    %v5447 = vlaneseq
    %v5448 = vshrl.u32 %v5447, 7
    %v5449 = vsub.s32 %v5442, %v5448
    %v5450 = vrot.slane %v5441, %v5449
    %v5451 = vsel %vm775, %v5450, %v5446
    %v5453 = vunpack.c.l.s4 1983009808
    %v5454 = vunpack.c.0.s8 %v5453
    %v5455 = vlaneseq
    %v5456 = vshrl.u32 %v5455, 7
    %v5457 = vsub.s32 %v5454, %v5456
    %v5458 = vrot.slane %v5451, %v5457
    %vm5460 = vcmask 320768
    %5461 = vst.msk [vmem:[#allocation18] sm:$0x3] %vm5460, %v5458
    %v5462 = vld [vmem:[#allocation2 + $0xa] sm:$0x3]
    %v5463 = vld [vmem:[%s8] sm:$0xf]
    %v5464 = vld [vmem:[%s8 + $0x4] sm:$0xf]
    %v5465 = vld [vmem:[%s8 + $0x8] sm:$0xf]
    %v5466 = vld [vmem:[%s8 + $0xc] sm:$0xf]
    %v5471 = vunpack.c.l.b16 %v5463
    %v5472 = vunpack.c.l.b16 %v5464
    %v5473 = vunpack.c.l.b16 %v5465
    %v5474 = vunpack.c.l.b16 %v5466
    %v5475 = vpack.c.b16 %v5472, %v5471
    %v5476 = vpack.c.b16 %v5474, %v5473
    %5479 = vmatprep.subr.bf16.mxu0 0
    %5480 = vmatpush1.bf16.msra.mxu0 %v5475
    %5481 = vmatprep.subr.bf16.mxu0 0
    %5482 = vmatpush1.bf16.msra.mxu0 %v5476
    %5483 = vmatprep.subr.bf16.mxu0 0
    %5484 = vmatpush1.bf16.msra.mxu0 0
    %5485 = vmatprep.subr.bf16.mxu0 0
    %5486 = vmatpush1.bf16.msra.mxu0 0
    %5487 = vmatprep.subr.bf16.mxu0 0
    %5488 = vmatpush1.bf16.msra.mxu0 0
    %5489 = vmatprep.subr.bf16.mxu0 0
    %5490 = vmatpush1.bf16.msra.mxu0 0
    %5491 = vmatprep.subr.bf16.mxu0 0
    %5492 = vmatpush1.bf16.msra.mxu0 0
    %5493 = vmatprep.subr.bf16.mxu0 0
    %5494 = vmatpush1.bf16.msra.mxu0 0
    %5495 = vmatprep.subr.bf16.mxu0 0
    %5496 = vmatpush1.bf16.msra.mxu0 0
    %5497 = vmatprep.subr.bf16.mxu0 0
    %5498 = vmatpush1.bf16.msra.mxu0 0
    %5499 = vmatprep.subr.bf16.mxu0 0
    %5500 = vmatpush1.bf16.msra.mxu0 0
    %5501 = vmatprep.subr.bf16.mxu0 0
    %5502 = vmatpush1.bf16.msra.mxu0 0
    %5503 = vmatprep.subr.bf16.mxu0 0
    %5504 = vmatpush1.bf16.msra.mxu0 0
    %5505 = vmatprep.subr.bf16.mxu0 0
    %5506 = vmatpush1.bf16.msra.mxu0 0
    %5507 = vmatprep.subr.bf16.mxu0 0
    %5508 = vmatpush1.bf16.msra.mxu0 0
    %5509 = vmatprep.subr.bf16.mxu0 0
    %5510 = vmatpush1.bf16.msra.mxu0 0
    %5511 = vmatprep.mubr.bf16.mxu0 0
    %5512 = vmatmul.mubr.bf16.gmra.mrb[0].mxu0 %v4598
    %v5513 = vpop.f32.mrb[0].mxu0
    %v5514 = vadd.f32 %v537, %v5513
    %v5515 = vpop.f32.mrb[0].mxu0
    %v5516 = vpop.f32.mrb[0].mxu0
    %v5517 = vpop.f32.mrb[0].mxu0
    %5518 = vdwg.mxu0
    %v5519 = vadd.f32 %v5462, %v5514
    %v5520 = vxor.u32 %v5519, 2147483648
    %v5521 = vmul.f32 %v5520, 1.442695
    %v5522 = vpow.pop %v5521
    %v5523 = vadd.f32 %v5522, 1.0
    %v5524 = vrcp.pop %v5523
    %v5525 = vmul.f32 1.0, %v5524
    %5527 = vrot.lane.b32.xlu0 %v5514, 64
    %v5528 = vpop.permute.xlu0 %5527
    %v5530 = vmul.f32 %v5525, %v5528
    %5532 = vrot.lane.b32.xlu0 %v5530, 64
    %v5533 = vpop.permute.xlu0 %5532
    %v5535 = vadd.f32 %v5462, %v5533
    %v5536 = vtanh.pop %v5535
    %v5537 = vsub.f32 1.0, %v5525
    %5539 = vrot.lane.b32.xlu0 %v5536, 96
    %v5540 = vpop.permute.xlu0 %5539
    %v5542 = vmul.f32 %v5537, %v5540
    %v5543 = vmul.f32 %v5525, %v4576
    %v5544 = vadd.f32 %v5542, %v5543
    %v5545 = vpack.c.bf16 %v5544, %v5544
    %v5546 = vld [vmem:[%s11] sm:$0xf]
    %v5547 = vld [vmem:[%s11 + $0x4] sm:$0xf]
    %v5548 = vld [vmem:[%s11 + $0x8] sm:$0xf]
    %v5549 = vld [vmem:[%s11 + $0xc] sm:$0xf]
    %5551 = vrot.lane.b32.xlu0 %v5545, 96
    %v5552 = vpop.permute.xlu0 %5551
    %v5557 = vunpack.c.l.b16 %v5546
    %v5558 = vunpack.c.l.b16 %v5547
    %v5559 = vunpack.c.l.b16 %v5548
    %v5560 = vunpack.c.l.b16 %v5549
    %v5561 = vpack.c.b16 %v5558, %v5557
    %v5562 = vpack.c.b16 %v5560, %v5559
    %v5566 = vsel %vm195, %v5552, 0
    %5568 = vmatprep.subr.bf16.mxu0 0
    %5569 = vmatpush1.bf16.msra.mxu0 %v5561
    %5570 = vmatprep.subr.bf16.mxu0 0
    %5571 = vmatpush1.bf16.msra.mxu0 %v5562
    %5572 = vmatprep.subr.bf16.mxu0 0
    %5573 = vmatpush1.bf16.msra.mxu0 0
    %5574 = vmatprep.subr.bf16.mxu0 0
    %5575 = vmatpush1.bf16.msra.mxu0 0
    %5576 = vmatprep.subr.bf16.mxu0 0
    %5577 = vmatpush1.bf16.msra.mxu0 0
    %5578 = vmatprep.subr.bf16.mxu0 0
    %5579 = vmatpush1.bf16.msra.mxu0 0
    %5580 = vmatprep.subr.bf16.mxu0 0
    %5581 = vmatpush1.bf16.msra.mxu0 0
    %5582 = vmatprep.subr.bf16.mxu0 0
    %5583 = vmatpush1.bf16.msra.mxu0 0
    %5584 = vmatprep.subr.bf16.mxu0 0
    %5585 = vmatpush1.bf16.msra.mxu0 0
    %5586 = vmatprep.subr.bf16.mxu0 0
    %5587 = vmatpush1.bf16.msra.mxu0 0
    %5588 = vmatprep.subr.bf16.mxu0 0
    %5589 = vmatpush1.bf16.msra.mxu0 0
    %5590 = vmatprep.subr.bf16.mxu0 0
    %5591 = vmatpush1.bf16.msra.mxu0 0
    %5592 = vmatprep.subr.bf16.mxu0 0
    %5593 = vmatpush1.bf16.msra.mxu0 0
    %5594 = vmatprep.subr.bf16.mxu0 0
    %5595 = vmatpush1.bf16.msra.mxu0 0
    %5596 = vmatprep.subr.bf16.mxu0 0
    %5597 = vmatpush1.bf16.msra.mxu0 0
    %5598 = vmatprep.subr.bf16.mxu0 0
    %5599 = vmatpush1.bf16.msra.mxu0 0
    %5600 = vmatprep.mubr.bf16.mxu0 0
    %5601 = vmatmul.mubr.bf16.gmra.mrb[0].mxu0 %v5566
    %v5602 = vpop.f32.mrb[0].mxu0
    %v5603 = vadd.f32 %v629, %v5602
    %v5604 = vpop.f32.mrb[0].mxu0
    %v5605 = vpop.f32.mrb[0].mxu0
    %v5606 = vpop.f32.mrb[0].mxu0
    %5607 = vdwg.mxu0
    %v5610 = vunpack.c.l.s4 1966171168
    %v5611 = vunpack.c.0.s8 %v5610
    %v5612 = vlaneseq
    %v5613 = vshrl.u32 %v5612, 7
    %v5614 = vsub.s32 %v5611, %v5613
    %v5615 = vrot.slane %v5603, %v5614
    %v5616 = vcombine.high %v5615, %v5615
    %v5618 = vunpack.c.l.s4 1966171168
    %v5619 = vunpack.c.0.s8 %v5618
    %v5620 = vlaneseq
    %v5621 = vshrl.u32 %v5620, 7
    %v5622 = vsub.s32 %v5619, %v5621
    %v5623 = vrot.slane %v5615, %v5622
    %v5625 = vunpack.c.l.s4 1966171168
    %v5626 = vunpack.c.0.s8 %v5625
    %v5627 = vlaneseq
    %v5628 = vshrl.u32 %v5627, 7
    %v5629 = vsub.s32 %v5626, %v5628
    %v5630 = vrot.slane %v5616, %v5629
    %v5631 = vlaneseq
    %v5632 = vshrl.u32 %v5631, 7
    %v5633 = vsub.s32 0, %v5632
    %v5634 = vrot.slane %v5623, %v5633
    %v5635 = vlaneseq
    %v5636 = vshrl.u32 %v5635, 7
    %v5637 = vsub.s32 0, %v5636
    %v5638 = vrot.slane %v5630, %v5637
    %v5641 = vadd.f32 %v5634, %v511
    %v5642 = vadd.f32 %v5638, %v512
    %v5643 = vtanh.pop %v5641
    %v5644 = vtanh.pop %v5642
    %v5645 = vmul.f32 %v5643, %v730
    %v5646 = vmul.f32 %v5644, %v730
    %v5647 = vsel %vm195, %v5645, 0.0
    %5648 = vadd.xlane.f32.xlu0 %v5647
    %v5649 = vpop.xlane.xlu0 %5648
    %v5650 = vsel %vm195, %v5646, 0.0
    %5651 = vadd.xlane.f32.xlu0 %v5650
    %v5652 = vpop.xlane.xlu0 %5651
    %v5653 = vadd.f32 %v5649, %v747
    %v5654 = vadd.f32 %v5652, %v754
    %5657 = vset.pattern.permute.xlu0 0
    %5658 = vperm.xlu0 %5657, %v5653
    %v5659 = vpop.permute.xlu0 %5658
    %5660 = vset.pattern.permute.xlu0 0
    %5661 = vperm.xlu0 %5660, %v5654
    %v5662 = vpop.permute.xlu0 %5661
    %v5663 = vlaneseq
    %v5664 = vshrl.u32 %v5663, 7
    %v5665 = vsub.s32 %v514, %v5664
    %v5666 = vrot.slane %v5659, %v5665
    %v5667 = vlaneseq
    %v5668 = vshrl.u32 %v5667, 7
    %v5669 = vsub.s32 %v514, %v5668
    %v5670 = vrot.slane %v5662, %v5669
    %v5671 = vsel %vm775, %v5670, %v5666
    %v5673 = vsel %vm778, %v5671, -inf
    %5674 = vmax.xlane.f32.xlu0 %v5673
    %v5675 = vpop.xlane.xlu0 %5674
    %v5677 = vlaneseq
    %v5678 = vshrl.u32 %v5677, 7
    %v5679 = vsub.s32 0, %v5678
    %v5680 = vrot.slane %v5675, %v5679
    %v5681 = vlaneseq
    %v5682 = vshrl.u32 %v5681, 7
    %v5683 = vsub.s32 1, %v5682
    %v5684 = vrot.slane %v5675, %v5683
    %v5687 = vsub.f32 %v5653, %v5680
    %v5688 = vsub.f32 %v5654, %v5684
    %v5689 = vmul.f32 %v5687, 1.442695
    %v5690 = vpow.pop %v5689
    %v5691 = vmul.f32 %v5688, 1.442695
    %v5692 = vpow.pop %v5691
    %5695 = vset.pattern.permute.xlu0 0
    %5696 = vperm.xlu0 %5695, %v5690
    %v5697 = vpop.permute.xlu0 %5696
    %5698 = vset.pattern.permute.xlu0 0
    %5699 = vperm.xlu0 %5698, %v5692
    %v5700 = vpop.permute.xlu0 %5699
    %v5701 = vlaneseq
    %v5702 = vshrl.u32 %v5701, 7
    %v5703 = vsub.s32 %v514, %v5702
    %v5704 = vrot.slane %v5697, %v5703
    %v5705 = vlaneseq
    %v5706 = vshrl.u32 %v5705, 7
    %v5707 = vsub.s32 %v514, %v5706
    %v5708 = vrot.slane %v5700, %v5707
    %v5709 = vsel %vm775, %v5708, %v5704
    %v5711 = vsel %vm778, %v5709, 0.0
    %5712 = vadd.xlane.f32.xlu0 %v5711
    %v5713 = vpop.xlane.xlu0 %5712
    %v5714 = vrcp.pop %v5713
    %v5716 = vlaneseq
    %v5717 = vshrl.u32 %v5716, 7
    %v5718 = vsub.s32 0, %v5717
    %v5719 = vrot.slane %v5714, %v5718
    %v5720 = vlaneseq
    %v5721 = vshrl.u32 %v5720, 7
    %v5722 = vsub.s32 1, %v5721
    %v5723 = vrot.slane %v5714, %v5722
    %v5726 = vmul.f32 %v5690, %v5719
    %v5727 = vmul.f32 %v5692, %v5723
    %5729 = vset.pattern.permute.xlu0 0
    %5730 = vperm.xlu0 %5729, %v5726
    %v5731 = vpop.permute.xlu0 %5730
    %5734 = vset.pattern.permute.xlu0 0
    %5735 = vperm.xlu0 %5734, %v5727
    %v5736 = vpop.permute.xlu0 %5735
    %v5738 = vmul.f32 %v5731, %v509
    %v5739 = vmul.f32 %v5736, %v510
    %v5740 = vsel %vm195, %v5738, 0.0
    %v5741 = vrot.slane %v5740, 4
    %v5742 = vadd.f32 %v5740, %v5741
    %v5743 = vrot.slane %v5742, 2
    %v5744 = vadd.f32 %v5742, %v5743
    %v5745 = vrot.slane %v5744, 1
    %v5746 = vadd.f32 %v5744, %v5745
    %v5747 = vsel %vm195, %v5739, 0.0
    %v5748 = vrot.slane %v5747, 4
    %v5749 = vadd.f32 %v5747, %v5748
    %v5750 = vrot.slane %v5749, 2
    %v5751 = vadd.f32 %v5749, %v5750
    %v5752 = vrot.slane %v5751, 1
    %v5753 = vadd.f32 %v5751, %v5752
    %5755 = vrot.lane.b32.xlu0 %v5544, 96
    %v5756 = vpop.permute.xlu0 %5755
    %v5760 = vsel %vm775, %v5753, %v5746
    %5761 = vrot.lane.b32.xlu0 %v5760, 32
    %v5762 = vpop.permute.xlu0 %5761
    %v5764 = vsel %vm195, %v5756, %v5762
    %v5765 = vsel %vm871, %v5764, %v5076
    %v5766 = vpack.c.bf16 %v5765, %v5765
    %v5767 = vld [vmem:[#allocation14] sm:$0xff]
    %v5768 = vld [vmem:[#allocation14 + $0x8] sm:$0xf]
    %v5769 = vld [vmem:[#allocation14 + $0xc] sm:$0xff]
    %v5770 = vld [vmem:[#allocation14 + $0x14] sm:$0xf]
    %v5771 = vld [vmem:[#allocation14 + $0x18] sm:$0xff]
    %v5772 = vld [vmem:[#allocation14 + $0x20] sm:$0xf]
    %v5773 = vld [vmem:[#allocation14 + $0x24] sm:$0xff]
    %v5774 = vld [vmem:[#allocation14 + $0x2c] sm:$0xf]
    %v5775 = vld [vmem:[#allocation14 + $0x30] sm:$0xff]
    %v5776 = vld [vmem:[#allocation14 + $0x38] sm:$0xf]
    %v5777 = vld [vmem:[#allocation14 + $0x3c] sm:$0xff]
    %v5778 = vld [vmem:[#allocation14 + $0x44] sm:$0xf]
    %v5779 = vld [vmem:[#allocation14 + $0x48] sm:$0xff]
    %v5780 = vld [vmem:[#allocation14 + $0x50] sm:$0xf]
    %v5781 = vld [vmem:[#allocation14 + $0x54] sm:$0xff]
    %v5782 = vld [vmem:[#allocation14 + $0x5c] sm:$0xf]
    %v5783 = vld [vmem:[#allocation14 + $0x60] sm:$0xff]
    %v5784 = vld [vmem:[#allocation14 + $0x68] sm:$0xf]
    %v5785 = vld [vmem:[#allocation14 + $0x6c] sm:$0xff]
    %v5786 = vld [vmem:[#allocation14 + $0x74] sm:$0xf]
    %v5787 = vld [vmem:[#allocation14 + $0x78] sm:$0xff]
    %v5788 = vld [vmem:[#allocation14 + $0x80] sm:$0xf]
    %v5789 = vld [vmem:[#allocation14 + $0x84] sm:$0xff]
    %v5790 = vld [vmem:[#allocation14 + $0x8c] sm:$0xf]
    %v5791 = vld [vmem:[#allocation14 + $0x90] sm:$0xff]
    %v5792 = vld [vmem:[#allocation14 + $0x98] sm:$0xf]
    %v5793 = vld [vmem:[#allocation14 + $0x9c] sm:$0xff]
    %v5794 = vld [vmem:[#allocation14 + $0xa4] sm:$0xf]
    %v5795 = vld [vmem:[#allocation14 + $0xa8] sm:$0xff]
    %v5796 = vld [vmem:[#allocation14 + $0xb0] sm:$0xf]
    %v5797 = vld [vmem:[#allocation14 + $0xb4] sm:$0xff]
    %v5798 = vld [vmem:[#allocation14 + $0xbc] sm:$0xf]
    %v5831 = vunpack.c.l.b16 %v5767
    %v5832 = vunpack.c.h.b16 %v5767
    %v5833 = vunpack.c.l.b16 %v5768
    %v5834 = vunpack.c.l.b16 %v5769
    %v5835 = vunpack.c.h.b16 %v5769
    %v5836 = vunpack.c.l.b16 %v5770
    %v5837 = vunpack.c.l.b16 %v5771
    %v5838 = vunpack.c.h.b16 %v5771
    %v5839 = vunpack.c.l.b16 %v5772
    %v5840 = vunpack.c.l.b16 %v5773
    %v5841 = vunpack.c.h.b16 %v5773
    %v5842 = vunpack.c.l.b16 %v5774
    %v5843 = vunpack.c.l.b16 %v5775
    %v5844 = vunpack.c.h.b16 %v5775
    %v5845 = vunpack.c.l.b16 %v5776
    %v5846 = vunpack.c.l.b16 %v5777
    %v5847 = vunpack.c.h.b16 %v5777
    %v5848 = vunpack.c.l.b16 %v5778
    %v5849 = vunpack.c.l.b16 %v5779
    %v5850 = vunpack.c.h.b16 %v5779
    %v5851 = vunpack.c.l.b16 %v5780
    %v5852 = vunpack.c.l.b16 %v5781
    %v5853 = vunpack.c.h.b16 %v5781
    %v5854 = vunpack.c.l.b16 %v5782
    %v5855 = vunpack.c.l.b16 %v5783
    %v5856 = vunpack.c.h.b16 %v5783
    %v5857 = vunpack.c.l.b16 %v5784
    %v5858 = vunpack.c.l.b16 %v5785
    %v5859 = vunpack.c.h.b16 %v5785
    %v5860 = vunpack.c.l.b16 %v5786
    %v5861 = vunpack.c.l.b16 %v5787
    %v5862 = vunpack.c.h.b16 %v5787
    %v5863 = vunpack.c.l.b16 %v5788
    %v5864 = vunpack.c.l.b16 %v5789
    %v5865 = vunpack.c.h.b16 %v5789
    %v5866 = vunpack.c.l.b16 %v5790
    %v5867 = vunpack.c.l.b16 %v5791
    %v5868 = vunpack.c.h.b16 %v5791
    %v5869 = vunpack.c.l.b16 %v5792
    %v5870 = vunpack.c.l.b16 %v5793
    %v5871 = vunpack.c.h.b16 %v5793
    %v5872 = vunpack.c.l.b16 %v5794
    %v5873 = vunpack.c.l.b16 %v5795
    %v5874 = vunpack.c.h.b16 %v5795
    %v5875 = vunpack.c.l.b16 %v5796
    %v5876 = vunpack.c.l.b16 %v5797
    %v5877 = vunpack.c.h.b16 %v5797
    %v5878 = vunpack.c.l.b16 %v5798
    %v5879 = vpack.c.b16 %v5834, %v5831
    %v5880 = vpack.c.b16 %v5835, %v5832
    %v5881 = vpack.c.b16 %v5836, %v5833
    %v5882 = vpack.c.b16 %v5840, %v5837
    %v5883 = vpack.c.b16 %v5841, %v5838
    %v5884 = vpack.c.b16 %v5842, %v5839
    %v5885 = vpack.c.b16 %v5846, %v5843
    %v5886 = vpack.c.b16 %v5847, %v5844
    %v5887 = vpack.c.b16 %v5848, %v5845
    %v5888 = vpack.c.b16 %v5852, %v5849
    %v5889 = vpack.c.b16 %v5853, %v5850
    %v5890 = vpack.c.b16 %v5854, %v5851
    %v5891 = vpack.c.b16 %v5858, %v5855
    %v5892 = vpack.c.b16 %v5859, %v5856
    %v5893 = vpack.c.b16 %v5860, %v5857
    %v5894 = vpack.c.b16 %v5864, %v5861
    %v5895 = vpack.c.b16 %v5865, %v5862
    %v5896 = vpack.c.b16 %v5866, %v5863
    %v5897 = vpack.c.b16 %v5870, %v5867
    %v5898 = vpack.c.b16 %v5871, %v5868
    %v5899 = vpack.c.b16 %v5872, %v5869
    %v5900 = vpack.c.b16 %v5876, %v5873
    %v5901 = vpack.c.b16 %v5877, %v5874
    %v5902 = vpack.c.b16 %v5878, %v5875
    %5927 = vmatprep.subr.bf16.mxu0 %v5880
    %5928 = vmatpush1.bf16.msra.mxu0 %v5879
    %5929 = vmatprep.subr.bf16.mxu0 %v5883
    %5930 = vmatpush1.bf16.msra.mxu0 %v5882
    %5931 = vmatprep.subr.bf16.mxu0 %v5886
    %5932 = vmatpush1.bf16.msra.mxu0 %v5885
    %5933 = vmatprep.subr.bf16.mxu0 %v5889
    %5934 = vmatpush1.bf16.msra.mxu0 %v5888
    %5935 = vmatprep.subr.bf16.mxu0 %v5892
    %5936 = vmatpush1.bf16.msra.mxu0 %v5891
    %5937 = vmatprep.subr.bf16.mxu0 %v5895
    %5938 = vmatpush1.bf16.msra.mxu0 %v5894
    %5939 = vmatprep.subr.bf16.mxu0 %v5898
    %5940 = vmatpush1.bf16.msra.mxu0 %v5897
    %5941 = vmatprep.subr.bf16.mxu0 %v5901
    %5942 = vmatpush1.bf16.msra.mxu0 %v5900
    %5943 = vmatprep.subr.bf16.mxu0 0
    %5944 = vmatpush1.bf16.msra.mxu0 0
    %5945 = vmatprep.subr.bf16.mxu0 0
    %5946 = vmatpush1.bf16.msra.mxu0 0
    %5947 = vmatprep.subr.bf16.mxu0 0
    %5948 = vmatpush1.bf16.msra.mxu0 0
    %5949 = vmatprep.subr.bf16.mxu0 0
    %5950 = vmatpush1.bf16.msra.mxu0 0
    %5951 = vmatprep.subr.bf16.mxu0 0
    %5952 = vmatpush1.bf16.msra.mxu0 0
    %5953 = vmatprep.subr.bf16.mxu0 0
    %5954 = vmatpush1.bf16.msra.mxu0 0
    %5955 = vmatprep.subr.bf16.mxu0 0
    %5956 = vmatpush1.bf16.msra.mxu0 0
    %5957 = vmatprep.subr.bf16.mxu0 0
    %5958 = vmatpush1.bf16.msra.mxu0 0
    %5959 = vmatprep.mubr.bf16.mxu0 0
    %5960 = vmatmul.mubr.bf16.gmra.mrb[0].mxu0 %v5766
    %v5961 = vpop.f32.mrb[0].mxu0
    %v5962 = vadd.f32 0.0, %v5961
    %v5963 = vpop.f32.mrb[0].mxu0
    %v5964 = vadd.f32 0.0, %v5963
    %v5965 = vpop.f32.mrb[0].mxu0
    %v5966 = vpop.f32.mrb[0].mxu0
    %5967 = vdwg.mxu0
    %5968 = vmatprep.subr.bf16.mxu0 0
    %5969 = vmatpush1.bf16.msra.mxu0 %v5881
    %5970 = vmatprep.subr.bf16.mxu0 0
    %5971 = vmatpush1.bf16.msra.mxu0 %v5884
    %5972 = vmatprep.subr.bf16.mxu0 0
    %5973 = vmatpush1.bf16.msra.mxu0 %v5887
    %5974 = vmatprep.subr.bf16.mxu0 0
    %5975 = vmatpush1.bf16.msra.mxu0 %v5890
    %5976 = vmatprep.subr.bf16.mxu0 0
    %5977 = vmatpush1.bf16.msra.mxu0 %v5893
    %5978 = vmatprep.subr.bf16.mxu0 0
    %5979 = vmatpush1.bf16.msra.mxu0 %v5896
    %5980 = vmatprep.subr.bf16.mxu0 0
    %5981 = vmatpush1.bf16.msra.mxu0 %v5899
    %5982 = vmatprep.subr.bf16.mxu0 0
    %5983 = vmatpush1.bf16.msra.mxu0 %v5902
    %5984 = vmatprep.subr.bf16.mxu0 0
    %5985 = vmatpush1.bf16.msra.mxu0 0
    %5986 = vmatprep.subr.bf16.mxu0 0
    %5987 = vmatpush1.bf16.msra.mxu0 0
    %5988 = vmatprep.subr.bf16.mxu0 0
    %5989 = vmatpush1.bf16.msra.mxu0 0
    %5990 = vmatprep.subr.bf16.mxu0 0
    %5991 = vmatpush1.bf16.msra.mxu0 0
    %5992 = vmatprep.subr.bf16.mxu0 0
    %5993 = vmatpush1.bf16.msra.mxu0 0
    %5994 = vmatprep.subr.bf16.mxu0 0
    %5995 = vmatpush1.bf16.msra.mxu0 0
    %5996 = vmatprep.subr.bf16.mxu0 0
    %5997 = vmatpush1.bf16.msra.mxu0 0
    %5998 = vmatprep.subr.bf16.mxu0 0
    %5999 = vmatpush1.bf16.msra.mxu0 0
    %6000 = vmatprep.mubr.bf16.mxu0 0
    %6001 = vmatmul.mubr.bf16.gmra.mrb[0].mxu0 %v5766
    %v6002 = vpop.f32.mrb[0].mxu0
    %v6003 = vadd.f32 0.0, %v6002
    %v6004 = vpop.f32.mrb[0].mxu0
    %v6005 = vpop.f32.mrb[0].mxu0
    %v6006 = vpop.f32.mrb[0].mxu0
    %6007 = vdwg.mxu0
    %v6008 = vadd.f32 %v5962, %v1119
    %v6009 = vadd.f32 %v5964, %v1123
    %v6010 = vadd.f32 %v5964, %v1138
    %v6011 = vadd.f32 %v6003, %v1141
    %6013 = vrot.lane.b32.xlu0 %v6010, 64
    %v6014 = vpop.permute.xlu0 %6013
    %v6016 = vadd.f32 %v6008, %v6014
    %v6017 = vxor.u32 %v6016, 2147483648
    %v6018 = vmul.f32 %v6017, 1.442695
    %v6019 = vpow.pop %v6018
    %v6020 = vadd.f32 %v6019, 1.0
    %v6021 = vrcp.pop %v6020
    %v6022 = vmul.f32 1.0, %v6021
    %6024 = vrot.lane.b32.xlu0 %v6011, 64
    %v6025 = vpop.permute.xlu0 %6024
    %v6027 = vadd.f32 %v6008, %v6025
    %v6028 = vxor.u32 %v6027, 2147483648
    %v6029 = vmul.f32 %v6028, 1.442695
    %v6030 = vpow.pop %v6029
    %v6031 = vadd.f32 %v6030, 1.0
    %v6032 = vrcp.pop %v6031
    %v6033 = vmul.f32 1.0, %v6032
    %v6034 = vmul.f32 %v6022, %v6025
    %v6035 = vadd.f32 %v6009, %v6034
    %v6036 = vtanh.pop %v6035
    %v6037 = vsub.f32 1.0, %v6033
    %6039 = vrot.lane.b32.xlu0 %v6036, 64
    %v6040 = vpop.permute.xlu0 %6039
    %v6042 = vmul.f32 %v6037, %v6040
    %v6043 = vmul.f32 %v6033, %v5076
    %v6044 = vadd.f32 %v6042, %v6043
    %6046 = vrot.lane.b32.xlu0 %v6044, 64
    %v6047 = vpop.permute.xlu0 %6046
    %v6049 = vadd.f32 %v5764, %v6047
    %v6050 = vsel %vm871, %v6049, %v5361
    %v6051 = vpack.c.bf16 %v6050, %v6050
    %v6052 = vld [vmem:[#allocation16] sm:$0xff]
    %v6053 = vld [vmem:[#allocation16 + $0x8] sm:$0xf]
    %v6054 = vld [vmem:[#allocation16 + $0xc] sm:$0xff]
    %v6055 = vld [vmem:[#allocation16 + $0x14] sm:$0xf]
    %v6056 = vld [vmem:[#allocation16 + $0x18] sm:$0xff]
    %v6057 = vld [vmem:[#allocation16 + $0x20] sm:$0xf]
    %v6058 = vld [vmem:[#allocation16 + $0x24] sm:$0xff]
    %v6059 = vld [vmem:[#allocation16 + $0x2c] sm:$0xf]
    %v6060 = vld [vmem:[#allocation16 + $0x30] sm:$0xff]
    %v6061 = vld [vmem:[#allocation16 + $0x38] sm:$0xf]
    %v6062 = vld [vmem:[#allocation16 + $0x3c] sm:$0xff]
    %v6063 = vld [vmem:[#allocation16 + $0x44] sm:$0xf]
    %v6064 = vld [vmem:[#allocation16 + $0x48] sm:$0xff]
    %v6065 = vld [vmem:[#allocation16 + $0x50] sm:$0xf]
    %v6066 = vld [vmem:[#allocation16 + $0x54] sm:$0xff]
    %v6067 = vld [vmem:[#allocation16 + $0x5c] sm:$0xf]
    %v6068 = vld [vmem:[#allocation16 + $0x60] sm:$0xff]
    %v6069 = vld [vmem:[#allocation16 + $0x68] sm:$0xf]
    %v6070 = vld [vmem:[#allocation16 + $0x6c] sm:$0xff]
    %v6071 = vld [vmem:[#allocation16 + $0x74] sm:$0xf]
    %v6072 = vld [vmem:[#allocation16 + $0x78] sm:$0xff]
    %v6073 = vld [vmem:[#allocation16 + $0x80] sm:$0xf]
    %v6074 = vld [vmem:[#allocation16 + $0x84] sm:$0xff]
    %v6075 = vld [vmem:[#allocation16 + $0x8c] sm:$0xf]
    %v6076 = vld [vmem:[#allocation16 + $0x90] sm:$0xff]
    %v6077 = vld [vmem:[#allocation16 + $0x98] sm:$0xf]
    %v6078 = vld [vmem:[#allocation16 + $0x9c] sm:$0xff]
    %v6079 = vld [vmem:[#allocation16 + $0xa4] sm:$0xf]
    %v6080 = vld [vmem:[#allocation16 + $0xa8] sm:$0xff]
    %v6081 = vld [vmem:[#allocation16 + $0xb0] sm:$0xf]
    %v6082 = vld [vmem:[#allocation16 + $0xb4] sm:$0xff]
    %v6083 = vld [vmem:[#allocation16 + $0xbc] sm:$0xf]
    %v6116 = vunpack.c.l.b16 %v6052
    %v6117 = vunpack.c.h.b16 %v6052
    %v6118 = vunpack.c.l.b16 %v6053
    %v6119 = vunpack.c.l.b16 %v6054
    %v6120 = vunpack.c.h.b16 %v6054
    %v6121 = vunpack.c.l.b16 %v6055
    %v6122 = vunpack.c.l.b16 %v6056
    %v6123 = vunpack.c.h.b16 %v6056
    %v6124 = vunpack.c.l.b16 %v6057
    %v6125 = vunpack.c.l.b16 %v6058
    %v6126 = vunpack.c.h.b16 %v6058
    %v6127 = vunpack.c.l.b16 %v6059
    %v6128 = vunpack.c.l.b16 %v6060
    %v6129 = vunpack.c.h.b16 %v6060
    %v6130 = vunpack.c.l.b16 %v6061
    %v6131 = vunpack.c.l.b16 %v6062
    %v6132 = vunpack.c.h.b16 %v6062
    %v6133 = vunpack.c.l.b16 %v6063
    %v6134 = vunpack.c.l.b16 %v6064
    %v6135 = vunpack.c.h.b16 %v6064
    %v6136 = vunpack.c.l.b16 %v6065
    %v6137 = vunpack.c.l.b16 %v6066
    %v6138 = vunpack.c.h.b16 %v6066
    %v6139 = vunpack.c.l.b16 %v6067
    %v6140 = vunpack.c.l.b16 %v6068
    %v6141 = vunpack.c.h.b16 %v6068
    %v6142 = vunpack.c.l.b16 %v6069
    %v6143 = vunpack.c.l.b16 %v6070
    %v6144 = vunpack.c.h.b16 %v6070
    %v6145 = vunpack.c.l.b16 %v6071
    %v6146 = vunpack.c.l.b16 %v6072
    %v6147 = vunpack.c.h.b16 %v6072
    %v6148 = vunpack.c.l.b16 %v6073
    %v6149 = vunpack.c.l.b16 %v6074
    %v6150 = vunpack.c.h.b16 %v6074
    %v6151 = vunpack.c.l.b16 %v6075
    %v6152 = vunpack.c.l.b16 %v6076
    %v6153 = vunpack.c.h.b16 %v6076
    %v6154 = vunpack.c.l.b16 %v6077
    %v6155 = vunpack.c.l.b16 %v6078
    %v6156 = vunpack.c.h.b16 %v6078
    %v6157 = vunpack.c.l.b16 %v6079
    %v6158 = vunpack.c.l.b16 %v6080
    %v6159 = vunpack.c.h.b16 %v6080
    %v6160 = vunpack.c.l.b16 %v6081
    %v6161 = vunpack.c.l.b16 %v6082
    %v6162 = vunpack.c.h.b16 %v6082
    %v6163 = vunpack.c.l.b16 %v6083
    %v6164 = vpack.c.b16 %v6119, %v6116
    %v6165 = vpack.c.b16 %v6120, %v6117
    %v6166 = vpack.c.b16 %v6121, %v6118
    %v6167 = vpack.c.b16 %v6125, %v6122
    %v6168 = vpack.c.b16 %v6126, %v6123
    %v6169 = vpack.c.b16 %v6127, %v6124
    %v6170 = vpack.c.b16 %v6131, %v6128
    %v6171 = vpack.c.b16 %v6132, %v6129
    %v6172 = vpack.c.b16 %v6133, %v6130
    %v6173 = vpack.c.b16 %v6137, %v6134
    %v6174 = vpack.c.b16 %v6138, %v6135
    %v6175 = vpack.c.b16 %v6139, %v6136
    %v6176 = vpack.c.b16 %v6143, %v6140
    %v6177 = vpack.c.b16 %v6144, %v6141
    %v6178 = vpack.c.b16 %v6145, %v6142
    %v6179 = vpack.c.b16 %v6149, %v6146
    %v6180 = vpack.c.b16 %v6150, %v6147
    %v6181 = vpack.c.b16 %v6151, %v6148
    %v6182 = vpack.c.b16 %v6155, %v6152
    %v6183 = vpack.c.b16 %v6156, %v6153
    %v6184 = vpack.c.b16 %v6157, %v6154
    %v6185 = vpack.c.b16 %v6161, %v6158
    %v6186 = vpack.c.b16 %v6162, %v6159
    %v6187 = vpack.c.b16 %v6163, %v6160
    %6212 = vmatprep.subr.bf16.mxu0 %v6165
    %6213 = vmatpush1.bf16.msra.mxu0 %v6164
    %6214 = vmatprep.subr.bf16.mxu0 %v6168
    %6215 = vmatpush1.bf16.msra.mxu0 %v6167
    %6216 = vmatprep.subr.bf16.mxu0 %v6171
    %6217 = vmatpush1.bf16.msra.mxu0 %v6170
    %6218 = vmatprep.subr.bf16.mxu0 %v6174
    %6219 = vmatpush1.bf16.msra.mxu0 %v6173
    %6220 = vmatprep.subr.bf16.mxu0 %v6177
    %6221 = vmatpush1.bf16.msra.mxu0 %v6176
    %6222 = vmatprep.subr.bf16.mxu0 %v6180
    %6223 = vmatpush1.bf16.msra.mxu0 %v6179
    %6224 = vmatprep.subr.bf16.mxu0 %v6183
    %6225 = vmatpush1.bf16.msra.mxu0 %v6182
    %6226 = vmatprep.subr.bf16.mxu0 %v6186
    %6227 = vmatpush1.bf16.msra.mxu0 %v6185
    %6228 = vmatprep.subr.bf16.mxu0 0
    %6229 = vmatpush1.bf16.msra.mxu0 0
    %6230 = vmatprep.subr.bf16.mxu0 0
    %6231 = vmatpush1.bf16.msra.mxu0 0
    %6232 = vmatprep.subr.bf16.mxu0 0
    %6233 = vmatpush1.bf16.msra.mxu0 0
    %6234 = vmatprep.subr.bf16.mxu0 0
    %6235 = vmatpush1.bf16.msra.mxu0 0
    %6236 = vmatprep.subr.bf16.mxu0 0
    %6237 = vmatpush1.bf16.msra.mxu0 0
    %6238 = vmatprep.subr.bf16.mxu0 0
    %6239 = vmatpush1.bf16.msra.mxu0 0
    %6240 = vmatprep.subr.bf16.mxu0 0
    %6241 = vmatpush1.bf16.msra.mxu0 0
    %6242 = vmatprep.subr.bf16.mxu0 0
    %6243 = vmatpush1.bf16.msra.mxu0 0
    %6244 = vmatprep.mubr.bf16.mxu0 0
    %6245 = vmatmul.mubr.bf16.gmra.mrb[0].mxu0 %v6051
    %v6246 = vpop.f32.mrb[0].mxu0
    %v6247 = vadd.f32 0.0, %v6246
    %v6248 = vpop.f32.mrb[0].mxu0
    %v6249 = vadd.f32 0.0, %v6248
    %v6250 = vpop.f32.mrb[0].mxu0
    %v6251 = vpop.f32.mrb[0].mxu0
    %6252 = vdwg.mxu0
    %6253 = vmatprep.subr.bf16.mxu0 0
    %6254 = vmatpush1.bf16.msra.mxu0 %v6166
    %6255 = vmatprep.subr.bf16.mxu0 0
    %6256 = vmatpush1.bf16.msra.mxu0 %v6169
    %6257 = vmatprep.subr.bf16.mxu0 0
    %6258 = vmatpush1.bf16.msra.mxu0 %v6172
    %6259 = vmatprep.subr.bf16.mxu0 0
    %6260 = vmatpush1.bf16.msra.mxu0 %v6175
    %6261 = vmatprep.subr.bf16.mxu0 0
    %6262 = vmatpush1.bf16.msra.mxu0 %v6178
    %6263 = vmatprep.subr.bf16.mxu0 0
    %6264 = vmatpush1.bf16.msra.mxu0 %v6181
    %6265 = vmatprep.subr.bf16.mxu0 0
    %6266 = vmatpush1.bf16.msra.mxu0 %v6184
    %6267 = vmatprep.subr.bf16.mxu0 0
    %6268 = vmatpush1.bf16.msra.mxu0 %v6187
    %6269 = vmatprep.subr.bf16.mxu0 0
    %6270 = vmatpush1.bf16.msra.mxu0 0
    %6271 = vmatprep.subr.bf16.mxu0 0
    %6272 = vmatpush1.bf16.msra.mxu0 0
    %6273 = vmatprep.subr.bf16.mxu0 0
    %6274 = vmatpush1.bf16.msra.mxu0 0
    %6275 = vmatprep.subr.bf16.mxu0 0
    %6276 = vmatpush1.bf16.msra.mxu0 0
    %6277 = vmatprep.subr.bf16.mxu0 0
    %6278 = vmatpush1.bf16.msra.mxu0 0
    %6279 = vmatprep.subr.bf16.mxu0 0
    %6280 = vmatpush1.bf16.msra.mxu0 0
    %6281 = vmatprep.subr.bf16.mxu0 0
    %6282 = vmatpush1.bf16.msra.mxu0 0
    %6283 = vmatprep.subr.bf16.mxu0 0
    %6284 = vmatpush1.bf16.msra.mxu0 0
    %6285 = vmatprep.mubr.bf16.mxu0 0
    %6286 = vmatmul.mubr.bf16.gmra.mrb[0].mxu0 %v6051
    %v6287 = vpop.f32.mrb[0].mxu0
    %v6288 = vadd.f32 0.0, %v6287
    %v6289 = vpop.f32.mrb[0].mxu0
    %v6290 = vpop.f32.mrb[0].mxu0
    %v6291 = vpop.f32.mrb[0].mxu0
    %6292 = vdwg.mxu0
    %v6293 = vadd.f32 %v6247, %v1431
    %v6294 = vadd.f32 %v6249, %v1435
    %v6295 = vadd.f32 %v6249, %v1450
    %v6296 = vadd.f32 %v6288, %v1453
    %6298 = vrot.lane.b32.xlu0 %v6295, 64
    %v6299 = vpop.permute.xlu0 %6298
    %v6301 = vadd.f32 %v6293, %v6299
    %v6302 = vxor.u32 %v6301, 2147483648
    %v6303 = vmul.f32 %v6302, 1.442695
    %v6304 = vpow.pop %v6303
    %v6305 = vadd.f32 %v6304, 1.0
    %v6306 = vrcp.pop %v6305
    %v6307 = vmul.f32 1.0, %v6306
    %6309 = vrot.lane.b32.xlu0 %v6296, 64
    %v6310 = vpop.permute.xlu0 %6309
    %v6312 = vadd.f32 %v6293, %v6310
    %v6313 = vxor.u32 %v6312, 2147483648
    %v6314 = vmul.f32 %v6313, 1.442695
    %v6315 = vpow.pop %v6314
    %v6316 = vadd.f32 %v6315, 1.0
    %v6317 = vrcp.pop %v6316
    %v6318 = vmul.f32 1.0, %v6317
    %v6319 = vmul.f32 %v6307, %v6310
    %v6320 = vadd.f32 %v6294, %v6319
    %v6321 = vtanh.pop %v6320
    %v6322 = vsub.f32 1.0, %v6318
    %6324 = vrot.lane.b32.xlu0 %v6321, 64
    %v6325 = vpop.permute.xlu0 %6324
    %v6327 = vmul.f32 %v6322, %v6325
    %v6328 = vmul.f32 %v6318, %v5361
    %v6329 = vadd.f32 %v6327, %v6328
    %6331 = vrot.lane.b32.xlu0 %v6329, 64
    %v6332 = vpop.permute.xlu0 %6331
    %v6334 = vadd.f32 %v6049, %v6332
    %6335 = vst.msk [vmem:[#allocation4 + $0xa] sm:$0x3] %vm1496, %v6334
    %v6336 = vcombine.high %v5726, %v5726
    %v6338 = vunpack.c.l.s4 1983009808
    %v6339 = vunpack.c.0.s8 %v6338
    %v6340 = vlaneseq
    %v6341 = vshrl.u32 %v6340, 7
    %v6342 = vsub.s32 %v6339, %v6341
    %v6343 = vrot.slane %v5726, %v6342
    %v6345 = vunpack.c.l.s4 1983009808
    %v6346 = vunpack.c.0.s8 %v6345
    %v6347 = vlaneseq
    %v6348 = vshrl.u32 %v6347, 7
    %v6349 = vsub.s32 %v6346, %v6348
    %v6350 = vrot.slane %v6336, %v6349
    %v6351 = vcombine.high %v6343, %v6343
    %v6352 = vcombine.high %v6350, %v6350
    %v6353 = vcombine.high %v5727, %v5727
    %v6355 = vunpack.c.l.s4 1983009808
    %v6356 = vunpack.c.0.s8 %v6355
    %v6357 = vlaneseq
    %v6358 = vshrl.u32 %v6357, 7
    %v6359 = vsub.s32 %v6356, %v6358
    %v6360 = vrot.slane %v5727, %v6359
    %v6362 = vunpack.c.l.s4 1983009808
    %v6363 = vunpack.c.0.s8 %v6362
    %v6364 = vlaneseq
    %v6365 = vshrl.u32 %v6364, 7
    %v6366 = vsub.s32 %v6363, %v6365
    %v6367 = vrot.slane %v6353, %v6366
    %v6368 = vcombine.high %v6360, %v6360
    %v6369 = vcombine.high %v6367, %v6367
    %v6370 = vcombine.low %v6343, %v6351
    %v6371 = vcombine.low %v6350, %v6352
    %v6373 = vunpack.c.l.s4 1983009808
    %v6374 = vunpack.c.0.s8 %v6373
    %v6375 = vlaneseq
    %v6376 = vshrl.u32 %v6375, 7
    %v6377 = vsub.s32 %v6374, %v6376
    %v6378 = vrot.slane %v6370, %v6377
    %v6380 = vunpack.c.l.s4 1983009808
    %v6381 = vunpack.c.0.s8 %v6380
    %v6382 = vlaneseq
    %v6383 = vshrl.u32 %v6382, 7
    %v6384 = vsub.s32 %v6381, %v6383
    %v6385 = vrot.slane %v6371, %v6384
    %v6386 = vcombine.low %v6378, %v6385
    %v6387 = vcombine.low %v6360, %v6368
    %v6388 = vcombine.low %v6367, %v6369
    %v6390 = vunpack.c.l.s4 1983009808
    %v6391 = vunpack.c.0.s8 %v6390
    %v6392 = vlaneseq
    %v6393 = vshrl.u32 %v6392, 7
    %v6394 = vsub.s32 %v6391, %v6393
    %v6395 = vrot.slane %v6387, %v6394
    %v6397 = vunpack.c.l.s4 1983009808
    %v6398 = vunpack.c.0.s8 %v6397
    %v6399 = vlaneseq
    %v6400 = vshrl.u32 %v6399, 7
    %v6401 = vsub.s32 %v6398, %v6400
    %v6402 = vrot.slane %v6388, %v6401
    %v6403 = vcombine.low %v6395, %v6402
    %6404 = vset.pattern.permute.xlu0 0
    %6405 = vperm.xlu0 %6404, %v6386
    %v6406 = vpop.permute.xlu0 %6405
    %6407 = vset.pattern.permute.xlu0 0
    %6408 = vperm.xlu0 %6407, %v6403
    %v6409 = vpop.permute.xlu0 %6408
    %v6410 = vadd.s32 %v514, 4294967256
    %v6411 = vlaneseq
    %v6412 = vshrl.u32 %v6411, 7
    %v6413 = vsub.s32 %v6410, %v6412
    %v6414 = vrot.slane %v6406, %v6413
    %v6415 = vlaneseq
    %v6416 = vshrl.u32 %v6415, 7
    %v6417 = vsub.s32 %v6410, %v6416
    %v6418 = vrot.slane %v6409, %v6417
    %v6419 = vsel %vm775, %v6418, %v6414
    %v6421 = vunpack.c.l.s4 1983009808
    %v6422 = vunpack.c.0.s8 %v6421
    %v6423 = vlaneseq
    %v6424 = vshrl.u32 %v6423, 7
    %v6425 = vsub.s32 %v6422, %v6424
    %v6426 = vrot.slane %v6419, %v6425
    %vm6428 = vcmask 386368
    %6429 = vst.msk [vmem:[#allocation18] sm:$0x3] %vm6428, %v6426
    %v6430 = vld [vmem:[#allocation2 + $0xc] sm:$0x3]
    %v6431 = vld [vmem:[%s8] sm:$0xf]
    %v6432 = vld [vmem:[%s8 + $0x4] sm:$0xf]
    %v6433 = vld [vmem:[%s8 + $0x8] sm:$0xf]
    %v6434 = vld [vmem:[%s8 + $0xc] sm:$0xf]
    %v6439 = vunpack.c.l.b16 %v6431
    %v6440 = vunpack.c.l.b16 %v6432
    %v6441 = vunpack.c.l.b16 %v6433
    %v6442 = vunpack.c.l.b16 %v6434
    %v6443 = vpack.c.b16 %v6440, %v6439
    %v6444 = vpack.c.b16 %v6442, %v6441
    %6447 = vmatprep.subr.bf16.mxu0 0
    %6448 = vmatpush1.bf16.msra.mxu0 %v6443
    %6449 = vmatprep.subr.bf16.mxu0 0
    %6450 = vmatpush1.bf16.msra.mxu0 %v6444
    %6451 = vmatprep.subr.bf16.mxu0 0
    %6452 = vmatpush1.bf16.msra.mxu0 0
    %6453 = vmatprep.subr.bf16.mxu0 0
    %6454 = vmatpush1.bf16.msra.mxu0 0
    %6455 = vmatprep.subr.bf16.mxu0 0
    %6456 = vmatpush1.bf16.msra.mxu0 0
    %6457 = vmatprep.subr.bf16.mxu0 0
    %6458 = vmatpush1.bf16.msra.mxu0 0
    %6459 = vmatprep.subr.bf16.mxu0 0
    %6460 = vmatpush1.bf16.msra.mxu0 0
    %6461 = vmatprep.subr.bf16.mxu0 0
    %6462 = vmatpush1.bf16.msra.mxu0 0
    %6463 = vmatprep.subr.bf16.mxu0 0
    %6464 = vmatpush1.bf16.msra.mxu0 0
    %6465 = vmatprep.subr.bf16.mxu0 0
    %6466 = vmatpush1.bf16.msra.mxu0 0
    %6467 = vmatprep.subr.bf16.mxu0 0
    %6468 = vmatpush1.bf16.msra.mxu0 0
    %6469 = vmatprep.subr.bf16.mxu0 0
    %6470 = vmatpush1.bf16.msra.mxu0 0
    %6471 = vmatprep.subr.bf16.mxu0 0
    %6472 = vmatpush1.bf16.msra.mxu0 0
    %6473 = vmatprep.subr.bf16.mxu0 0
    %6474 = vmatpush1.bf16.msra.mxu0 0
    %6475 = vmatprep.subr.bf16.mxu0 0
    %6476 = vmatpush1.bf16.msra.mxu0 0
    %6477 = vmatprep.subr.bf16.mxu0 0
    %6478 = vmatpush1.bf16.msra.mxu0 0
    %6479 = vmatprep.mubr.bf16.mxu0 0
    %6480 = vmatmul.mubr.bf16.gmra.mrb[0].mxu0 %v5566
    %v6481 = vpop.f32.mrb[0].mxu0
    %v6482 = vadd.f32 %v537, %v6481
    %v6483 = vpop.f32.mrb[0].mxu0
    %v6484 = vpop.f32.mrb[0].mxu0
    %v6485 = vpop.f32.mrb[0].mxu0
    %6486 = vdwg.mxu0
    %v6487 = vadd.f32 %v6430, %v6482
    %v6488 = vxor.u32 %v6487, 2147483648
    %v6489 = vmul.f32 %v6488, 1.442695
    %v6490 = vpow.pop %v6489
    %v6491 = vadd.f32 %v6490, 1.0
    %v6492 = vrcp.pop %v6491
    %v6493 = vmul.f32 1.0, %v6492
    %6495 = vrot.lane.b32.xlu0 %v6482, 64
    %v6496 = vpop.permute.xlu0 %6495
    %v6498 = vmul.f32 %v6493, %v6496
    %6500 = vrot.lane.b32.xlu0 %v6498, 64
    %v6501 = vpop.permute.xlu0 %6500
    %v6503 = vadd.f32 %v6430, %v6501
    %v6504 = vtanh.pop %v6503
    %v6505 = vsub.f32 1.0, %v6493
    %6507 = vrot.lane.b32.xlu0 %v6504, 96
    %v6508 = vpop.permute.xlu0 %6507
    %v6510 = vmul.f32 %v6505, %v6508
    %v6511 = vmul.f32 %v6493, %v5544
    %v6512 = vadd.f32 %v6510, %v6511
    %v6513 = vpack.c.bf16 %v6512, %v6512
    %v6514 = vld [vmem:[%s11] sm:$0xf]
    %v6515 = vld [vmem:[%s11 + $0x4] sm:$0xf]
    %v6516 = vld [vmem:[%s11 + $0x8] sm:$0xf]
    %v6517 = vld [vmem:[%s11 + $0xc] sm:$0xf]
    %6519 = vrot.lane.b32.xlu0 %v6513, 96
    %v6520 = vpop.permute.xlu0 %6519
    %v6525 = vunpack.c.l.b16 %v6514
    %v6526 = vunpack.c.l.b16 %v6515
    %v6527 = vunpack.c.l.b16 %v6516
    %v6528 = vunpack.c.l.b16 %v6517
    %v6529 = vpack.c.b16 %v6526, %v6525
    %v6530 = vpack.c.b16 %v6528, %v6527
    %v6534 = vsel %vm195, %v6520, 0
    %6536 = vmatprep.subr.bf16.mxu0 0
    %6537 = vmatpush1.bf16.msra.mxu0 %v6529
    %6538 = vmatprep.subr.bf16.mxu0 0
    %6539 = vmatpush1.bf16.msra.mxu0 %v6530
    %6540 = vmatprep.subr.bf16.mxu0 0
    %6541 = vmatpush1.bf16.msra.mxu0 0
    %6542 = vmatprep.subr.bf16.mxu0 0
    %6543 = vmatpush1.bf16.msra.mxu0 0
    %6544 = vmatprep.subr.bf16.mxu0 0
    %6545 = vmatpush1.bf16.msra.mxu0 0
    %6546 = vmatprep.subr.bf16.mxu0 0
    %6547 = vmatpush1.bf16.msra.mxu0 0
    %6548 = vmatprep.subr.bf16.mxu0 0
    %6549 = vmatpush1.bf16.msra.mxu0 0
    %6550 = vmatprep.subr.bf16.mxu0 0
    %6551 = vmatpush1.bf16.msra.mxu0 0
    %6552 = vmatprep.subr.bf16.mxu0 0
    %6553 = vmatpush1.bf16.msra.mxu0 0
    %6554 = vmatprep.subr.bf16.mxu0 0
    %6555 = vmatpush1.bf16.msra.mxu0 0
    %6556 = vmatprep.subr.bf16.mxu0 0
    %6557 = vmatpush1.bf16.msra.mxu0 0
    %6558 = vmatprep.subr.bf16.mxu0 0
    %6559 = vmatpush1.bf16.msra.mxu0 0
    %6560 = vmatprep.subr.bf16.mxu0 0
    %6561 = vmatpush1.bf16.msra.mxu0 0
    %6562 = vmatprep.subr.bf16.mxu0 0
    %6563 = vmatpush1.bf16.msra.mxu0 0
    %6564 = vmatprep.subr.bf16.mxu0 0
    %6565 = vmatpush1.bf16.msra.mxu0 0
    %6566 = vmatprep.subr.bf16.mxu0 0
    %6567 = vmatpush1.bf16.msra.mxu0 0
    %6568 = vmatprep.mubr.bf16.mxu0 0
    %6569 = vmatmul.mubr.bf16.gmra.mrb[0].mxu0 %v6534
    %v6570 = vpop.f32.mrb[0].mxu0
    %v6571 = vadd.f32 %v629, %v6570
    %v6572 = vpop.f32.mrb[0].mxu0
    %v6573 = vpop.f32.mrb[0].mxu0
    %v6574 = vpop.f32.mrb[0].mxu0
    %6575 = vdwg.mxu0
    %v6578 = vunpack.c.l.s4 1966171168
    %v6579 = vunpack.c.0.s8 %v6578
    %v6580 = vlaneseq
    %v6581 = vshrl.u32 %v6580, 7
    %v6582 = vsub.s32 %v6579, %v6581
    %v6583 = vrot.slane %v6571, %v6582
    %v6584 = vcombine.high %v6583, %v6583
    %v6586 = vunpack.c.l.s4 1966171168
    %v6587 = vunpack.c.0.s8 %v6586
    %v6588 = vlaneseq
    %v6589 = vshrl.u32 %v6588, 7
    %v6590 = vsub.s32 %v6587, %v6589
    %v6591 = vrot.slane %v6583, %v6590
    %v6593 = vunpack.c.l.s4 1966171168
    %v6594 = vunpack.c.0.s8 %v6593
    %v6595 = vlaneseq
    %v6596 = vshrl.u32 %v6595, 7
    %v6597 = vsub.s32 %v6594, %v6596
    %v6598 = vrot.slane %v6584, %v6597
    %v6599 = vlaneseq
    %v6600 = vshrl.u32 %v6599, 7
    %v6601 = vsub.s32 0, %v6600
    %v6602 = vrot.slane %v6591, %v6601
    %v6603 = vlaneseq
    %v6604 = vshrl.u32 %v6603, 7
    %v6605 = vsub.s32 0, %v6604
    %v6606 = vrot.slane %v6598, %v6605
    %v6609 = vadd.f32 %v6602, %v511
    %v6610 = vadd.f32 %v6606, %v512
    %v6611 = vtanh.pop %v6609
    %v6612 = vtanh.pop %v6610
    %v6613 = vmul.f32 %v6611, %v730
    %v6614 = vmul.f32 %v6612, %v730
    %v6615 = vsel %vm195, %v6613, 0.0
    %6616 = vadd.xlane.f32.xlu0 %v6615
    %v6617 = vpop.xlane.xlu0 %6616
    %v6618 = vsel %vm195, %v6614, 0.0
    %6619 = vadd.xlane.f32.xlu0 %v6618
    %v6620 = vpop.xlane.xlu0 %6619
    %v6621 = vadd.f32 %v6617, %v747
    %v6622 = vadd.f32 %v6620, %v754
    %6625 = vset.pattern.permute.xlu0 0
    %6626 = vperm.xlu0 %6625, %v6621
    %v6627 = vpop.permute.xlu0 %6626
    %6628 = vset.pattern.permute.xlu0 0
    %6629 = vperm.xlu0 %6628, %v6622
    %v6630 = vpop.permute.xlu0 %6629
    %v6631 = vlaneseq
    %v6632 = vshrl.u32 %v6631, 7
    %v6633 = vsub.s32 %v514, %v6632
    %v6634 = vrot.slane %v6627, %v6633
    %v6635 = vlaneseq
    %v6636 = vshrl.u32 %v6635, 7
    %v6637 = vsub.s32 %v514, %v6636
    %v6638 = vrot.slane %v6630, %v6637
    %v6639 = vsel %vm775, %v6638, %v6634
    %v6641 = vsel %vm778, %v6639, -inf
    %6642 = vmax.xlane.f32.xlu0 %v6641
    %v6643 = vpop.xlane.xlu0 %6642
    %v6645 = vlaneseq
    %v6646 = vshrl.u32 %v6645, 7
    %v6647 = vsub.s32 0, %v6646
    %v6648 = vrot.slane %v6643, %v6647
    %v6649 = vlaneseq
    %v6650 = vshrl.u32 %v6649, 7
    %v6651 = vsub.s32 1, %v6650
    %v6652 = vrot.slane %v6643, %v6651
    %v6655 = vsub.f32 %v6621, %v6648
    %v6656 = vsub.f32 %v6622, %v6652
    %v6657 = vmul.f32 %v6655, 1.442695
    %v6658 = vpow.pop %v6657
    %v6659 = vmul.f32 %v6656, 1.442695
    %v6660 = vpow.pop %v6659
    %6663 = vset.pattern.permute.xlu0 0
    %6664 = vperm.xlu0 %6663, %v6658
    %v6665 = vpop.permute.xlu0 %6664
    %6666 = vset.pattern.permute.xlu0 0
    %6667 = vperm.xlu0 %6666, %v6660
    %v6668 = vpop.permute.xlu0 %6667
    %v6669 = vlaneseq
    %v6670 = vshrl.u32 %v6669, 7
    %v6671 = vsub.s32 %v514, %v6670
    %v6672 = vrot.slane %v6665, %v6671
    %v6673 = vlaneseq
    %v6674 = vshrl.u32 %v6673, 7
    %v6675 = vsub.s32 %v514, %v6674
    %v6676 = vrot.slane %v6668, %v6675
    %v6677 = vsel %vm775, %v6676, %v6672
    %v6679 = vsel %vm778, %v6677, 0.0
    %6680 = vadd.xlane.f32.xlu0 %v6679
    %v6681 = vpop.xlane.xlu0 %6680
    %v6682 = vrcp.pop %v6681
    %v6684 = vlaneseq
    %v6685 = vshrl.u32 %v6684, 7
    %v6686 = vsub.s32 0, %v6685
    %v6687 = vrot.slane %v6682, %v6686
    %v6688 = vlaneseq
    %v6689 = vshrl.u32 %v6688, 7
    %v6690 = vsub.s32 1, %v6689
    %v6691 = vrot.slane %v6682, %v6690
    %v6694 = vmul.f32 %v6658, %v6687
    %v6695 = vmul.f32 %v6660, %v6691
    %6697 = vset.pattern.permute.xlu0 0
    %6698 = vperm.xlu0 %6697, %v6694
    %v6699 = vpop.permute.xlu0 %6698
    %6702 = vset.pattern.permute.xlu0 0
    %6703 = vperm.xlu0 %6702, %v6695
    %v6704 = vpop.permute.xlu0 %6703
    %v6706 = vmul.f32 %v6699, %v509
    %v6707 = vmul.f32 %v6704, %v510
    %v6708 = vsel %vm195, %v6706, 0.0
    %v6709 = vrot.slane %v6708, 4
    %v6710 = vadd.f32 %v6708, %v6709
    %v6711 = vrot.slane %v6710, 2
    %v6712 = vadd.f32 %v6710, %v6711
    %v6713 = vrot.slane %v6712, 1
    %v6714 = vadd.f32 %v6712, %v6713
    %v6715 = vsel %vm195, %v6707, 0.0
    %v6716 = vrot.slane %v6715, 4
    %v6717 = vadd.f32 %v6715, %v6716
    %v6718 = vrot.slane %v6717, 2
    %v6719 = vadd.f32 %v6717, %v6718
    %v6720 = vrot.slane %v6719, 1
    %v6721 = vadd.f32 %v6719, %v6720
    %6723 = vrot.lane.b32.xlu0 %v6512, 96
    %v6724 = vpop.permute.xlu0 %6723
    %v6728 = vsel %vm775, %v6721, %v6714
    %6729 = vrot.lane.b32.xlu0 %v6728, 32
    %v6730 = vpop.permute.xlu0 %6729
    %v6732 = vsel %vm195, %v6724, %v6730
    %v6733 = vsel %vm871, %v6732, %v6044
    %v6734 = vpack.c.bf16 %v6733, %v6733
    %v6735 = vld [vmem:[#allocation14] sm:$0xff]
    %v6736 = vld [vmem:[#allocation14 + $0x8] sm:$0xf]
    %v6737 = vld [vmem:[#allocation14 + $0xc] sm:$0xff]
    %v6738 = vld [vmem:[#allocation14 + $0x14] sm:$0xf]
    %v6739 = vld [vmem:[#allocation14 + $0x18] sm:$0xff]
    %v6740 = vld [vmem:[#allocation14 + $0x20] sm:$0xf]
    %v6741 = vld [vmem:[#allocation14 + $0x24] sm:$0xff]
    %v6742 = vld [vmem:[#allocation14 + $0x2c] sm:$0xf]
    %v6743 = vld [vmem:[#allocation14 + $0x30] sm:$0xff]
    %v6744 = vld [vmem:[#allocation14 + $0x38] sm:$0xf]
    %v6745 = vld [vmem:[#allocation14 + $0x3c] sm:$0xff]
    %v6746 = vld [vmem:[#allocation14 + $0x44] sm:$0xf]
    %v6747 = vld [vmem:[#allocation14 + $0x48] sm:$0xff]
    %v6748 = vld [vmem:[#allocation14 + $0x50] sm:$0xf]
    %v6749 = vld [vmem:[#allocation14 + $0x54] sm:$0xff]
    %v6750 = vld [vmem:[#allocation14 + $0x5c] sm:$0xf]
    %v6751 = vld [vmem:[#allocation14 + $0x60] sm:$0xff]
    %v6752 = vld [vmem:[#allocation14 + $0x68] sm:$0xf]
    %v6753 = vld [vmem:[#allocation14 + $0x6c] sm:$0xff]
    %v6754 = vld [vmem:[#allocation14 + $0x74] sm:$0xf]
    %v6755 = vld [vmem:[#allocation14 + $0x78] sm:$0xff]
    %v6756 = vld [vmem:[#allocation14 + $0x80] sm:$0xf]
    %v6757 = vld [vmem:[#allocation14 + $0x84] sm:$0xff]
    %v6758 = vld [vmem:[#allocation14 + $0x8c] sm:$0xf]
    %v6759 = vld [vmem:[#allocation14 + $0x90] sm:$0xff]
    %v6760 = vld [vmem:[#allocation14 + $0x98] sm:$0xf]
    %v6761 = vld [vmem:[#allocation14 + $0x9c] sm:$0xff]
    %v6762 = vld [vmem:[#allocation14 + $0xa4] sm:$0xf]
    %v6763 = vld [vmem:[#allocation14 + $0xa8] sm:$0xff]
    %v6764 = vld [vmem:[#allocation14 + $0xb0] sm:$0xf]
    %v6765 = vld [vmem:[#allocation14 + $0xb4] sm:$0xff]
    %v6766 = vld [vmem:[#allocation14 + $0xbc] sm:$0xf]
    %v6799 = vunpack.c.l.b16 %v6735
    %v6800 = vunpack.c.h.b16 %v6735
    %v6801 = vunpack.c.l.b16 %v6736
    %v6802 = vunpack.c.l.b16 %v6737
    %v6803 = vunpack.c.h.b16 %v6737
    %v6804 = vunpack.c.l.b16 %v6738
    %v6805 = vunpack.c.l.b16 %v6739
    %v6806 = vunpack.c.h.b16 %v6739
    %v6807 = vunpack.c.l.b16 %v6740
    %v6808 = vunpack.c.l.b16 %v6741
    %v6809 = vunpack.c.h.b16 %v6741
    %v6810 = vunpack.c.l.b16 %v6742
    %v6811 = vunpack.c.l.b16 %v6743
    %v6812 = vunpack.c.h.b16 %v6743
    %v6813 = vunpack.c.l.b16 %v6744
    %v6814 = vunpack.c.l.b16 %v6745
    %v6815 = vunpack.c.h.b16 %v6745
    %v6816 = vunpack.c.l.b16 %v6746
    %v6817 = vunpack.c.l.b16 %v6747
    %v6818 = vunpack.c.h.b16 %v6747
    %v6819 = vunpack.c.l.b16 %v6748
    %v6820 = vunpack.c.l.b16 %v6749
    %v6821 = vunpack.c.h.b16 %v6749
    %v6822 = vunpack.c.l.b16 %v6750
    %v6823 = vunpack.c.l.b16 %v6751
    %v6824 = vunpack.c.h.b16 %v6751
    %v6825 = vunpack.c.l.b16 %v6752
    %v6826 = vunpack.c.l.b16 %v6753
    %v6827 = vunpack.c.h.b16 %v6753
    %v6828 = vunpack.c.l.b16 %v6754
    %v6829 = vunpack.c.l.b16 %v6755
    %v6830 = vunpack.c.h.b16 %v6755
    %v6831 = vunpack.c.l.b16 %v6756
    %v6832 = vunpack.c.l.b16 %v6757
    %v6833 = vunpack.c.h.b16 %v6757
    %v6834 = vunpack.c.l.b16 %v6758
    %v6835 = vunpack.c.l.b16 %v6759
    %v6836 = vunpack.c.h.b16 %v6759
    %v6837 = vunpack.c.l.b16 %v6760
    %v6838 = vunpack.c.l.b16 %v6761
    %v6839 = vunpack.c.h.b16 %v6761
    %v6840 = vunpack.c.l.b16 %v6762
    %v6841 = vunpack.c.l.b16 %v6763
    %v6842 = vunpack.c.h.b16 %v6763
    %v6843 = vunpack.c.l.b16 %v6764
    %v6844 = vunpack.c.l.b16 %v6765
    %v6845 = vunpack.c.h.b16 %v6765
    %v6846 = vunpack.c.l.b16 %v6766
    %v6847 = vpack.c.b16 %v6802, %v6799
    %v6848 = vpack.c.b16 %v6803, %v6800
    %v6849 = vpack.c.b16 %v6804, %v6801
    %v6850 = vpack.c.b16 %v6808, %v6805
    %v6851 = vpack.c.b16 %v6809, %v6806
    %v6852 = vpack.c.b16 %v6810, %v6807
    %v6853 = vpack.c.b16 %v6814, %v6811
    %v6854 = vpack.c.b16 %v6815, %v6812
    %v6855 = vpack.c.b16 %v6816, %v6813
    %v6856 = vpack.c.b16 %v6820, %v6817
    %v6857 = vpack.c.b16 %v6821, %v6818
    %v6858 = vpack.c.b16 %v6822, %v6819
    %v6859 = vpack.c.b16 %v6826, %v6823
    %v6860 = vpack.c.b16 %v6827, %v6824
    %v6861 = vpack.c.b16 %v6828, %v6825
    %v6862 = vpack.c.b16 %v6832, %v6829
    %v6863 = vpack.c.b16 %v6833, %v6830
    %v6864 = vpack.c.b16 %v6834, %v6831
    %v6865 = vpack.c.b16 %v6838, %v6835
    %v6866 = vpack.c.b16 %v6839, %v6836
    %v6867 = vpack.c.b16 %v6840, %v6837
    %v6868 = vpack.c.b16 %v6844, %v6841
    %v6869 = vpack.c.b16 %v6845, %v6842
    %v6870 = vpack.c.b16 %v6846, %v6843
    %6895 = vmatprep.subr.bf16.mxu0 %v6848
    %6896 = vmatpush1.bf16.msra.mxu0 %v6847
    %6897 = vmatprep.subr.bf16.mxu0 %v6851
    %6898 = vmatpush1.bf16.msra.mxu0 %v6850
    %6899 = vmatprep.subr.bf16.mxu0 %v6854
    %6900 = vmatpush1.bf16.msra.mxu0 %v6853
    %6901 = vmatprep.subr.bf16.mxu0 %v6857
    %6902 = vmatpush1.bf16.msra.mxu0 %v6856
    %6903 = vmatprep.subr.bf16.mxu0 %v6860
    %6904 = vmatpush1.bf16.msra.mxu0 %v6859
    %6905 = vmatprep.subr.bf16.mxu0 %v6863
    %6906 = vmatpush1.bf16.msra.mxu0 %v6862
    %6907 = vmatprep.subr.bf16.mxu0 %v6866
    %6908 = vmatpush1.bf16.msra.mxu0 %v6865
    %6909 = vmatprep.subr.bf16.mxu0 %v6869
    %6910 = vmatpush1.bf16.msra.mxu0 %v6868
    %6911 = vmatprep.subr.bf16.mxu0 0
    %6912 = vmatpush1.bf16.msra.mxu0 0
    %6913 = vmatprep.subr.bf16.mxu0 0
    %6914 = vmatpush1.bf16.msra.mxu0 0
    %6915 = vmatprep.subr.bf16.mxu0 0
    %6916 = vmatpush1.bf16.msra.mxu0 0
    %6917 = vmatprep.subr.bf16.mxu0 0
    %6918 = vmatpush1.bf16.msra.mxu0 0
    %6919 = vmatprep.subr.bf16.mxu0 0
    %6920 = vmatpush1.bf16.msra.mxu0 0
    %6921 = vmatprep.subr.bf16.mxu0 0
    %6922 = vmatpush1.bf16.msra.mxu0 0
    %6923 = vmatprep.subr.bf16.mxu0 0
    %6924 = vmatpush1.bf16.msra.mxu0 0
    %6925 = vmatprep.subr.bf16.mxu0 0
    %6926 = vmatpush1.bf16.msra.mxu0 0
    %6927 = vmatprep.mubr.bf16.mxu0 0
    %6928 = vmatmul.mubr.bf16.gmra.mrb[0].mxu0 %v6734
    %v6929 = vpop.f32.mrb[0].mxu0
    %v6930 = vadd.f32 0.0, %v6929
    %v6931 = vpop.f32.mrb[0].mxu0
    %v6932 = vadd.f32 0.0, %v6931
    %v6933 = vpop.f32.mrb[0].mxu0
    %v6934 = vpop.f32.mrb[0].mxu0
    %6935 = vdwg.mxu0
    %6936 = vmatprep.subr.bf16.mxu0 0
    %6937 = vmatpush1.bf16.msra.mxu0 %v6849
    %6938 = vmatprep.subr.bf16.mxu0 0
    %6939 = vmatpush1.bf16.msra.mxu0 %v6852
    %6940 = vmatprep.subr.bf16.mxu0 0
    %6941 = vmatpush1.bf16.msra.mxu0 %v6855
    %6942 = vmatprep.subr.bf16.mxu0 0
    %6943 = vmatpush1.bf16.msra.mxu0 %v6858
    %6944 = vmatprep.subr.bf16.mxu0 0
    %6945 = vmatpush1.bf16.msra.mxu0 %v6861
    %6946 = vmatprep.subr.bf16.mxu0 0
    %6947 = vmatpush1.bf16.msra.mxu0 %v6864
    %6948 = vmatprep.subr.bf16.mxu0 0
    %6949 = vmatpush1.bf16.msra.mxu0 %v6867
    %6950 = vmatprep.subr.bf16.mxu0 0
    %6951 = vmatpush1.bf16.msra.mxu0 %v6870
    %6952 = vmatprep.subr.bf16.mxu0 0
    %6953 = vmatpush1.bf16.msra.mxu0 0
    %6954 = vmatprep.subr.bf16.mxu0 0
    %6955 = vmatpush1.bf16.msra.mxu0 0
    %6956 = vmatprep.subr.bf16.mxu0 0
    %6957 = vmatpush1.bf16.msra.mxu0 0
    %6958 = vmatprep.subr.bf16.mxu0 0
    %6959 = vmatpush1.bf16.msra.mxu0 0
    %6960 = vmatprep.subr.bf16.mxu0 0
    %6961 = vmatpush1.bf16.msra.mxu0 0
    %6962 = vmatprep.subr.bf16.mxu0 0
    %6963 = vmatpush1.bf16.msra.mxu0 0
    %6964 = vmatprep.subr.bf16.mxu0 0
    %6965 = vmatpush1.bf16.msra.mxu0 0
    %6966 = vmatprep.subr.bf16.mxu0 0
    %6967 = vmatpush1.bf16.msra.mxu0 0
    %6968 = vmatprep.mubr.bf16.mxu0 0
    %6969 = vmatmul.mubr.bf16.gmra.mrb[0].mxu0 %v6734
    %v6970 = vpop.f32.mrb[0].mxu0
    %v6971 = vadd.f32 0.0, %v6970
    %v6972 = vpop.f32.mrb[0].mxu0
    %v6973 = vpop.f32.mrb[0].mxu0
    %v6974 = vpop.f32.mrb[0].mxu0
    %6975 = vdwg.mxu0
    %v6976 = vadd.f32 %v6930, %v1119
    %v6977 = vadd.f32 %v6932, %v1123
    %v6978 = vadd.f32 %v6932, %v1138
    %v6979 = vadd.f32 %v6971, %v1141
    %6981 = vrot.lane.b32.xlu0 %v6978, 64
    %v6982 = vpop.permute.xlu0 %6981
    %v6984 = vadd.f32 %v6976, %v6982
    %v6985 = vxor.u32 %v6984, 2147483648
    %v6986 = vmul.f32 %v6985, 1.442695
    %v6987 = vpow.pop %v6986
    %v6988 = vadd.f32 %v6987, 1.0
    %v6989 = vrcp.pop %v6988
    %v6990 = vmul.f32 1.0, %v6989
    %6992 = vrot.lane.b32.xlu0 %v6979, 64
    %v6993 = vpop.permute.xlu0 %6992
    %v6995 = vadd.f32 %v6976, %v6993
    %v6996 = vxor.u32 %v6995, 2147483648
    %v6997 = vmul.f32 %v6996, 1.442695
    %v6998 = vpow.pop %v6997
    %v6999 = vadd.f32 %v6998, 1.0
    %v7000 = vrcp.pop %v6999
    %v7001 = vmul.f32 1.0, %v7000
    %v7002 = vmul.f32 %v6990, %v6993
    %v7003 = vadd.f32 %v6977, %v7002
    %v7004 = vtanh.pop %v7003
    %v7005 = vsub.f32 1.0, %v7001
    %7007 = vrot.lane.b32.xlu0 %v7004, 64
    %v7008 = vpop.permute.xlu0 %7007
    %v7010 = vmul.f32 %v7005, %v7008
    %v7011 = vmul.f32 %v7001, %v6044
    %v7012 = vadd.f32 %v7010, %v7011
    %7014 = vrot.lane.b32.xlu0 %v7012, 64
    %v7015 = vpop.permute.xlu0 %7014
    %v7017 = vadd.f32 %v6732, %v7015
    %v7018 = vsel %vm871, %v7017, %v6329
    %v7019 = vpack.c.bf16 %v7018, %v7018
    %v7020 = vld [vmem:[#allocation16] sm:$0xff]
    %v7021 = vld [vmem:[#allocation16 + $0x8] sm:$0xf]
    %v7022 = vld [vmem:[#allocation16 + $0xc] sm:$0xff]
    %v7023 = vld [vmem:[#allocation16 + $0x14] sm:$0xf]
    %v7024 = vld [vmem:[#allocation16 + $0x18] sm:$0xff]
    %v7025 = vld [vmem:[#allocation16 + $0x20] sm:$0xf]
    %v7026 = vld [vmem:[#allocation16 + $0x24] sm:$0xff]
    %v7027 = vld [vmem:[#allocation16 + $0x2c] sm:$0xf]
    %v7028 = vld [vmem:[#allocation16 + $0x30] sm:$0xff]
    %v7029 = vld [vmem:[#allocation16 + $0x38] sm:$0xf]
    %v7030 = vld [vmem:[#allocation16 + $0x3c] sm:$0xff]
    %v7031 = vld [vmem:[#allocation16 + $0x44] sm:$0xf]
    %v7032 = vld [vmem:[#allocation16 + $0x48] sm:$0xff]
    %v7033 = vld [vmem:[#allocation16 + $0x50] sm:$0xf]
    %v7034 = vld [vmem:[#allocation16 + $0x54] sm:$0xff]
    %v7035 = vld [vmem:[#allocation16 + $0x5c] sm:$0xf]
    %v7036 = vld [vmem:[#allocation16 + $0x60] sm:$0xff]
    %v7037 = vld [vmem:[#allocation16 + $0x68] sm:$0xf]
    %v7038 = vld [vmem:[#allocation16 + $0x6c] sm:$0xff]
    %v7039 = vld [vmem:[#allocation16 + $0x74] sm:$0xf]
    %v7040 = vld [vmem:[#allocation16 + $0x78] sm:$0xff]
    %v7041 = vld [vmem:[#allocation16 + $0x80] sm:$0xf]
    %v7042 = vld [vmem:[#allocation16 + $0x84] sm:$0xff]
    %v7043 = vld [vmem:[#allocation16 + $0x8c] sm:$0xf]
    %v7044 = vld [vmem:[#allocation16 + $0x90] sm:$0xff]
    %v7045 = vld [vmem:[#allocation16 + $0x98] sm:$0xf]
    %v7046 = vld [vmem:[#allocation16 + $0x9c] sm:$0xff]
    %v7047 = vld [vmem:[#allocation16 + $0xa4] sm:$0xf]
    %v7048 = vld [vmem:[#allocation16 + $0xa8] sm:$0xff]
    %v7049 = vld [vmem:[#allocation16 + $0xb0] sm:$0xf]
    %v7050 = vld [vmem:[#allocation16 + $0xb4] sm:$0xff]
    %v7051 = vld [vmem:[#allocation16 + $0xbc] sm:$0xf]
    %v7084 = vunpack.c.l.b16 %v7020
    %v7085 = vunpack.c.h.b16 %v7020
    %v7086 = vunpack.c.l.b16 %v7021
    %v7087 = vunpack.c.l.b16 %v7022
    %v7088 = vunpack.c.h.b16 %v7022
    %v7089 = vunpack.c.l.b16 %v7023
    %v7090 = vunpack.c.l.b16 %v7024
    %v7091 = vunpack.c.h.b16 %v7024
    %v7092 = vunpack.c.l.b16 %v7025
    %v7093 = vunpack.c.l.b16 %v7026
    %v7094 = vunpack.c.h.b16 %v7026
    %v7095 = vunpack.c.l.b16 %v7027
    %v7096 = vunpack.c.l.b16 %v7028
    %v7097 = vunpack.c.h.b16 %v7028
    %v7098 = vunpack.c.l.b16 %v7029
    %v7099 = vunpack.c.l.b16 %v7030
    %v7100 = vunpack.c.h.b16 %v7030
    %v7101 = vunpack.c.l.b16 %v7031
    %v7102 = vunpack.c.l.b16 %v7032
    %v7103 = vunpack.c.h.b16 %v7032
    %v7104 = vunpack.c.l.b16 %v7033
    %v7105 = vunpack.c.l.b16 %v7034
    %v7106 = vunpack.c.h.b16 %v7034
    %v7107 = vunpack.c.l.b16 %v7035
    %v7108 = vunpack.c.l.b16 %v7036
    %v7109 = vunpack.c.h.b16 %v7036
    %v7110 = vunpack.c.l.b16 %v7037
    %v7111 = vunpack.c.l.b16 %v7038
    %v7112 = vunpack.c.h.b16 %v7038
    %v7113 = vunpack.c.l.b16 %v7039
    %v7114 = vunpack.c.l.b16 %v7040
    %v7115 = vunpack.c.h.b16 %v7040
    %v7116 = vunpack.c.l.b16 %v7041
    %v7117 = vunpack.c.l.b16 %v7042
    %v7118 = vunpack.c.h.b16 %v7042
    %v7119 = vunpack.c.l.b16 %v7043
    %v7120 = vunpack.c.l.b16 %v7044
    %v7121 = vunpack.c.h.b16 %v7044
    %v7122 = vunpack.c.l.b16 %v7045
    %v7123 = vunpack.c.l.b16 %v7046
    %v7124 = vunpack.c.h.b16 %v7046
    %v7125 = vunpack.c.l.b16 %v7047
    %v7126 = vunpack.c.l.b16 %v7048
    %v7127 = vunpack.c.h.b16 %v7048
    %v7128 = vunpack.c.l.b16 %v7049
    %v7129 = vunpack.c.l.b16 %v7050
    %v7130 = vunpack.c.h.b16 %v7050
    %v7131 = vunpack.c.l.b16 %v7051
    %v7132 = vpack.c.b16 %v7087, %v7084
    %v7133 = vpack.c.b16 %v7088, %v7085
    %v7134 = vpack.c.b16 %v7089, %v7086
    %v7135 = vpack.c.b16 %v7093, %v7090
    %v7136 = vpack.c.b16 %v7094, %v7091
    %v7137 = vpack.c.b16 %v7095, %v7092
    %v7138 = vpack.c.b16 %v7099, %v7096
    %v7139 = vpack.c.b16 %v7100, %v7097
    %v7140 = vpack.c.b16 %v7101, %v7098
    %v7141 = vpack.c.b16 %v7105, %v7102
    %v7142 = vpack.c.b16 %v7106, %v7103
    %v7143 = vpack.c.b16 %v7107, %v7104
    %v7144 = vpack.c.b16 %v7111, %v7108
    %v7145 = vpack.c.b16 %v7112, %v7109
    %v7146 = vpack.c.b16 %v7113, %v7110
    %v7147 = vpack.c.b16 %v7117, %v7114
    %v7148 = vpack.c.b16 %v7118, %v7115
    %v7149 = vpack.c.b16 %v7119, %v7116
    %v7150 = vpack.c.b16 %v7123, %v7120
    %v7151 = vpack.c.b16 %v7124, %v7121
    %v7152 = vpack.c.b16 %v7125, %v7122
    %v7153 = vpack.c.b16 %v7129, %v7126
    %v7154 = vpack.c.b16 %v7130, %v7127
    %v7155 = vpack.c.b16 %v7131, %v7128
    %7180 = vmatprep.subr.bf16.mxu0 %v7133
    %7181 = vmatpush1.bf16.msra.mxu0 %v7132
    %7182 = vmatprep.subr.bf16.mxu0 %v7136
    %7183 = vmatpush1.bf16.msra.mxu0 %v7135
    %7184 = vmatprep.subr.bf16.mxu0 %v7139
    %7185 = vmatpush1.bf16.msra.mxu0 %v7138
    %7186 = vmatprep.subr.bf16.mxu0 %v7142
    %7187 = vmatpush1.bf16.msra.mxu0 %v7141
    %7188 = vmatprep.subr.bf16.mxu0 %v7145
    %7189 = vmatpush1.bf16.msra.mxu0 %v7144
    %7190 = vmatprep.subr.bf16.mxu0 %v7148
    %7191 = vmatpush1.bf16.msra.mxu0 %v7147
    %7192 = vmatprep.subr.bf16.mxu0 %v7151
    %7193 = vmatpush1.bf16.msra.mxu0 %v7150
    %7194 = vmatprep.subr.bf16.mxu0 %v7154
    %7195 = vmatpush1.bf16.msra.mxu0 %v7153
    %7196 = vmatprep.subr.bf16.mxu0 0
    %7197 = vmatpush1.bf16.msra.mxu0 0
    %7198 = vmatprep.subr.bf16.mxu0 0
    %7199 = vmatpush1.bf16.msra.mxu0 0
    %7200 = vmatprep.subr.bf16.mxu0 0
    %7201 = vmatpush1.bf16.msra.mxu0 0
    %7202 = vmatprep.subr.bf16.mxu0 0
    %7203 = vmatpush1.bf16.msra.mxu0 0
    %7204 = vmatprep.subr.bf16.mxu0 0
    %7205 = vmatpush1.bf16.msra.mxu0 0
    %7206 = vmatprep.subr.bf16.mxu0 0
    %7207 = vmatpush1.bf16.msra.mxu0 0
    %7208 = vmatprep.subr.bf16.mxu0 0
    %7209 = vmatpush1.bf16.msra.mxu0 0
    %7210 = vmatprep.subr.bf16.mxu0 0
    %7211 = vmatpush1.bf16.msra.mxu0 0
    %7212 = vmatprep.mubr.bf16.mxu0 0
    %7213 = vmatmul.mubr.bf16.gmra.mrb[0].mxu0 %v7019
    %v7214 = vpop.f32.mrb[0].mxu0
    %v7215 = vadd.f32 0.0, %v7214
    %v7216 = vpop.f32.mrb[0].mxu0
    %v7217 = vadd.f32 0.0, %v7216
    %v7218 = vpop.f32.mrb[0].mxu0
    %v7219 = vpop.f32.mrb[0].mxu0
    %7220 = vdwg.mxu0
    %7221 = vmatprep.subr.bf16.mxu0 0
    %7222 = vmatpush1.bf16.msra.mxu0 %v7134
    %7223 = vmatprep.subr.bf16.mxu0 0
    %7224 = vmatpush1.bf16.msra.mxu0 %v7137
    %7225 = vmatprep.subr.bf16.mxu0 0
    %7226 = vmatpush1.bf16.msra.mxu0 %v7140
    %7227 = vmatprep.subr.bf16.mxu0 0
    %7228 = vmatpush1.bf16.msra.mxu0 %v7143
    %7229 = vmatprep.subr.bf16.mxu0 0
    %7230 = vmatpush1.bf16.msra.mxu0 %v7146
    %7231 = vmatprep.subr.bf16.mxu0 0
    %7232 = vmatpush1.bf16.msra.mxu0 %v7149
    %7233 = vmatprep.subr.bf16.mxu0 0
    %7234 = vmatpush1.bf16.msra.mxu0 %v7152
    %7235 = vmatprep.subr.bf16.mxu0 0
    %7236 = vmatpush1.bf16.msra.mxu0 %v7155
    %7237 = vmatprep.subr.bf16.mxu0 0
    %7238 = vmatpush1.bf16.msra.mxu0 0
    %7239 = vmatprep.subr.bf16.mxu0 0
    %7240 = vmatpush1.bf16.msra.mxu0 0
    %7241 = vmatprep.subr.bf16.mxu0 0
    %7242 = vmatpush1.bf16.msra.mxu0 0
    %7243 = vmatprep.subr.bf16.mxu0 0
    %7244 = vmatpush1.bf16.msra.mxu0 0
    %7245 = vmatprep.subr.bf16.mxu0 0
    %7246 = vmatpush1.bf16.msra.mxu0 0
    %7247 = vmatprep.subr.bf16.mxu0 0
    %7248 = vmatpush1.bf16.msra.mxu0 0
    %7249 = vmatprep.subr.bf16.mxu0 0
    %7250 = vmatpush1.bf16.msra.mxu0 0
    %7251 = vmatprep.subr.bf16.mxu0 0
    %7252 = vmatpush1.bf16.msra.mxu0 0
    %7253 = vmatprep.mubr.bf16.mxu0 0
    %7254 = vmatmul.mubr.bf16.gmra.mrb[0].mxu0 %v7019
    %v7255 = vpop.f32.mrb[0].mxu0
    %v7256 = vadd.f32 0.0, %v7255
    %v7257 = vpop.f32.mrb[0].mxu0
    %v7258 = vpop.f32.mrb[0].mxu0
    %v7259 = vpop.f32.mrb[0].mxu0
    %7260 = vdwg.mxu0
    %v7261 = vadd.f32 %v7215, %v1431
    %v7262 = vadd.f32 %v7217, %v1435
    %v7263 = vadd.f32 %v7217, %v1450
    %v7264 = vadd.f32 %v7256, %v1453
    %7266 = vrot.lane.b32.xlu0 %v7263, 64
    %v7267 = vpop.permute.xlu0 %7266
    %v7269 = vadd.f32 %v7261, %v7267
    %v7270 = vxor.u32 %v7269, 2147483648
    %v7271 = vmul.f32 %v7270, 1.442695
    %v7272 = vpow.pop %v7271
    %v7273 = vadd.f32 %v7272, 1.0
    %v7274 = vrcp.pop %v7273
    %v7275 = vmul.f32 1.0, %v7274
    %7277 = vrot.lane.b32.xlu0 %v7264, 64
    %v7278 = vpop.permute.xlu0 %7277
    %v7280 = vadd.f32 %v7261, %v7278
    %v7281 = vxor.u32 %v7280, 2147483648
    %v7282 = vmul.f32 %v7281, 1.442695
    %v7283 = vpow.pop %v7282
    %v7284 = vadd.f32 %v7283, 1.0
    %v7285 = vrcp.pop %v7284
    %v7286 = vmul.f32 1.0, %v7285
    %v7287 = vmul.f32 %v7275, %v7278
    %v7288 = vadd.f32 %v7262, %v7287
    %v7289 = vtanh.pop %v7288
    %v7290 = vsub.f32 1.0, %v7286
    %7292 = vrot.lane.b32.xlu0 %v7289, 64
    %v7293 = vpop.permute.xlu0 %7292
    %v7295 = vmul.f32 %v7290, %v7293
    %v7296 = vmul.f32 %v7286, %v6329
    %v7297 = vadd.f32 %v7295, %v7296
    %7299 = vrot.lane.b32.xlu0 %v7297, 64
    %v7300 = vpop.permute.xlu0 %7299
    %v7302 = vadd.f32 %v7017, %v7300
    %7303 = vst.msk [vmem:[#allocation4 + $0xc] sm:$0x3] %vm1496, %v7302
    %v7304 = vcombine.high %v6694, %v6694
    %v7306 = vunpack.c.l.s4 1983009808
    %v7307 = vunpack.c.0.s8 %v7306
    %v7308 = vlaneseq
    %v7309 = vshrl.u32 %v7308, 7
    %v7310 = vsub.s32 %v7307, %v7309
    %v7311 = vrot.slane %v6694, %v7310
    %v7313 = vunpack.c.l.s4 1983009808
    %v7314 = vunpack.c.0.s8 %v7313
    %v7315 = vlaneseq
    %v7316 = vshrl.u32 %v7315, 7
    %v7317 = vsub.s32 %v7314, %v7316
    %v7318 = vrot.slane %v7304, %v7317
    %v7319 = vcombine.high %v7311, %v7311
    %v7320 = vcombine.high %v7318, %v7318
    %v7321 = vcombine.high %v6695, %v6695
    %v7323 = vunpack.c.l.s4 1983009808
    %v7324 = vunpack.c.0.s8 %v7323
    %v7325 = vlaneseq
    %v7326 = vshrl.u32 %v7325, 7
    %v7327 = vsub.s32 %v7324, %v7326
    %v7328 = vrot.slane %v6695, %v7327
    %v7330 = vunpack.c.l.s4 1983009808
    %v7331 = vunpack.c.0.s8 %v7330
    %v7332 = vlaneseq
    %v7333 = vshrl.u32 %v7332, 7
    %v7334 = vsub.s32 %v7331, %v7333
    %v7335 = vrot.slane %v7321, %v7334
    %v7336 = vcombine.high %v7328, %v7328
    %v7337 = vcombine.high %v7335, %v7335
    %v7338 = vcombine.low %v7311, %v7319
    %v7339 = vcombine.low %v7318, %v7320
    %v7341 = vunpack.c.l.s4 1983009808
    %v7342 = vunpack.c.0.s8 %v7341
    %v7343 = vlaneseq
    %v7344 = vshrl.u32 %v7343, 7
    %v7345 = vsub.s32 %v7342, %v7344
    %v7346 = vrot.slane %v7338, %v7345
    %v7348 = vunpack.c.l.s4 1983009808
    %v7349 = vunpack.c.0.s8 %v7348
    %v7350 = vlaneseq
    %v7351 = vshrl.u32 %v7350, 7
    %v7352 = vsub.s32 %v7349, %v7351
    %v7353 = vrot.slane %v7339, %v7352
    %v7354 = vcombine.low %v7346, %v7353
    %v7355 = vcombine.low %v7328, %v7336
    %v7356 = vcombine.low %v7335, %v7337
    %v7358 = vunpack.c.l.s4 1983009808
    %v7359 = vunpack.c.0.s8 %v7358
    %v7360 = vlaneseq
    %v7361 = vshrl.u32 %v7360, 7
    %v7362 = vsub.s32 %v7359, %v7361
    %v7363 = vrot.slane %v7355, %v7362
    %v7365 = vunpack.c.l.s4 1983009808
    %v7366 = vunpack.c.0.s8 %v7365
    %v7367 = vlaneseq
    %v7368 = vshrl.u32 %v7367, 7
    %v7369 = vsub.s32 %v7366, %v7368
    %v7370 = vrot.slane %v7356, %v7369
    %v7371 = vcombine.low %v7363, %v7370
    %7372 = vset.pattern.permute.xlu0 0
    %7373 = vperm.xlu0 %7372, %v7354
    %v7374 = vpop.permute.xlu0 %7373
    %7375 = vset.pattern.permute.xlu0 0
    %7376 = vperm.xlu0 %7375, %v7371
    %v7377 = vpop.permute.xlu0 %7376
    %v7378 = vadd.s32 %v514, 4294967248
    %v7379 = vlaneseq
    %v7380 = vshrl.u32 %v7379, 7
    %v7381 = vsub.s32 %v7378, %v7380
    %v7382 = vrot.slane %v7374, %v7381
    %v7383 = vlaneseq
    %v7384 = vshrl.u32 %v7383, 7
    %v7385 = vsub.s32 %v7378, %v7384
    %v7386 = vrot.slane %v7377, %v7385
    %v7387 = vsel %vm775, %v7386, %v7382
    %v7389 = vunpack.c.l.s4 1983009808
    %v7390 = vunpack.c.0.s8 %v7389
    %v7391 = vlaneseq
    %v7392 = vshrl.u32 %v7391, 7
    %v7393 = vsub.s32 %v7390, %v7392
    %v7394 = vrot.slane %v7387, %v7393
    %vm7396 = vcmask 451968
    %7397 = vst.msk [vmem:[#allocation18] sm:$0x3] %vm7396, %v7394
    %v7398 = vld [vmem:[#allocation2 + $0xe] sm:$0x3]
    %v7399 = vld [vmem:[%s8] sm:$0xf]
    %v7400 = vld [vmem:[%s8 + $0x4] sm:$0xf]
    %v7401 = vld [vmem:[%s8 + $0x8] sm:$0xf]
    %v7402 = vld [vmem:[%s8 + $0xc] sm:$0xf]
    %v7407 = vunpack.c.l.b16 %v7399
    %v7408 = vunpack.c.l.b16 %v7400
    %v7409 = vunpack.c.l.b16 %v7401
    %v7410 = vunpack.c.l.b16 %v7402
    %v7411 = vpack.c.b16 %v7408, %v7407
    %v7412 = vpack.c.b16 %v7410, %v7409
    %7415 = vmatprep.subr.bf16.mxu0 0
    %7416 = vmatpush1.bf16.msra.mxu0 %v7411
    %7417 = vmatprep.subr.bf16.mxu0 0
    %7418 = vmatpush1.bf16.msra.mxu0 %v7412
    %7419 = vmatprep.subr.bf16.mxu0 0
    %7420 = vmatpush1.bf16.msra.mxu0 0
    %7421 = vmatprep.subr.bf16.mxu0 0
    %7422 = vmatpush1.bf16.msra.mxu0 0
    %7423 = vmatprep.subr.bf16.mxu0 0
    %7424 = vmatpush1.bf16.msra.mxu0 0
    %7425 = vmatprep.subr.bf16.mxu0 0
    %7426 = vmatpush1.bf16.msra.mxu0 0
    %7427 = vmatprep.subr.bf16.mxu0 0
    %7428 = vmatpush1.bf16.msra.mxu0 0
    %7429 = vmatprep.subr.bf16.mxu0 0
    %7430 = vmatpush1.bf16.msra.mxu0 0
    %7431 = vmatprep.subr.bf16.mxu0 0
    %7432 = vmatpush1.bf16.msra.mxu0 0
    %7433 = vmatprep.subr.bf16.mxu0 0
    %7434 = vmatpush1.bf16.msra.mxu0 0
    %7435 = vmatprep.subr.bf16.mxu0 0
    %7436 = vmatpush1.bf16.msra.mxu0 0
    %7437 = vmatprep.subr.bf16.mxu0 0
    %7438 = vmatpush1.bf16.msra.mxu0 0
    %7439 = vmatprep.subr.bf16.mxu0 0
    %7440 = vmatpush1.bf16.msra.mxu0 0
    %7441 = vmatprep.subr.bf16.mxu0 0
    %7442 = vmatpush1.bf16.msra.mxu0 0
    %7443 = vmatprep.subr.bf16.mxu0 0
    %7444 = vmatpush1.bf16.msra.mxu0 0
    %7445 = vmatprep.subr.bf16.mxu0 0
    %7446 = vmatpush1.bf16.msra.mxu0 0
    %7447 = vmatprep.mubr.bf16.mxu0 0
    %7448 = vmatmul.mubr.bf16.gmra.mrb[0].mxu0 %v6534
    %v7449 = vpop.f32.mrb[0].mxu0
    %v7450 = vadd.f32 %v537, %v7449
    %v7451 = vpop.f32.mrb[0].mxu0
    %v7452 = vpop.f32.mrb[0].mxu0
    %v7453 = vpop.f32.mrb[0].mxu0
    %7454 = vdwg.mxu0
    %v7455 = vadd.f32 %v7398, %v7450
    %v7456 = vxor.u32 %v7455, 2147483648
    %v7457 = vmul.f32 %v7456, 1.442695
    %v7458 = vpow.pop %v7457
    %v7459 = vadd.f32 %v7458, 1.0
    %v7460 = vrcp.pop %v7459
    %v7461 = vmul.f32 1.0, %v7460
    %7463 = vrot.lane.b32.xlu0 %v7450, 64
    %v7464 = vpop.permute.xlu0 %7463
    %v7466 = vmul.f32 %v7461, %v7464
    %7468 = vrot.lane.b32.xlu0 %v7466, 64
    %v7469 = vpop.permute.xlu0 %7468
    %v7471 = vadd.f32 %v7398, %v7469
    %v7472 = vtanh.pop %v7471
    %v7473 = vsub.f32 1.0, %v7461
    %7475 = vrot.lane.b32.xlu0 %v7472, 96
    %v7476 = vpop.permute.xlu0 %7475
    %v7478 = vmul.f32 %v7473, %v7476
    %v7479 = vmul.f32 %v7461, %v6512
    %v7480 = vadd.f32 %v7478, %v7479
    %v7481 = vpack.c.bf16 %v7480, %v7480
    %v7482 = vld [vmem:[%s11] sm:$0xf]
    %v7483 = vld [vmem:[%s11 + $0x4] sm:$0xf]
    %v7484 = vld [vmem:[%s11 + $0x8] sm:$0xf]
    %v7485 = vld [vmem:[%s11 + $0xc] sm:$0xf]
    %7487 = vrot.lane.b32.xlu0 %v7481, 96
    %v7488 = vpop.permute.xlu0 %7487
    %v7493 = vunpack.c.l.b16 %v7482
    %v7494 = vunpack.c.l.b16 %v7483
    %v7495 = vunpack.c.l.b16 %v7484
    %v7496 = vunpack.c.l.b16 %v7485
    %v7497 = vpack.c.b16 %v7494, %v7493
    %v7498 = vpack.c.b16 %v7496, %v7495
    %v7502 = vsel %vm195, %v7488, 0
    %7504 = vmatprep.subr.bf16.mxu0 0
    %7505 = vmatpush1.bf16.msra.mxu0 %v7497
    %7506 = vmatprep.subr.bf16.mxu0 0
    %7507 = vmatpush1.bf16.msra.mxu0 %v7498
    %7508 = vmatprep.subr.bf16.mxu0 0
    %7509 = vmatpush1.bf16.msra.mxu0 0
    %7510 = vmatprep.subr.bf16.mxu0 0
    %7511 = vmatpush1.bf16.msra.mxu0 0
    %7512 = vmatprep.subr.bf16.mxu0 0
    %7513 = vmatpush1.bf16.msra.mxu0 0
    %7514 = vmatprep.subr.bf16.mxu0 0
    %7515 = vmatpush1.bf16.msra.mxu0 0
    %7516 = vmatprep.subr.bf16.mxu0 0
    %7517 = vmatpush1.bf16.msra.mxu0 0
    %7518 = vmatprep.subr.bf16.mxu0 0
    %7519 = vmatpush1.bf16.msra.mxu0 0
    %7520 = vmatprep.subr.bf16.mxu0 0
    %7521 = vmatpush1.bf16.msra.mxu0 0
    %7522 = vmatprep.subr.bf16.mxu0 0
    %7523 = vmatpush1.bf16.msra.mxu0 0
    %7524 = vmatprep.subr.bf16.mxu0 0
    %7525 = vmatpush1.bf16.msra.mxu0 0
    %7526 = vmatprep.subr.bf16.mxu0 0
    %7527 = vmatpush1.bf16.msra.mxu0 0
    %7528 = vmatprep.subr.bf16.mxu0 0
    %7529 = vmatpush1.bf16.msra.mxu0 0
    %7530 = vmatprep.subr.bf16.mxu0 0
    %7531 = vmatpush1.bf16.msra.mxu0 0
    %7532 = vmatprep.subr.bf16.mxu0 0
    %7533 = vmatpush1.bf16.msra.mxu0 0
    %7534 = vmatprep.subr.bf16.mxu0 0
    %7535 = vmatpush1.bf16.msra.mxu0 0
    %7536 = vmatprep.mubr.bf16.mxu0 0
    %7537 = vmatmul.mubr.bf16.gmra.mrb[0].mxu0 %v7502
    %v7538 = vpop.f32.mrb[0].mxu0
    %v7539 = vadd.f32 %v629, %v7538
    %v7540 = vpop.f32.mrb[0].mxu0
    %v7541 = vpop.f32.mrb[0].mxu0
    %v7542 = vpop.f32.mrb[0].mxu0
    %7543 = vdwg.mxu0
    %v7546 = vunpack.c.l.s4 1966171168
    %v7547 = vunpack.c.0.s8 %v7546
    %v7548 = vlaneseq
    %v7549 = vshrl.u32 %v7548, 7
    %v7550 = vsub.s32 %v7547, %v7549
    %v7551 = vrot.slane %v7539, %v7550
    %v7552 = vcombine.high %v7551, %v7551
    %v7554 = vunpack.c.l.s4 1966171168
    %v7555 = vunpack.c.0.s8 %v7554
    %v7556 = vlaneseq
    %v7557 = vshrl.u32 %v7556, 7
    %v7558 = vsub.s32 %v7555, %v7557
    %v7559 = vrot.slane %v7551, %v7558
    %v7561 = vunpack.c.l.s4 1966171168
    %v7562 = vunpack.c.0.s8 %v7561
    %v7563 = vlaneseq
    %v7564 = vshrl.u32 %v7563, 7
    %v7565 = vsub.s32 %v7562, %v7564
    %v7566 = vrot.slane %v7552, %v7565
    %v7567 = vlaneseq
    %v7568 = vshrl.u32 %v7567, 7
    %v7569 = vsub.s32 0, %v7568
    %v7570 = vrot.slane %v7559, %v7569
    %v7571 = vlaneseq
    %v7572 = vshrl.u32 %v7571, 7
    %v7573 = vsub.s32 0, %v7572
    %v7574 = vrot.slane %v7566, %v7573
    %v7577 = vadd.f32 %v7570, %v511
    %v7578 = vadd.f32 %v7574, %v512
    %v7579 = vtanh.pop %v7577
    %v7580 = vtanh.pop %v7578
    %v7581 = vmul.f32 %v7579, %v730
    %v7582 = vmul.f32 %v7580, %v730
    %v7583 = vsel %vm195, %v7581, 0.0
    %7584 = vadd.xlane.f32.xlu0 %v7583
    %v7585 = vpop.xlane.xlu0 %7584
    %v7586 = vsel %vm195, %v7582, 0.0
    %7587 = vadd.xlane.f32.xlu0 %v7586
    %v7588 = vpop.xlane.xlu0 %7587
    %v7589 = vadd.f32 %v7585, %v747
    %v7590 = vadd.f32 %v7588, %v754
    %7593 = vset.pattern.permute.xlu0 0
    %7594 = vperm.xlu0 %7593, %v7589
    %v7595 = vpop.permute.xlu0 %7594
    %7596 = vset.pattern.permute.xlu0 0
    %7597 = vperm.xlu0 %7596, %v7590
    %v7598 = vpop.permute.xlu0 %7597
    %v7599 = vlaneseq
    %v7600 = vshrl.u32 %v7599, 7
    %v7601 = vsub.s32 %v514, %v7600
    %v7602 = vrot.slane %v7595, %v7601
    %v7603 = vlaneseq
    %v7604 = vshrl.u32 %v7603, 7
    %v7605 = vsub.s32 %v514, %v7604
    %v7606 = vrot.slane %v7598, %v7605
    %v7607 = vsel %vm775, %v7606, %v7602
    %v7609 = vsel %vm778, %v7607, -inf
    %7610 = vmax.xlane.f32.xlu0 %v7609
    %v7611 = vpop.xlane.xlu0 %7610
    %v7613 = vlaneseq
    %v7614 = vshrl.u32 %v7613, 7
    %v7615 = vsub.s32 0, %v7614
    %v7616 = vrot.slane %v7611, %v7615
    %v7617 = vlaneseq
    %v7618 = vshrl.u32 %v7617, 7
    %v7619 = vsub.s32 1, %v7618
    %v7620 = vrot.slane %v7611, %v7619
    %v7623 = vsub.f32 %v7589, %v7616
    %v7624 = vsub.f32 %v7590, %v7620
    %v7625 = vmul.f32 %v7623, 1.442695
    %v7626 = vpow.pop %v7625
    %v7627 = vmul.f32 %v7624, 1.442695
    %v7628 = vpow.pop %v7627
    %7631 = vset.pattern.permute.xlu0 0
    %7632 = vperm.xlu0 %7631, %v7626
    %v7633 = vpop.permute.xlu0 %7632
    %7634 = vset.pattern.permute.xlu0 0
    %7635 = vperm.xlu0 %7634, %v7628
    %v7636 = vpop.permute.xlu0 %7635
    %v7637 = vlaneseq
    %v7638 = vshrl.u32 %v7637, 7
    %v7639 = vsub.s32 %v514, %v7638
    %v7640 = vrot.slane %v7633, %v7639
    %v7641 = vlaneseq
    %v7642 = vshrl.u32 %v7641, 7
    %v7643 = vsub.s32 %v514, %v7642
    %v7644 = vrot.slane %v7636, %v7643
    %v7645 = vsel %vm775, %v7644, %v7640
    %v7647 = vsel %vm778, %v7645, 0.0
    %7648 = vadd.xlane.f32.xlu0 %v7647
    %v7649 = vpop.xlane.xlu0 %7648
    %v7650 = vrcp.pop %v7649
    %v7652 = vlaneseq
    %v7653 = vshrl.u32 %v7652, 7
    %v7654 = vsub.s32 0, %v7653
    %v7655 = vrot.slane %v7650, %v7654
    %v7656 = vlaneseq
    %v7657 = vshrl.u32 %v7656, 7
    %v7658 = vsub.s32 1, %v7657
    %v7659 = vrot.slane %v7650, %v7658
    %v7662 = vmul.f32 %v7626, %v7655
    %v7663 = vmul.f32 %v7628, %v7659
    %7665 = vset.pattern.permute.xlu0 0
    %7666 = vperm.xlu0 %7665, %v7662
    %v7667 = vpop.permute.xlu0 %7666
    %7670 = vset.pattern.permute.xlu0 0
    %7671 = vperm.xlu0 %7670, %v7663
    %v7672 = vpop.permute.xlu0 %7671
    %v7674 = vmul.f32 %v7667, %v509
    %v7675 = vmul.f32 %v7672, %v510
    %v7676 = vsel %vm195, %v7674, 0.0
    %v7677 = vrot.slane %v7676, 4
    %v7678 = vadd.f32 %v7676, %v7677
    %v7679 = vrot.slane %v7678, 2
    %v7680 = vadd.f32 %v7678, %v7679
    %v7681 = vrot.slane %v7680, 1
    %v7682 = vadd.f32 %v7680, %v7681
    %v7683 = vsel %vm195, %v7675, 0.0
    %v7684 = vrot.slane %v7683, 4
    %v7685 = vadd.f32 %v7683, %v7684
    %v7686 = vrot.slane %v7685, 2
    %v7687 = vadd.f32 %v7685, %v7686
    %v7688 = vrot.slane %v7687, 1
    %v7689 = vadd.f32 %v7687, %v7688
    %7691 = vrot.lane.b32.xlu0 %v7480, 96
    %v7692 = vpop.permute.xlu0 %7691
    %v7696 = vsel %vm775, %v7689, %v7682
    %7697 = vrot.lane.b32.xlu0 %v7696, 32
    %v7698 = vpop.permute.xlu0 %7697
    %v7700 = vsel %vm195, %v7692, %v7698
    %v7701 = vsel %vm871, %v7700, %v7012
    %v7702 = vpack.c.bf16 %v7701, %v7701
    %v7703 = vld [vmem:[#allocation14] sm:$0xff]
    %v7704 = vld [vmem:[#allocation14 + $0x8] sm:$0xf]
    %v7705 = vld [vmem:[#allocation14 + $0xc] sm:$0xff]
    %v7706 = vld [vmem:[#allocation14 + $0x14] sm:$0xf]
    %v7707 = vld [vmem:[#allocation14 + $0x18] sm:$0xff]
    %v7708 = vld [vmem:[#allocation14 + $0x20] sm:$0xf]
    %v7709 = vld [vmem:[#allocation14 + $0x24] sm:$0xff]
    %v7710 = vld [vmem:[#allocation14 + $0x2c] sm:$0xf]
    %v7711 = vld [vmem:[#allocation14 + $0x30] sm:$0xff]
    %v7712 = vld [vmem:[#allocation14 + $0x38] sm:$0xf]
    %v7713 = vld [vmem:[#allocation14 + $0x3c] sm:$0xff]
    %v7714 = vld [vmem:[#allocation14 + $0x44] sm:$0xf]
    %v7715 = vld [vmem:[#allocation14 + $0x48] sm:$0xff]
    %v7716 = vld [vmem:[#allocation14 + $0x50] sm:$0xf]
    %v7717 = vld [vmem:[#allocation14 + $0x54] sm:$0xff]
    %v7718 = vld [vmem:[#allocation14 + $0x5c] sm:$0xf]
    %v7719 = vld [vmem:[#allocation14 + $0x60] sm:$0xff]
    %v7720 = vld [vmem:[#allocation14 + $0x68] sm:$0xf]
    %v7721 = vld [vmem:[#allocation14 + $0x6c] sm:$0xff]
    %v7722 = vld [vmem:[#allocation14 + $0x74] sm:$0xf]
    %v7723 = vld [vmem:[#allocation14 + $0x78] sm:$0xff]
    %v7724 = vld [vmem:[#allocation14 + $0x80] sm:$0xf]
    %v7725 = vld [vmem:[#allocation14 + $0x84] sm:$0xff]
    %v7726 = vld [vmem:[#allocation14 + $0x8c] sm:$0xf]
    %v7727 = vld [vmem:[#allocation14 + $0x90] sm:$0xff]
    %v7728 = vld [vmem:[#allocation14 + $0x98] sm:$0xf]
    %v7729 = vld [vmem:[#allocation14 + $0x9c] sm:$0xff]
    %v7730 = vld [vmem:[#allocation14 + $0xa4] sm:$0xf]
    %v7731 = vld [vmem:[#allocation14 + $0xa8] sm:$0xff]
    %v7732 = vld [vmem:[#allocation14 + $0xb0] sm:$0xf]
    %v7733 = vld [vmem:[#allocation14 + $0xb4] sm:$0xff]
    %v7734 = vld [vmem:[#allocation14 + $0xbc] sm:$0xf]
    %v7767 = vunpack.c.l.b16 %v7703
    %v7768 = vunpack.c.h.b16 %v7703
    %v7769 = vunpack.c.l.b16 %v7704
    %v7770 = vunpack.c.l.b16 %v7705
    %v7771 = vunpack.c.h.b16 %v7705
    %v7772 = vunpack.c.l.b16 %v7706
    %v7773 = vunpack.c.l.b16 %v7707
    %v7774 = vunpack.c.h.b16 %v7707
    %v7775 = vunpack.c.l.b16 %v7708
    %v7776 = vunpack.c.l.b16 %v7709
    %v7777 = vunpack.c.h.b16 %v7709
    %v7778 = vunpack.c.l.b16 %v7710
    %v7779 = vunpack.c.l.b16 %v7711
    %v7780 = vunpack.c.h.b16 %v7711
    %v7781 = vunpack.c.l.b16 %v7712
    %v7782 = vunpack.c.l.b16 %v7713
    %v7783 = vunpack.c.h.b16 %v7713
    %v7784 = vunpack.c.l.b16 %v7714
    %v7785 = vunpack.c.l.b16 %v7715
    %v7786 = vunpack.c.h.b16 %v7715
    %v7787 = vunpack.c.l.b16 %v7716
    %v7788 = vunpack.c.l.b16 %v7717
    %v7789 = vunpack.c.h.b16 %v7717
    %v7790 = vunpack.c.l.b16 %v7718
    %v7791 = vunpack.c.l.b16 %v7719
    %v7792 = vunpack.c.h.b16 %v7719
    %v7793 = vunpack.c.l.b16 %v7720
    %v7794 = vunpack.c.l.b16 %v7721
    %v7795 = vunpack.c.h.b16 %v7721
    %v7796 = vunpack.c.l.b16 %v7722
    %v7797 = vunpack.c.l.b16 %v7723
    %v7798 = vunpack.c.h.b16 %v7723
    %v7799 = vunpack.c.l.b16 %v7724
    %v7800 = vunpack.c.l.b16 %v7725
    %v7801 = vunpack.c.h.b16 %v7725
    %v7802 = vunpack.c.l.b16 %v7726
    %v7803 = vunpack.c.l.b16 %v7727
    %v7804 = vunpack.c.h.b16 %v7727
    %v7805 = vunpack.c.l.b16 %v7728
    %v7806 = vunpack.c.l.b16 %v7729
    %v7807 = vunpack.c.h.b16 %v7729
    %v7808 = vunpack.c.l.b16 %v7730
    %v7809 = vunpack.c.l.b16 %v7731
    %v7810 = vunpack.c.h.b16 %v7731
    %v7811 = vunpack.c.l.b16 %v7732
    %v7812 = vunpack.c.l.b16 %v7733
    %v7813 = vunpack.c.h.b16 %v7733
    %v7814 = vunpack.c.l.b16 %v7734
    %v7815 = vpack.c.b16 %v7770, %v7767
    %v7816 = vpack.c.b16 %v7771, %v7768
    %v7817 = vpack.c.b16 %v7772, %v7769
    %v7818 = vpack.c.b16 %v7776, %v7773
    %v7819 = vpack.c.b16 %v7777, %v7774
    %v7820 = vpack.c.b16 %v7778, %v7775
    %v7821 = vpack.c.b16 %v7782, %v7779
    %v7822 = vpack.c.b16 %v7783, %v7780
    %v7823 = vpack.c.b16 %v7784, %v7781
    %v7824 = vpack.c.b16 %v7788, %v7785
    %v7825 = vpack.c.b16 %v7789, %v7786
    %v7826 = vpack.c.b16 %v7790, %v7787
    %v7827 = vpack.c.b16 %v7794, %v7791
    %v7828 = vpack.c.b16 %v7795, %v7792
    %v7829 = vpack.c.b16 %v7796, %v7793
    %v7830 = vpack.c.b16 %v7800, %v7797
    %v7831 = vpack.c.b16 %v7801, %v7798
    %v7832 = vpack.c.b16 %v7802, %v7799
    %v7833 = vpack.c.b16 %v7806, %v7803
    %v7834 = vpack.c.b16 %v7807, %v7804
    %v7835 = vpack.c.b16 %v7808, %v7805
    %v7836 = vpack.c.b16 %v7812, %v7809
    %v7837 = vpack.c.b16 %v7813, %v7810
    %v7838 = vpack.c.b16 %v7814, %v7811
    %7863 = vmatprep.subr.bf16.mxu0 %v7816
    %7864 = vmatpush1.bf16.msra.mxu0 %v7815
    %7865 = vmatprep.subr.bf16.mxu0 %v7819
    %7866 = vmatpush1.bf16.msra.mxu0 %v7818
    %7867 = vmatprep.subr.bf16.mxu0 %v7822
    %7868 = vmatpush1.bf16.msra.mxu0 %v7821
    %7869 = vmatprep.subr.bf16.mxu0 %v7825
    %7870 = vmatpush1.bf16.msra.mxu0 %v7824
    %7871 = vmatprep.subr.bf16.mxu0 %v7828
    %7872 = vmatpush1.bf16.msra.mxu0 %v7827
    %7873 = vmatprep.subr.bf16.mxu0 %v7831
    %7874 = vmatpush1.bf16.msra.mxu0 %v7830
    %7875 = vmatprep.subr.bf16.mxu0 %v7834
    %7876 = vmatpush1.bf16.msra.mxu0 %v7833
    %7877 = vmatprep.subr.bf16.mxu0 %v7837
    %7878 = vmatpush1.bf16.msra.mxu0 %v7836
    %7879 = vmatprep.subr.bf16.mxu0 0
    %7880 = vmatpush1.bf16.msra.mxu0 0
    %7881 = vmatprep.subr.bf16.mxu0 0
    %7882 = vmatpush1.bf16.msra.mxu0 0
    %7883 = vmatprep.subr.bf16.mxu0 0
    %7884 = vmatpush1.bf16.msra.mxu0 0
    %7885 = vmatprep.subr.bf16.mxu0 0
    %7886 = vmatpush1.bf16.msra.mxu0 0
    %7887 = vmatprep.subr.bf16.mxu0 0
    %7888 = vmatpush1.bf16.msra.mxu0 0
    %7889 = vmatprep.subr.bf16.mxu0 0
    %7890 = vmatpush1.bf16.msra.mxu0 0
    %7891 = vmatprep.subr.bf16.mxu0 0
    %7892 = vmatpush1.bf16.msra.mxu0 0
    %7893 = vmatprep.subr.bf16.mxu0 0
    %7894 = vmatpush1.bf16.msra.mxu0 0
    %7895 = vmatprep.mubr.bf16.mxu0 0
    %7896 = vmatmul.mubr.bf16.gmra.mrb[0].mxu0 %v7702
    %v7897 = vpop.f32.mrb[0].mxu0
    %v7898 = vadd.f32 0.0, %v7897
    %v7899 = vpop.f32.mrb[0].mxu0
    %v7900 = vadd.f32 0.0, %v7899
    %v7901 = vpop.f32.mrb[0].mxu0
    %v7902 = vpop.f32.mrb[0].mxu0
    %7903 = vdwg.mxu0
    %7904 = vmatprep.subr.bf16.mxu0 0
    %7905 = vmatpush1.bf16.msra.mxu0 %v7817
    %7906 = vmatprep.subr.bf16.mxu0 0
    %7907 = vmatpush1.bf16.msra.mxu0 %v7820
    %7908 = vmatprep.subr.bf16.mxu0 0
    %7909 = vmatpush1.bf16.msra.mxu0 %v7823
    %7910 = vmatprep.subr.bf16.mxu0 0
    %7911 = vmatpush1.bf16.msra.mxu0 %v7826
    %7912 = vmatprep.subr.bf16.mxu0 0
    %7913 = vmatpush1.bf16.msra.mxu0 %v7829
    %7914 = vmatprep.subr.bf16.mxu0 0
    %7915 = vmatpush1.bf16.msra.mxu0 %v7832
    %7916 = vmatprep.subr.bf16.mxu0 0
    %7917 = vmatpush1.bf16.msra.mxu0 %v7835
    %7918 = vmatprep.subr.bf16.mxu0 0
    %7919 = vmatpush1.bf16.msra.mxu0 %v7838
    %7920 = vmatprep.subr.bf16.mxu0 0
    %7921 = vmatpush1.bf16.msra.mxu0 0
    %7922 = vmatprep.subr.bf16.mxu0 0
    %7923 = vmatpush1.bf16.msra.mxu0 0
    %7924 = vmatprep.subr.bf16.mxu0 0
    %7925 = vmatpush1.bf16.msra.mxu0 0
    %7926 = vmatprep.subr.bf16.mxu0 0
    %7927 = vmatpush1.bf16.msra.mxu0 0
    %7928 = vmatprep.subr.bf16.mxu0 0
    %7929 = vmatpush1.bf16.msra.mxu0 0
    %7930 = vmatprep.subr.bf16.mxu0 0
    %7931 = vmatpush1.bf16.msra.mxu0 0
    %7932 = vmatprep.subr.bf16.mxu0 0
    %7933 = vmatpush1.bf16.msra.mxu0 0
    %7934 = vmatprep.subr.bf16.mxu0 0
    %7935 = vmatpush1.bf16.msra.mxu0 0
    %7936 = vmatprep.mubr.bf16.mxu0 0
    %7937 = vmatmul.mubr.bf16.gmra.mrb[0].mxu0 %v7702
    %v7938 = vpop.f32.mrb[0].mxu0
    %v7939 = vadd.f32 0.0, %v7938
    %v7940 = vpop.f32.mrb[0].mxu0
    %v7941 = vpop.f32.mrb[0].mxu0
    %v7942 = vpop.f32.mrb[0].mxu0
    %7943 = vdwg.mxu0
    %v7944 = vadd.f32 %v7898, %v1119
    %v7945 = vadd.f32 %v7900, %v1123
    %v7946 = vadd.f32 %v7900, %v1138
    %v7947 = vadd.f32 %v7939, %v1141
    %7949 = vrot.lane.b32.xlu0 %v7946, 64
    %v7950 = vpop.permute.xlu0 %7949
    %v7952 = vadd.f32 %v7944, %v7950
    %v7953 = vxor.u32 %v7952, 2147483648
    %v7954 = vmul.f32 %v7953, 1.442695
    %v7955 = vpow.pop %v7954
    %v7956 = vadd.f32 %v7955, 1.0
    %v7957 = vrcp.pop %v7956
    %v7958 = vmul.f32 1.0, %v7957
    %7960 = vrot.lane.b32.xlu0 %v7947, 64
    %v7961 = vpop.permute.xlu0 %7960
    %v7963 = vadd.f32 %v7944, %v7961
    %v7964 = vxor.u32 %v7963, 2147483648
    %v7965 = vmul.f32 %v7964, 1.442695
    %v7966 = vpow.pop %v7965
    %v7967 = vadd.f32 %v7966, 1.0
    %v7968 = vrcp.pop %v7967
    %v7969 = vmul.f32 1.0, %v7968
    %v7970 = vmul.f32 %v7958, %v7961
    %v7971 = vadd.f32 %v7945, %v7970
    %v7972 = vtanh.pop %v7971
    %v7973 = vsub.f32 1.0, %v7969
    %7975 = vrot.lane.b32.xlu0 %v7972, 64
    %v7976 = vpop.permute.xlu0 %7975
    %v7978 = vmul.f32 %v7973, %v7976
    %v7979 = vmul.f32 %v7969, %v7012
    %v7980 = vadd.f32 %v7978, %v7979
    %7982 = vrot.lane.b32.xlu0 %v7980, 64
    %v7983 = vpop.permute.xlu0 %7982
    %v7985 = vadd.f32 %v7700, %v7983
    %v7986 = vsel %vm871, %v7985, %v7297
    %v7987 = vpack.c.bf16 %v7986, %v7986
    %v7988 = vld [vmem:[#allocation16] sm:$0xff]
    %v7989 = vld [vmem:[#allocation16 + $0x8] sm:$0xf]
    %v7990 = vld [vmem:[#allocation16 + $0xc] sm:$0xff]
    %v7991 = vld [vmem:[#allocation16 + $0x14] sm:$0xf]
    %v7992 = vld [vmem:[#allocation16 + $0x18] sm:$0xff]
    %v7993 = vld [vmem:[#allocation16 + $0x20] sm:$0xf]
    %v7994 = vld [vmem:[#allocation16 + $0x24] sm:$0xff]
    %v7995 = vld [vmem:[#allocation16 + $0x2c] sm:$0xf]
    %v7996 = vld [vmem:[#allocation16 + $0x30] sm:$0xff]
    %v7997 = vld [vmem:[#allocation16 + $0x38] sm:$0xf]
    %v7998 = vld [vmem:[#allocation16 + $0x3c] sm:$0xff]
    %v7999 = vld [vmem:[#allocation16 + $0x44] sm:$0xf]
    %v8000 = vld [vmem:[#allocation16 + $0x48] sm:$0xff]
    %v8001 = vld [vmem:[#allocation16 + $0x50] sm:$0xf]
    %v8002 = vld [vmem:[#allocation16 + $0x54] sm:$0xff]
    %v8003 = vld [vmem:[#allocation16 + $0x5c] sm:$0xf]
    %v8004 = vld [vmem:[#allocation16 + $0x60] sm:$0xff]
    %v8005 = vld [vmem:[#allocation16 + $0x68] sm:$0xf]
    %v8006 = vld [vmem:[#allocation16 + $0x6c] sm:$0xff]
    %v8007 = vld [vmem:[#allocation16 + $0x74] sm:$0xf]
    %v8008 = vld [vmem:[#allocation16 + $0x78] sm:$0xff]
    %v8009 = vld [vmem:[#allocation16 + $0x80] sm:$0xf]
    %v8010 = vld [vmem:[#allocation16 + $0x84] sm:$0xff]
    %v8011 = vld [vmem:[#allocation16 + $0x8c] sm:$0xf]
    %v8012 = vld [vmem:[#allocation16 + $0x90] sm:$0xff]
    %v8013 = vld [vmem:[#allocation16 + $0x98] sm:$0xf]
    %v8014 = vld [vmem:[#allocation16 + $0x9c] sm:$0xff]
    %v8015 = vld [vmem:[#allocation16 + $0xa4] sm:$0xf]
    %v8016 = vld [vmem:[#allocation16 + $0xa8] sm:$0xff]
    %v8017 = vld [vmem:[#allocation16 + $0xb0] sm:$0xf]
    %v8018 = vld [vmem:[#allocation16 + $0xb4] sm:$0xff]
    %v8019 = vld [vmem:[#allocation16 + $0xbc] sm:$0xf]
    %v8052 = vunpack.c.l.b16 %v7988
    %v8053 = vunpack.c.h.b16 %v7988
    %v8054 = vunpack.c.l.b16 %v7989
    %v8055 = vunpack.c.l.b16 %v7990
    %v8056 = vunpack.c.h.b16 %v7990
    %v8057 = vunpack.c.l.b16 %v7991
    %v8058 = vunpack.c.l.b16 %v7992
    %v8059 = vunpack.c.h.b16 %v7992
    %v8060 = vunpack.c.l.b16 %v7993
    %v8061 = vunpack.c.l.b16 %v7994
    %v8062 = vunpack.c.h.b16 %v7994
    %v8063 = vunpack.c.l.b16 %v7995
    %v8064 = vunpack.c.l.b16 %v7996
    %v8065 = vunpack.c.h.b16 %v7996
    %v8066 = vunpack.c.l.b16 %v7997
    %v8067 = vunpack.c.l.b16 %v7998
    %v8068 = vunpack.c.h.b16 %v7998
    %v8069 = vunpack.c.l.b16 %v7999
    %v8070 = vunpack.c.l.b16 %v8000
    %v8071 = vunpack.c.h.b16 %v8000
    %v8072 = vunpack.c.l.b16 %v8001
    %v8073 = vunpack.c.l.b16 %v8002
    %v8074 = vunpack.c.h.b16 %v8002
    %v8075 = vunpack.c.l.b16 %v8003
    %v8076 = vunpack.c.l.b16 %v8004
    %v8077 = vunpack.c.h.b16 %v8004
    %v8078 = vunpack.c.l.b16 %v8005
    %v8079 = vunpack.c.l.b16 %v8006
    %v8080 = vunpack.c.h.b16 %v8006
    %v8081 = vunpack.c.l.b16 %v8007
    %v8082 = vunpack.c.l.b16 %v8008
    %v8083 = vunpack.c.h.b16 %v8008
    %v8084 = vunpack.c.l.b16 %v8009
    %v8085 = vunpack.c.l.b16 %v8010
    %v8086 = vunpack.c.h.b16 %v8010
    %v8087 = vunpack.c.l.b16 %v8011
    %v8088 = vunpack.c.l.b16 %v8012
    %v8089 = vunpack.c.h.b16 %v8012
    %v8090 = vunpack.c.l.b16 %v8013
    %v8091 = vunpack.c.l.b16 %v8014
    %v8092 = vunpack.c.h.b16 %v8014
    %v8093 = vunpack.c.l.b16 %v8015
    %v8094 = vunpack.c.l.b16 %v8016
    %v8095 = vunpack.c.h.b16 %v8016
    %v8096 = vunpack.c.l.b16 %v8017
    %v8097 = vunpack.c.l.b16 %v8018
    %v8098 = vunpack.c.h.b16 %v8018
    %v8099 = vunpack.c.l.b16 %v8019
    %v8100 = vpack.c.b16 %v8055, %v8052
    %v8101 = vpack.c.b16 %v8056, %v8053
    %v8102 = vpack.c.b16 %v8057, %v8054
    %v8103 = vpack.c.b16 %v8061, %v8058
    %v8104 = vpack.c.b16 %v8062, %v8059
    %v8105 = vpack.c.b16 %v8063, %v8060
    %v8106 = vpack.c.b16 %v8067, %v8064
    %v8107 = vpack.c.b16 %v8068, %v8065
    %v8108 = vpack.c.b16 %v8069, %v8066
    %v8109 = vpack.c.b16 %v8073, %v8070
    %v8110 = vpack.c.b16 %v8074, %v8071
    %v8111 = vpack.c.b16 %v8075, %v8072
    %v8112 = vpack.c.b16 %v8079, %v8076
    %v8113 = vpack.c.b16 %v8080, %v8077
    %v8114 = vpack.c.b16 %v8081, %v8078
    %v8115 = vpack.c.b16 %v8085, %v8082
    %v8116 = vpack.c.b16 %v8086, %v8083
    %v8117 = vpack.c.b16 %v8087, %v8084
    %v8118 = vpack.c.b16 %v8091, %v8088
    %v8119 = vpack.c.b16 %v8092, %v8089
    %v8120 = vpack.c.b16 %v8093, %v8090
    %v8121 = vpack.c.b16 %v8097, %v8094
    %v8122 = vpack.c.b16 %v8098, %v8095
    %v8123 = vpack.c.b16 %v8099, %v8096
    %8148 = vmatprep.subr.bf16.mxu0 %v8101
    %8149 = vmatpush1.bf16.msra.mxu0 %v8100
    %8150 = vmatprep.subr.bf16.mxu0 %v8104
    %8151 = vmatpush1.bf16.msra.mxu0 %v8103
    %8152 = vmatprep.subr.bf16.mxu0 %v8107
    %8153 = vmatpush1.bf16.msra.mxu0 %v8106
    %8154 = vmatprep.subr.bf16.mxu0 %v8110
    %8155 = vmatpush1.bf16.msra.mxu0 %v8109
    %8156 = vmatprep.subr.bf16.mxu0 %v8113
    %8157 = vmatpush1.bf16.msra.mxu0 %v8112
    %8158 = vmatprep.subr.bf16.mxu0 %v8116
    %8159 = vmatpush1.bf16.msra.mxu0 %v8115
    %8160 = vmatprep.subr.bf16.mxu0 %v8119
    %8161 = vmatpush1.bf16.msra.mxu0 %v8118
    %8162 = vmatprep.subr.bf16.mxu0 %v8122
    %8163 = vmatpush1.bf16.msra.mxu0 %v8121
    %8164 = vmatprep.subr.bf16.mxu0 0
    %8165 = vmatpush1.bf16.msra.mxu0 0
    %8166 = vmatprep.subr.bf16.mxu0 0
    %8167 = vmatpush1.bf16.msra.mxu0 0
    %8168 = vmatprep.subr.bf16.mxu0 0
    %8169 = vmatpush1.bf16.msra.mxu0 0
    %8170 = vmatprep.subr.bf16.mxu0 0
    %8171 = vmatpush1.bf16.msra.mxu0 0
    %8172 = vmatprep.subr.bf16.mxu0 0
    %8173 = vmatpush1.bf16.msra.mxu0 0
    %8174 = vmatprep.subr.bf16.mxu0 0
    %8175 = vmatpush1.bf16.msra.mxu0 0
    %8176 = vmatprep.subr.bf16.mxu0 0
    %8177 = vmatpush1.bf16.msra.mxu0 0
    %8178 = vmatprep.subr.bf16.mxu0 0
    %8179 = vmatpush1.bf16.msra.mxu0 0
    %8180 = vmatprep.mubr.bf16.mxu0 0
    %8181 = vmatmul.mubr.bf16.gmra.mrb[0].mxu0 %v7987
    %v8182 = vpop.f32.mrb[0].mxu0
    %v8183 = vadd.f32 0.0, %v8182
    %v8184 = vpop.f32.mrb[0].mxu0
    %v8185 = vadd.f32 0.0, %v8184
    %v8186 = vpop.f32.mrb[0].mxu0
    %v8187 = vpop.f32.mrb[0].mxu0
    %8188 = vdwg.mxu0
    %8189 = vmatprep.subr.bf16.mxu0 0
    %8190 = vmatpush1.bf16.msra.mxu0 %v8102
    %8191 = vmatprep.subr.bf16.mxu0 0
    %8192 = vmatpush1.bf16.msra.mxu0 %v8105
    %8193 = vmatprep.subr.bf16.mxu0 0
    %8194 = vmatpush1.bf16.msra.mxu0 %v8108
    %8195 = vmatprep.subr.bf16.mxu0 0
    %8196 = vmatpush1.bf16.msra.mxu0 %v8111
    %8197 = vmatprep.subr.bf16.mxu0 0
    %8198 = vmatpush1.bf16.msra.mxu0 %v8114
    %8199 = vmatprep.subr.bf16.mxu0 0
    %8200 = vmatpush1.bf16.msra.mxu0 %v8117
    %8201 = vmatprep.subr.bf16.mxu0 0
    %8202 = vmatpush1.bf16.msra.mxu0 %v8120
    %8203 = vmatprep.subr.bf16.mxu0 0
    %8204 = vmatpush1.bf16.msra.mxu0 %v8123
    %8205 = vmatprep.subr.bf16.mxu0 0
    %8206 = vmatpush1.bf16.msra.mxu0 0
    %8207 = vmatprep.subr.bf16.mxu0 0
    %8208 = vmatpush1.bf16.msra.mxu0 0
    %8209 = vmatprep.subr.bf16.mxu0 0
    %8210 = vmatpush1.bf16.msra.mxu0 0
    %8211 = vmatprep.subr.bf16.mxu0 0
    %8212 = vmatpush1.bf16.msra.mxu0 0
    %8213 = vmatprep.subr.bf16.mxu0 0
    %8214 = vmatpush1.bf16.msra.mxu0 0
    %8215 = vmatprep.subr.bf16.mxu0 0
    %8216 = vmatpush1.bf16.msra.mxu0 0
    %8217 = vmatprep.subr.bf16.mxu0 0
    %8218 = vmatpush1.bf16.msra.mxu0 0
    %8219 = vmatprep.subr.bf16.mxu0 0
    %8220 = vmatpush1.bf16.msra.mxu0 0
    %8221 = vmatprep.mubr.bf16.mxu0 0
    %8222 = vmatmul.mubr.bf16.gmra.mrb[0].mxu0 %v7987
    %v8223 = vpop.f32.mrb[0].mxu0
    %v8224 = vadd.f32 0.0, %v8223
    %v8225 = vpop.f32.mrb[0].mxu0
    %v8226 = vpop.f32.mrb[0].mxu0
    %v8227 = vpop.f32.mrb[0].mxu0
    %8228 = vdwg.mxu0
    %v8229 = vadd.f32 %v8183, %v1431
    %v8230 = vadd.f32 %v8185, %v1435
    %v8231 = vadd.f32 %v8185, %v1450
    %v8232 = vadd.f32 %v8224, %v1453
    %8234 = vrot.lane.b32.xlu0 %v8231, 64
    %v8235 = vpop.permute.xlu0 %8234
    %v8237 = vadd.f32 %v8229, %v8235
    %v8238 = vxor.u32 %v8237, 2147483648
    %v8239 = vmul.f32 %v8238, 1.442695
    %v8240 = vpow.pop %v8239
    %v8241 = vadd.f32 %v8240, 1.0
    %v8242 = vrcp.pop %v8241
    %v8243 = vmul.f32 1.0, %v8242
    %8245 = vrot.lane.b32.xlu0 %v8232, 64
    %v8246 = vpop.permute.xlu0 %8245
    %v8248 = vadd.f32 %v8229, %v8246
    %v8249 = vxor.u32 %v8248, 2147483648
    %v8250 = vmul.f32 %v8249, 1.442695
    %v8251 = vpow.pop %v8250
    %v8252 = vadd.f32 %v8251, 1.0
    %v8253 = vrcp.pop %v8252
    %v8254 = vmul.f32 1.0, %v8253
    %v8255 = vmul.f32 %v8243, %v8246
    %v8256 = vadd.f32 %v8230, %v8255
    %v8257 = vtanh.pop %v8256
    %v8258 = vsub.f32 1.0, %v8254
    %8260 = vrot.lane.b32.xlu0 %v8257, 64
    %v8261 = vpop.permute.xlu0 %8260
    %v8263 = vmul.f32 %v8258, %v8261
    %v8264 = vmul.f32 %v8254, %v7297
    %v8265 = vadd.f32 %v8263, %v8264
    %8267 = vrot.lane.b32.xlu0 %v8265, 64
    %v8268 = vpop.permute.xlu0 %8267
    %v8270 = vadd.f32 %v7985, %v8268
    %8271 = vst.msk [vmem:[#allocation4 + $0xe] sm:$0x3] %vm1496, %v8270
    %v8272 = vcombine.high %v7662, %v7662
    %v8274 = vunpack.c.l.s4 1983009808
    %v8275 = vunpack.c.0.s8 %v8274
    %v8276 = vlaneseq
    %v8277 = vshrl.u32 %v8276, 7
    %v8278 = vsub.s32 %v8275, %v8277
    %v8279 = vrot.slane %v7662, %v8278
    %v8281 = vunpack.c.l.s4 1983009808
    %v8282 = vunpack.c.0.s8 %v8281
    %v8283 = vlaneseq
    %v8284 = vshrl.u32 %v8283, 7
    %v8285 = vsub.s32 %v8282, %v8284
    %v8286 = vrot.slane %v8272, %v8285
    %v8287 = vcombine.high %v8279, %v8279
    %v8288 = vcombine.high %v8286, %v8286
    %v8289 = vcombine.high %v7663, %v7663
    %v8291 = vunpack.c.l.s4 1983009808
    %v8292 = vunpack.c.0.s8 %v8291
    %v8293 = vlaneseq
    %v8294 = vshrl.u32 %v8293, 7
    %v8295 = vsub.s32 %v8292, %v8294
    %v8296 = vrot.slane %v7663, %v8295
    %v8298 = vunpack.c.l.s4 1983009808
    %v8299 = vunpack.c.0.s8 %v8298
    %v8300 = vlaneseq
    %v8301 = vshrl.u32 %v8300, 7
    %v8302 = vsub.s32 %v8299, %v8301
    %v8303 = vrot.slane %v8289, %v8302
    %v8304 = vcombine.high %v8296, %v8296
    %v8305 = vcombine.high %v8303, %v8303
    %v8306 = vcombine.low %v8279, %v8287
    %v8307 = vcombine.low %v8286, %v8288
    %v8309 = vunpack.c.l.s4 1983009808
    %v8310 = vunpack.c.0.s8 %v8309
    %v8311 = vlaneseq
    %v8312 = vshrl.u32 %v8311, 7
    %v8313 = vsub.s32 %v8310, %v8312
    %v8314 = vrot.slane %v8306, %v8313
    %v8316 = vunpack.c.l.s4 1983009808
    %v8317 = vunpack.c.0.s8 %v8316
    %v8318 = vlaneseq
    %v8319 = vshrl.u32 %v8318, 7
    %v8320 = vsub.s32 %v8317, %v8319
    %v8321 = vrot.slane %v8307, %v8320
    %v8322 = vcombine.low %v8314, %v8321
    %v8323 = vcombine.low %v8296, %v8304
    %v8324 = vcombine.low %v8303, %v8305
    %v8326 = vunpack.c.l.s4 1983009808
    %v8327 = vunpack.c.0.s8 %v8326
    %v8328 = vlaneseq
    %v8329 = vshrl.u32 %v8328, 7
    %v8330 = vsub.s32 %v8327, %v8329
    %v8331 = vrot.slane %v8323, %v8330
    %v8333 = vunpack.c.l.s4 1983009808
    %v8334 = vunpack.c.0.s8 %v8333
    %v8335 = vlaneseq
    %v8336 = vshrl.u32 %v8335, 7
    %v8337 = vsub.s32 %v8334, %v8336
    %v8338 = vrot.slane %v8324, %v8337
    %v8339 = vcombine.low %v8331, %v8338
    %8340 = vset.pattern.permute.xlu0 0
    %8341 = vperm.xlu0 %8340, %v8322
    %v8342 = vpop.permute.xlu0 %8341
    %8343 = vset.pattern.permute.xlu0 0
    %8344 = vperm.xlu0 %8343, %v8339
    %v8345 = vpop.permute.xlu0 %8344
    %v8346 = vadd.s32 %v514, 4294967240
    %v8347 = vlaneseq
    %v8348 = vshrl.u32 %v8347, 7
    %v8349 = vsub.s32 %v8346, %v8348
    %v8350 = vrot.slane %v8342, %v8349
    %v8351 = vlaneseq
    %v8352 = vshrl.u32 %v8351, 7
    %v8353 = vsub.s32 %v8346, %v8352
    %v8354 = vrot.slane %v8345, %v8353
    %v8355 = vsel %vm775, %v8354, %v8350
    %v8357 = vunpack.c.l.s4 1983009808
    %v8358 = vunpack.c.0.s8 %v8357
    %v8359 = vlaneseq
    %v8360 = vshrl.u32 %v8359, 7
    %v8361 = vsub.s32 %v8358, %v8360
    %v8362 = vrot.slane %v8355, %v8361
    %vm8364 = vcmask 517568
    %8365 = vst.msk [vmem:[#allocation18] sm:$0x3] %vm8364, %v8362
    %v8366 = vld [vmem:[#allocation4] sm:$0xff]
    %v8367 = vld [vmem:[#allocation4 + $0x8] sm:$0xff]
    %v8368 = vpack.c.bf16 %v8367, %v8366
    %v8369 = vld [vmem:[%s22] sm:$0xf]
    %v8370 = vld [vmem:[%s22 + $0x4] sm:$0xf]
    %v8371 = vld [vmem:[%s22 + $0x8] sm:$0xf]
    %v8372 = vld [vmem:[%s22 + $0xc] sm:$0xf]
    %v8373 = vld [vmem:[%s22 + $0x10] sm:$0xf]
    %v8374 = vld [vmem:[%s22 + $0x14] sm:$0xf]
    %v8375 = vld [vmem:[%s22 + $0x18] sm:$0xf]
    %v8376 = vld [vmem:[%s22 + $0x1c] sm:$0xf]
    %v8377 = vld [vmem:[%s23] sm:$0x1]
    %v8379 = vlaneseq
    %v8380 = vshrl.u32 %v8379, 7
    %v8381 = vsub.s32 0, %v8380
    %v8382 = vrot.slane %v8377, %v8381
    %v8392 = vunpack.c.l.b16 %v8369
    %v8393 = vunpack.c.l.b16 %v8370
    %v8394 = vunpack.c.l.b16 %v8371
    %v8395 = vunpack.c.l.b16 %v8372
    %v8396 = vunpack.c.l.b16 %v8373
    %v8397 = vunpack.c.l.b16 %v8374
    %v8398 = vunpack.c.l.b16 %v8375
    %v8399 = vunpack.c.l.b16 %v8376
    %v8400 = vpack.c.b16 %v8393, %v8392
    %v8401 = vpack.c.b16 %v8395, %v8394
    %v8402 = vpack.c.b16 %v8397, %v8396
    %v8403 = vpack.c.b16 %v8399, %v8398
    %v8409 = vsel %vm871, %v8368, 0
    %8411 = vmatprep.subr.bf16.mxu0 0
    %8412 = vmatpush1.bf16.msra.mxu0 %v8400
    %8413 = vmatprep.subr.bf16.mxu0 0
    %8414 = vmatpush1.bf16.msra.mxu0 %v8401
    %8415 = vmatprep.subr.bf16.mxu0 0
    %8416 = vmatpush1.bf16.msra.mxu0 %v8402
    %8417 = vmatprep.subr.bf16.mxu0 0
    %8418 = vmatpush1.bf16.msra.mxu0 %v8403
    %8419 = vmatprep.subr.bf16.mxu0 0
    %8420 = vmatpush1.bf16.msra.mxu0 0
    %8421 = vmatprep.subr.bf16.mxu0 0
    %8422 = vmatpush1.bf16.msra.mxu0 0
    %8423 = vmatprep.subr.bf16.mxu0 0
    %8424 = vmatpush1.bf16.msra.mxu0 0
    %8425 = vmatprep.subr.bf16.mxu0 0
    %8426 = vmatpush1.bf16.msra.mxu0 0
    %8427 = vmatprep.subr.bf16.mxu0 0
    %8428 = vmatpush1.bf16.msra.mxu0 0
    %8429 = vmatprep.subr.bf16.mxu0 0
    %8430 = vmatpush1.bf16.msra.mxu0 0
    %8431 = vmatprep.subr.bf16.mxu0 0
    %8432 = vmatpush1.bf16.msra.mxu0 0
    %8433 = vmatprep.subr.bf16.mxu0 0
    %8434 = vmatpush1.bf16.msra.mxu0 0
    %8435 = vmatprep.subr.bf16.mxu0 0
    %8436 = vmatpush1.bf16.msra.mxu0 0
    %8437 = vmatprep.subr.bf16.mxu0 0
    %8438 = vmatpush1.bf16.msra.mxu0 0
    %8439 = vmatprep.subr.bf16.mxu0 0
    %8440 = vmatpush1.bf16.msra.mxu0 0
    %8441 = vmatprep.subr.bf16.mxu0 0
    %8442 = vmatpush1.bf16.msra.mxu0 0
    %8443 = vmatprep.mubr.bf16.mxu0 0
    %8444 = vmatmul.mubr.bf16.gmra.mrb[0].mxu0 %v8409
    %v8445 = vpop.f32.mrb[0].mxu0
    %v8446 = vadd.f32 %v8382, %v8445
    %v8447 = vpop.f32.mrb[0].mxu0
    %v8448 = vpop.f32.mrb[0].mxu0
    %v8449 = vadd.f32 %v8382, %v8448
    %v8450 = vpop.f32.mrb[0].mxu0
    %8451 = vdwg.mxu0
    %8452 = vst.msk [vmem:[#allocation17] sm:$0xff] %vm195, %v8446
    %8453 = vst.msk [vmem:[#allocation17 + $0x8] sm:$0xff] %vm195, %v8449
    %v8455 = vunpack.c.l.s4 1983009808
    %v8456 = vunpack.c.0.s8 %v8455
    %v8457 = vlaneseq
    %v8458 = vshrl.u32 %v8457, 7
    %v8459 = vsub.s32 %v8456, %v8458
    %v8460 = vrot.slane %v7480, %v8459
    %8461 = vrot.lane.b32.xlu0 %v8460, 32
    %v8462 = vpop.permute.xlu0 %8461
    %vm8464 = vcmask 779776
    %8465 = vst.msk [vmem:[#allocation18] sm:$0x3] %vm8464, %v8462
    %v8467 = vunpack.c.l.s4 1983009808
    %v8468 = vunpack.c.0.s8 %v8467
    %v8469 = vlaneseq
    %v8470 = vshrl.u32 %v8469, 7
    %v8471 = vsub.s32 %v8468, %v8470
    %v8472 = vrot.slane %v7980, %v8471
    %8473 = vrot.lane.b32.xlu0 %v8472, 32
    %v8474 = vpop.permute.xlu0 %8473
    %v8475 = vrot.slane %v8474, 6
    %v8476 = vsel %vm195, %v8475, %v8474
    %vm8478 = vcmask 1042176
    %vm8479 = vcmask 257026
    %vm8480 = vmor %vm8479, %vm8478
    %8481 = vst.msk [vmem:[#allocation18] sm:$0xf] %vm8480, %v8476
    %v8483 = vunpack.c.l.s4 1983009808
    %v8484 = vunpack.c.0.s8 %v8483
    %v8485 = vlaneseq
    %v8486 = vshrl.u32 %v8485, 7
    %v8487 = vsub.s32 %v8484, %v8486
    %v8488 = vrot.slane %v8265, %v8487
    %8489 = vrot.lane.b32.xlu0 %v8488, 96
    %v8490 = vpop.permute.xlu0 %8489
    %vm8492 = vcmask 779520
    %8493 = vst.msk [vmem:[#allocation18 + $0x2] sm:$0x3] %vm8492, %v8490
    // Predicated region
    $region126: #{tpu_custom_call.1} parent=1 // pred_check
      _
    $region127: #{tpu_custom_call.1} parent=1 // pred_check_branch
      %8495 = sbr.rel (0) target = $region129
    $region128: #{tpu_custom_call.1} parent=1 // pred_region
      %s8497 = ssub.s32 256, 256
      %8498 = vsyncadd [#allocation7], %s8497
      %s8499 = sshll.u32 [#allocation17], 4
      %s8500 = int_to_ptr.vmem [resolvable:$true] %s8499
      %8505 = dma.vmem_to_hbm [thread:$0]  %s8500, 256, %s24, [#allocation7], 128, 128, 8
    $region129: #{tpu_custom_call.1} parent=1 // pred_fallthru
      _
    // Predicated region
    $region130: #{tpu_custom_call.1} parent=1 // pred_check
      _
    $region131: #{tpu_custom_call.1} parent=1 // pred_check_branch
      %8507 = sbr.rel (0) target = $region133
    $region132: #{tpu_custom_call.1} parent=1 // pred_region
      %s8509 = ssub.s32 64, 64
      %8510 = vsyncadd [#allocation19], %s8509
      %s8512 = sshll.u32 [#allocation18], 4
      %s8513 = int_to_ptr.vmem [resolvable:$true] %s8512
      %8515 = dma.vmem_to_hbm [thread:$0]  %s8513, 64, %s25, [#allocation19]
    $region133: #{tpu_custom_call.1} parent=1 // pred_fallthru
      _
    // Predicated region
    $region134: #{tpu_custom_call.1} parent=1 // pred_check
      _
    $region135: #{tpu_custom_call.1} parent=1 // pred_check_branch
      %8517 = sbr.rel (0) target = $region137
    $region136: #{tpu_custom_call.1} parent=1 // pred_region
      %8518 = dma.done [#allocation7], 256
    $region137: #{tpu_custom_call.1} parent=1 // pred_fallthru
      _
    // Predicated region
    $region138: #{tpu_custom_call.1} parent=1 // pred_check
      _
    $region139: #{tpu_custom_call.1} parent=1 // pred_check_branch
      %8520 = sbr.rel (0) target = $region141
    $region140: #{tpu_custom_call.1} parent=1 // pred_region
      %8521 = dma.done [#allocation19], 64
    $region141: #{tpu_custom_call.1} parent=1 // pred_fallthru
      _
    %8522 = vsyncpa [#allocation6], 1
    %8523 = vsyncpa [#allocation9], 1
    %8524 = vsyncpa [#allocation12], 1
    %8525 = vsyncpa [#allocation15], 1
    %8526 = vsyncpa [#allocation7], 1
    %8527 = vsyncpa [#allocation19], 1

</llo_original>
